<compile_context>
chip_gen: v5e
topology: v5e:2x2
jax: 0.10.0
libtpu: 0.0.40
codegen_flags: <defaults>
</compile_context>

<pallas_src>
import numpy as np
import jax
import jax.numpy as jnp
from jax.experimental import pallas as pl
from jax.experimental.pallas import tpu as pltpu

# ----------------------------- hyper-parameters ------------------------------
B = 2              # batch
T_TEXT = 8         # token sequence length
D = 32             # encoding / embedding channels
HEADS = 4
HEAD_DIM = D // HEADS
N_BLOCKS = 2       # text-encoder blocks
N_FLOW = 2         # (simplified) acoustic flow steps
VOCAB = 10
N_SPK = 4
MAX_LEN = 16       # self.max_length (decoder feature frames)
UP_RATES = (2, 2)
UPP = int(np.prod(UP_RATES))       # np.prod(hp.Decoder.Upsample.Rate)
T_WAV = MAX_LEN * UPP
DEC_CH = (32, 16, 8)               # prenet out, after up1, after up2
SAMPLE_RATE = 200.0                # only used for the NSF sine phase

MM_DTYPE = jnp.bfloat16            # MXU operand dtype (f32 accumulation)


# ========================= in-kernel helper functions =========================
def _mxdot(a, b):
    """MXU matmul, bf16 operands (native path on v6e/v7x), f32 accumulation."""
    return jnp.dot(a.astype(MM_DTYPE), b.astype(MM_DTYPE),
                   preferred_element_type=jnp.float32)


def _f32dot(a, b):
    """f32 matmul (used for activation x activation products)."""
    return jnp.dot(a, b, preferred_element_type=jnp.float32)


def _relu(x):
    return jnp.maximum(x, 0.0)


def _leaky(x):
    return jnp.where(x > 0, x, 0.1 * x)


def _softplus(x):
    return jnp.log1p(jnp.exp(-jnp.abs(x))) + jnp.maximum(x, 0.0)


def _log_softplus(x):
    # stabilized: log(softplus(x)) ~= x for very negative x (no -inf underflow)
    sp = _softplus(x)
    return jnp.where(x < -20.0, x, jnp.log(sp + 1e-30))


def _layer_norm(x, g, b, eps=1e-5):
    mu = jnp.mean(x, axis=-1, keepdims=True)
    var = jnp.mean(jnp.square(x - mu), axis=-1, keepdims=True)
    return (x - mu) * jax.lax.rsqrt(var + eps) * g + b


def _conv_same(x, w2d):
    """'same' 1-D conv, stride 1, odd K, done fully in VMEM.

    x:   [T, Cin]  activation value
    w2d: [K*Cin, Cout]  tap-major flattened conv weight
    Builds the im2col by shifted slices + zero edges and does one MXU matmul.
    """
    t, cin = x.shape
    k_taps = w2d.shape[0] // cin
    pad = (k_taps - 1) // 2
    if k_taps == 1:
        return _mxdot(x, w2d)
    cols = []
    for k in range(k_taps):
        d = k - pad
        if d == 0:
            cols.append(x)
        elif d > 0:
            cols.append(jnp.concatenate(
                [x[d:, :], jnp.zeros((d, cin), x.dtype)], axis=0))
        else:
            cols.append(jnp.concatenate(
                [jnp.zeros((-d, cin), x.dtype), x[:d, :]], axis=0))
    return _mxdot(jnp.concatenate(cols, axis=-1), w2d)


def _repeat_time(x, r):
    """Nearest-neighbour time upsampling: [T, C] -> [T*r, C]."""
    t, c = x.shape
    return jnp.broadcast_to(x[:, None, :], (t, r, c)).reshape(t * r, c)


# =============================== Pallas kernels ===============================
def _encoder_kernel(*refs):
    """Per-batch: transformer blocks + projection + spk add + duration head."""
    enc_ref, spk_ref = refs[0], refs[1]
    idx = 2
    blk_refs = []
    for _ in range(N_BLOCKS):
        blk_refs.append(refs[idx:idx + 12])
        idx += 12
    projw, projb, dw1, db1, dw2, db2 = refs[idx:idx + 6]
    idx += 6
    packed_ref, dur_ref = refs[idx], refs[idx + 1]

    x = enc_ref[...]                                       # [T, D]
    scale = 1.0 / np.sqrt(HEAD_DIM)
    for br in blk_refs:
        (wqkv, bqkv, wo, bo, g1, b1,
         fw1, fb1, fw2, fb2, g2, b2) = [r[...] for r in br]
        qkv = _mxdot(x, wqkv) + bqkv                       # [T, 3D]
        heads = []
        for h in range(HEADS):
            qh = qkv[:, h * HEAD_DIM:(h + 1) * HEAD_DIM]
            kh = qkv[:, D + h * HEAD_DIM:D + (h + 1) * HEAD_DIM]
            vh = qkv[:, 2 * D + h * HEAD_DIM:2 * D + (h + 1) * HEAD_DIM]
            s = _f32dot(qh, kh.T) * scale                  # [T, T]
            s = s - jnp.max(s, axis=-1, keepdims=True)
            p = jnp.exp(s)
            p = p / jnp.sum(p, axis=-1, keepdims=True)
            heads.append(_f32dot(p, vh))                   # [T, hd]
        a = jnp.concatenate(heads, axis=-1)                # [T, D]
        x = _layer_norm(x + _mxdot(a, wo) + bo, g1, b1)
        hmid = _relu(_mxdot(x, fw1) + fb1)
        x = _layer_norm(x + _mxdot(hmid, fw2) + fb2, g2, b2)

    proj = _mxdot(x, projw[...]) + projb[...]              # [T, 2D]
    means = proj[:, :D]
    log_stds = _log_softplus(proj[:, D:])                  # softplus().log()
    enc_spk = x + spk_ref[...]                             # [T,D] + [1,D]

    # duration predictor: conv(k=3) + relu, conv(k=1) + softplus
    hdur = _relu(_conv_same(enc_spk, dw1[...]) + db1[...])
    dur = _softplus(_mxdot(hdur, dw2[...]) + db2[...])     # [T, 1]

    packed_ref[...] = jnp.concatenate([enc_spk, means, log_stds], axis=-1)
    dur_ref[...] = dur


def _variance_kernel(*refs):
    """Per-batch: alignment bmm + f0 predictor + sampling + flow + f0 scale."""
    (align_ref, packed_ref, vnoise_ref, spk_ref,
     f0w1, f0b1, f0w2, f0b2) = refs[:8]
    idx = 8
    flow_refs = refs[idx:idx + 2 * N_FLOW]
    idx += 2 * N_FLOW
    f0m_ref, f0s_ref = refs[idx], refs[idx + 1]
    idx += 2
    ac_ref, f0_ref = refs[idx], refs[idx + 1]

    ali = align_ref[...]                                   # [L, T]
    packed = packed_ref[...]                               # [T, 3D]
    exp_all = _f32dot(ali, packed)                         # [L, 3D] (one bmm)
    enc_exp = exp_all[:, :D]
    means_exp = exp_all[:, D:2 * D]
    lstds_exp = exp_all[:, 2 * D:]

    # f0 predictor
    h = _relu(_conv_same(enc_exp, f0w1[...]) + f0b1[...])
    f0 = _mxdot(h, f0w2[...]) + f0b2[...]                  # [L, 1]

    # VAE re-parameterised sample + (simplified) flow reverse
    # TODO(synk): real acoustic_flow reverse is a stack of affine-coupling
    # flows; simplified to invertible 1x1 convs + speaker conditioning.
    x = means_exp + jnp.exp(lstds_exp) * vnoise_ref[...]
    spk = spk_ref[...]                                     # [1, D]
    for fi in range(N_FLOW):
        w = flow_refs[2 * fi][...]
        c = flow_refs[2 * fi + 1][...]
        x = _mxdot(x, w) + _mxdot(spk, c)
    ac_ref[...] = x

    # f0 de-normalisation (matches torch.where(|f0| < 1e-3, f0*std+mean, 0))
    scaled = f0 * f0s_ref[...] + f0m_ref[...]
    f0_ref[...] = jnp.where(jnp.abs(f0) < 1e-3, scaled, jnp.zeros_like(f0))


def _decoder_kernel(*refs):
    """Per-batch: prenet + upsample/noise/residual stages + postnet + tanh."""
    nstage = len(UP_RATES)
    ac_ref = refs[0]
    nc_refs = refs[1:1 + nstage]
    idx = 1 + nstage
    prew, preb = refs[idx], refs[idx + 1]
    idx += 2
    stage_refs = []
    for _ in range(nstage):
        stage_refs.append(refs[idx:idx + 8])
        idx += 8
    postw, postb = refs[idx], refs[idx + 1]
    idx += 2
    wav_ref = refs[idx]

    dec = _conv_same(ac_ref[...], prew[...]) + preb[...]   # [L, 32]
    for si, rate in enumerate(UP_RATES):
        (upw, upb, nw, nb,
         raw_, rab, rbw, rbb) = [r[...] for r in stage_refs[si]]
        dec = _repeat_time(dec, rate)
        dec = _leaky(_conv_same(dec, upw) + upb)
        dec = dec + _mxdot(nc_refs[si][...], nw) + nb      # noise branch
        lr = _leaky(dec)
        y1 = _conv_same(lr, raw_) + rab                    # residual k=3
        y2 = _conv_same(lr, rbw) + rbb                     # residual k=5
        dec = dec + 0.5 * (y1 + y2)                        # mean of branches
    post = _conv_same(_leaky(dec), postw[...]) + postb[...]  # [T_wav, 1]
    wav_ref[...] = jnp.tanh(post)


# ============================ BlockSpec helpers ================================
def _spec_batch(a):
    """Per-batch block along the leading dim; batch dim squeezed in kernel."""
    nd = a.ndim
    return pl.BlockSpec((None,) + a.shape[1:],
                        lambda i, _n=nd: (i,) + (0,) * (_n - 1))


def _spec_full(a):
    """Whole array broadcast to every grid step (weights)."""
    nd = a.ndim
    return pl.BlockSpec(a.shape, lambda i, _n=nd: (0,) * _n)


_PARALLEL = pltpu.CompilerParams(dimension_semantics=("parallel",))


# ============================ JAX glue helpers =================================
def _im2col_strided(x, k, stride, pad):
    """[B, T, Cin] -> [B, t_out, K*Cin]; only used for the two tiny (Cin=1)
    strided noise-block convs whose source (the NSF sine) is produced in JAX."""
    bb, t, cin = x.shape
    xp = jnp.pad(x, ((0, 0), (pad, pad), (0, 0)))
    t_out = (t + 2 * pad - k) // stride + 1
    base = jnp.arange(t_out) * stride
    cols = jnp.stack([xp[:, base + kk, :] for kk in range(k)], axis=2)
    return cols.reshape(bb, t_out, k * cin)


# ================================ parameters ==================================
def make_params(key):
    ks = iter(jax.random.split(key, 256))

    def w(shape, scale=None):
        scale = scale if scale is not None else 0.3 / np.sqrt(np.prod(shape[:-1]))
        return jax.random.normal(next(ks), shape, jnp.float32) * scale

    p = {}
    p["token_emb"] = w((VOCAB, D), 1.0)
    p["spk_emb"] = w((N_SPK, D), 0.3)
    blocks = []
    for _ in range(N_BLOCKS):
        blocks.append(dict(
            wqkv=w((D, 3 * D)), bqkv=jnp.zeros((3 * D,)),
            wo=w((D, D)), bo=jnp.zeros((D,)),
            ln1_g=jnp.ones((D,)), ln1_b=jnp.zeros((D,)),
            ffn_w1=w((D, 4 * D)), ffn_b1=jnp.zeros((4 * D,)),
            ffn_w2=w((4 * D, D)), ffn_b2=jnp.zeros((D,)),
            ln2_g=jnp.ones((D,)), ln2_b=jnp.zeros((D,)),
        ))
    p["blocks"] = blocks
    p["proj_w"] = w((1, D, 2 * D)); p["proj_b"] = jnp.zeros((2 * D,))
    p["dur_w1"] = w((3, D, D));     p["dur_b1"] = jnp.zeros((D,))
    p["dur_w2"] = w((1, D, 1));     p["dur_b2"] = jnp.zeros((1,))
    p["f0_w1"] = w((3, D, D));      p["f0_b1"] = jnp.zeros((D,))
    p["f0_w2"] = w((1, D, 1));      p["f0_b2"] = jnp.zeros((1,))
    p["flow"] = [dict(w=w((D, D), 0.2) + jnp.eye(D, dtype=jnp.float32),
                      cond=w((D, D))) for _ in range(N_FLOW)]
    p["pre_w"] = w((7, D, DEC_CH[0])); p["pre_b"] = jnp.zeros((DEC_CH[0],))
    ups, nblk, res = [], [], []
    for i in range(len(UP_RATES)):
        cin, cout = DEC_CH[i], DEC_CH[i + 1]
        ups.append(dict(w=w((3, cin, cout)), b=jnp.zeros((cout,))))
        stride = UPP // int(np.prod(UP_RATES[:i + 1]))
        k = 2 * stride if stride > 1 else 1
        nblk.append(dict(w=w((k, 1, cout)), b=jnp.zeros((cout,))))
        res.append([dict(w=w((ksz, cout, cout)), b=jnp.zeros((cout,)))
                    for ksz in (3, 5)])
    p["ups"], p["noise"], p["res"] = ups, nblk, res
    p["post_w"] = w((7, DEC_CH[-1], 1)); p["post_b"] = jnp.zeros((1,))
    return p


# ================================== forward ===================================
def forward(params, tokens, speakers, f0_means, f0_stds, key):
    p = params
    wb = lambda a: a.astype(MM_DTYPE)                         # 2-D matmul weight
    row = lambda a: a.reshape(1, -1).astype(jnp.float32)      # bias / LN params
    cw = lambda a: a.reshape(a.shape[0] * a.shape[1],         # conv w [K,Ci,Co]
                             a.shape[2]).astype(MM_DTYPE)     #   -> [K*Ci, Co]

    # --- 1) fused text encoder + projection + duration predictor --------------
    enc0 = jnp.take(p["token_emb"], tokens, axis=0)           # [B, T, D]
    spk = jnp.take(p["spk_emb"], speakers, axis=0)            # [B, D]
    spk3 = spk[:, None, :]                                    # [B, 1, D]

    enc_in = [enc0, spk3]
    enc_specs = [_spec_batch(enc0), _spec_batch(spk3)]
    for blk in p["blocks"]:
        ws = [wb(blk["wqkv"]), row(blk["bqkv"]), wb(blk["wo"]), row(blk["bo"]),
              row(blk["ln1_g"]), row(blk["ln1_b"]),
              wb(blk["ffn_w1"]), row(blk["ffn_b1"]),
              wb(blk["ffn_w2"]), row(blk["ffn_b2"]),
              row(blk["ln2_g"]), row(blk["ln2_b"])]
        enc_in += ws
        enc_specs += [_spec_full(a) for a in ws]
    tail = [cw(p["proj_w"]), row(p["proj_b"]),
            cw(p["dur_w1"]), row(p["dur_b1"]),
            cw(p["dur_w2"]), row(p["dur_b2"])]
    enc_in += tail
    enc_specs += [_spec_full(a) for a in tail]

    packed, durations = pl.pallas_call(
        _encoder_kernel,
        out_shape=(jax.ShapeDtypeStruct((B, T_TEXT, 3 * D), jnp.float32),
                   jax.ShapeDtypeStruct((B, T_TEXT, 1), jnp.float32)),
        grid=(B,),
        in_specs=enc_specs,
        out_specs=(pl.BlockSpec((None, T_TEXT, 3 * D), lambda i: (i, 0, 0)),
                   pl.BlockSpec((None, T_TEXT, 1), lambda i: (i, 0, 0))),
        compiler_params=_PARALLEL,
    )(*enc_in)
    durations = durations[..., 0]                             # [B, T]

    # --- 2) length regulation (tiny int/bool logic, plain JAX) ----------------
    repeats = (durations + 0.5).astype(jnp.int32)
    feature_lengths = repeats.sum(axis=1)                     # noqa: F841 (mirrors reference)
    reps_cumsum = jnp.cumsum(jnp.pad(repeats, ((0, 0), (1, 0))), axis=1)[:, None, :]
    range_ = jnp.arange(MAX_LEN, dtype=jnp.int32)[None, :, None]
    alignments = ((reps_cumsum[:, :, :-1] <= range_) &
                  (reps_cumsum[:, :, 1:] > range_)).astype(jnp.float32)   # [B, L, T]

    # --- 3) fused alignment bmm + f0 predictor + sampling + flow ---------------
    key, k1 = jax.random.split(key)
    vae_noise = jax.random.normal(k1, (B, MAX_LEN, D), jnp.float32)
    f0m = f0_means.reshape(B, 1, 1)
    f0s_in = f0_stds.reshape(B, 1, 1)

    var_in = [alignments, packed, vae_noise, spk3,
              cw(p["f0_w1"]), row(p["f0_b1"]), cw(p["f0_w2"]), row(p["f0_b2"])]
    var_specs = [_spec_batch(alignments), _spec_batch(packed),
                 _spec_batch(vae_noise), _spec_batch(spk3)]
    var_specs += [_spec_full(a) for a in var_in[4:]]
    flow_ws = []
    for st in p["flow"]:
        flow_ws += [wb(st["w"]), wb(st["cond"])]
    var_in += flow_ws
    var_specs += [_spec_full(a) for a in flow_ws]
    var_in += [f0m, f0s_in]
    var_specs += [_spec_batch(f0m), _spec_batch(f0s_in)]

    acoustic, f0 = pl.pallas_call(
        _variance_kernel,
        out_shape=(jax.ShapeDtypeStruct((B, MAX_LEN, D), jnp.float32),
                   jax.ShapeDtypeStruct((B, MAX_LEN, 1), jnp.float32)),
        grid=(B,),
        in_specs=var_specs,
        out_specs=(pl.BlockSpec((None, MAX_LEN, D), lambda i: (i, 0, 0)),
                   pl.BlockSpec((None, MAX_LEN, 1), lambda i: (i, 0, 0))),
        compiler_params=_PARALLEL,
    )(*var_in)
    f0 = f0[..., 0]                                           # [B, L]

    # --- 4) NSF sine source (cumsum + tiny elementwise, plain JAX) -------------
    # TODO(synk): single-harmonic sine source; real HnNSF has multiple harmonics + tanh merge.
    f0_up = jnp.repeat(f0, UPP, axis=1)                       # [B, T_wav]
    phase = jnp.cumsum(f0_up / SAMPLE_RATE, axis=1)
    voiced = (f0_up > 0).astype(jnp.float32)
    key, k2 = jax.random.split(key)
    src_noise = jax.random.normal(k2, f0_up.shape, jnp.float32)
    f0_sines = (0.1 * jnp.sin(2.0 * np.pi * phase) * voiced
                + 0.003 * src_noise)[..., None]               # [B, T_wav, 1]

    # strided im2col for the two tiny (Cin=1) noise-block convs
    nc_list = []
    for i in range(len(UP_RATES)):
        stride = UPP // int(np.prod(UP_RATES[:i + 1]))
        k = p["noise"][i]["w"].shape[0]
        pad = (k - stride) // 2 if stride > 1 else 0
        nc_list.append(_im2col_strided(f0_sines, k, stride, pad))

    # --- 5) fused decoder -------------------------------------------------------
    dec_in = [acoustic] + nc_list
    dec_specs = [_spec_batch(acoustic)] + [_spec_batch(nc) for nc in nc_list]
    ws = [cw(p["pre_w"]), row(p["pre_b"])]
    for i in range(len(UP_RATES)):
        ws += [cw(p["ups"][i]["w"]), row(p["ups"][i]["b"]),
               cw(p["noise"][i]["w"]), row(p["noise"][i]["b"]),
               cw(p["res"][i][0]["w"]), row(p["res"][i][0]["b"]),
               cw(p["res"][i][1]["w"]), row(p["res"][i][1]["b"])]
    ws += [cw(p["post_w"]), row(p["post_b"])]
    dec_in += ws
    dec_specs += [_spec_full(a) for a in ws]

    wav = pl.pallas_call(
        _decoder_kernel,
        out_shape=jax.ShapeDtypeStruct((B, T_WAV, 1), jnp.float32),
        grid=(B,),
        in_specs=dec_specs,
        out_specs=pl.BlockSpec((None, T_WAV, 1), lambda i: (i, 0, 0)),
        compiler_params=_PARALLEL,
    )(*dec_in)

    return wav.transpose(0, 2, 1)                             # [B, 1, T_wav] (NCL)


# ==================================== main =====================================
if __name__ == "__main__":
    key = jax.random.PRNGKey(0)
    k_tok, k_spk, k_mean, k_std, k_run = jax.random.split(key, 5)
    tokens = jax.random.randint(k_tok, (B, T_TEXT), 0, VOCAB, dtype=jnp.int32)
    speakers = jax.random.randint(k_spk, (B,), 0, N_SPK, dtype=jnp.int32)
    f0_means = jax.random.uniform(k_mean, (B,), jnp.float32, 100.0, 200.0)
    f0_stds = jax.random.uniform(k_std, (B,), jnp.float32, 10.0, 30.0)

    params = make_params(jax.random.PRNGKey(42))
    fwd = jax.jit(forward)
    preds = jax.block_until_ready(
        fwd(params, tokens, speakers, f0_means, f0_stds, k_run))
    assert preds.shape == (B, 1, T_WAV), preds.shape
    assert bool(jnp.all(jnp.isfinite(preds)))
    print("KERNEL_OK")
</pallas_src>

<mosaic_0001>
module attributes {stable_mosaic.version = 11 : i64} {
  func.func @_encoder_kernel(%arg0: i32, %arg1: memref<1x8x32xf32, #tpu.memory_space<vmem>>, %arg2: memref<1x1x32xf32, #tpu.memory_space<vmem>>, %arg3: memref<32x96xbf16, #tpu.memory_space<vmem>>, %arg4: memref<1x96xf32, #tpu.memory_space<vmem>>, %arg5: memref<32x32xbf16, #tpu.memory_space<vmem>>, %arg6: memref<1x32xf32, #tpu.memory_space<vmem>>, %arg7: memref<1x32xf32, #tpu.memory_space<vmem>>, %arg8: memref<1x32xf32, #tpu.memory_space<vmem>>, %arg9: memref<32x128xbf16, #tpu.memory_space<vmem>>, %arg10: memref<1x128xf32, #tpu.memory_space<vmem>>, %arg11: memref<128x32xbf16, #tpu.memory_space<vmem>>, %arg12: memref<1x32xf32, #tpu.memory_space<vmem>>, %arg13: memref<1x32xf32, #tpu.memory_space<vmem>>, %arg14: memref<1x32xf32, #tpu.memory_space<vmem>>, %arg15: memref<32x96xbf16, #tpu.memory_space<vmem>>, %arg16: memref<1x96xf32, #tpu.memory_space<vmem>>, %arg17: memref<32x32xbf16, #tpu.memory_space<vmem>>, %arg18: memref<1x32xf32, #tpu.memory_space<vmem>>, %arg19: memref<1x32xf32, #tpu.memory_space<vmem>>, %arg20: memref<1x32xf32, #tpu.memory_space<vmem>>, %arg21: memref<32x128xbf16, #tpu.memory_space<vmem>>, %arg22: memref<1x128xf32, #tpu.memory_space<vmem>>, %arg23: memref<128x32xbf16, #tpu.memory_space<vmem>>, %arg24: memref<1x32xf32, #tpu.memory_space<vmem>>, %arg25: memref<1x32xf32, #tpu.memory_space<vmem>>, %arg26: memref<1x32xf32, #tpu.memory_space<vmem>>, %arg27: memref<32x64xbf16, #tpu.memory_space<vmem>>, %arg28: memref<1x64xf32, #tpu.memory_space<vmem>>, %arg29: memref<96x32xbf16, #tpu.memory_space<vmem>>, %arg30: memref<1x32xf32, #tpu.memory_space<vmem>>, %arg31: memref<32x1xbf16, #tpu.memory_space<vmem>>, %arg32: memref<1x1xf32, #tpu.memory_space<vmem>>, %arg33: memref<1x8x96xf32, #tpu.memory_space<vmem>>, %arg34: memref<1x8x1xf32, #tpu.memory_space<vmem>>) attributes {dimension_semantics = [#tpu.dimension_semantics<parallel>], iteration_bounds = array<i64: 2>, scalar_prefetch = 0 : i64, scratch_operands = 0 : i64, tpu.core_type = #tpu.core_type<tc>, window_params = [{transform_indices = @transform_0, window_bounds = array<i64: 1, 8, 32>}, {transform_indices = @transform_1, window_bounds = array<i64: 1, 1, 32>}, {pipeline_mode = #tpu.pipeline_mode<synchronous>, transform_indices = @transform_2, window_bounds = array<i64: 32, 96>}, {pipeline_mode = #tpu.pipeline_mode<synchronous>, transform_indices = @transform_3, window_bounds = array<i64: 1, 96>}, {pipeline_mode = #tpu.pipeline_mode<synchronous>, transform_indices = @transform_4, window_bounds = array<i64: 32, 32>}, {pipeline_mode = #tpu.pipeline_mode<synchronous>, transform_indices = @transform_5, window_bounds = array<i64: 1, 32>}, {pipeline_mode = #tpu.pipeline_mode<synchronous>, transform_indices = @transform_6, window_bounds = array<i64: 1, 32>}, {pipeline_mode = #tpu.pipeline_mode<synchronous>, transform_indices = @transform_7, window_bounds = array<i64: 1, 32>}, {pipeline_mode = #tpu.pipeline_mode<synchronous>, transform_indices = @transform_8, window_bounds = array<i64: 32, 128>}, {pipeline_mode = #tpu.pipeline_mode<synchronous>, transform_indices = @transform_9, window_bounds = array<i64: 1, 128>}, {pipeline_mode = #tpu.pipeline_mode<synchronous>, transform_indices = @transform_10, window_bounds = array<i64: 128, 32>}, {pipeline_mode = #tpu.pipeline_mode<synchronous>, transform_indices = @transform_11, window_bounds = array<i64: 1, 32>}, {pipeline_mode = #tpu.pipeline_mode<synchronous>, transform_indices = @transform_12, window_bounds = array<i64: 1, 32>}, {pipeline_mode = #tpu.pipeline_mode<synchronous>, transform_indices = @transform_13, window_bounds = array<i64: 1, 32>}, {pipeline_mode = #tpu.pipeline_mode<synchronous>, transform_indices = @transform_14, window_bounds = array<i64: 32, 96>}, {pipeline_mode = #tpu.pipeline_mode<synchronous>, transform_indices = @transform_15, window_bounds = array<i64: 1, 96>}, {pipeline_mode = #tpu.pipeline_mode<synchronous>, transform_indices = @transform_16, window_bounds = array<i64: 32, 32>}, {pipeline_mode = #tpu.pipeline_mode<synchronous>, transform_indices = @transform_17, window_bounds = array<i64: 1, 32>}, {pipeline_mode = #tpu.pipeline_mode<synchronous>, transform_indices = @transform_18, window_bounds = array<i64: 1, 32>}, {pipeline_mode = #tpu.pipeline_mode<synchronous>, transform_indices = @transform_19, window_bounds = array<i64: 1, 32>}, {pipeline_mode = #tpu.pipeline_mode<synchronous>, transform_indices = @transform_20, window_bounds = array<i64: 32, 128>}, {pipeline_mode = #tpu.pipeline_mode<synchronous>, transform_indices = @transform_21, window_bounds = array<i64: 1, 128>}, {pipeline_mode = #tpu.pipeline_mode<synchronous>, transform_indices = @transform_22, window_bounds = array<i64: 128, 32>}, {pipeline_mode = #tpu.pipeline_mode<synchronous>, transform_indices = @transform_23, window_bounds = array<i64: 1, 32>}, {pipeline_mode = #tpu.pipeline_mode<synchronous>, transform_indices = @transform_24, window_bounds = array<i64: 1, 32>}, {pipeline_mode = #tpu.pipeline_mode<synchronous>, transform_indices = @transform_25, window_bounds = array<i64: 1, 32>}, {pipeline_mode = #tpu.pipeline_mode<synchronous>, transform_indices = @transform_26, window_bounds = array<i64: 32, 64>}, {pipeline_mode = #tpu.pipeline_mode<synchronous>, transform_indices = @transform_27, window_bounds = array<i64: 1, 64>}, {pipeline_mode = #tpu.pipeline_mode<synchronous>, transform_indices = @transform_28, window_bounds = array<i64: 96, 32>}, {pipeline_mode = #tpu.pipeline_mode<synchronous>, transform_indices = @transform_29, window_bounds = array<i64: 1, 32>}, {pipeline_mode = #tpu.pipeline_mode<synchronous>, transform_indices = @transform_30, window_bounds = array<i64: 32, 1>}, {pipeline_mode = #tpu.pipeline_mode<synchronous>, transform_indices = @transform_31, window_bounds = array<i64: 1, 1>}, {transform_indices = @transform_32, window_bounds = array<i64: 1, 8, 96>}, {transform_indices = @transform_33, window_bounds = array<i64: 1, 8, 1>}]} {
    %c0 = arith.constant 0 : index
    %c0_0 = arith.constant 0 : index
    %c0_1 = arith.constant 0 : index
    %0 = vector.load %arg1[%c0, %c0_0, %c0_1] : memref<1x8x32xf32, #tpu.memory_space<vmem>>, vector<1x8x32xf32>
    %1 = vector.shape_cast %0 : vector<1x8x32xf32> to vector<8x32xf32>
    %c0_2 = arith.constant 0 : index
    %c0_3 = arith.constant 0 : index
    %2 = vector.load %arg3[%c0_2, %c0_3] : memref<32x96xbf16, #tpu.memory_space<vmem>>, vector<32x96xbf16>
    %c0_4 = arith.constant 0 : index
    %c0_5 = arith.constant 0 : index
    %3 = vector.load %arg4[%c0_4, %c0_5] : memref<1x96xf32, #tpu.memory_space<vmem>>, vector<1x96xf32>
    %c0_6 = arith.constant 0 : index
    %c0_7 = arith.constant 0 : index
    %4 = vector.load %arg5[%c0_6, %c0_7] : memref<32x32xbf16, #tpu.memory_space<vmem>>, vector<32x32xbf16>
    %c0_8 = arith.constant 0 : index
    %c0_9 = arith.constant 0 : index
    %5 = vector.load %arg6[%c0_8, %c0_9] : memref<1x32xf32, #tpu.memory_space<vmem>>, vector<1x32xf32>
    %c0_10 = arith.constant 0 : index
    %c0_11 = arith.constant 0 : index
    %6 = vector.load %arg7[%c0_10, %c0_11] : memref<1x32xf32, #tpu.memory_space<vmem>>, vector<1x32xf32>
    %c0_12 = arith.constant 0 : index
    %c0_13 = arith.constant 0 : index
    %7 = vector.load %arg8[%c0_12, %c0_13] : memref<1x32xf32, #tpu.memory_space<vmem>>, vector<1x32xf32>
    %c0_14 = arith.constant 0 : index
    %c0_15 = arith.constant 0 : index
    %8 = vector.load %arg9[%c0_14, %c0_15] : memref<32x128xbf16, #tpu.memory_space<vmem>>, vector<32x128xbf16>
    %c0_16 = arith.constant 0 : index
    %c0_17 = arith.constant 0 : index
    %9 = vector.load %arg10[%c0_16, %c0_17] : memref<1x128xf32, #tpu.memory_space<vmem>>, vector<1x128xf32>
    %c0_18 = arith.constant 0 : index
    %c0_19 = arith.constant 0 : index
    %10 = vector.load %arg11[%c0_18, %c0_19] : memref<128x32xbf16, #tpu.memory_space<vmem>>, vector<128x32xbf16>
    %c0_20 = arith.constant 0 : index
    %c0_21 = arith.constant 0 : index
    %11 = vector.load %arg12[%c0_20, %c0_21] : memref<1x32xf32, #tpu.memory_space<vmem>>, vector<1x32xf32>
    %c0_22 = arith.constant 0 : index
    %c0_23 = arith.constant 0 : index
    %12 = vector.load %arg13[%c0_22, %c0_23] : memref<1x32xf32, #tpu.memory_space<vmem>>, vector<1x32xf32>
    %c0_24 = arith.constant 0 : index
    %c0_25 = arith.constant 0 : index
    %13 = vector.load %arg14[%c0_24, %c0_25] : memref<1x32xf32, #tpu.memory_space<vmem>>, vector<1x32xf32>
    %14 = arith.truncf %1 : vector<8x32xf32> to vector<8x32xbf16>
    %cst = arith.constant dense<0.000000e+00> : vector<8x96xf32>
    %15 = tpu.matmul %14, %2, %cst {dimension_numbers = #tpu.dot_dimension_numbers<[1], [0], [0], [1], [0, 0, 1, 1], [], []>} : vector<8x32xbf16>, vector<32x96xbf16>, vector<8x96xf32> -> vector<8x96xf32>
    %16 = vector.broadcast %3 : vector<1x96xf32> to vector<8x96xf32>
    %17 = arith.addf %15, %16 : vector<8x96xf32>
    %18 = vector.extract_strided_slice %17 {offsets = [0, 0], sizes = [8, 8], strides = [1, 1]} : vector<8x96xf32> to vector<8x8xf32>
    %19 = vector.extract_strided_slice %17 {offsets = [0, 32], sizes = [8, 8], strides = [1, 1]} : vector<8x96xf32> to vector<8x8xf32>
    %20 = vector.extract_strided_slice %17 {offsets = [0, 64], sizes = [8, 8], strides = [1, 1]} : vector<8x96xf32> to vector<8x8xf32>
    %21 = tpu.transpose %19, [1, 0] : vector<8x8xf32> -> vector<8x8xf32>
    %cst_26 = arith.constant dense<0.000000e+00> : vector<8x8xf32>
    %22 = tpu.matmul %18, %21, %cst_26 {dimension_numbers = #tpu.dot_dimension_numbers<[1], [0], [0], [1], [0, 0, 1, 1], [], []>} : vector<8x8xf32>, vector<8x8xf32>, vector<8x8xf32> -> vector<8x8xf32>
    %cst_27 = arith.constant 0.353553385 : f32
    %23 = vector.broadcast %cst_27 : f32 to vector<8x8xf32>
    %24 = arith.mulf %22, %23 : vector<8x8xf32>
    %cst_28 = arith.constant dense<0xFF800000> : vector<8xf32>
    %25 = vector.multi_reduction <maximumf>, %24, %cst_28 [1] : vector<8x8xf32> to vector<8xf32>
    %26 = vector.shape_cast %25 : vector<8xf32> to vector<8x1xf32>
    %27 = vector.broadcast %26 : vector<8x1xf32> to vector<8x8xf32>
    %28 = arith.subf %24, %27 : vector<8x8xf32>
    %29 = math.exp %28 : vector<8x8xf32>
    %cst_29 = arith.constant dense<0.000000e+00> : vector<8xf32>
    %30 = vector.multi_reduction <add>, %29, %cst_29 [1] : vector<8x8xf32> to vector<8xf32>
    %31 = vector.shape_cast %30 : vector<8xf32> to vector<8x1xf32>
    %32 = vector.broadcast %31 : vector<8x1xf32> to vector<8x8xf32>
    %33 = arith.divf %29, %32 : vector<8x8xf32>
    %cst_30 = arith.constant dense<0.000000e+00> : vector<8x8xf32>
    %34 = tpu.matmul %33, %20, %cst_30 {dimension_numbers = #tpu.dot_dimension_numbers<[1], [0], [0], [1], [0, 0, 1, 1], [], []>} : vector<8x8xf32>, vector<8x8xf32>, vector<8x8xf32> -> vector<8x8xf32>
    %35 = vector.extract_strided_slice %17 {offsets = [0, 8], sizes = [8, 8], strides = [1, 1]} : vector<8x96xf32> to vector<8x8xf32>
    %36 = vector.extract_strided_slice %17 {offsets = [0, 40], sizes = [8, 8], strides = [1, 1]} : vector<8x96xf32> to vector<8x8xf32>
    %37 = vector.extract_strided_slice %17 {offsets = [0, 72], sizes = [8, 8], strides = [1, 1]} : vector<8x96xf32> to vector<8x8xf32>
    %38 = tpu.transpose %36, [1, 0] : vector<8x8xf32> -> vector<8x8xf32>
    %cst_31 = arith.constant dense<0.000000e+00> : vector<8x8xf32>
    %39 = tpu.matmul %35, %38, %cst_31 {dimension_numbers = #tpu.dot_dimension_numbers<[1], [0], [0], [1], [0, 0, 1, 1], [], []>} : vector<8x8xf32>, vector<8x8xf32>, vector<8x8xf32> -> vector<8x8xf32>
    %cst_32 = arith.constant 0.353553385 : f32
    %40 = vector.broadcast %cst_32 : f32 to vector<8x8xf32>
    %41 = arith.mulf %39, %40 : vector<8x8xf32>
    %cst_33 = arith.constant dense<0xFF800000> : vector<8xf32>
    %42 = vector.multi_reduction <maximumf>, %41, %cst_33 [1] : vector<8x8xf32> to vector<8xf32>
    %43 = vector.shape_cast %42 : vector<8xf32> to vector<8x1xf32>
    %44 = vector.broadcast %43 : vector<8x1xf32> to vector<8x8xf32>
    %45 = arith.subf %41, %44 : vector<8x8xf32>
    %46 = math.exp %45 : vector<8x8xf32>
    %cst_34 = arith.constant dense<0.000000e+00> : vector<8xf32>
    %47 = vector.multi_reduction <add>, %46, %cst_34 [1] : vector<8x8xf32> to vector<8xf32>
    %48 = vector.shape_cast %47 : vector<8xf32> to vector<8x1xf32>
    %49 = vector.broadcast %48 : vector<8x1xf32> to vector<8x8xf32>
    %50 = arith.divf %46, %49 : vector<8x8xf32>
    %cst_35 = arith.constant dense<0.000000e+00> : vector<8x8xf32>
    %51 = tpu.matmul %50, %37, %cst_35 {dimension_numbers = #tpu.dot_dimension_numbers<[1], [0], [0], [1], [0, 0, 1, 1], [], []>} : vector<8x8xf32>, vector<8x8xf32>, vector<8x8xf32> -> vector<8x8xf32>
    %52 = vector.extract_strided_slice %17 {offsets = [0, 16], sizes = [8, 8], strides = [1, 1]} : vector<8x96xf32> to vector<8x8xf32>
    %53 = vector.extract_strided_slice %17 {offsets = [0, 48], sizes = [8, 8], strides = [1, 1]} : vector<8x96xf32> to vector<8x8xf32>
    %54 = vector.extract_strided_slice %17 {offsets = [0, 80], sizes = [8, 8], strides = [1, 1]} : vector<8x96xf32> to vector<8x8xf32>
    %55 = tpu.transpose %53, [1, 0] : vector<8x8xf32> -> vector<8x8xf32>
    %cst_36 = arith.constant dense<0.000000e+00> : vector<8x8xf32>
    %56 = tpu.matmul %52, %55, %cst_36 {dimension_numbers = #tpu.dot_dimension_numbers<[1], [0], [0], [1], [0, 0, 1, 1], [], []>} : vector<8x8xf32>, vector<8x8xf32>, vector<8x8xf32> -> vector<8x8xf32>
    %cst_37 = arith.constant 0.353553385 : f32
    %57 = vector.broadcast %cst_37 : f32 to vector<8x8xf32>
    %58 = arith.mulf %56, %57 : vector<8x8xf32>
    %cst_38 = arith.constant dense<0xFF800000> : vector<8xf32>
    %59 = vector.multi_reduction <maximumf>, %58, %cst_38 [1] : vector<8x8xf32> to vector<8xf32>
    %60 = vector.shape_cast %59 : vector<8xf32> to vector<8x1xf32>
    %61 = vector.broadcast %60 : vector<8x1xf32> to vector<8x8xf32>
    %62 = arith.subf %58, %61 : vector<8x8xf32>
    %63 = math.exp %62 : vector<8x8xf32>
    %cst_39 = arith.constant dense<0.000000e+00> : vector<8xf32>
    %64 = vector.multi_reduction <add>, %63, %cst_39 [1] : vector<8x8xf32> to vector<8xf32>
    %65 = vector.shape_cast %64 : vector<8xf32> to vector<8x1xf32>
    %66 = vector.broadcast %65 : vector<8x1xf32> to vector<8x8xf32>
    %67 = arith.divf %63, %66 : vector<8x8xf32>
    %cst_40 = arith.constant dense<0.000000e+00> : vector<8x8xf32>
    %68 = tpu.matmul %67, %54, %cst_40 {dimension_numbers = #tpu.dot_dimension_numbers<[1], [0], [0], [1], [0, 0, 1, 1], [], []>} : vector<8x8xf32>, vector<8x8xf32>, vector<8x8xf32> -> vector<8x8xf32>
    %69 = vector.extract_strided_slice %17 {offsets = [0, 24], sizes = [8, 8], strides = [1, 1]} : vector<8x96xf32> to vector<8x8xf32>
    %70 = vector.extract_strided_slice %17 {offsets = [0, 56], sizes = [8, 8], strides = [1, 1]} : vector<8x96xf32> to vector<8x8xf32>
    %71 = vector.extract_strided_slice %17 {offsets = [0, 88], sizes = [8, 8], strides = [1, 1]} : vector<8x96xf32> to vector<8x8xf32>
    %72 = tpu.transpose %70, [1, 0] : vector<8x8xf32> -> vector<8x8xf32>
    %cst_41 = arith.constant dense<0.000000e+00> : vector<8x8xf32>
    %73 = tpu.matmul %69, %72, %cst_41 {dimension_numbers = #tpu.dot_dimension_numbers<[1], [0], [0], [1], [0, 0, 1, 1], [], []>} : vector<8x8xf32>, vector<8x8xf32>, vector<8x8xf32> -> vector<8x8xf32>
    %cst_42 = arith.constant 0.353553385 : f32
    %74 = vector.broadcast %cst_42 : f32 to vector<8x8xf32>
    %75 = arith.mulf %73, %74 : vector<8x8xf32>
    %cst_43 = arith.constant dense<0xFF800000> : vector<8xf32>
    %76 = vector.multi_reduction <maximumf>, %75, %cst_43 [1] : vector<8x8xf32> to vector<8xf32>
    %77 = vector.shape_cast %76 : vector<8xf32> to vector<8x1xf32>
    %78 = vector.broadcast %77 : vector<8x1xf32> to vector<8x8xf32>
    %79 = arith.subf %75, %78 : vector<8x8xf32>
    %80 = math.exp %79 : vector<8x8xf32>
    %cst_44 = arith.constant dense<0.000000e+00> : vector<8xf32>
    %81 = vector.multi_reduction <add>, %80, %cst_44 [1] : vector<8x8xf32> to vector<8xf32>
    %82 = vector.shape_cast %81 : vector<8xf32> to vector<8x1xf32>
    %83 = vector.broadcast %82 : vector<8x1xf32> to vector<8x8xf32>
    %84 = arith.divf %80, %83 : vector<8x8xf32>
    %cst_45 = arith.constant dense<0.000000e+00> : vector<8x8xf32>
    %85 = tpu.matmul %84, %71, %cst_45 {dimension_numbers = #tpu.dot_dimension_numbers<[1], [0], [0], [1], [0, 0, 1, 1], [], []>} : vector<8x8xf32>, vector<8x8xf32>, vector<8x8xf32> -> vector<8x8xf32>
    %86 = tpu.concatenate %34, %51, %68, %85 in 1 : vector<8x8xf32>, vector<8x8xf32>, vector<8x8xf32>, vector<8x8xf32> -> vector<8x32xf32>
    %87 = arith.truncf %86 : vector<8x32xf32> to vector<8x32xbf16>
    %cst_46 = arith.constant dense<0.000000e+00> : vector<8x32xf32>
    %88 = tpu.matmul %87, %4, %cst_46 {dimension_numbers = #tpu.dot_dimension_numbers<[1], [0], [0], [1], [0, 0, 1, 1], [], []>} : vector<8x32xbf16>, vector<32x32xbf16>, vector<8x32xf32> -> vector<8x32xf32>
    %89 = arith.addf %1, %88 : vector<8x32xf32>
    %90 = vector.broadcast %5 : vector<1x32xf32> to vector<8x32xf32>
    %91 = arith.addf %89, %90 : vector<8x32xf32>
    %cst_47 = arith.constant dense<0.000000e+00> : vector<8xf32>
    %92 = vector.multi_reduction <add>, %91, %cst_47 [1] : vector<8x32xf32> to vector<8xf32>
    %93 = vector.shape_cast %92 : vector<8xf32> to vector<8x1xf32>
    %cst_48 = arith.constant 3.200000e+01 : f32
    %94 = vector.broadcast %cst_48 : f32 to vector<8x1xf32>
    %95 = arith.divf %93, %94 : vector<8x1xf32>
    %96 = vector.broadcast %95 : vector<8x1xf32> to vector<8x32xf32>
    %97 = arith.subf %91, %96 : vector<8x32xf32>
    %98 = arith.mulf %97, %97 : vector<8x32xf32>
    %cst_49 = arith.constant dense<0.000000e+00> : vector<8xf32>
    %99 = vector.multi_reduction <add>, %98, %cst_49 [1] : vector<8x32xf32> to vector<8xf32>
    %100 = vector.shape_cast %99 : vector<8xf32> to vector<8x1xf32>
    %cst_50 = arith.constant 3.200000e+01 : f32
    %101 = vector.broadcast %cst_50 : f32 to vector<8x1xf32>
    %102 = arith.divf %100, %101 : vector<8x1xf32>
    %103 = vector.broadcast %95 : vector<8x1xf32> to vector<8x32xf32>
    %104 = arith.subf %91, %103 : vector<8x32xf32>
    %cst_51 = arith.constant 9.99999974E-6 : f32
    %105 = vector.broadcast %cst_51 : f32 to vector<8x1xf32>
    %106 = arith.addf %102, %105 : vector<8x1xf32>
    %107 = math.rsqrt %106 : vector<8x1xf32>
    %108 = vector.broadcast %107 : vector<8x1xf32> to vector<8x32xf32>
    %109 = arith.mulf %104, %108 : vector<8x32xf32>
    %110 = vector.broadcast %6 : vector<1x32xf32> to vector<8x32xf32>
    %111 = arith.mulf %109, %110 : vector<8x32xf32>
    %112 = vector.broadcast %7 : vector<1x32xf32> to vector<8x32xf32>
    %113 = arith.addf %111, %112 : vector<8x32xf32>
    %114 = arith.truncf %113 : vector<8x32xf32> to vector<8x32xbf16>
    %cst_52 = arith.constant dense<0.000000e+00> : vector<8x128xf32>
    %115 = tpu.matmul %114, %8, %cst_52 {dimension_numbers = #tpu.dot_dimension_numbers<[1], [0], [0], [1], [0, 0, 1, 1], [], []>} : vector<8x32xbf16>, vector<32x128xbf16>, vector<8x128xf32> -> vector<8x128xf32>
    %116 = vector.broadcast %9 : vector<1x128xf32> to vector<8x128xf32>
    %117 = arith.addf %115, %116 : vector<8x128xf32>
    %cst_53 = arith.constant 0.000000e+00 : f32
    %118 = vector.broadcast %cst_53 : f32 to vector<8x128xf32>
    %119 = arith.maximumf %117, %118 : vector<8x128xf32>
    %120 = arith.truncf %119 : vector<8x128xf32> to vector<8x128xbf16>
    %cst_54 = arith.constant dense<0.000000e+00> : vector<8x32xf32>
    %121 = tpu.matmul %120, %10, %cst_54 {dimension_numbers = #tpu.dot_dimension_numbers<[1], [0], [0], [1], [0, 0, 1, 1], [], []>} : vector<8x128xbf16>, vector<128x32xbf16>, vector<8x32xf32> -> vector<8x32xf32>
    %122 = arith.addf %113, %121 : vector<8x32xf32>
    %123 = vector.broadcast %11 : vector<1x32xf32> to vector<8x32xf32>
    %124 = arith.addf %122, %123 : vector<8x32xf32>
    %cst_55 = arith.constant dense<0.000000e+00> : vector<8xf32>
    %125 = vector.multi_reduction <add>, %124, %cst_55 [1] : vector<8x32xf32> to vector<8xf32>
    %126 = vector.shape_cast %125 : vector<8xf32> to vector<8x1xf32>
    %cst_56 = arith.constant 3.200000e+01 : f32
    %127 = vector.broadcast %cst_56 : f32 to vector<8x1xf32>
    %128 = arith.divf %126, %127 : vector<8x1xf32>
    %129 = vector.broadcast %128 : vector<8x1xf32> to vector<8x32xf32>
    %130 = arith.subf %124, %129 : vector<8x32xf32>
    %131 = arith.mulf %130, %130 : vector<8x32xf32>
    %cst_57 = arith.constant dense<0.000000e+00> : vector<8xf32>
    %132 = vector.multi_reduction <add>, %131, %cst_57 [1] : vector<8x32xf32> to vector<8xf32>
    %133 = vector.shape_cast %132 : vector<8xf32> to vector<8x1xf32>
    %cst_58 = arith.constant 3.200000e+01 : f32
    %134 = vector.broadcast %cst_58 : f32 to vector<8x1xf32>
    %135 = arith.divf %133, %134 : vector<8x1xf32>
    %136 = vector.broadcast %128 : vector<8x1xf32> to vector<8x32xf32>
    %137 = arith.subf %124, %136 : vector<8x32xf32>
    %cst_59 = arith.constant 9.99999974E-6 : f32
    %138 = vector.broadcast %cst_59 : f32 to vector<8x1xf32>
    %139 = arith.addf %135, %138 : vector<8x1xf32>
    %140 = math.rsqrt %139 : vector<8x1xf32>
    %141 = vector.broadcast %140 : vector<8x1xf32> to vector<8x32xf32>
    %142 = arith.mulf %137, %141 : vector<8x32xf32>
    %143 = vector.broadcast %12 : vector<1x32xf32> to vector<8x32xf32>
    %144 = arith.mulf %142, %143 : vector<8x32xf32>
    %145 = vector.broadcast %13 : vector<1x32xf32> to vector<8x32xf32>
    %146 = arith.addf %144, %145 : vector<8x32xf32>
    %c0_60 = arith.constant 0 : index
    %c0_61 = arith.constant 0 : index
    %147 = vector.load %arg15[%c0_60, %c0_61] : memref<32x96xbf16, #tpu.memory_space<vmem>>, vector<32x96xbf16>
    %c0_62 = arith.constant 0 : index
    %c0_63 = arith.constant 0 : index
    %148 = vector.load %arg16[%c0_62, %c0_63] : memref<1x96xf32, #tpu.memory_space<vmem>>, vector<1x96xf32>
    %c0_64 = arith.constant 0 : index
    %c0_65 = arith.constant 0 : index
    %149 = vector.load %arg17[%c0_64, %c0_65] : memref<32x32xbf16, #tpu.memory_space<vmem>>, vector<32x32xbf16>
    %c0_66 = arith.constant 0 : index
    %c0_67 = arith.constant 0 : index
    %150 = vector.load %arg18[%c0_66, %c0_67] : memref<1x32xf32, #tpu.memory_space<vmem>>, vector<1x32xf32>
    %c0_68 = arith.constant 0 : index
    %c0_69 = arith.constant 0 : index
    %151 = vector.load %arg19[%c0_68, %c0_69] : memref<1x32xf32, #tpu.memory_space<vmem>>, vector<1x32xf32>
    %c0_70 = arith.constant 0 : index
    %c0_71 = arith.constant 0 : index
    %152 = vector.load %arg20[%c0_70, %c0_71] : memref<1x32xf32, #tpu.memory_space<vmem>>, vector<1x32xf32>
    %c0_72 = arith.constant 0 : index
    %c0_73 = arith.constant 0 : index
    %153 = vector.load %arg21[%c0_72, %c0_73] : memref<32x128xbf16, #tpu.memory_space<vmem>>, vector<32x128xbf16>
    %c0_74 = arith.constant 0 : index
    %c0_75 = arith.constant 0 : index
    %154 = vector.load %arg22[%c0_74, %c0_75] : memref<1x128xf32, #tpu.memory_space<vmem>>, vector<1x128xf32>
    %c0_76 = arith.constant 0 : index
    %c0_77 = arith.constant 0 : index
    %155 = vector.load %arg23[%c0_76, %c0_77] : memref<128x32xbf16, #tpu.memory_space<vmem>>, vector<128x32xbf16>
    %c0_78 = arith.constant 0 : index
    %c0_79 = arith.constant 0 : index
    %156 = vector.load %arg24[%c0_78, %c0_79] : memref<1x32xf32, #tpu.memory_space<vmem>>, vector<1x32xf32>
    %c0_80 = arith.constant 0 : index
    %c0_81 = arith.constant 0 : index
    %157 = vector.load %arg25[%c0_80, %c0_81] : memref<1x32xf32, #tpu.memory_space<vmem>>, vector<1x32xf32>
    %c0_82 = arith.constant 0 : index
    %c0_83 = arith.constant 0 : index
    %158 = vector.load %arg26[%c0_82, %c0_83] : memref<1x32xf32, #tpu.memory_space<vmem>>, vector<1x32xf32>
    %159 = arith.truncf %146 : vector<8x32xf32> to vector<8x32xbf16>
    %cst_84 = arith.constant dense<0.000000e+00> : vector<8x96xf32>
    %160 = tpu.matmul %159, %147, %cst_84 {dimension_numbers = #tpu.dot_dimension_numbers<[1], [0], [0], [1], [0, 0, 1, 1], [], []>} : vector<8x32xbf16>, vector<32x96xbf16>, vector<8x96xf32> -> vector<8x96xf32>
    %161 = vector.broadcast %148 : vector<1x96xf32> to vector<8x96xf32>
    %162 = arith.addf %160, %161 : vector<8x96xf32>
    %163 = vector.extract_strided_slice %162 {offsets = [0, 0], sizes = [8, 8], strides = [1, 1]} : vector<8x96xf32> to vector<8x8xf32>
    %164 = vector.extract_strided_slice %162 {offsets = [0, 32], sizes = [8, 8], strides = [1, 1]} : vector<8x96xf32> to vector<8x8xf32>
    %165 = vector.extract_strided_slice %162 {offsets = [0, 64], sizes = [8, 8], strides = [1, 1]} : vector<8x96xf32> to vector<8x8xf32>
    %166 = tpu.transpose %164, [1, 0] : vector<8x8xf32> -> vector<8x8xf32>
    %cst_85 = arith.constant dense<0.000000e+00> : vector<8x8xf32>
    %167 = tpu.matmul %163, %166, %cst_85 {dimension_numbers = #tpu.dot_dimension_numbers<[1], [0], [0], [1], [0, 0, 1, 1], [], []>} : vector<8x8xf32>, vector<8x8xf32>, vector<8x8xf32> -> vector<8x8xf32>
    %cst_86 = arith.constant 0.353553385 : f32
    %168 = vector.broadcast %cst_86 : f32 to vector<8x8xf32>
    %169 = arith.mulf %167, %168 : vector<8x8xf32>
    %cst_87 = arith.constant dense<0xFF800000> : vector<8xf32>
    %170 = vector.multi_reduction <maximumf>, %169, %cst_87 [1] : vector<8x8xf32> to vector<8xf32>
    %171 = vector.shape_cast %170 : vector<8xf32> to vector<8x1xf32>
    %172 = vector.broadcast %171 : vector<8x1xf32> to vector<8x8xf32>
    %173 = arith.subf %169, %172 : vector<8x8xf32>
    %174 = math.exp %173 : vector<8x8xf32>
    %cst_88 = arith.constant dense<0.000000e+00> : vector<8xf32>
    %175 = vector.multi_reduction <add>, %174, %cst_88 [1] : vector<8x8xf32> to vector<8xf32>
    %176 = vector.shape_cast %175 : vector<8xf32> to vector<8x1xf32>
    %177 = vector.broadcast %176 : vector<8x1xf32> to vector<8x8xf32>
    %178 = arith.divf %174, %177 : vector<8x8xf32>
    %cst_89 = arith.constant dense<0.000000e+00> : vector<8x8xf32>
    %179 = tpu.matmul %178, %165, %cst_89 {dimension_numbers = #tpu.dot_dimension_numbers<[1], [0], [0], [1], [0, 0, 1, 1], [], []>} : vector<8x8xf32>, vector<8x8xf32>, vector<8x8xf32> -> vector<8x8xf32>
    %180 = vector.extract_strided_slice %162 {offsets = [0, 8], sizes = [8, 8], strides = [1, 1]} : vector<8x96xf32> to vector<8x8xf32>
    %181 = vector.extract_strided_slice %162 {offsets = [0, 40], sizes = [8, 8], strides = [1, 1]} : vector<8x96xf32> to vector<8x8xf32>
    %182 = vector.extract_strided_slice %162 {offsets = [0, 72], sizes = [8, 8], strides = [1, 1]} : vector<8x96xf32> to vector<8x8xf32>
    %183 = tpu.transpose %181, [1, 0] : vector<8x8xf32> -> vector<8x8xf32>
    %cst_90 = arith.constant dense<0.000000e+00> : vector<8x8xf32>
    %184 = tpu.matmul %180, %183, %cst_90 {dimension_numbers = #tpu.dot_dimension_numbers<[1], [0], [0], [1], [0, 0, 1, 1], [], []>} : vector<8x8xf32>, vector<8x8xf32>, vector<8x8xf32> -> vector<8x8xf32>
    %cst_91 = arith.constant 0.353553385 : f32
    %185 = vector.broadcast %cst_91 : f32 to vector<8x8xf32>
    %186 = arith.mulf %184, %185 : vector<8x8xf32>
    %cst_92 = arith.constant dense<0xFF800000> : vector<8xf32>
    %187 = vector.multi_reduction <maximumf>, %186, %cst_92 [1] : vector<8x8xf32> to vector<8xf32>
    %188 = vector.shape_cast %187 : vector<8xf32> to vector<8x1xf32>
    %189 = vector.broadcast %188 : vector<8x1xf32> to vector<8x8xf32>
    %190 = arith.subf %186, %189 : vector<8x8xf32>
    %191 = math.exp %190 : vector<8x8xf32>
    %cst_93 = arith.constant dense<0.000000e+00> : vector<8xf32>
    %192 = vector.multi_reduction <add>, %191, %cst_93 [1] : vector<8x8xf32> to vector<8xf32>
    %193 = vector.shape_cast %192 : vector<8xf32> to vector<8x1xf32>
    %194 = vector.broadcast %193 : vector<8x1xf32> to vector<8x8xf32>
    %195 = arith.divf %191, %194 : vector<8x8xf32>
    %cst_94 = arith.constant dense<0.000000e+00> : vector<8x8xf32>
    %196 = tpu.matmul %195, %182, %cst_94 {dimension_numbers = #tpu.dot_dimension_numbers<[1], [0], [0], [1], [0, 0, 1, 1], [], []>} : vector<8x8xf32>, vector<8x8xf32>, vector<8x8xf32> -> vector<8x8xf32>
    %197 = vector.extract_strided_slice %162 {offsets = [0, 16], sizes = [8, 8], strides = [1, 1]} : vector<8x96xf32> to vector<8x8xf32>
    %198 = vector.extract_strided_slice %162 {offsets = [0, 48], sizes = [8, 8], strides = [1, 1]} : vector<8x96xf32> to vector<8x8xf32>
    %199 = vector.extract_strided_slice %162 {offsets = [0, 80], sizes = [8, 8], strides = [1, 1]} : vector<8x96xf32> to vector<8x8xf32>
    %200 = tpu.transpose %198, [1, 0] : vector<8x8xf32> -> vector<8x8xf32>
    %cst_95 = arith.constant dense<0.000000e+00> : vector<8x8xf32>
    %201 = tpu.matmul %197, %200, %cst_95 {dimension_numbers = #tpu.dot_dimension_numbers<[1], [0], [0], [1], [0, 0, 1, 1], [], []>} : vector<8x8xf32>, vector<8x8xf32>, vector<8x8xf32> -> vector<8x8xf32>
    %cst_96 = arith.constant 0.353553385 : f32
    %202 = vector.broadcast %cst_96 : f32 to vector<8x8xf32>
    %203 = arith.mulf %201, %202 : vector<8x8xf32>
    %cst_97 = arith.constant dense<0xFF800000> : vector<8xf32>
    %204 = vector.multi_reduction <maximumf>, %203, %cst_97 [1] : vector<8x8xf32> to vector<8xf32>
    %205 = vector.shape_cast %204 : vector<8xf32> to vector<8x1xf32>
    %206 = vector.broadcast %205 : vector<8x1xf32> to vector<8x8xf32>
    %207 = arith.subf %203, %206 : vector<8x8xf32>
    %208 = math.exp %207 : vector<8x8xf32>
    %cst_98 = arith.constant dense<0.000000e+00> : vector<8xf32>
    %209 = vector.multi_reduction <add>, %208, %cst_98 [1] : vector<8x8xf32> to vector<8xf32>
    %210 = vector.shape_cast %209 : vector<8xf32> to vector<8x1xf32>
    %211 = vector.broadcast %210 : vector<8x1xf32> to vector<8x8xf32>
    %212 = arith.divf %208, %211 : vector<8x8xf32>
    %cst_99 = arith.constant dense<0.000000e+00> : vector<8x8xf32>
    %213 = tpu.matmul %212, %199, %cst_99 {dimension_numbers = #tpu.dot_dimension_numbers<[1], [0], [0], [1], [0, 0, 1, 1], [], []>} : vector<8x8xf32>, vector<8x8xf32>, vector<8x8xf32> -> vector<8x8xf32>
    %214 = vector.extract_strided_slice %162 {offsets = [0, 24], sizes = [8, 8], strides = [1, 1]} : vector<8x96xf32> to vector<8x8xf32>
    %215 = vector.extract_strided_slice %162 {offsets = [0, 56], sizes = [8, 8], strides = [1, 1]} : vector<8x96xf32> to vector<8x8xf32>
    %216 = vector.extract_strided_slice %162 {offsets = [0, 88], sizes = [8, 8], strides = [1, 1]} : vector<8x96xf32> to vector<8x8xf32>
    %217 = tpu.transpose %215, [1, 0] : vector<8x8xf32> -> vector<8x8xf32>
    %cst_100 = arith.constant dense<0.000000e+00> : vector<8x8xf32>
    %218 = tpu.matmul %214, %217, %cst_100 {dimension_numbers = #tpu.dot_dimension_numbers<[1], [0], [0], [1], [0, 0, 1, 1], [], []>} : vector<8x8xf32>, vector<8x8xf32>, vector<8x8xf32> -> vector<8x8xf32>
    %cst_101 = arith.constant 0.353553385 : f32
    %219 = vector.broadcast %cst_101 : f32 to vector<8x8xf32>
    %220 = arith.mulf %218, %219 : vector<8x8xf32>
    %cst_102 = arith.constant dense<0xFF800000> : vector<8xf32>
    %221 = vector.multi_reduction <maximumf>, %220, %cst_102 [1] : vector<8x8xf32> to vector<8xf32>
    %222 = vector.shape_cast %221 : vector<8xf32> to vector<8x1xf32>
    %223 = vector.broadcast %222 : vector<8x1xf32> to vector<8x8xf32>
    %224 = arith.subf %220, %223 : vector<8x8xf32>
    %225 = math.exp %224 : vector<8x8xf32>
    %cst_103 = arith.constant dense<0.000000e+00> : vector<8xf32>
    %226 = vector.multi_reduction <add>, %225, %cst_103 [1] : vector<8x8xf32> to vector<8xf32>
    %227 = vector.shape_cast %226 : vector<8xf32> to vector<8x1xf32>
    %228 = vector.broadcast %227 : vector<8x1xf32> to vector<8x8xf32>
    %229 = arith.divf %225, %228 : vector<8x8xf32>
    %cst_104 = arith.constant dense<0.000000e+00> : vector<8x8xf32>
    %230 = tpu.matmul %229, %216, %cst_104 {dimension_numbers = #tpu.dot_dimension_numbers<[1], [0], [0], [1], [0, 0, 1, 1], [], []>} : vector<8x8xf32>, vector<8x8xf32>, vector<8x8xf32> -> vector<8x8xf32>
    %231 = tpu.concatenate %179, %196, %213, %230 in 1 : vector<8x8xf32>, vector<8x8xf32>, vector<8x8xf32>, vector<8x8xf32> -> vector<8x32xf32>
    %232 = arith.truncf %231 : vector<8x32xf32> to vector<8x32xbf16>
    %cst_105 = arith.constant dense<0.000000e+00> : vector<8x32xf32>
    %233 = tpu.matmul %232, %149, %cst_105 {dimension_numbers = #tpu.dot_dimension_numbers<[1], [0], [0], [1], [0, 0, 1, 1], [], []>} : vector<8x32xbf16>, vector<32x32xbf16>, vector<8x32xf32> -> vector<8x32xf32>
    %234 = arith.addf %146, %233 : vector<8x32xf32>
    %235 = vector.broadcast %150 : vector<1x32xf32> to vector<8x32xf32>
    %236 = arith.addf %234, %235 : vector<8x32xf32>
    %cst_106 = arith.constant dense<0.000000e+00> : vector<8xf32>
    %237 = vector.multi_reduction <add>, %236, %cst_106 [1] : vector<8x32xf32> to vector<8xf32>
    %238 = vector.shape_cast %237 : vector<8xf32> to vector<8x1xf32>
    %cst_107 = arith.constant 3.200000e+01 : f32
    %239 = vector.broadcast %cst_107 : f32 to vector<8x1xf32>
    %240 = arith.divf %238, %239 : vector<8x1xf32>
    %241 = vector.broadcast %240 : vector<8x1xf32> to vector<8x32xf32>
    %242 = arith.subf %236, %241 : vector<8x32xf32>
    %243 = arith.mulf %242, %242 : vector<8x32xf32>
    %cst_108 = arith.constant dense<0.000000e+00> : vector<8xf32>
    %244 = vector.multi_reduction <add>, %243, %cst_108 [1] : vector<8x32xf32> to vector<8xf32>
    %245 = vector.shape_cast %244 : vector<8xf32> to vector<8x1xf32>
    %cst_109 = arith.constant 3.200000e+01 : f32
    %246 = vector.broadcast %cst_109 : f32 to vector<8x1xf32>
    %247 = arith.divf %245, %246 : vector<8x1xf32>
    %248 = vector.broadcast %240 : vector<8x1xf32> to vector<8x32xf32>
    %249 = arith.subf %236, %248 : vector<8x32xf32>
    %cst_110 = arith.constant 9.99999974E-6 : f32
    %250 = vector.broadcast %cst_110 : f32 to vector<8x1xf32>
    %251 = arith.addf %247, %250 : vector<8x1xf32>
    %252 = math.rsqrt %251 : vector<8x1xf32>
    %253 = vector.broadcast %252 : vector<8x1xf32> to vector<8x32xf32>
    %254 = arith.mulf %249, %253 : vector<8x32xf32>
    %255 = vector.broadcast %151 : vector<1x32xf32> to vector<8x32xf32>
    %256 = arith.mulf %254, %255 : vector<8x32xf32>
    %257 = vector.broadcast %152 : vector<1x32xf32> to vector<8x32xf32>
    %258 = arith.addf %256, %257 : vector<8x32xf32>
    %259 = arith.truncf %258 : vector<8x32xf32> to vector<8x32xbf16>
    %cst_111 = arith.constant dense<0.000000e+00> : vector<8x128xf32>
    %260 = tpu.matmul %259, %153, %cst_111 {dimension_numbers = #tpu.dot_dimension_numbers<[1], [0], [0], [1], [0, 0, 1, 1], [], []>} : vector<8x32xbf16>, vector<32x128xbf16>, vector<8x128xf32> -> vector<8x128xf32>
    %261 = vector.broadcast %154 : vector<1x128xf32> to vector<8x128xf32>
    %262 = arith.addf %260, %261 : vector<8x128xf32>
    %cst_112 = arith.constant 0.000000e+00 : f32
    %263 = vector.broadcast %cst_112 : f32 to vector<8x128xf32>
    %264 = arith.maximumf %262, %263 : vector<8x128xf32>
    %265 = arith.truncf %264 : vector<8x128xf32> to vector<8x128xbf16>
    %cst_113 = arith.constant dense<0.000000e+00> : vector<8x32xf32>
    %266 = tpu.matmul %265, %155, %cst_113 {dimension_numbers = #tpu.dot_dimension_numbers<[1], [0], [0], [1], [0, 0, 1, 1], [], []>} : vector<8x128xbf16>, vector<128x32xbf16>, vector<8x32xf32> -> vector<8x32xf32>
    %267 = arith.addf %258, %266 : vector<8x32xf32>
    %268 = vector.broadcast %156 : vector<1x32xf32> to vector<8x32xf32>
    %269 = arith.addf %267, %268 : vector<8x32xf32>
    %cst_114 = arith.constant dense<0.000000e+00> : vector<8xf32>
    %270 = vector.multi_reduction <add>, %269, %cst_114 [1] : vector<8x32xf32> to vector<8xf32>
    %271 = vector.shape_cast %270 : vector<8xf32> to vector<8x1xf32>
    %cst_115 = arith.constant 3.200000e+01 : f32
    %272 = vector.broadcast %cst_115 : f32 to vector<8x1xf32>
    %273 = arith.divf %271, %272 : vector<8x1xf32>
    %274 = vector.broadcast %273 : vector<8x1xf32> to vector<8x32xf32>
    %275 = arith.subf %269, %274 : vector<8x32xf32>
    %276 = arith.mulf %275, %275 : vector<8x32xf32>
    %cst_116 = arith.constant dense<0.000000e+00> : vector<8xf32>
    %277 = vector.multi_reduction <add>, %276, %cst_116 [1] : vector<8x32xf32> to vector<8xf32>
    %278 = vector.shape_cast %277 : vector<8xf32> to vector<8x1xf32>
    %cst_117 = arith.constant 3.200000e+01 : f32
    %279 = vector.broadcast %cst_117 : f32 to vector<8x1xf32>
    %280 = arith.divf %278, %279 : vector<8x1xf32>
    %281 = vector.broadcast %273 : vector<8x1xf32> to vector<8x32xf32>
    %282 = arith.subf %269, %281 : vector<8x32xf32>
    %cst_118 = arith.constant 9.99999974E-6 : f32
    %283 = vector.broadcast %cst_118 : f32 to vector<8x1xf32>
    %284 = arith.addf %280, %283 : vector<8x1xf32>
    %285 = math.rsqrt %284 : vector<8x1xf32>
    %286 = vector.broadcast %285 : vector<8x1xf32> to vector<8x32xf32>
    %287 = arith.mulf %282, %286 : vector<8x32xf32>
    %288 = vector.broadcast %157 : vector<1x32xf32> to vector<8x32xf32>
    %289 = arith.mulf %287, %288 : vector<8x32xf32>
    %290 = vector.broadcast %158 : vector<1x32xf32> to vector<8x32xf32>
    %291 = arith.addf %289, %290 : vector<8x32xf32>
    %c0_119 = arith.constant 0 : index
    %c0_120 = arith.constant 0 : index
    %292 = vector.load %arg27[%c0_119, %c0_120] : memref<32x64xbf16, #tpu.memory_space<vmem>>, vector<32x64xbf16>
    %293 = arith.truncf %291 : vector<8x32xf32> to vector<8x32xbf16>
    %cst_121 = arith.constant dense<0.000000e+00> : vector<8x64xf32>
    %294 = tpu.matmul %293, %292, %cst_121 {dimension_numbers = #tpu.dot_dimension_numbers<[1], [0], [0], [1], [0, 0, 1, 1], [], []>} : vector<8x32xbf16>, vector<32x64xbf16>, vector<8x64xf32> -> vector<8x64xf32>
    %c0_122 = arith.constant 0 : index
    %c0_123 = arith.constant 0 : index
    %295 = vector.load %arg28[%c0_122, %c0_123] : memref<1x64xf32, #tpu.memory_space<vmem>>, vector<1x64xf32>
    %296 = vector.broadcast %295 : vector<1x64xf32> to vector<8x64xf32>
    %297 = arith.addf %294, %296 : vector<8x64xf32>
    %298 = vector.extract_strided_slice %297 {offsets = [0, 0], sizes = [8, 32], strides = [1, 1]} : vector<8x64xf32> to vector<8x32xf32>
    %299 = vector.extract_strided_slice %297 {offsets = [0, 32], sizes = [8, 32], strides = [1, 1]} : vector<8x64xf32> to vector<8x32xf32>
    %300 = math.absf %299 : vector<8x32xf32>
    %cst_124 = arith.constant 0.000000e+00 : f32
    %301 = vector.broadcast %cst_124 : f32 to vector<8x32xf32>
    %302 = arith.subf %301, %300 : vector<8x32xf32>
    %303 = math.exp %302 : vector<8x32xf32>
    %304 = math.log1p %303 : vector<8x32xf32>
    %cst_125 = arith.constant 0.000000e+00 : f32
    %305 = vector.broadcast %cst_125 : f32 to vector<8x32xf32>
    %306 = arith.maximumf %299, %305 : vector<8x32xf32>
    %307 = arith.addf %304, %306 : vector<8x32xf32>
    %cst_126 = arith.constant -2.000000e+01 : f32
    %308 = vector.broadcast %cst_126 : f32 to vector<8x32xf32>
    %309 = arith.cmpf olt, %299, %308 : vector<8x32xf32>
    %cst_127 = arith.constant 1.000000e-30 : f32
    %310 = vector.broadcast %cst_127 : f32 to vector<8x32xf32>
    %311 = arith.addf %307, %310 : vector<8x32xf32>
    %312 = math.log %311 : vector<8x32xf32>
    %313 = arith.select %309, %299, %312 : vector<8x32xi1>, vector<8x32xf32>
    %c0_128 = arith.constant 0 : index
    %c0_129 = arith.constant 0 : index
    %c0_130 = arith.constant 0 : index
    %314 = vector.load %arg2[%c0_128, %c0_129, %c0_130] : memref<1x1x32xf32, #tpu.memory_space<vmem>>, vector<1x1x32xf32>
    %315 = vector.shape_cast %314 : vector<1x1x32xf32> to vector<1x32xf32>
    %316 = vector.broadcast %315 : vector<1x32xf32> to vector<8x32xf32>
    %317 = arith.addf %291, %316 : vector<8x32xf32>
    %c0_131 = arith.constant 0 : index
    %c0_132 = arith.constant 0 : index
    %318 = vector.load %arg29[%c0_131, %c0_132] : memref<96x32xbf16, #tpu.memory_space<vmem>>, vector<96x32xbf16>
    %cst_133 = arith.constant 0.000000e+00 : f32
    %319 = vector.broadcast %cst_133 : f32 to vector<1x32xf32>
    %320 = vector.extract_strided_slice %317 {offsets = [0, 0], sizes = [7, 32], strides = [1, 1]} : vector<8x32xf32> to vector<7x32xf32>
    %321 = tpu.concatenate %319, %320 in 0 : vector<1x32xf32>, vector<7x32xf32> -> vector<8x32xf32>
    %322 = vector.extract_strided_slice %317 {offsets = [1, 0], sizes = [7, 32], strides = [1, 1]} : vector<8x32xf32> to vector<7x32xf32>
    %cst_134 = arith.constant 0.000000e+00 : f32
    %323 = vector.broadcast %cst_134 : f32 to vector<1x32xf32>
    %324 = tpu.concatenate %322, %323 in 0 : vector<7x32xf32>, vector<1x32xf32> -> vector<8x32xf32>
    %325 = tpu.concatenate %321, %317, %324 in 1 : vector<8x32xf32>, vector<8x32xf32>, vector<8x32xf32> -> vector<8x96xf32>
    %326 = arith.truncf %325 : vector<8x96xf32> to vector<8x96xbf16>
    %cst_135 = arith.constant dense<0.000000e+00> : vector<8x32xf32>
    %327 = tpu.matmul %326, %318, %cst_135 {dimension_numbers = #tpu.dot_dimension_numbers<[1], [0], [0], [1], [0, 0, 1, 1], [], []>} : vector<8x96xbf16>, vector<96x32xbf16>, vector<8x32xf32> -> vector<8x32xf32>
    %c0_136 = arith.constant 0 : index
    %c0_137 = arith.constant 0 : index
    %328 = vector.load %arg30[%c0_136, %c0_137] : memref<1x32xf32, #tpu.memory_space<vmem>>, vector<1x32xf32>
    %329 = vector.broadcast %328 : vector<1x32xf32> to vector<8x32xf32>
    %330 = arith.addf %327, %329 : vector<8x32xf32>
    %cst_138 = arith.constant 0.000000e+00 : f32
    %331 = vector.broadcast %cst_138 : f32 to vector<8x32xf32>
    %332 = arith.maximumf %330, %331 : vector<8x32xf32>
    %c0_139 = arith.constant 0 : index
    %c0_140 = arith.constant 0 : index
    %333 = vector.load %arg31[%c0_139, %c0_140] : memref<32x1xbf16, #tpu.memory_space<vmem>>, vector<32x1xbf16>
    %334 = arith.truncf %332 : vector<8x32xf32> to vector<8x32xbf16>
    %cst_141 = arith.constant dense<0.000000e+00> : vector<8x1xf32>
    %335 = tpu.matmul %334, %333, %cst_141 {dimension_numbers = #tpu.dot_dimension_numbers<[1], [0], [0], [1], [0, 0, 1, 1], [], []>} : vector<8x32xbf16>, vector<32x1xbf16>, vector<8x1xf32> -> vector<8x1xf32>
    %c0_142 = arith.constant 0 : index
    %c0_143 = arith.constant 0 : index
    %336 = vector.load %arg32[%c0_142, %c0_143] : memref<1x1xf32, #tpu.memory_space<vmem>>, vector<1x1xf32>
    %337 = vector.broadcast %336 : vector<1x1xf32> to vector<8x1xf32>
    %338 = arith.addf %335, %337 : vector<8x1xf32>
    %339 = math.absf %338 : vector<8x1xf32>
    %cst_144 = arith.constant 0.000000e+00 : f32
    %340 = vector.broadcast %cst_144 : f32 to vector<8x1xf32>
    %341 = arith.subf %340, %339 : vector<8x1xf32>
    %342 = math.exp %341 : vector<8x1xf32>
    %343 = math.log1p %342 : vector<8x1xf32>
    %cst_145 = arith.constant 0.000000e+00 : f32
    %344 = vector.broadcast %cst_145 : f32 to vector<8x1xf32>
    %345 = arith.maximumf %338, %344 : vector<8x1xf32>
    %346 = arith.addf %343, %345 : vector<8x1xf32>
    %347 = tpu.concatenate %317, %298, %313 in 1 : vector<8x32xf32>, vector<8x32xf32>, vector<8x32xf32> -> vector<8x96xf32>
    %c0_146 = arith.constant 0 : index
    %c0_147 = arith.constant 0 : index
    %c0_148 = arith.constant 0 : index
    %348 = vector.load %arg33[%c0_146, %c0_147, %c0_148] : memref<1x8x96xf32, #tpu.memory_space<vmem>>, vector<1x8x96xf32>
    %349 = vector.shape_cast %348 : vector<1x8x96xf32> to vector<8x96xf32>
    %350 = vector.shape_cast %347 : vector<8x96xf32> to vector<1x8x96xf32>
    tpu.vector_store %arg33[%c0_146, %c0_147, %c0_148], %350 {strides = array<i32>} : memref<1x8x96xf32, #tpu.memory_space<vmem>>, vector<1x8x96xf32>,
    %c0_149 = arith.constant 0 : index
    %c0_150 = arith.constant 0 : index
    %c0_151 = arith.constant 0 : index
    %351 = vector.load %arg34[%c0_149, %c0_150, %c0_151] : memref<1x8x1xf32, #tpu.memory_space<vmem>>, vector<1x8x1xf32>
    %352 = vector.shape_cast %351 : vector<1x8x1xf32> to vector<8x1xf32>
    %353 = vector.shape_cast %346 : vector<8x1xf32> to vector<1x8x1xf32>
    tpu.vector_store %arg34[%c0_149, %c0_150, %c0_151], %353 {strides = array<i32>} : memref<1x8x1xf32, #tpu.memory_space<vmem>>, vector<1x8x1xf32>,
    return
  }
  func.func @transform_0(%arg0: i32) -> (i32, i32, i32) {
    %c0_i32 = arith.constant 0 : i32
    %c0_i32_0 = arith.constant 0 : i32
    %c0_i32_1 = arith.constant 0 : i32
    return %arg0, %c0_i32, %c0_i32_0 : i32, i32, i32
  }
  func.func @transform_1(%arg0: i32) -> (i32, i32, i32) {
    %c0_i32 = arith.constant 0 : i32
    %c0_i32_0 = arith.constant 0 : i32
    %c0_i32_1 = arith.constant 0 : i32
    return %arg0, %c0_i32, %c0_i32_0 : i32, i32, i32
  }
  func.func @transform_2(%arg0: i32) -> (i32, i32) {
    %c0_i32 = arith.constant 0 : i32
    %c0_i32_0 = arith.constant 0 : i32
    %c0_i32_1 = arith.constant 0 : i32
    return %c0_i32, %c0_i32_0 : i32, i32
  }
  func.func @transform_3(%arg0: i32) -> (i32, i32) {
    %c0_i32 = arith.constant 0 : i32
    %c0_i32_0 = arith.constant 0 : i32
    %c0_i32_1 = arith.constant 0 : i32
    return %c0_i32, %c0_i32_0 : i32, i32
  }
  func.func @transform_4(%arg0: i32) -> (i32, i32) {
    %c0_i32 = arith.constant 0 : i32
    %c0_i32_0 = arith.constant 0 : i32
    %c0_i32_1 = arith.constant 0 : i32
    return %c0_i32, %c0_i32_0 : i32, i32
  }
  func.func @transform_5(%arg0: i32) -> (i32, i32) {
    %c0_i32 = arith.constant 0 : i32
    %c0_i32_0 = arith.constant 0 : i32
    %c0_i32_1 = arith.constant 0 : i32
    return %c0_i32, %c0_i32_0 : i32, i32
  }
  func.func @transform_6(%arg0: i32) -> (i32, i32) {
    %c0_i32 = arith.constant 0 : i32
    %c0_i32_0 = arith.constant 0 : i32
    %c0_i32_1 = arith.constant 0 : i32
    return %c0_i32, %c0_i32_0 : i32, i32
  }
  func.func @transform_7(%arg0: i32) -> (i32, i32) {
    %c0_i32 = arith.constant 0 : i32
    %c0_i32_0 = arith.constant 0 : i32
    %c0_i32_1 = arith.constant 0 : i32
    return %c0_i32, %c0_i32_0 : i32, i32
  }
  func.func @transform_8(%arg0: i32) -> (i32, i32) {
    %c0_i32 = arith.constant 0 : i32
    %c0_i32_0 = arith.constant 0 : i32
    %c0_i32_1 = arith.constant 0 : i32
    return %c0_i32, %c0_i32_0 : i32, i32
  }
  func.func @transform_9(%arg0: i32) -> (i32, i32) {
    %c0_i32 = arith.constant 0 : i32
    %c0_i32_0 = arith.constant 0 : i32
    %c0_i32_1 = arith.constant 0 : i32
    return %c0_i32, %c0_i32_0 : i32, i32
  }
  func.func @transform_10(%arg0: i32) -> (i32, i32) {
    %c0_i32 = arith.constant 0 : i32
    %c0_i32_0 = arith.constant 0 : i32
    %c0_i32_1 = arith.constant 0 : i32
    return %c0_i32, %c0_i32_0 : i32, i32
  }
  func.func @transform_11(%arg0: i32) -> (i32, i32) {
    %c0_i32 = arith.constant 0 : i32
    %c0_i32_0 = arith.constant 0 : i32
    %c0_i32_1 = arith.constant 0 : i32
    return %c0_i32, %c0_i32_0 : i32, i32
  }
  func.func @transform_12(%arg0: i32) -> (i32, i32) {
    %c0_i32 = arith.constant 0 : i32
    %c0_i32_0 = arith.constant 0 : i32
    %c0_i32_1 = arith.constant 0 : i32
    return %c0_i32, %c0_i32_0 : i32, i32
  }
  func.func @transform_13(%arg0: i32) -> (i32, i32) {
    %c0_i32 = arith.constant 0 : i32
    %c0_i32_0 = arith.constant 0 : i32
    %c0_i32_1 = arith.constant 0 : i32
    return %c0_i32, %c0_i32_0 : i32, i32
  }
  func.func @transform_14(%arg0: i32) -> (i32, i32) {
    %c0_i32 = arith.constant 0 : i32
    %c0_i32_0 = arith.constant 0 : i32
    %c0_i32_1 = arith.constant 0 : i32
    return %c0_i32, %c0_i32_0 : i32, i32
  }
  func.func @transform_15(%arg0: i32) -> (i32, i32) {
    %c0_i32 = arith.constant 0 : i32
    %c0_i32_0 = arith.constant 0 : i32
    %c0_i32_1 = arith.constant 0 : i32
    return %c0_i32, %c0_i32_0 : i32, i32
  }
  func.func @transform_16(%arg0: i32) -> (i32, i32) {
    %c0_i32 = arith.constant 0 : i32
    %c0_i32_0 = arith.constant 0 : i32
    %c0_i32_1 = arith.constant 0 : i32
    return %c0_i32, %c0_i32_0 : i32, i32
  }
  func.func @transform_17(%arg0: i32) -> (i32, i32) {
    %c0_i32 = arith.constant 0 : i32
    %c0_i32_0 = arith.constant 0 : i32
    %c0_i32_1 = arith.constant 0 : i32
    return %c0_i32, %c0_i32_0 : i32, i32
  }
  func.func @transform_18(%arg0: i32) -> (i32, i32) {
    %c0_i32 = arith.constant 0 : i32
    %c0_i32_0 = arith.constant 0 : i32
    %c0_i32_1 = arith.constant 0 : i32
    return %c0_i32, %c0_i32_0 : i32, i32
  }
  func.func @transform_19(%arg0: i32) -> (i32, i32) {
    %c0_i32 = arith.constant 0 : i32
    %c0_i32_0 = arith.constant 0 : i32
    %c0_i32_1 = arith.constant 0 : i32
    return %c0_i32, %c0_i32_0 : i32, i32
  }
  func.func @transform_20(%arg0: i32) -> (i32, i32) {
    %c0_i32 = arith.constant 0 : i32
    %c0_i32_0 = arith.constant 0 : i32
    %c0_i32_1 = arith.constant 0 : i32
    return %c0_i32, %c0_i32_0 : i32, i32
  }
  func.func @transform_21(%arg0: i32) -> (i32, i32) {
    %c0_i32 = arith.constant 0 : i32
    %c0_i32_0 = arith.constant 0 : i32
    %c0_i32_1 = arith.constant 0 : i32
    return %c0_i32, %c0_i32_0 : i32, i32
  }
  func.func @transform_22(%arg0: i32) -> (i32, i32) {
    %c0_i32 = arith.constant 0 : i32
    %c0_i32_0 = arith.constant 0 : i32
    %c0_i32_1 = arith.constant 0 : i32
    return %c0_i32, %c0_i32_0 : i32, i32
  }
  func.func @transform_23(%arg0: i32) -> (i32, i32) {
    %c0_i32 = arith.constant 0 : i32
    %c0_i32_0 = arith.constant 0 : i32
    %c0_i32_1 = arith.constant 0 : i32
    return %c0_i32, %c0_i32_0 : i32, i32
  }
  func.func @transform_24(%arg0: i32) -> (i32, i32) {
    %c0_i32 = arith.constant 0 : i32
    %c0_i32_0 = arith.constant 0 : i32
    %c0_i32_1 = arith.constant 0 : i32
    return %c0_i32, %c0_i32_0 : i32, i32
  }
  func.func @transform_25(%arg0: i32) -> (i32, i32) {
    %c0_i32 = arith.constant 0 : i32
    %c0_i32_0 = arith.constant 0 : i32
    %c0_i32_1 = arith.constant 0 : i32
    return %c0_i32, %c0_i32_0 : i32, i32
  }
  func.func @transform_26(%arg0: i32) -> (i32, i32) {
    %c0_i32 = arith.constant 0 : i32
    %c0_i32_0 = arith.constant 0 : i32
    %c0_i32_1 = arith.constant 0 : i32
    return %c0_i32, %c0_i32_0 : i32, i32
  }
  func.func @transform_27(%arg0: i32) -> (i32, i32) {
    %c0_i32 = arith.constant 0 : i32
    %c0_i32_0 = arith.constant 0 : i32
    %c0_i32_1 = arith.constant 0 : i32
    return %c0_i32, %c0_i32_0 : i32, i32
  }
  func.func @transform_28(%arg0: i32) -> (i32, i32) {
    %c0_i32 = arith.constant 0 : i32
    %c0_i32_0 = arith.constant 0 : i32
    %c0_i32_1 = arith.constant 0 : i32
    return %c0_i32, %c0_i32_0 : i32, i32
  }
  func.func @transform_29(%arg0: i32) -> (i32, i32) {
    %c0_i32 = arith.constant 0 : i32
    %c0_i32_0 = arith.constant 0 : i32
    %c0_i32_1 = arith.constant 0 : i32
    return %c0_i32, %c0_i32_0 : i32, i32
  }
  func.func @transform_30(%arg0: i32) -> (i32, i32) {
    %c0_i32 = arith.constant 0 : i32
    %c0_i32_0 = arith.constant 0 : i32
    %c0_i32_1 = arith.constant 0 : i32
    return %c0_i32, %c0_i32_0 : i32, i32
  }
  func.func @transform_31(%arg0: i32) -> (i32, i32) {
    %c0_i32 = arith.constant 0 : i32
    %c0_i32_0 = arith.constant 0 : i32
    %c0_i32_1 = arith.constant 0 : i32
    return %c0_i32, %c0_i32_0 : i32, i32
  }
  func.func @transform_32(%arg0: i32) -> (i32, i32, i32) {
    %c0_i32 = arith.constant 0 : i32
    %c0_i32_0 = arith.constant 0 : i32
    %c0_i32_1 = arith.constant 0 : i32
    return %arg0, %c0_i32, %c0_i32_0 : i32, i32, i32
  }
  func.func @transform_33(%arg0: i32) -> (i32, i32, i32) {
    %c0_i32 = arith.constant 0 : i32
    %c0_i32_0 = arith.constant 0 : i32
    %c0_i32_1 = arith.constant 0 : i32
    return %arg0, %c0_i32, %c0_i32_0 : i32, i32, i32
  }
}

module attributes {stable_mosaic.version = 11 : i64} {
  func.func @_variance_kernel(%arg0: i32, %arg1: memref<1x16x8xf32, #tpu.memory_space<vmem>>, %arg2: memref<1x8x96xf32, #tpu.memory_space<vmem>>, %arg3: memref<1x16x32xf32, #tpu.memory_space<vmem>>, %arg4: memref<1x1x32xf32, #tpu.memory_space<vmem>>, %arg5: memref<96x32xbf16, #tpu.memory_space<vmem>>, %arg6: memref<1x32xf32, #tpu.memory_space<vmem>>, %arg7: memref<32x1xbf16, #tpu.memory_space<vmem>>, %arg8: memref<1x1xf32, #tpu.memory_space<vmem>>, %arg9: memref<32x32xbf16, #tpu.memory_space<vmem>>, %arg10: memref<32x32xbf16, #tpu.memory_space<vmem>>, %arg11: memref<32x32xbf16, #tpu.memory_space<vmem>>, %arg12: memref<32x32xbf16, #tpu.memory_space<vmem>>, %arg13: memref<1x1x1xf32, #tpu.memory_space<vmem>>, %arg14: memref<1x1x1xf32, #tpu.memory_space<vmem>>, %arg15: memref<1x16x32xf32, #tpu.memory_space<vmem>>, %arg16: memref<1x16x1xf32, #tpu.memory_space<vmem>>) attributes {dimension_semantics = [#tpu.dimension_semantics<parallel>], iteration_bounds = array<i64: 2>, scalar_prefetch = 0 : i64, scratch_operands = 0 : i64, tpu.core_type = #tpu.core_type<tc>, window_params = [{transform_indices = @transform_0, window_bounds = array<i64: 1, 16, 8>}, {transform_indices = @transform_1, window_bounds = array<i64: 1, 8, 96>}, {transform_indices = @transform_2, window_bounds = array<i64: 1, 16, 32>}, {transform_indices = @transform_3, window_bounds = array<i64: 1, 1, 32>}, {pipeline_mode = #tpu.pipeline_mode<synchronous>, transform_indices = @transform_4, window_bounds = array<i64: 96, 32>}, {pipeline_mode = #tpu.pipeline_mode<synchronous>, transform_indices = @transform_5, window_bounds = array<i64: 1, 32>}, {pipeline_mode = #tpu.pipeline_mode<synchronous>, transform_indices = @transform_6, window_bounds = array<i64: 32, 1>}, {pipeline_mode = #tpu.pipeline_mode<synchronous>, transform_indices = @transform_7, window_bounds = array<i64: 1, 1>}, {pipeline_mode = #tpu.pipeline_mode<synchronous>, transform_indices = @transform_8, window_bounds = array<i64: 32, 32>}, {pipeline_mode = #tpu.pipeline_mode<synchronous>, transform_indices = @transform_9, window_bounds = array<i64: 32, 32>}, {pipeline_mode = #tpu.pipeline_mode<synchronous>, transform_indices = @transform_10, window_bounds = array<i64: 32, 32>}, {pipeline_mode = #tpu.pipeline_mode<synchronous>, transform_indices = @transform_11, window_bounds = array<i64: 32, 32>}, {transform_indices = @transform_12, window_bounds = array<i64: 1, 1, 1>}, {transform_indices = @transform_13, window_bounds = array<i64: 1, 1, 1>}, {transform_indices = @transform_14, window_bounds = array<i64: 1, 16, 32>}, {transform_indices = @transform_15, window_bounds = array<i64: 1, 16, 1>}]} {
    %c0 = arith.constant 0 : index
    %c0_0 = arith.constant 0 : index
    %c0_1 = arith.constant 0 : index
    %0 = vector.load %arg1[%c0, %c0_0, %c0_1] : memref<1x16x8xf32, #tpu.memory_space<vmem>>, vector<1x16x8xf32>
    %1 = vector.shape_cast %0 : vector<1x16x8xf32> to vector<16x8xf32>
    %c0_2 = arith.constant 0 : index
    %c0_3 = arith.constant 0 : index
    %c0_4 = arith.constant 0 : index
    %2 = vector.load %arg2[%c0_2, %c0_3, %c0_4] : memref<1x8x96xf32, #tpu.memory_space<vmem>>, vector<1x8x96xf32>
    %3 = vector.shape_cast %2 : vector<1x8x96xf32> to vector<8x96xf32>
    %cst = arith.constant dense<0.000000e+00> : vector<16x96xf32>
    %4 = tpu.matmul %1, %3, %cst {dimension_numbers = #tpu.dot_dimension_numbers<[1], [0], [0], [1], [0, 0, 1, 1], [], []>} : vector<16x8xf32>, vector<8x96xf32>, vector<16x96xf32> -> vector<16x96xf32>
    %5 = vector.extract_strided_slice %4 {offsets = [0, 0], sizes = [16, 32], strides = [1, 1]} : vector<16x96xf32> to vector<16x32xf32>
    %6 = vector.extract_strided_slice %4 {offsets = [0, 32], sizes = [16, 32], strides = [1, 1]} : vector<16x96xf32> to vector<16x32xf32>
    %7 = vector.extract_strided_slice %4 {offsets = [0, 64], sizes = [16, 32], strides = [1, 1]} : vector<16x96xf32> to vector<16x32xf32>
    %c0_5 = arith.constant 0 : index
    %c0_6 = arith.constant 0 : index
    %8 = vector.load %arg5[%c0_5, %c0_6] : memref<96x32xbf16, #tpu.memory_space<vmem>>, vector<96x32xbf16>
    %cst_7 = arith.constant 0.000000e+00 : f32
    %9 = vector.broadcast %cst_7 : f32 to vector<1x32xf32>
    %10 = vector.extract_strided_slice %5 {offsets = [0, 0], sizes = [15, 32], strides = [1, 1]} : vector<16x32xf32> to vector<15x32xf32>
    %11 = tpu.concatenate %9, %10 in 0 : vector<1x32xf32>, vector<15x32xf32> -> vector<16x32xf32>
    %12 = vector.extract_strided_slice %5 {offsets = [1, 0], sizes = [15, 32], strides = [1, 1]} : vector<16x32xf32> to vector<15x32xf32>
    %cst_8 = arith.constant 0.000000e+00 : f32
    %13 = vector.broadcast %cst_8 : f32 to vector<1x32xf32>
    %14 = tpu.concatenate %12, %13 in 0 : vector<15x32xf32>, vector<1x32xf32> -> vector<16x32xf32>
    %15 = tpu.concatenate %11, %5, %14 in 1 : vector<16x32xf32>, vector<16x32xf32>, vector<16x32xf32> -> vector<16x96xf32>
    %16 = arith.truncf %15 : vector<16x96xf32> to vector<16x96xbf16>
    %cst_9 = arith.constant dense<0.000000e+00> : vector<16x32xf32>
    %17 = tpu.matmul %16, %8, %cst_9 {dimension_numbers = #tpu.dot_dimension_numbers<[1], [0], [0], [1], [0, 0, 1, 1], [], []>} : vector<16x96xbf16>, vector<96x32xbf16>, vector<16x32xf32> -> vector<16x32xf32>
    %c0_10 = arith.constant 0 : index
    %c0_11 = arith.constant 0 : index
    %18 = vector.load %arg6[%c0_10, %c0_11] : memref<1x32xf32, #tpu.memory_space<vmem>>, vector<1x32xf32>
    %19 = vector.broadcast %18 : vector<1x32xf32> to vector<16x32xf32>
    %20 = arith.addf %17, %19 : vector<16x32xf32>
    %cst_12 = arith.constant 0.000000e+00 : f32
    %21 = vector.broadcast %cst_12 : f32 to vector<16x32xf32>
    %22 = arith.maximumf %20, %21 : vector<16x32xf32>
    %c0_13 = arith.constant 0 : index
    %c0_14 = arith.constant 0 : index
    %23 = vector.load %arg7[%c0_13, %c0_14] : memref<32x1xbf16, #tpu.memory_space<vmem>>, vector<32x1xbf16>
    %24 = arith.truncf %22 : vector<16x32xf32> to vector<16x32xbf16>
    %cst_15 = arith.constant dense<0.000000e+00> : vector<16x1xf32>
    %25 = tpu.matmul %24, %23, %cst_15 {dimension_numbers = #tpu.dot_dimension_numbers<[1], [0], [0], [1], [0, 0, 1, 1], [], []>} : vector<16x32xbf16>, vector<32x1xbf16>, vector<16x1xf32> -> vector<16x1xf32>
    %c0_16 = arith.constant 0 : index
    %c0_17 = arith.constant 0 : index
    %26 = vector.load %arg8[%c0_16, %c0_17] : memref<1x1xf32, #tpu.memory_space<vmem>>, vector<1x1xf32>
    %27 = vector.broadcast %26 : vector<1x1xf32> to vector<16x1xf32>
    %28 = arith.addf %25, %27 : vector<16x1xf32>
    %29 = math.exp %7 : vector<16x32xf32>
    %c0_18 = arith.constant 0 : index
    %c0_19 = arith.constant 0 : index
    %c0_20 = arith.constant 0 : index
    %30 = vector.load %arg3[%c0_18, %c0_19, %c0_20] : memref<1x16x32xf32, #tpu.memory_space<vmem>>, vector<1x16x32xf32>
    %31 = vector.shape_cast %30 : vector<1x16x32xf32> to vector<16x32xf32>
    %32 = arith.mulf %29, %31 : vector<16x32xf32>
    %33 = arith.addf %6, %32 : vector<16x32xf32>
    %c0_21 = arith.constant 0 : index
    %c0_22 = arith.constant 0 : index
    %c0_23 = arith.constant 0 : index
    %34 = vector.load %arg4[%c0_21, %c0_22, %c0_23] : memref<1x1x32xf32, #tpu.memory_space<vmem>>, vector<1x1x32xf32>
    %35 = vector.shape_cast %34 : vector<1x1x32xf32> to vector<1x32xf32>
    %c0_24 = arith.constant 0 : index
    %c0_25 = arith.constant 0 : index
    %36 = vector.load %arg9[%c0_24, %c0_25] : memref<32x32xbf16, #tpu.memory_space<vmem>>, vector<32x32xbf16>
    %c0_26 = arith.constant 0 : index
    %c0_27 = arith.constant 0 : index
    %37 = vector.load %arg10[%c0_26, %c0_27] : memref<32x32xbf16, #tpu.memory_space<vmem>>, vector<32x32xbf16>
    %38 = arith.truncf %33 : vector<16x32xf32> to vector<16x32xbf16>
    %cst_28 = arith.constant dense<0.000000e+00> : vector<16x32xf32>
    %39 = tpu.matmul %38, %36, %cst_28 {dimension_numbers = #tpu.dot_dimension_numbers<[1], [0], [0], [1], [0, 0, 1, 1], [], []>} : vector<16x32xbf16>, vector<32x32xbf16>, vector<16x32xf32> -> vector<16x32xf32>
    %40 = arith.truncf %35 : vector<1x32xf32> to vector<1x32xbf16>
    %cst_29 = arith.constant dense<0.000000e+00> : vector<1x32xf32>
    %41 = tpu.matmul %40, %37, %cst_29 {dimension_numbers = #tpu.dot_dimension_numbers<[1], [0], [0], [1], [0, 0, 1, 1], [], []>} : vector<1x32xbf16>, vector<32x32xbf16>, vector<1x32xf32> -> vector<1x32xf32>
    %42 = vector.broadcast %41 : vector<1x32xf32> to vector<16x32xf32>
    %43 = arith.addf %39, %42 : vector<16x32xf32>
    %c0_30 = arith.constant 0 : index
    %c0_31 = arith.constant 0 : index
    %44 = vector.load %arg11[%c0_30, %c0_31] : memref<32x32xbf16, #tpu.memory_space<vmem>>, vector<32x32xbf16>
    %c0_32 = arith.constant 0 : index
    %c0_33 = arith.constant 0 : index
    %45 = vector.load %arg12[%c0_32, %c0_33] : memref<32x32xbf16, #tpu.memory_space<vmem>>, vector<32x32xbf16>
    %46 = arith.truncf %43 : vector<16x32xf32> to vector<16x32xbf16>
    %cst_34 = arith.constant dense<0.000000e+00> : vector<16x32xf32>
    %47 = tpu.matmul %46, %44, %cst_34 {dimension_numbers = #tpu.dot_dimension_numbers<[1], [0], [0], [1], [0, 0, 1, 1], [], []>} : vector<16x32xbf16>, vector<32x32xbf16>, vector<16x32xf32> -> vector<16x32xf32>
    %48 = arith.truncf %35 : vector<1x32xf32> to vector<1x32xbf16>
    %cst_35 = arith.constant dense<0.000000e+00> : vector<1x32xf32>
    %49 = tpu.matmul %48, %45, %cst_35 {dimension_numbers = #tpu.dot_dimension_numbers<[1], [0], [0], [1], [0, 0, 1, 1], [], []>} : vector<1x32xbf16>, vector<32x32xbf16>, vector<1x32xf32> -> vector<1x32xf32>
    %50 = vector.broadcast %49 : vector<1x32xf32> to vector<16x32xf32>
    %51 = arith.addf %47, %50 : vector<16x32xf32>
    %c0_36 = arith.constant 0 : index
    %c0_37 = arith.constant 0 : index
    %c0_38 = arith.constant 0 : index
    %52 = vector.load %arg15[%c0_36, %c0_37, %c0_38] : memref<1x16x32xf32, #tpu.memory_space<vmem>>, vector<1x16x32xf32>
    %53 = vector.shape_cast %52 : vector<1x16x32xf32> to vector<16x32xf32>
    %54 = vector.shape_cast %51 : vector<16x32xf32> to vector<1x16x32xf32>
    tpu.vector_store %arg15[%c0_36, %c0_37, %c0_38], %54 {strides = array<i32>} : memref<1x16x32xf32, #tpu.memory_space<vmem>>, vector<1x16x32xf32>,
    %c0_39 = arith.constant 0 : index
    %c0_40 = arith.constant 0 : index
    %c0_41 = arith.constant 0 : index
    %55 = vector.load %arg14[%c0_39, %c0_40, %c0_41] : memref<1x1x1xf32, #tpu.memory_space<vmem>>, vector<1x1x1xf32>
    %56 = vector.shape_cast %55 : vector<1x1x1xf32> to vector<1x1xf32>
    %57 = vector.broadcast %56 : vector<1x1xf32> to vector<16x1xf32>
    %58 = arith.mulf %28, %57 : vector<16x1xf32>
    %c0_42 = arith.constant 0 : index
    %c0_43 = arith.constant 0 : index
    %c0_44 = arith.constant 0 : index
    %59 = vector.load %arg13[%c0_42, %c0_43, %c0_44] : memref<1x1x1xf32, #tpu.memory_space<vmem>>, vector<1x1x1xf32>
    %60 = vector.shape_cast %59 : vector<1x1x1xf32> to vector<1x1xf32>
    %61 = vector.broadcast %60 : vector<1x1xf32> to vector<16x1xf32>
    %62 = arith.addf %58, %61 : vector<16x1xf32>
    %63 = math.absf %28 : vector<16x1xf32>
    %cst_45 = arith.constant 1.000000e-03 : f32
    %64 = vector.broadcast %cst_45 : f32 to vector<16x1xf32>
    %65 = arith.cmpf olt, %63, %64 : vector<16x1xf32>
    %cst_46 = arith.constant 0.000000e+00 : f32
    %66 = vector.broadcast %cst_46 : f32 to vector<16x1xf32>
    %67 = arith.select %65, %62, %66 : vector<16x1xi1>, vector<16x1xf32>
    %c0_47 = arith.constant 0 : index
    %c0_48 = arith.constant 0 : index
    %c0_49 = arith.constant 0 : index
    %68 = vector.load %arg16[%c0_47, %c0_48, %c0_49] : memref<1x16x1xf32, #tpu.memory_space<vmem>>, vector<1x16x1xf32>
    %69 = vector.shape_cast %68 : vector<1x16x1xf32> to vector<16x1xf32>
    %70 = vector.shape_cast %67 : vector<16x1xf32> to vector<1x16x1xf32>
    tpu.vector_store %arg16[%c0_47, %c0_48, %c0_49], %70 {strides = array<i32>} : memref<1x16x1xf32, #tpu.memory_space<vmem>>, vector<1x16x1xf32>,
    return
  }
  func.func @transform_0(%arg0: i32) -> (i32, i32, i32) {
    %c0_i32 = arith.constant 0 : i32
    %c0_i32_0 = arith.constant 0 : i32
    %c0_i32_1 = arith.constant 0 : i32
    return %arg0, %c0_i32, %c0_i32_0 : i32, i32, i32
  }
  func.func @transform_1(%arg0: i32) -> (i32, i32, i32) {
    %c0_i32 = arith.constant 0 : i32
    %c0_i32_0 = arith.constant 0 : i32
    %c0_i32_1 = arith.constant 0 : i32
    return %arg0, %c0_i32, %c0_i32_0 : i32, i32, i32
  }
  func.func @transform_2(%arg0: i32) -> (i32, i32, i32) {
    %c0_i32 = arith.constant 0 : i32
    %c0_i32_0 = arith.constant 0 : i32
    %c0_i32_1 = arith.constant 0 : i32
    return %arg0, %c0_i32, %c0_i32_0 : i32, i32, i32
  }
  func.func @transform_3(%arg0: i32) -> (i32, i32, i32) {
    %c0_i32 = arith.constant 0 : i32
    %c0_i32_0 = arith.constant 0 : i32
    %c0_i32_1 = arith.constant 0 : i32
    return %arg0, %c0_i32, %c0_i32_0 : i32, i32, i32
  }
  func.func @transform_4(%arg0: i32) -> (i32, i32) {
    %c0_i32 = arith.constant 0 : i32
    %c0_i32_0 = arith.constant 0 : i32
    %c0_i32_1 = arith.constant 0 : i32
    return %c0_i32, %c0_i32_0 : i32, i32
  }
  func.func @transform_5(%arg0: i32) -> (i32, i32) {
    %c0_i32 = arith.constant 0 : i32
    %c0_i32_0 = arith.constant 0 : i32
    %c0_i32_1 = arith.constant 0 : i32
    return %c0_i32, %c0_i32_0 : i32, i32
  }
  func.func @transform_6(%arg0: i32) -> (i32, i32) {
    %c0_i32 = arith.constant 0 : i32
    %c0_i32_0 = arith.constant 0 : i32
    %c0_i32_1 = arith.constant 0 : i32
    return %c0_i32, %c0_i32_0 : i32, i32
  }
  func.func @transform_7(%arg0: i32) -> (i32, i32) {
    %c0_i32 = arith.constant 0 : i32
    %c0_i32_0 = arith.constant 0 : i32
    %c0_i32_1 = arith.constant 0 : i32
    return %c0_i32, %c0_i32_0 : i32, i32
  }
  func.func @transform_8(%arg0: i32) -> (i32, i32) {
    %c0_i32 = arith.constant 0 : i32
    %c0_i32_0 = arith.constant 0 : i32
    %c0_i32_1 = arith.constant 0 : i32
    return %c0_i32, %c0_i32_0 : i32, i32
  }
  func.func @transform_9(%arg0: i32) -> (i32, i32) {
    %c0_i32 = arith.constant 0 : i32
    %c0_i32_0 = arith.constant 0 : i32
    %c0_i32_1 = arith.constant 0 : i32
    return %c0_i32, %c0_i32_0 : i32, i32
  }
  func.func @transform_10(%arg0: i32) -> (i32, i32) {
    %c0_i32 = arith.constant 0 : i32
    %c0_i32_0 = arith.constant 0 : i32
    %c0_i32_1 = arith.constant 0 : i32
    return %c0_i32, %c0_i32_0 : i32, i32
  }
  func.func @transform_11(%arg0: i32) -> (i32, i32) {
    %c0_i32 = arith.constant 0 : i32
    %c0_i32_0 = arith.constant 0 : i32
    %c0_i32_1 = arith.constant 0 : i32
    return %c0_i32, %c0_i32_0 : i32, i32
  }
  func.func @transform_12(%arg0: i32) -> (i32, i32, i32) {
    %c0_i32 = arith.constant 0 : i32
    %c0_i32_0 = arith.constant 0 : i32
    %c0_i32_1 = arith.constant 0 : i32
    return %arg0, %c0_i32, %c0_i32_0 : i32, i32, i32
  }
  func.func @transform_13(%arg0: i32) -> (i32, i32, i32) {
    %c0_i32 = arith.constant 0 : i32
    %c0_i32_0 = arith.constant 0 : i32
    %c0_i32_1 = arith.constant 0 : i32
    return %arg0, %c0_i32, %c0_i32_0 : i32, i32, i32
  }
  func.func @transform_14(%arg0: i32) -> (i32, i32, i32) {
    %c0_i32 = arith.constant 0 : i32
    %c0_i32_0 = arith.constant 0 : i32
    %c0_i32_1 = arith.constant 0 : i32
    return %arg0, %c0_i32, %c0_i32_0 : i32, i32, i32
  }
  func.func @transform_15(%arg0: i32) -> (i32, i32, i32) {
    %c0_i32 = arith.constant 0 : i32
    %c0_i32_0 = arith.constant 0 : i32
    %c0_i32_1 = arith.constant 0 : i32
    return %arg0, %c0_i32, %c0_i32_0 : i32, i32, i32
  }
}

module attributes {stable_mosaic.version = 11 : i64} {
  func.func @_decoder_kernel(%arg0: i32, %arg1: memref<1x16x32xf32, #tpu.memory_space<vmem>>, %arg2: memref<1x32x4xf32, #tpu.memory_space<vmem>>, %arg3: memref<1x64x1xf32, #tpu.memory_space<vmem>>, %arg4: memref<224x32xbf16, #tpu.memory_space<vmem>>, %arg5: memref<1x32xf32, #tpu.memory_space<vmem>>, %arg6: memref<96x16xbf16, #tpu.memory_space<vmem>>, %arg7: memref<1x16xf32, #tpu.memory_space<vmem>>, %arg8: memref<4x16xbf16, #tpu.memory_space<vmem>>, %arg9: memref<1x16xf32, #tpu.memory_space<vmem>>, %arg10: memref<48x16xbf16, #tpu.memory_space<vmem>>, %arg11: memref<1x16xf32, #tpu.memory_space<vmem>>, %arg12: memref<80x16xbf16, #tpu.memory_space<vmem>>, %arg13: memref<1x16xf32, #tpu.memory_space<vmem>>, %arg14: memref<48x8xbf16, #tpu.memory_space<vmem>>, %arg15: memref<1x8xf32, #tpu.memory_space<vmem>>, %arg16: memref<1x8xbf16, #tpu.memory_space<vmem>>, %arg17: memref<1x8xf32, #tpu.memory_space<vmem>>, %arg18: memref<24x8xbf16, #tpu.memory_space<vmem>>, %arg19: memref<1x8xf32, #tpu.memory_space<vmem>>, %arg20: memref<40x8xbf16, #tpu.memory_space<vmem>>, %arg21: memref<1x8xf32, #tpu.memory_space<vmem>>, %arg22: memref<56x1xbf16, #tpu.memory_space<vmem>>, %arg23: memref<1x1xf32, #tpu.memory_space<vmem>>, %arg24: memref<1x64x1xf32, #tpu.memory_space<vmem>>) attributes {dimension_semantics = [#tpu.dimension_semantics<parallel>], iteration_bounds = array<i64: 2>, scalar_prefetch = 0 : i64, scratch_operands = 0 : i64, tpu.core_type = #tpu.core_type<tc>, window_params = [{transform_indices = @transform_0, window_bounds = array<i64: 1, 16, 32>}, {transform_indices = @transform_1, window_bounds = array<i64: 1, 32, 4>}, {transform_indices = @transform_2, window_bounds = array<i64: 1, 64, 1>}, {pipeline_mode = #tpu.pipeline_mode<synchronous>, transform_indices = @transform_3, window_bounds = array<i64: 224, 32>}, {pipeline_mode = #tpu.pipeline_mode<synchronous>, transform_indices = @transform_4, window_bounds = array<i64: 1, 32>}, {pipeline_mode = #tpu.pipeline_mode<synchronous>, transform_indices = @transform_5, window_bounds = array<i64: 96, 16>}, {pipeline_mode = #tpu.pipeline_mode<synchronous>, transform_indices = @transform_6, window_bounds = array<i64: 1, 16>}, {pipeline_mode = #tpu.pipeline_mode<synchronous>, transform_indices = @transform_7, window_bounds = array<i64: 4, 16>}, {pipeline_mode = #tpu.pipeline_mode<synchronous>, transform_indices = @transform_8, window_bounds = array<i64: 1, 16>}, {pipeline_mode = #tpu.pipeline_mode<synchronous>, transform_indices = @transform_9, window_bounds = array<i64: 48, 16>}, {pipeline_mode = #tpu.pipeline_mode<synchronous>, transform_indices = @transform_10, window_bounds = array<i64: 1, 16>}, {pipeline_mode = #tpu.pipeline_mode<synchronous>, transform_indices = @transform_11, window_bounds = array<i64: 80, 16>}, {pipeline_mode = #tpu.pipeline_mode<synchronous>, transform_indices = @transform_12, window_bounds = array<i64: 1, 16>}, {pipeline_mode = #tpu.pipeline_mode<synchronous>, transform_indices = @transform_13, window_bounds = array<i64: 48, 8>}, {pipeline_mode = #tpu.pipeline_mode<synchronous>, transform_indices = @transform_14, window_bounds = array<i64: 1, 8>}, {pipeline_mode = #tpu.pipeline_mode<synchronous>, transform_indices = @transform_15, window_bounds = array<i64: 1, 8>}, {pipeline_mode = #tpu.pipeline_mode<synchronous>, transform_indices = @transform_16, window_bounds = array<i64: 1, 8>}, {pipeline_mode = #tpu.pipeline_mode<synchronous>, transform_indices = @transform_17, window_bounds = array<i64: 24, 8>}, {pipeline_mode = #tpu.pipeline_mode<synchronous>, transform_indices = @transform_18, window_bounds = array<i64: 1, 8>}, {pipeline_mode = #tpu.pipeline_mode<synchronous>, transform_indices = @transform_19, window_bounds = array<i64: 40, 8>}, {pipeline_mode = #tpu.pipeline_mode<synchronous>, transform_indices = @transform_20, window_bounds = array<i64: 1, 8>}, {pipeline_mode = #tpu.pipeline_mode<synchronous>, transform_indices = @transform_21, window_bounds = array<i64: 56, 1>}, {pipeline_mode = #tpu.pipeline_mode<synchronous>, transform_indices = @transform_22, window_bounds = array<i64: 1, 1>}, {transform_indices = @transform_23, window_bounds = array<i64: 1, 64, 1>}]} {
    %c0 = arith.constant 0 : index
    %c0_0 = arith.constant 0 : index
    %c0_1 = arith.constant 0 : index
    %0 = vector.load %arg1[%c0, %c0_0, %c0_1] : memref<1x16x32xf32, #tpu.memory_space<vmem>>, vector<1x16x32xf32>
    %1 = vector.shape_cast %0 : vector<1x16x32xf32> to vector<16x32xf32>
    %c0_2 = arith.constant 0 : index
    %c0_3 = arith.constant 0 : index
    %2 = vector.load %arg4[%c0_2, %c0_3] : memref<224x32xbf16, #tpu.memory_space<vmem>>, vector<224x32xbf16>
    %cst = arith.constant 0.000000e+00 : f32
    %3 = vector.broadcast %cst : f32 to vector<3x32xf32>
    %4 = vector.extract_strided_slice %1 {offsets = [0, 0], sizes = [13, 32], strides = [1, 1]} : vector<16x32xf32> to vector<13x32xf32>
    %5 = tpu.concatenate %3, %4 in 0 : vector<3x32xf32>, vector<13x32xf32> -> vector<16x32xf32>
    %cst_4 = arith.constant 0.000000e+00 : f32
    %6 = vector.broadcast %cst_4 : f32 to vector<2x32xf32>
    %7 = vector.extract_strided_slice %1 {offsets = [0, 0], sizes = [14, 32], strides = [1, 1]} : vector<16x32xf32> to vector<14x32xf32>
    %8 = tpu.concatenate %6, %7 in 0 : vector<2x32xf32>, vector<14x32xf32> -> vector<16x32xf32>
    %cst_5 = arith.constant 0.000000e+00 : f32
    %9 = vector.broadcast %cst_5 : f32 to vector<1x32xf32>
    %10 = vector.extract_strided_slice %1 {offsets = [0, 0], sizes = [15, 32], strides = [1, 1]} : vector<16x32xf32> to vector<15x32xf32>
    %11 = tpu.concatenate %9, %10 in 0 : vector<1x32xf32>, vector<15x32xf32> -> vector<16x32xf32>
    %12 = vector.extract_strided_slice %1 {offsets = [1, 0], sizes = [15, 32], strides = [1, 1]} : vector<16x32xf32> to vector<15x32xf32>
    %cst_6 = arith.constant 0.000000e+00 : f32
    %13 = vector.broadcast %cst_6 : f32 to vector<1x32xf32>
    %14 = tpu.concatenate %12, %13 in 0 : vector<15x32xf32>, vector<1x32xf32> -> vector<16x32xf32>
    %15 = vector.extract_strided_slice %1 {offsets = [2, 0], sizes = [14, 32], strides = [1, 1]} : vector<16x32xf32> to vector<14x32xf32>
    %cst_7 = arith.constant 0.000000e+00 : f32
    %16 = vector.broadcast %cst_7 : f32 to vector<2x32xf32>
    %17 = tpu.concatenate %15, %16 in 0 : vector<14x32xf32>, vector<2x32xf32> -> vector<16x32xf32>
    %18 = vector.extract_strided_slice %1 {offsets = [3, 0], sizes = [13, 32], strides = [1, 1]} : vector<16x32xf32> to vector<13x32xf32>
    %cst_8 = arith.constant 0.000000e+00 : f32
    %19 = vector.broadcast %cst_8 : f32 to vector<3x32xf32>
    %20 = tpu.concatenate %18, %19 in 0 : vector<13x32xf32>, vector<3x32xf32> -> vector<16x32xf32>
    %21 = tpu.concatenate %5, %8, %11, %1, %14, %17, %20 in 1 : vector<16x32xf32>, vector<16x32xf32>, vector<16x32xf32>, vector<16x32xf32>, vector<16x32xf32>, vector<16x32xf32>, vector<16x32xf32> -> vector<16x224xf32>
    %22 = arith.truncf %21 : vector<16x224xf32> to vector<16x224xbf16>
    %cst_9 = arith.constant dense<0.000000e+00> : vector<16x32xf32>
    %23 = tpu.matmul %22, %2, %cst_9 {dimension_numbers = #tpu.dot_dimension_numbers<[1], [0], [0], [1], [0, 0, 1, 1], [], []>} : vector<16x224xbf16>, vector<224x32xbf16>, vector<16x32xf32> -> vector<16x32xf32>
    %c0_10 = arith.constant 0 : index
    %c0_11 = arith.constant 0 : index
    %24 = vector.load %arg5[%c0_10, %c0_11] : memref<1x32xf32, #tpu.memory_space<vmem>>, vector<1x32xf32>
    %25 = vector.broadcast %24 : vector<1x32xf32> to vector<16x32xf32>
    %26 = arith.addf %23, %25 : vector<16x32xf32>
    %c0_12 = arith.constant 0 : index
    %c0_13 = arith.constant 0 : index
    %27 = vector.load %arg6[%c0_12, %c0_13] : memref<96x16xbf16, #tpu.memory_space<vmem>>, vector<96x16xbf16>
    %c0_14 = arith.constant 0 : index
    %c0_15 = arith.constant 0 : index
    %28 = vector.load %arg7[%c0_14, %c0_15] : memref<1x16xf32, #tpu.memory_space<vmem>>, vector<1x16xf32>
    %c0_16 = arith.constant 0 : index
    %c0_17 = arith.constant 0 : index
    %29 = vector.load %arg8[%c0_16, %c0_17] : memref<4x16xbf16, #tpu.memory_space<vmem>>, vector<4x16xbf16>
    %c0_18 = arith.constant 0 : index
    %c0_19 = arith.constant 0 : index
    %30 = vector.load %arg9[%c0_18, %c0_19] : memref<1x16xf32, #tpu.memory_space<vmem>>, vector<1x16xf32>
    %c0_20 = arith.constant 0 : index
    %c0_21 = arith.constant 0 : index
    %31 = vector.load %arg10[%c0_20, %c0_21] : memref<48x16xbf16, #tpu.memory_space<vmem>>, vector<48x16xbf16>
    %c0_22 = arith.constant 0 : index
    %c0_23 = arith.constant 0 : index
    %32 = vector.load %arg11[%c0_22, %c0_23] : memref<1x16xf32, #tpu.memory_space<vmem>>, vector<1x16xf32>
    %c0_24 = arith.constant 0 : index
    %c0_25 = arith.constant 0 : index
    %33 = vector.load %arg12[%c0_24, %c0_25] : memref<80x16xbf16, #tpu.memory_space<vmem>>, vector<80x16xbf16>
    %c0_26 = arith.constant 0 : index
    %c0_27 = arith.constant 0 : index
    %34 = vector.load %arg13[%c0_26, %c0_27] : memref<1x16xf32, #tpu.memory_space<vmem>>, vector<1x16xf32>
    %35 = vector.shape_cast %26 : vector<16x32xf32> to vector<16x1x32xf32>
    %36 = vector.shape_cast %35 : vector<16x1x32xf32> to vector<16x1x32xf32>
    %37 = vector.broadcast %36 : vector<16x1x32xf32> to vector<16x2x32xf32>
    %38 = vector.shape_cast %37 : vector<16x2x32xf32> to vector<32x32xf32>
    %cst_28 = arith.constant 0.000000e+00 : f32
    %39 = vector.broadcast %cst_28 : f32 to vector<1x32xf32>
    %40 = vector.extract_strided_slice %38 {offsets = [0, 0], sizes = [31, 32], strides = [1, 1]} : vector<32x32xf32> to vector<31x32xf32>
    %41 = tpu.concatenate %39, %40 in 0 : vector<1x32xf32>, vector<31x32xf32> -> vector<32x32xf32>
    %42 = vector.extract_strided_slice %38 {offsets = [1, 0], sizes = [31, 32], strides = [1, 1]} : vector<32x32xf32> to vector<31x32xf32>
    %cst_29 = arith.constant 0.000000e+00 : f32
    %43 = vector.broadcast %cst_29 : f32 to vector<1x32xf32>
    %44 = tpu.concatenate %42, %43 in 0 : vector<31x32xf32>, vector<1x32xf32> -> vector<32x32xf32>
    %45 = tpu.concatenate %41, %38, %44 in 1 : vector<32x32xf32>, vector<32x32xf32>, vector<32x32xf32> -> vector<32x96xf32>
    %46 = arith.truncf %45 : vector<32x96xf32> to vector<32x96xbf16>
    %cst_30 = arith.constant dense<0.000000e+00> : vector<32x16xf32>
    %47 = tpu.matmul %46, %27, %cst_30 {dimension_numbers = #tpu.dot_dimension_numbers<[1], [0], [0], [1], [0, 0, 1, 1], [], []>} : vector<32x96xbf16>, vector<96x16xbf16>, vector<32x16xf32> -> vector<32x16xf32>
    %48 = vector.broadcast %28 : vector<1x16xf32> to vector<32x16xf32>
    %49 = arith.addf %47, %48 : vector<32x16xf32>
    %cst_31 = arith.constant 0.000000e+00 : f32
    %50 = vector.broadcast %cst_31 : f32 to vector<32x16xf32>
    %51 = arith.cmpf ogt, %49, %50 : vector<32x16xf32>
    %cst_32 = arith.constant 1.000000e-01 : f32
    %52 = vector.broadcast %cst_32 : f32 to vector<32x16xf32>
    %53 = arith.mulf %52, %49 : vector<32x16xf32>
    %54 = arith.select %51, %49, %53 : vector<32x16xi1>, vector<32x16xf32>
    %c0_33 = arith.constant 0 : index
    %c0_34 = arith.constant 0 : index
    %c0_35 = arith.constant 0 : index
    %55 = vector.load %arg2[%c0_33, %c0_34, %c0_35] : memref<1x32x4xf32, #tpu.memory_space<vmem>>, vector<1x32x4xf32>
    %56 = vector.shape_cast %55 : vector<1x32x4xf32> to vector<32x4xf32>
    %57 = arith.truncf %56 : vector<32x4xf32> to vector<32x4xbf16>
    %cst_36 = arith.constant dense<0.000000e+00> : vector<32x16xf32>
    %58 = tpu.matmul %57, %29, %cst_36 {dimension_numbers = #tpu.dot_dimension_numbers<[1], [0], [0], [1], [0, 0, 1, 1], [], []>} : vector<32x4xbf16>, vector<4x16xbf16>, vector<32x16xf32> -> vector<32x16xf32>
    %59 = arith.addf %54, %58 : vector<32x16xf32>
    %60 = vector.broadcast %30 : vector<1x16xf32> to vector<32x16xf32>
    %61 = arith.addf %59, %60 : vector<32x16xf32>
    %cst_37 = arith.constant 0.000000e+00 : f32
    %62 = vector.broadcast %cst_37 : f32 to vector<32x16xf32>
    %63 = arith.cmpf ogt, %61, %62 : vector<32x16xf32>
    %cst_38 = arith.constant 1.000000e-01 : f32
    %64 = vector.broadcast %cst_38 : f32 to vector<32x16xf32>
    %65 = arith.mulf %64, %61 : vector<32x16xf32>
    %66 = arith.select %63, %61, %65 : vector<32x16xi1>, vector<32x16xf32>
    %cst_39 = arith.constant 0.000000e+00 : f32
    %67 = vector.broadcast %cst_39 : f32 to vector<1x16xf32>
    %68 = vector.extract_strided_slice %66 {offsets = [0, 0], sizes = [31, 16], strides = [1, 1]} : vector<32x16xf32> to vector<31x16xf32>
    %69 = tpu.concatenate %67, %68 in 0 : vector<1x16xf32>, vector<31x16xf32> -> vector<32x16xf32>
    %70 = vector.extract_strided_slice %66 {offsets = [1, 0], sizes = [31, 16], strides = [1, 1]} : vector<32x16xf32> to vector<31x16xf32>
    %cst_40 = arith.constant 0.000000e+00 : f32
    %71 = vector.broadcast %cst_40 : f32 to vector<1x16xf32>
    %72 = tpu.concatenate %70, %71 in 0 : vector<31x16xf32>, vector<1x16xf32> -> vector<32x16xf32>
    %73 = tpu.concatenate %69, %66, %72 in 1 : vector<32x16xf32>, vector<32x16xf32>, vector<32x16xf32> -> vector<32x48xf32>
    %74 = arith.truncf %73 : vector<32x48xf32> to vector<32x48xbf16>
    %cst_41 = arith.constant dense<0.000000e+00> : vector<32x16xf32>
    %75 = tpu.matmul %74, %31, %cst_41 {dimension_numbers = #tpu.dot_dimension_numbers<[1], [0], [0], [1], [0, 0, 1, 1], [], []>} : vector<32x48xbf16>, vector<48x16xbf16>, vector<32x16xf32> -> vector<32x16xf32>
    %76 = vector.broadcast %32 : vector<1x16xf32> to vector<32x16xf32>
    %77 = arith.addf %75, %76 : vector<32x16xf32>
    %cst_42 = arith.constant 0.000000e+00 : f32
    %78 = vector.broadcast %cst_42 : f32 to vector<2x16xf32>
    %79 = vector.extract_strided_slice %66 {offsets = [0, 0], sizes = [30, 16], strides = [1, 1]} : vector<32x16xf32> to vector<30x16xf32>
    %80 = tpu.concatenate %78, %79 in 0 : vector<2x16xf32>, vector<30x16xf32> -> vector<32x16xf32>
    %cst_43 = arith.constant 0.000000e+00 : f32
    %81 = vector.broadcast %cst_43 : f32 to vector<1x16xf32>
    %82 = vector.extract_strided_slice %66 {offsets = [0, 0], sizes = [31, 16], strides = [1, 1]} : vector<32x16xf32> to vector<31x16xf32>
    %83 = tpu.concatenate %81, %82 in 0 : vector<1x16xf32>, vector<31x16xf32> -> vector<32x16xf32>
    %84 = vector.extract_strided_slice %66 {offsets = [1, 0], sizes = [31, 16], strides = [1, 1]} : vector<32x16xf32> to vector<31x16xf32>
    %cst_44 = arith.constant 0.000000e+00 : f32
    %85 = vector.broadcast %cst_44 : f32 to vector<1x16xf32>
    %86 = tpu.concatenate %84, %85 in 0 : vector<31x16xf32>, vector<1x16xf32> -> vector<32x16xf32>
    %87 = vector.extract_strided_slice %66 {offsets = [2, 0], sizes = [30, 16], strides = [1, 1]} : vector<32x16xf32> to vector<30x16xf32>
    %cst_45 = arith.constant 0.000000e+00 : f32
    %88 = vector.broadcast %cst_45 : f32 to vector<2x16xf32>
    %89 = tpu.concatenate %87, %88 in 0 : vector<30x16xf32>, vector<2x16xf32> -> vector<32x16xf32>
    %90 = tpu.concatenate %80, %83, %66, %86, %89 in 1 : vector<32x16xf32>, vector<32x16xf32>, vector<32x16xf32>, vector<32x16xf32>, vector<32x16xf32> -> vector<32x80xf32>
    %91 = arith.truncf %90 : vector<32x80xf32> to vector<32x80xbf16>
    %cst_46 = arith.constant dense<0.000000e+00> : vector<32x16xf32>
    %92 = tpu.matmul %91, %33, %cst_46 {dimension_numbers = #tpu.dot_dimension_numbers<[1], [0], [0], [1], [0, 0, 1, 1], [], []>} : vector<32x80xbf16>, vector<80x16xbf16>, vector<32x16xf32> -> vector<32x16xf32>
    %93 = vector.broadcast %34 : vector<1x16xf32> to vector<32x16xf32>
    %94 = arith.addf %92, %93 : vector<32x16xf32>
    %95 = arith.addf %77, %94 : vector<32x16xf32>
    %cst_47 = arith.constant 5.000000e-01 : f32
    %96 = vector.broadcast %cst_47 : f32 to vector<32x16xf32>
    %97 = arith.mulf %96, %95 : vector<32x16xf32>
    %98 = arith.addf %61, %97 : vector<32x16xf32>
    %c0_48 = arith.constant 0 : index
    %c0_49 = arith.constant 0 : index
    %99 = vector.load %arg14[%c0_48, %c0_49] : memref<48x8xbf16, #tpu.memory_space<vmem>>, vector<48x8xbf16>
    %c0_50 = arith.constant 0 : index
    %c0_51 = arith.constant 0 : index
    %100 = vector.load %arg15[%c0_50, %c0_51] : memref<1x8xf32, #tpu.memory_space<vmem>>, vector<1x8xf32>
    %c0_52 = arith.constant 0 : index
    %c0_53 = arith.constant 0 : index
    %101 = vector.load %arg16[%c0_52, %c0_53] : memref<1x8xbf16, #tpu.memory_space<vmem>>, vector<1x8xbf16>
    %c0_54 = arith.constant 0 : index
    %c0_55 = arith.constant 0 : index
    %102 = vector.load %arg17[%c0_54, %c0_55] : memref<1x8xf32, #tpu.memory_space<vmem>>, vector<1x8xf32>
    %c0_56 = arith.constant 0 : index
    %c0_57 = arith.constant 0 : index
    %103 = vector.load %arg18[%c0_56, %c0_57] : memref<24x8xbf16, #tpu.memory_space<vmem>>, vector<24x8xbf16>
    %c0_58 = arith.constant 0 : index
    %c0_59 = arith.constant 0 : index
    %104 = vector.load %arg19[%c0_58, %c0_59] : memref<1x8xf32, #tpu.memory_space<vmem>>, vector<1x8xf32>
    %c0_60 = arith.constant 0 : index
    %c0_61 = arith.constant 0 : index
    %105 = vector.load %arg20[%c0_60, %c0_61] : memref<40x8xbf16, #tpu.memory_space<vmem>>, vector<40x8xbf16>
    %c0_62 = arith.constant 0 : index
    %c0_63 = arith.constant 0 : index
    %106 = vector.load %arg21[%c0_62, %c0_63] : memref<1x8xf32, #tpu.memory_space<vmem>>, vector<1x8xf32>
    %107 = vector.shape_cast %98 : vector<32x16xf32> to vector<32x1x16xf32>
    %108 = vector.shape_cast %107 : vector<32x1x16xf32> to vector<32x1x16xf32>
    %109 = vector.broadcast %108 : vector<32x1x16xf32> to vector<32x2x16xf32>
    %110 = vector.shape_cast %109 : vector<32x2x16xf32> to vector<64x16xf32>
    %cst_64 = arith.constant 0.000000e+00 : f32
    %111 = vector.broadcast %cst_64 : f32 to vector<1x16xf32>
    %112 = vector.extract_strided_slice %110 {offsets = [0, 0], sizes = [63, 16], strides = [1, 1]} : vector<64x16xf32> to vector<63x16xf32>
    %113 = tpu.concatenate %111, %112 in 0 : vector<1x16xf32>, vector<63x16xf32> -> vector<64x16xf32>
    %114 = vector.extract_strided_slice %110 {offsets = [1, 0], sizes = [63, 16], strides = [1, 1]} : vector<64x16xf32> to vector<63x16xf32>
    %cst_65 = arith.constant 0.000000e+00 : f32
    %115 = vector.broadcast %cst_65 : f32 to vector<1x16xf32>
    %116 = tpu.concatenate %114, %115 in 0 : vector<63x16xf32>, vector<1x16xf32> -> vector<64x16xf32>
    %117 = tpu.concatenate %113, %110, %116 in 1 : vector<64x16xf32>, vector<64x16xf32>, vector<64x16xf32> -> vector<64x48xf32>
    %118 = arith.truncf %117 : vector<64x48xf32> to vector<64x48xbf16>
    %cst_66 = arith.constant dense<0.000000e+00> : vector<64x8xf32>
    %119 = tpu.matmul %118, %99, %cst_66 {dimension_numbers = #tpu.dot_dimension_numbers<[1], [0], [0], [1], [0, 0, 1, 1], [], []>} : vector<64x48xbf16>, vector<48x8xbf16>, vector<64x8xf32> -> vector<64x8xf32>
    %120 = vector.broadcast %100 : vector<1x8xf32> to vector<64x8xf32>
    %121 = arith.addf %119, %120 : vector<64x8xf32>
    %cst_67 = arith.constant 0.000000e+00 : f32
    %122 = vector.broadcast %cst_67 : f32 to vector<64x8xf32>
    %123 = arith.cmpf ogt, %121, %122 : vector<64x8xf32>
    %cst_68 = arith.constant 1.000000e-01 : f32
    %124 = vector.broadcast %cst_68 : f32 to vector<64x8xf32>
    %125 = arith.mulf %124, %121 : vector<64x8xf32>
    %126 = arith.select %123, %121, %125 : vector<64x8xi1>, vector<64x8xf32>
    %c0_69 = arith.constant 0 : index
    %c0_70 = arith.constant 0 : index
    %c0_71 = arith.constant 0 : index
    %127 = vector.load %arg3[%c0_69, %c0_70, %c0_71] : memref<1x64x1xf32, #tpu.memory_space<vmem>>, vector<1x64x1xf32>
    %128 = vector.shape_cast %127 : vector<1x64x1xf32> to vector<64x1xf32>
    %129 = arith.truncf %128 : vector<64x1xf32> to vector<64x1xbf16>
    %cst_72 = arith.constant dense<0.000000e+00> : vector<64x8xf32>
    %130 = tpu.matmul %129, %101, %cst_72 {dimension_numbers = #tpu.dot_dimension_numbers<[1], [0], [0], [1], [0, 0, 1, 1], [], []>} : vector<64x1xbf16>, vector<1x8xbf16>, vector<64x8xf32> -> vector<64x8xf32>
    %131 = arith.addf %126, %130 : vector<64x8xf32>
    %132 = vector.broadcast %102 : vector<1x8xf32> to vector<64x8xf32>
    %133 = arith.addf %131, %132 : vector<64x8xf32>
    %cst_73 = arith.constant 0.000000e+00 : f32
    %134 = vector.broadcast %cst_73 : f32 to vector<64x8xf32>
    %135 = arith.cmpf ogt, %133, %134 : vector<64x8xf32>
    %cst_74 = arith.constant 1.000000e-01 : f32
    %136 = vector.broadcast %cst_74 : f32 to vector<64x8xf32>
    %137 = arith.mulf %136, %133 : vector<64x8xf32>
    %138 = arith.select %135, %133, %137 : vector<64x8xi1>, vector<64x8xf32>
    %cst_75 = arith.constant 0.000000e+00 : f32
    %139 = vector.broadcast %cst_75 : f32 to vector<1x8xf32>
    %140 = vector.extract_strided_slice %138 {offsets = [0, 0], sizes = [63, 8], strides = [1, 1]} : vector<64x8xf32> to vector<63x8xf32>
    %141 = tpu.concatenate %139, %140 in 0 : vector<1x8xf32>, vector<63x8xf32> -> vector<64x8xf32>
    %142 = vector.extract_strided_slice %138 {offsets = [1, 0], sizes = [63, 8], strides = [1, 1]} : vector<64x8xf32> to vector<63x8xf32>
    %cst_76 = arith.constant 0.000000e+00 : f32
    %143 = vector.broadcast %cst_76 : f32 to vector<1x8xf32>
    %144 = tpu.concatenate %142, %143 in 0 : vector<63x8xf32>, vector<1x8xf32> -> vector<64x8xf32>
    %145 = tpu.concatenate %141, %138, %144 in 1 : vector<64x8xf32>, vector<64x8xf32>, vector<64x8xf32> -> vector<64x24xf32>
    %146 = arith.truncf %145 : vector<64x24xf32> to vector<64x24xbf16>
    %cst_77 = arith.constant dense<0.000000e+00> : vector<64x8xf32>
    %147 = tpu.matmul %146, %103, %cst_77 {dimension_numbers = #tpu.dot_dimension_numbers<[1], [0], [0], [1], [0, 0, 1, 1], [], []>} : vector<64x24xbf16>, vector<24x8xbf16>, vector<64x8xf32> -> vector<64x8xf32>
    %148 = vector.broadcast %104 : vector<1x8xf32> to vector<64x8xf32>
    %149 = arith.addf %147, %148 : vector<64x8xf32>
    %cst_78 = arith.constant 0.000000e+00 : f32
    %150 = vector.broadcast %cst_78 : f32 to vector<2x8xf32>
    %151 = vector.extract_strided_slice %138 {offsets = [0, 0], sizes = [62, 8], strides = [1, 1]} : vector<64x8xf32> to vector<62x8xf32>
    %152 = tpu.concatenate %150, %151 in 0 : vector<2x8xf32>, vector<62x8xf32> -> vector<64x8xf32>
    %cst_79 = arith.constant 0.000000e+00 : f32
    %153 = vector.broadcast %cst_79 : f32 to vector<1x8xf32>
    %154 = vector.extract_strided_slice %138 {offsets = [0, 0], sizes = [63, 8], strides = [1, 1]} : vector<64x8xf32> to vector<63x8xf32>
    %155 = tpu.concatenate %153, %154 in 0 : vector<1x8xf32>, vector<63x8xf32> -> vector<64x8xf32>
    %156 = vector.extract_strided_slice %138 {offsets = [1, 0], sizes = [63, 8], strides = [1, 1]} : vector<64x8xf32> to vector<63x8xf32>
    %cst_80 = arith.constant 0.000000e+00 : f32
    %157 = vector.broadcast %cst_80 : f32 to vector<1x8xf32>
    %158 = tpu.concatenate %156, %157 in 0 : vector<63x8xf32>, vector<1x8xf32> -> vector<64x8xf32>
    %159 = vector.extract_strided_slice %138 {offsets = [2, 0], sizes = [62, 8], strides = [1, 1]} : vector<64x8xf32> to vector<62x8xf32>
    %cst_81 = arith.constant 0.000000e+00 : f32
    %160 = vector.broadcast %cst_81 : f32 to vector<2x8xf32>
    %161 = tpu.concatenate %159, %160 in 0 : vector<62x8xf32>, vector<2x8xf32> -> vector<64x8xf32>
    %162 = tpu.concatenate %152, %155, %138, %158, %161 in 1 : vector<64x8xf32>, vector<64x8xf32>, vector<64x8xf32>, vector<64x8xf32>, vector<64x8xf32> -> vector<64x40xf32>
    %163 = arith.truncf %162 : vector<64x40xf32> to vector<64x40xbf16>
    %cst_82 = arith.constant dense<0.000000e+00> : vector<64x8xf32>
    %164 = tpu.matmul %163, %105, %cst_82 {dimension_numbers = #tpu.dot_dimension_numbers<[1], [0], [0], [1], [0, 0, 1, 1], [], []>} : vector<64x40xbf16>, vector<40x8xbf16>, vector<64x8xf32> -> vector<64x8xf32>
    %165 = vector.broadcast %106 : vector<1x8xf32> to vector<64x8xf32>
    %166 = arith.addf %164, %165 : vector<64x8xf32>
    %167 = arith.addf %149, %166 : vector<64x8xf32>
    %cst_83 = arith.constant 5.000000e-01 : f32
    %168 = vector.broadcast %cst_83 : f32 to vector<64x8xf32>
    %169 = arith.mulf %168, %167 : vector<64x8xf32>
    %170 = arith.addf %133, %169 : vector<64x8xf32>
    %cst_84 = arith.constant 0.000000e+00 : f32
    %171 = vector.broadcast %cst_84 : f32 to vector<64x8xf32>
    %172 = arith.cmpf ogt, %170, %171 : vector<64x8xf32>
    %cst_85 = arith.constant 1.000000e-01 : f32
    %173 = vector.broadcast %cst_85 : f32 to vector<64x8xf32>
    %174 = arith.mulf %173, %170 : vector<64x8xf32>
    %175 = arith.select %172, %170, %174 : vector<64x8xi1>, vector<64x8xf32>
    %c0_86 = arith.constant 0 : index
    %c0_87 = arith.constant 0 : index
    %176 = vector.load %arg22[%c0_86, %c0_87] : memref<56x1xbf16, #tpu.memory_space<vmem>>, vector<56x1xbf16>
    %cst_88 = arith.constant 0.000000e+00 : f32
    %177 = vector.broadcast %cst_88 : f32 to vector<3x8xf32>
    %178 = vector.extract_strided_slice %175 {offsets = [0, 0], sizes = [61, 8], strides = [1, 1]} : vector<64x8xf32> to vector<61x8xf32>
    %179 = tpu.concatenate %177, %178 in 0 : vector<3x8xf32>, vector<61x8xf32> -> vector<64x8xf32>
    %cst_89 = arith.constant 0.000000e+00 : f32
    %180 = vector.broadcast %cst_89 : f32 to vector<2x8xf32>
    %181 = vector.extract_strided_slice %175 {offsets = [0, 0], sizes = [62, 8], strides = [1, 1]} : vector<64x8xf32> to vector<62x8xf32>
    %182 = tpu.concatenate %180, %181 in 0 : vector<2x8xf32>, vector<62x8xf32> -> vector<64x8xf32>
    %cst_90 = arith.constant 0.000000e+00 : f32
    %183 = vector.broadcast %cst_90 : f32 to vector<1x8xf32>
    %184 = vector.extract_strided_slice %175 {offsets = [0, 0], sizes = [63, 8], strides = [1, 1]} : vector<64x8xf32> to vector<63x8xf32>
    %185 = tpu.concatenate %183, %184 in 0 : vector<1x8xf32>, vector<63x8xf32> -> vector<64x8xf32>
    %186 = vector.extract_strided_slice %175 {offsets = [1, 0], sizes = [63, 8], strides = [1, 1]} : vector<64x8xf32> to vector<63x8xf32>
    %cst_91 = arith.constant 0.000000e+00 : f32
    %187 = vector.broadcast %cst_91 : f32 to vector<1x8xf32>
    %188 = tpu.concatenate %186, %187 in 0 : vector<63x8xf32>, vector<1x8xf32> -> vector<64x8xf32>
    %189 = vector.extract_strided_slice %175 {offsets = [2, 0], sizes = [62, 8], strides = [1, 1]} : vector<64x8xf32> to vector<62x8xf32>
    %cst_92 = arith.constant 0.000000e+00 : f32
    %190 = vector.broadcast %cst_92 : f32 to vector<2x8xf32>
    %191 = tpu.concatenate %189, %190 in 0 : vector<62x8xf32>, vector<2x8xf32> -> vector<64x8xf32>
    %192 = vector.extract_strided_slice %175 {offsets = [3, 0], sizes = [61, 8], strides = [1, 1]} : vector<64x8xf32> to vector<61x8xf32>
    %cst_93 = arith.constant 0.000000e+00 : f32
    %193 = vector.broadcast %cst_93 : f32 to vector<3x8xf32>
    %194 = tpu.concatenate %192, %193 in 0 : vector<61x8xf32>, vector<3x8xf32> -> vector<64x8xf32>
    %195 = tpu.concatenate %179, %182, %185, %175, %188, %191, %194 in 1 : vector<64x8xf32>, vector<64x8xf32>, vector<64x8xf32>, vector<64x8xf32>, vector<64x8xf32>, vector<64x8xf32>, vector<64x8xf32> -> vector<64x56xf32>
    %196 = arith.truncf %195 : vector<64x56xf32> to vector<64x56xbf16>
    %cst_94 = arith.constant dense<0.000000e+00> : vector<64x1xf32>
    %197 = tpu.matmul %196, %176, %cst_94 {dimension_numbers = #tpu.dot_dimension_numbers<[1], [0], [0], [1], [0, 0, 1, 1], [], []>} : vector<64x56xbf16>, vector<56x1xbf16>, vector<64x1xf32> -> vector<64x1xf32>
    %c0_95 = arith.constant 0 : index
    %c0_96 = arith.constant 0 : index
    %198 = vector.load %arg23[%c0_95, %c0_96] : memref<1x1xf32, #tpu.memory_space<vmem>>, vector<1x1xf32>
    %199 = vector.broadcast %198 : vector<1x1xf32> to vector<64x1xf32>
    %200 = arith.addf %197, %199 : vector<64x1xf32>
    %201 = math.tanh %200 : vector<64x1xf32>
    %c0_97 = arith.constant 0 : index
    %c0_98 = arith.constant 0 : index
    %c0_99 = arith.constant 0 : index
    %202 = vector.load %arg24[%c0_97, %c0_98, %c0_99] : memref<1x64x1xf32, #tpu.memory_space<vmem>>, vector<1x64x1xf32>
    %203 = vector.shape_cast %202 : vector<1x64x1xf32> to vector<64x1xf32>
    %204 = vector.shape_cast %201 : vector<64x1xf32> to vector<1x64x1xf32>
    tpu.vector_store %arg24[%c0_97, %c0_98, %c0_99], %204 {strides = array<i32>} : memref<1x64x1xf32, #tpu.memory_space<vmem>>, vector<1x64x1xf32>,
    return
  }
  func.func @transform_0(%arg0: i32) -> (i32, i32, i32) {
    %c0_i32 = arith.constant 0 : i32
    %c0_i32_0 = arith.constant 0 : i32
    %c0_i32_1 = arith.constant 0 : i32
    return %arg0, %c0_i32, %c0_i32_0 : i32, i32, i32
  }
  func.func @transform_1(%arg0: i32) -> (i32, i32, i32) {
    %c0_i32 = arith.constant 0 : i32
    %c0_i32_0 = arith.constant 0 : i32
    %c0_i32_1 = arith.constant 0 : i32
    return %arg0, %c0_i32, %c0_i32_0 : i32, i32, i32
  }
  func.func @transform_2(%arg0: i32) -> (i32, i32, i32) {
    %c0_i32 = arith.constant 0 : i32
    %c0_i32_0 = arith.constant 0 : i32
    %c0_i32_1 = arith.constant 0 : i32
    return %arg0, %c0_i32, %c0_i32_0 : i32, i32, i32
  }
  func.func @transform_3(%arg0: i32) -> (i32, i32) {
    %c0_i32 = arith.constant 0 : i32
    %c0_i32_0 = arith.constant 0 : i32
    %c0_i32_1 = arith.constant 0 : i32
    return %c0_i32, %c0_i32_0 : i32, i32
  }
  func.func @transform_4(%arg0: i32) -> (i32, i32) {
    %c0_i32 = arith.constant 0 : i32
    %c0_i32_0 = arith.constant 0 : i32
    %c0_i32_1 = arith.constant 0 : i32
    return %c0_i32, %c0_i32_0 : i32, i32
  }
  func.func @transform_5(%arg0: i32) -> (i32, i32) {
    %c0_i32 = arith.constant 0 : i32
    %c0_i32_0 = arith.constant 0 : i32
    %c0_i32_1 = arith.constant 0 : i32
    return %c0_i32, %c0_i32_0 : i32, i32
  }
  func.func @transform_6(%arg0: i32) -> (i32, i32) {
    %c0_i32 = arith.constant 0 : i32
    %c0_i32_0 = arith.constant 0 : i32
    %c0_i32_1 = arith.constant 0 : i32
    return %c0_i32, %c0_i32_0 : i32, i32
  }
  func.func @transform_7(%arg0: i32) -> (i32, i32) {
    %c0_i32 = arith.constant 0 : i32
    %c0_i32_0 = arith.constant 0 : i32
    %c0_i32_1 = arith.constant 0 : i32
    return %c0_i32, %c0_i32_0 : i32, i32
  }
  func.func @transform_8(%arg0: i32) -> (i32, i32) {
    %c0_i32 = arith.constant 0 : i32
    %c0_i32_0 = arith.constant 0 : i32
    %c0_i32_1 = arith.constant 0 : i32
    return %c0_i32, %c0_i32_0 : i32, i32
  }
  func.func @transform_9(%arg0: i32) -> (i32, i32) {
    %c0_i32 = arith.constant 0 : i32
    %c0_i32_0 = arith.constant 0 : i32
    %c0_i32_1 = arith.constant 0 : i32
    return %c0_i32, %c0_i32_0 : i32, i32
  }
  func.func @transform_10(%arg0: i32) -> (i32, i32) {
    %c0_i32 = arith.constant 0 : i32
    %c0_i32_0 = arith.constant 0 : i32
    %c0_i32_1 = arith.constant 0 : i32
    return %c0_i32, %c0_i32_0 : i32, i32
  }
  func.func @transform_11(%arg0: i32) -> (i32, i32) {
    %c0_i32 = arith.constant 0 : i32
    %c0_i32_0 = arith.constant 0 : i32
    %c0_i32_1 = arith.constant 0 : i32
    return %c0_i32, %c0_i32_0 : i32, i32
  }
  func.func @transform_12(%arg0: i32) -> (i32, i32) {
    %c0_i32 = arith.constant 0 : i32
    %c0_i32_0 = arith.constant 0 : i32
    %c0_i32_1 = arith.constant 0 : i32
    return %c0_i32, %c0_i32_0 : i32, i32
  }
  func.func @transform_13(%arg0: i32) -> (i32, i32) {
    %c0_i32 = arith.constant 0 : i32
    %c0_i32_0 = arith.constant 0 : i32
    %c0_i32_1 = arith.constant 0 : i32
    return %c0_i32, %c0_i32_0 : i32, i32
  }
  func.func @transform_14(%arg0: i32) -> (i32, i32) {
    %c0_i32 = arith.constant 0 : i32
    %c0_i32_0 = arith.constant 0 : i32
    %c0_i32_1 = arith.constant 0 : i32
    return %c0_i32, %c0_i32_0 : i32, i32
  }
  func.func @transform_15(%arg0: i32) -> (i32, i32) {
    %c0_i32 = arith.constant 0 : i32
    %c0_i32_0 = arith.constant 0 : i32
    %c0_i32_1 = arith.constant 0 : i32
    return %c0_i32, %c0_i32_0 : i32, i32
  }
  func.func @transform_16(%arg0: i32) -> (i32, i32) {
    %c0_i32 = arith.constant 0 : i32
    %c0_i32_0 = arith.constant 0 : i32
    %c0_i32_1 = arith.constant 0 : i32
    return %c0_i32, %c0_i32_0 : i32, i32
  }
  func.func @transform_17(%arg0: i32) -> (i32, i32) {
    %c0_i32 = arith.constant 0 : i32
    %c0_i32_0 = arith.constant 0 : i32
    %c0_i32_1 = arith.constant 0 : i32
    return %c0_i32, %c0_i32_0 : i32, i32
  }
  func.func @transform_18(%arg0: i32) -> (i32, i32) {
    %c0_i32 = arith.constant 0 : i32
    %c0_i32_0 = arith.constant 0 : i32
    %c0_i32_1 = arith.constant 0 : i32
    return %c0_i32, %c0_i32_0 : i32, i32
  }
  func.func @transform_19(%arg0: i32) -> (i32, i32) {
    %c0_i32 = arith.constant 0 : i32
    %c0_i32_0 = arith.constant 0 : i32
    %c0_i32_1 = arith.constant 0 : i32
    return %c0_i32, %c0_i32_0 : i32, i32
  }
  func.func @transform_20(%arg0: i32) -> (i32, i32) {
    %c0_i32 = arith.constant 0 : i32
    %c0_i32_0 = arith.constant 0 : i32
    %c0_i32_1 = arith.constant 0 : i32
    return %c0_i32, %c0_i32_0 : i32, i32
  }
  func.func @transform_21(%arg0: i32) -> (i32, i32) {
    %c0_i32 = arith.constant 0 : i32
    %c0_i32_0 = arith.constant 0 : i32
    %c0_i32_1 = arith.constant 0 : i32
    return %c0_i32, %c0_i32_0 : i32, i32
  }
  func.func @transform_22(%arg0: i32) -> (i32, i32) {
    %c0_i32 = arith.constant 0 : i32
    %c0_i32_0 = arith.constant 0 : i32
    %c0_i32_1 = arith.constant 0 : i32
    return %c0_i32, %c0_i32_0 : i32, i32
  }
  func.func @transform_23(%arg0: i32) -> (i32, i32, i32) {
    %c0_i32 = arith.constant 0 : i32
    %c0_i32_0 = arith.constant 0 : i32
    %c0_i32_1 = arith.constant 0 : i32
    return %arg0, %c0_i32, %c0_i32_0 : i32, i32, i32
  }
}

</mosaic_0001>

<llo_original>
// kernel: forward.4
$region0: #{forward.4}
  #allocation0 [shape = 'u32[]', space=smem, size = 0x4, offset = 0x4, fixed_abs, tag = 'smem constant byte address 0x4 - core index']
  #allocation1 [shape = 'u32[72,128]{1,0:T(1,128)}', space=vmem, size = 0x9000, scoped, tag = 'internal scratch']
  #allocation2 [shape = 'f32[1,1]{1,0:T(1,128)S(1)}', space=vmem, size = 0x200, scoped, tag = 'scoped memory for forward.4']
  %s0 = inlined_call_operand.vmem [shape: f32[2,16,8], index: 0, kind: input, shape index: {}]
  %s1 = inlined_call_operand.vmem [shape: f32[2,8,96], index: 1, kind: input, shape index: {}]
  %s2 = inlined_call_operand.vmem [shape: f32[2,16,32], index: 2, kind: input, shape index: {}]
  %s3 = inlined_call_operand.vmem [shape: f32[2,1,32], index: 3, kind: input, shape index: {}]
  %s4 = inlined_call_operand.vmem [shape: bf16[96,32], index: 4, kind: input, shape index: {}]
  %s5 = inlined_call_operand.vmem [shape: f32[1,32], index: 5, kind: input, shape index: {}]
  %s6 = inlined_call_operand.vmem [shape: bf16[32,1], index: 6, kind: input, shape index: {}]
  %s7 = inlined_call_operand.<no memory space> [shape: f32[1,1], index: 7, kind: input, shape index: {}]
  %s8 = inlined_call_operand.vmem [shape: bf16[32,32], index: 8, kind: input, shape index: {}]
  %s9 = inlined_call_operand.vmem [shape: bf16[32,32], index: 9, kind: input, shape index: {}]
  %s10 = inlined_call_operand.vmem [shape: bf16[32,32], index: 10, kind: input, shape index: {}]
  %s11 = inlined_call_operand.vmem [shape: bf16[32,32], index: 11, kind: input, shape index: {}]
  %s12 = inlined_call_operand.vmem [shape: f32[2,1,1], index: 12, kind: input, shape index: {}]
  %s13 = inlined_call_operand.vmem [shape: f32[2,1,1], index: 13, kind: input, shape index: {}]
  %s14 = inlined_call_operand.vmem [shape: f32[2,16,32], index: 14, kind: output, shape index: {0}]
  %s15 = inlined_call_operand.vmem [shape: f32[2,16,1], index: 15, kind: output, shape index: {1}]
  %16 = xla_tuple %s14, %s15
  %s17 = sld [smem:[#allocation0]]
  $region97: #{forward.4} parent=0
    _
  %s19 = ssub.s32 1, %s17
  %s20 = scalar_select 0, %s19, %s17
  %v21 = vstv %s7
  %22 = vst [vmem:[#allocation2] sm:$0x1] %v21
  loop: start=0, step=1, limit=4
  $region2: #{forward.4} parent=0 // loop_pre_header
    _
  $region3: #{forward.4} parent=0 // loop_header
    %s24 = sphi 0, %s28
    %p25 = scmp.ge.s32.totalorder %s24, 4
    %s34 = sphi 0, %s36
    %s37 = sphi 0, %s34
    %s38 = sphi 0, %s37
    %s54 = sphi 0, %s38
    %s60 = sphi 0, %s62
    %s63 = sphi 0, %s60
    %s64 = sphi 0, %s63
    %s80 = sphi 0, %s64
    %s86 = sphi 0, %s88
    %s89 = sphi 0, %s86
    %s90 = sphi 0, %s89
    %s106 = sphi 0, %s90
    %s112 = sphi 0, %s114
    %s115 = sphi 0, %s112
    %s116 = sphi 0, %s115
    %s132 = sphi 0, %s116
    %s136 = sphi 0, %s136
    %s138 = sphi 0, %s136
    %s139 = sphi 0, %s138
    %s153 = sphi 0, %s139
    %s157 = sphi 0, %s157
    %s159 = sphi 0, %s157
    %s160 = sphi 0, %s159
    %s174 = sphi 0, %s160
    %s178 = sphi 0, %s178
    %s180 = sphi 0, %s178
    %s181 = sphi 0, %s180
    %s195 = sphi 0, %s181
    %s199 = sphi 0, %s199
    %s201 = sphi 0, %s199
    %s202 = sphi 0, %s201
    %s216 = sphi 0, %s202
    %s220 = sphi 0, %s220
    %s222 = sphi 0, %s220
    %s223 = sphi 0, %s222
    %s237 = sphi 0, %s223
    %s241 = sphi 0, %s241
    %s243 = sphi 0, %s241
    %s244 = sphi 0, %s243
    %s258 = sphi 0, %s244
    %s262 = sphi 0, %s262
    %s264 = sphi 0, %s262
    %s265 = sphi 0, %s264
    %s279 = sphi 0, %s265
    %s283 = sphi 0, %s283
    %s285 = sphi 0, %s283
    %s286 = sphi 0, %s285
    %s300 = sphi 0, %s286
    %s306 = sphi 0, %s308
    %s309 = sphi 0, %s306
    %s310 = sphi 0, %s309
    %s326 = sphi 0, %s310
    %s332 = sphi 0, %s334
    %s335 = sphi 0, %s332
    %s336 = sphi 0, %s335
    %s352 = sphi 0, %s336
    %s358 = sphi 0, %s360
    %s361 = sphi 0, %s358
    %s362 = sphi 0, %s361
    %s378 = sphi 0, %s362
    %s384 = sphi 0, %s386
    %s387 = sphi 0, %s384
    %s388 = sphi 0, %s387
    %s404 = sphi 0, %s388
  $region4: #{forward.4} parent=0 // loop_header_branch
    %27 = sbr.rel (%p25) target = $region8
  $region5: #{forward.4} parent=0 // loop_body
    %s29 = ssub.s32 %s24, 1
    %s30 = ssub.s32 %s24, 2
    %s31 = sadd.s32 %s24, 1
    %s32 = ssub.s32 %s24, %s31
    %p33 = scmp.eq.s32.totalorder %s32, 0
    %s35 = sadd.s32 %s34, 1
    %s36 = scalar_select %p33, %s34, %s35
    %p39 = pneg %p33
    %p40 = scmp.eq.s32.totalorder %s24, 1
    %p41 = por %p39, %p40
    %p42 = scmp.ne.s32.totalorder %s34, %s37
    %p43 = scmp.eq.s32.totalorder %s24, 0
    %p44 = por %p42, %p43
    %p45 = scmp.ne.s32.totalorder %s34, %s37
    %p46 = scmp.eq.s32.totalorder %s29, 1
    %p47 = por %p45, %p46
    %p48 = scmp.ne.s32.totalorder %s37, %s38
    %p49 = scmp.eq.s32.totalorder %s29, 0
    %p50 = por %p48, %p49
    %p51 = scmp.ne.s32.totalorder %s37, %s38
    %p52 = scmp.eq.s32.totalorder %s30, 1
    %p53 = por %p51, %p52
    %p55 = scmp.ne.s32.totalorder %s38, %s54
    %p56 = scmp.eq.s32.totalorder %s30, 0
    %p57 = por %p55, %p56
    %s58 = ssub.s32 %s24, %s31
    %p59 = scmp.eq.s32.totalorder %s58, 0
    %s61 = sadd.s32 %s60, 1
    %s62 = scalar_select %p59, %s60, %s61
    %p65 = pneg %p59
    %p66 = scmp.eq.s32.totalorder %s24, 1
    %p67 = por %p65, %p66
    %p68 = scmp.ne.s32.totalorder %s60, %s63
    %p69 = scmp.eq.s32.totalorder %s24, 0
    %p70 = por %p68, %p69
    %p71 = scmp.ne.s32.totalorder %s60, %s63
    %p72 = scmp.eq.s32.totalorder %s29, 1
    %p73 = por %p71, %p72
    %p74 = scmp.ne.s32.totalorder %s63, %s64
    %p75 = scmp.eq.s32.totalorder %s29, 0
    %p76 = por %p74, %p75
    %p77 = scmp.ne.s32.totalorder %s63, %s64
    %p78 = scmp.eq.s32.totalorder %s30, 1
    %p79 = por %p77, %p78
    %p81 = scmp.ne.s32.totalorder %s64, %s80
    %p82 = scmp.eq.s32.totalorder %s30, 0
    %p83 = por %p81, %p82
    %s84 = ssub.s32 %s24, %s31
    %p85 = scmp.eq.s32.totalorder %s84, 0
    %s87 = sadd.s32 %s86, 1
    %s88 = scalar_select %p85, %s86, %s87
    %p91 = pneg %p85
    %p92 = scmp.eq.s32.totalorder %s24, 1
    %p93 = por %p91, %p92
    %p94 = scmp.ne.s32.totalorder %s86, %s89
    %p95 = scmp.eq.s32.totalorder %s24, 0
    %p96 = por %p94, %p95
    %p97 = scmp.ne.s32.totalorder %s86, %s89
    %p98 = scmp.eq.s32.totalorder %s29, 1
    %p99 = por %p97, %p98
    %p100 = scmp.ne.s32.totalorder %s89, %s90
    %p101 = scmp.eq.s32.totalorder %s29, 0
    %p102 = por %p100, %p101
    %p103 = scmp.ne.s32.totalorder %s89, %s90
    %p104 = scmp.eq.s32.totalorder %s30, 1
    %p105 = por %p103, %p104
    %p107 = scmp.ne.s32.totalorder %s90, %s106
    %p108 = scmp.eq.s32.totalorder %s30, 0
    %p109 = por %p107, %p108
    %s110 = ssub.s32 %s24, %s31
    %p111 = scmp.eq.s32.totalorder %s110, 0
    %s113 = sadd.s32 %s112, 1
    %s114 = scalar_select %p111, %s112, %s113
    %p117 = pneg %p111
    %p118 = scmp.eq.s32.totalorder %s24, 1
    %p119 = por %p117, %p118
    %p120 = scmp.ne.s32.totalorder %s112, %s115
    %p121 = scmp.eq.s32.totalorder %s24, 0
    %p122 = por %p120, %p121
    %p123 = scmp.ne.s32.totalorder %s112, %s115
    %p124 = scmp.eq.s32.totalorder %s29, 1
    %p125 = por %p123, %p124
    %p126 = scmp.ne.s32.totalorder %s115, %s116
    %p127 = scmp.eq.s32.totalorder %s29, 0
    %p128 = por %p126, %p127
    %p129 = scmp.ne.s32.totalorder %s115, %s116
    %p130 = scmp.eq.s32.totalorder %s30, 1
    %p131 = por %p129, %p130
    %p133 = scmp.ne.s32.totalorder %s116, %s132
    %p134 = scmp.eq.s32.totalorder %s30, 0
    %p135 = por %p133, %p134
    %s137 = sadd.s32 %s136, 1
    %p140 = scmp.eq.s32.totalorder %s24, 1
    %p141 = scmp.ne.s32.totalorder %s136, %s138
    %p142 = scmp.eq.s32.totalorder %s24, 0
    %p143 = por %p141, %p142
    %p144 = scmp.ne.s32.totalorder %s136, %s138
    %p145 = scmp.eq.s32.totalorder %s29, 1
    %p146 = por %p144, %p145
    %p147 = scmp.ne.s32.totalorder %s138, %s139
    %p148 = scmp.eq.s32.totalorder %s29, 0
    %p149 = por %p147, %p148
    %p150 = scmp.ne.s32.totalorder %s138, %s139
    %p151 = scmp.eq.s32.totalorder %s30, 1
    %p152 = por %p150, %p151
    %p154 = scmp.ne.s32.totalorder %s139, %s153
    %p155 = scmp.eq.s32.totalorder %s30, 0
    %p156 = por %p154, %p155
    %s158 = sadd.s32 %s157, 1
    %p161 = scmp.eq.s32.totalorder %s24, 1
    %p162 = scmp.ne.s32.totalorder %s157, %s159
    %p163 = scmp.eq.s32.totalorder %s24, 0
    %p164 = por %p162, %p163
    %p165 = scmp.ne.s32.totalorder %s157, %s159
    %p166 = scmp.eq.s32.totalorder %s29, 1
    %p167 = por %p165, %p166
    %p168 = scmp.ne.s32.totalorder %s159, %s160
    %p169 = scmp.eq.s32.totalorder %s29, 0
    %p170 = por %p168, %p169
    %p171 = scmp.ne.s32.totalorder %s159, %s160
    %p172 = scmp.eq.s32.totalorder %s30, 1
    %p173 = por %p171, %p172
    %p175 = scmp.ne.s32.totalorder %s160, %s174
    %p176 = scmp.eq.s32.totalorder %s30, 0
    %p177 = por %p175, %p176
    %s179 = sadd.s32 %s178, 1
    %p182 = scmp.eq.s32.totalorder %s24, 1
    %p183 = scmp.ne.s32.totalorder %s178, %s180
    %p184 = scmp.eq.s32.totalorder %s24, 0
    %p185 = por %p183, %p184
    %p186 = scmp.ne.s32.totalorder %s178, %s180
    %p187 = scmp.eq.s32.totalorder %s29, 1
    %p188 = por %p186, %p187
    %p189 = scmp.ne.s32.totalorder %s180, %s181
    %p190 = scmp.eq.s32.totalorder %s29, 0
    %p191 = por %p189, %p190
    %p192 = scmp.ne.s32.totalorder %s180, %s181
    %p193 = scmp.eq.s32.totalorder %s30, 1
    %p194 = por %p192, %p193
    %p196 = scmp.ne.s32.totalorder %s181, %s195
    %p197 = scmp.eq.s32.totalorder %s30, 0
    %p198 = por %p196, %p197
    %s200 = sadd.s32 %s199, 1
    %p203 = scmp.eq.s32.totalorder %s24, 1
    %p204 = scmp.ne.s32.totalorder %s199, %s201
    %p205 = scmp.eq.s32.totalorder %s24, 0
    %p206 = por %p204, %p205
    %p207 = scmp.ne.s32.totalorder %s199, %s201
    %p208 = scmp.eq.s32.totalorder %s29, 1
    %p209 = por %p207, %p208
    %p210 = scmp.ne.s32.totalorder %s201, %s202
    %p211 = scmp.eq.s32.totalorder %s29, 0
    %p212 = por %p210, %p211
    %p213 = scmp.ne.s32.totalorder %s201, %s202
    %p214 = scmp.eq.s32.totalorder %s30, 1
    %p215 = por %p213, %p214
    %p217 = scmp.ne.s32.totalorder %s202, %s216
    %p218 = scmp.eq.s32.totalorder %s30, 0
    %p219 = por %p217, %p218
    %s221 = sadd.s32 %s220, 1
    %p224 = scmp.eq.s32.totalorder %s24, 1
    %p225 = scmp.ne.s32.totalorder %s220, %s222
    %p226 = scmp.eq.s32.totalorder %s24, 0
    %p227 = por %p225, %p226
    %p228 = scmp.ne.s32.totalorder %s220, %s222
    %p229 = scmp.eq.s32.totalorder %s29, 1
    %p230 = por %p228, %p229
    %p231 = scmp.ne.s32.totalorder %s222, %s223
    %p232 = scmp.eq.s32.totalorder %s29, 0
    %p233 = por %p231, %p232
    %p234 = scmp.ne.s32.totalorder %s222, %s223
    %p235 = scmp.eq.s32.totalorder %s30, 1
    %p236 = por %p234, %p235
    %p238 = scmp.ne.s32.totalorder %s223, %s237
    %p239 = scmp.eq.s32.totalorder %s30, 0
    %p240 = por %p238, %p239
    %s242 = sadd.s32 %s241, 1
    %p245 = scmp.eq.s32.totalorder %s24, 1
    %p246 = scmp.ne.s32.totalorder %s241, %s243
    %p247 = scmp.eq.s32.totalorder %s24, 0
    %p248 = por %p246, %p247
    %p249 = scmp.ne.s32.totalorder %s241, %s243
    %p250 = scmp.eq.s32.totalorder %s29, 1
    %p251 = por %p249, %p250
    %p252 = scmp.ne.s32.totalorder %s243, %s244
    %p253 = scmp.eq.s32.totalorder %s29, 0
    %p254 = por %p252, %p253
    %p255 = scmp.ne.s32.totalorder %s243, %s244
    %p256 = scmp.eq.s32.totalorder %s30, 1
    %p257 = por %p255, %p256
    %p259 = scmp.ne.s32.totalorder %s244, %s258
    %p260 = scmp.eq.s32.totalorder %s30, 0
    %p261 = por %p259, %p260
    %s263 = sadd.s32 %s262, 1
    %p266 = scmp.eq.s32.totalorder %s24, 1
    %p267 = scmp.ne.s32.totalorder %s262, %s264
    %p268 = scmp.eq.s32.totalorder %s24, 0
    %p269 = por %p267, %p268
    %p270 = scmp.ne.s32.totalorder %s262, %s264
    %p271 = scmp.eq.s32.totalorder %s29, 1
    %p272 = por %p270, %p271
    %p273 = scmp.ne.s32.totalorder %s264, %s265
    %p274 = scmp.eq.s32.totalorder %s29, 0
    %p275 = por %p273, %p274
    %p276 = scmp.ne.s32.totalorder %s264, %s265
    %p277 = scmp.eq.s32.totalorder %s30, 1
    %p278 = por %p276, %p277
    %p280 = scmp.ne.s32.totalorder %s265, %s279
    %p281 = scmp.eq.s32.totalorder %s30, 0
    %p282 = por %p280, %p281
    %s284 = sadd.s32 %s283, 1
    %p287 = scmp.eq.s32.totalorder %s24, 1
    %p288 = scmp.ne.s32.totalorder %s283, %s285
    %p289 = scmp.eq.s32.totalorder %s24, 0
    %p290 = por %p288, %p289
    %p291 = scmp.ne.s32.totalorder %s283, %s285
    %p292 = scmp.eq.s32.totalorder %s29, 1
    %p293 = por %p291, %p292
    %p294 = scmp.ne.s32.totalorder %s285, %s286
    %p295 = scmp.eq.s32.totalorder %s29, 0
    %p296 = por %p294, %p295
    %p297 = scmp.ne.s32.totalorder %s285, %s286
    %p298 = scmp.eq.s32.totalorder %s30, 1
    %p299 = por %p297, %p298
    %p301 = scmp.ne.s32.totalorder %s286, %s300
    %p302 = scmp.eq.s32.totalorder %s30, 0
    %p303 = por %p301, %p302
    %s304 = ssub.s32 %s24, %s31
    %p305 = scmp.eq.s32.totalorder %s304, 0
    %s307 = sadd.s32 %s306, 1
    %s308 = scalar_select %p305, %s306, %s307
    %p311 = pneg %p305
    %p312 = scmp.eq.s32.totalorder %s24, 1
    %p313 = por %p311, %p312
    %p314 = scmp.ne.s32.totalorder %s306, %s309
    %p315 = scmp.eq.s32.totalorder %s24, 0
    %p316 = por %p314, %p315
    %p317 = scmp.ne.s32.totalorder %s306, %s309
    %p318 = scmp.eq.s32.totalorder %s29, 1
    %p319 = por %p317, %p318
    %p320 = scmp.ne.s32.totalorder %s309, %s310
    %p321 = scmp.eq.s32.totalorder %s29, 0
    %p322 = por %p320, %p321
    %p323 = scmp.ne.s32.totalorder %s309, %s310
    %p324 = scmp.eq.s32.totalorder %s30, 1
    %p325 = por %p323, %p324
    %p327 = scmp.ne.s32.totalorder %s310, %s326
    %p328 = scmp.eq.s32.totalorder %s30, 0
    %p329 = por %p327, %p328
    %s330 = ssub.s32 %s24, %s31
    %p331 = scmp.eq.s32.totalorder %s330, 0
    %s333 = sadd.s32 %s332, 1
    %s334 = scalar_select %p331, %s332, %s333
    %p337 = pneg %p331
    %p338 = scmp.eq.s32.totalorder %s24, 1
    %p339 = por %p337, %p338
    %p340 = scmp.ne.s32.totalorder %s332, %s335
    %p341 = scmp.eq.s32.totalorder %s24, 0
    %p342 = por %p340, %p341
    %p343 = scmp.ne.s32.totalorder %s332, %s335
    %p344 = scmp.eq.s32.totalorder %s29, 1
    %p345 = por %p343, %p344
    %p346 = scmp.ne.s32.totalorder %s335, %s336
    %p347 = scmp.eq.s32.totalorder %s29, 0
    %p348 = por %p346, %p347
    %p349 = scmp.ne.s32.totalorder %s335, %s336
    %p350 = scmp.eq.s32.totalorder %s30, 1
    %p351 = por %p349, %p350
    %p353 = scmp.ne.s32.totalorder %s336, %s352
    %p354 = scmp.eq.s32.totalorder %s30, 0
    %p355 = por %p353, %p354
    %s356 = ssub.s32 %s24, %s31
    %p357 = scmp.eq.s32.totalorder %s356, 0
    %s359 = sadd.s32 %s358, 1
    %s360 = scalar_select %p357, %s358, %s359
    %p363 = pneg %p357
    %p364 = scmp.eq.s32.totalorder %s24, 1
    %p365 = por %p363, %p364
    %p366 = scmp.ne.s32.totalorder %s358, %s361
    %p367 = scmp.eq.s32.totalorder %s24, 0
    %p368 = por %p366, %p367
    %p369 = scmp.ne.s32.totalorder %s358, %s361
    %p370 = scmp.eq.s32.totalorder %s29, 1
    %p371 = por %p369, %p370
    %p372 = scmp.ne.s32.totalorder %s361, %s362
    %p373 = scmp.eq.s32.totalorder %s29, 0
    %p374 = por %p372, %p373
    %p375 = scmp.ne.s32.totalorder %s361, %s362
    %p376 = scmp.eq.s32.totalorder %s30, 1
    %p377 = por %p375, %p376
    %p379 = scmp.ne.s32.totalorder %s362, %s378
    %p380 = scmp.eq.s32.totalorder %s30, 0
    %p381 = por %p379, %p380
    %s382 = ssub.s32 %s24, %s31
    %p383 = scmp.eq.s32.totalorder %s382, 0
    %s385 = sadd.s32 %s384, 1
    %s386 = scalar_select %p383, %s384, %s385
    %p389 = pneg %p383
    %p390 = scmp.eq.s32.totalorder %s24, 1
    %p391 = por %p389, %p390
    %p392 = scmp.ne.s32.totalorder %s384, %s387
    %p393 = scmp.eq.s32.totalorder %s24, 0
    %p394 = por %p392, %p393
    %p395 = scmp.ne.s32.totalorder %s384, %s387
    %p396 = scmp.eq.s32.totalorder %s29, 1
    %p397 = por %p395, %p396
    %p398 = scmp.ne.s32.totalorder %s387, %s388
    %p399 = scmp.eq.s32.totalorder %s29, 0
    %p400 = por %p398, %p399
    %p401 = scmp.ne.s32.totalorder %s387, %s388
    %p402 = scmp.eq.s32.totalorder %s30, 1
    %p403 = por %p401, %p402
    %p405 = scmp.ne.s32.totalorder %s388, %s404
    %p406 = scmp.eq.s32.totalorder %s30, 0
    %p407 = por %p405, %p406
    %p408 = scmp.le.s32.totalorder 1, %s24
    %p409 = scmp.lt.s32.totalorder %s24, 3
    %p410 = pnand %p408, %p409
    %p411 = pneg %p410
    // Predicated region
    $region9: #{forward.4} parent=5 // pred_check
      _
    $region10: #{forward.4} parent=5 // pred_check_branch
      %413 = sbr.rel (%p410) target = $region12
    $region11: #{forward.4} parent=5 // pred_region
      %s414 = ssub.s32 %s24, 1
      // Predicated region
      $region13: #{forward.4} parent=11 // pred_check
        %p415 = pneg %p149
      $region14: #{forward.4} parent=11 // pred_check_branch
        %417 = sbr.rel (%p415) target = $region16
      $region15: #{forward.4} parent=11 // pred_region
        _
      $region16: #{forward.4} parent=11 // pred_fallthru
        _
      // Predicated region
      $region17: #{forward.4} parent=11 // pred_check
        %p418 = pneg %p170
      $region18: #{forward.4} parent=11 // pred_check_branch
        %420 = sbr.rel (%p418) target = $region20
      $region19: #{forward.4} parent=11 // pred_region
        _
      $region20: #{forward.4} parent=11 // pred_fallthru
        _
      // Predicated region
      $region21: #{forward.4} parent=11 // pred_check
        %p421 = pneg %p191
      $region22: #{forward.4} parent=11 // pred_check_branch
        %423 = sbr.rel (%p421) target = $region24
      $region23: #{forward.4} parent=11 // pred_region
        _
      $region24: #{forward.4} parent=11 // pred_fallthru
        _
      // Predicated region
      $region25: #{forward.4} parent=11 // pred_check
        %p424 = pneg %p212
      $region26: #{forward.4} parent=11 // pred_check_branch
        %426 = sbr.rel (%p424) target = $region28
      $region27: #{forward.4} parent=11 // pred_region
        _
      $region28: #{forward.4} parent=11 // pred_fallthru
        _
      // Predicated region
      $region29: #{forward.4} parent=11 // pred_check
        %p427 = pneg %p233
      $region30: #{forward.4} parent=11 // pred_check_branch
        %429 = sbr.rel (%p427) target = $region32
      $region31: #{forward.4} parent=11 // pred_region
        _
      $region32: #{forward.4} parent=11 // pred_fallthru
        _
      // Predicated region
      $region33: #{forward.4} parent=11 // pred_check
        %p430 = pneg %p254
      $region34: #{forward.4} parent=11 // pred_check_branch
        %432 = sbr.rel (%p430) target = $region36
      $region35: #{forward.4} parent=11 // pred_region
        _
      $region36: #{forward.4} parent=11 // pred_fallthru
        _
      // Predicated region
      $region37: #{forward.4} parent=11 // pred_check
        %p433 = pneg %p275
      $region38: #{forward.4} parent=11 // pred_check_branch
        %435 = sbr.rel (%p433) target = $region40
      $region39: #{forward.4} parent=11 // pred_region
        _
      $region40: #{forward.4} parent=11 // pred_fallthru
        _
      // Predicated region
      $region41: #{forward.4} parent=11 // pred_check
        %p436 = pneg %p296
      $region42: #{forward.4} parent=11 // pred_check_branch
        %438 = sbr.rel (%p436) target = $region44
      $region43: #{forward.4} parent=11 // pred_region
        _
      $region44: #{forward.4} parent=11 // pred_fallthru
        _
    $region12: #{forward.4} parent=5 // pred_fallthru
      _
    %p439 = scmp.lt.s32.totalorder %s24, 2
    // Predicated region
    $region45: #{forward.4} parent=5 // pred_check
      %p440 = pneg %p439
    $region46: #{forward.4} parent=5 // pred_check_branch
      %442 = sbr.rel (%p440) target = $region48
    $region47: #{forward.4} parent=5 // pred_region
      // Predicated region
      $region49: #{forward.4} parent=47 // pred_check
        %p443 = pneg %p44
      $region50: #{forward.4} parent=47 // pred_check_branch
        %445 = sbr.rel (%p443) target = $region52
      $region51: #{forward.4} parent=47 // pred_region
        %p446 = scmp.lt.s32.totalorder %s24, 1
        %s447 = scalar_select %p446, %s24, 1
        %s448 = smul.addr %s447, 2
        %s449 = smul.addr %s448, 8
        %s450 = scalar_lea.vmem %s0, %s449
      $region52: #{forward.4} parent=47 // pred_fallthru
        _
      // Predicated region
      $region53: #{forward.4} parent=47 // pred_check
        %p451 = pneg %p70
      $region54: #{forward.4} parent=47 // pred_check_branch
        %453 = sbr.rel (%p451) target = $region56
      $region55: #{forward.4} parent=47 // pred_region
        %p454 = scmp.lt.s32.totalorder %s24, 1
        %s455 = scalar_select %p454, %s24, 1
        %s456 = smul.addr %s455, 8
        %s457 = scalar_lea.vmem %s1, %s456
      $region56: #{forward.4} parent=47 // pred_fallthru
        _
      // Predicated region
      $region57: #{forward.4} parent=47 // pred_check
        %p458 = pneg %p96
      $region58: #{forward.4} parent=47 // pred_check_branch
        %460 = sbr.rel (%p458) target = $region60
      $region59: #{forward.4} parent=47 // pred_region
        %p461 = scmp.lt.s32.totalorder %s24, 1
        %s462 = scalar_select %p461, %s24, 1
        %s463 = smul.addr %s462, 2
        %s464 = smul.addr %s463, 8
        %s465 = scalar_lea.vmem %s2, %s464
      $region60: #{forward.4} parent=47 // pred_fallthru
        _
      // Predicated region
      $region61: #{forward.4} parent=47 // pred_check
        %p466 = pneg %p122
      $region62: #{forward.4} parent=47 // pred_check_branch
        %468 = sbr.rel (%p466) target = $region64
      $region63: #{forward.4} parent=47 // pred_region
        %p469 = scmp.lt.s32.totalorder %s24, 1
        %s470 = scalar_select %p469, %s24, 1
        %s471 = scalar_lea.vmem %s3, %s470
      $region64: #{forward.4} parent=47 // pred_fallthru
        _
      // Predicated region
      $region65: #{forward.4} parent=47 // pred_check
        %p472 = pneg %p316
      $region66: #{forward.4} parent=47 // pred_check_branch
        %474 = sbr.rel (%p472) target = $region68
      $region67: #{forward.4} parent=47 // pred_region
        %p475 = scmp.lt.s32.totalorder %s24, 1
        %s476 = scalar_select %p475, %s24, 1
        %s477 = scalar_lea.vmem %s12, %s476
      $region68: #{forward.4} parent=47 // pred_fallthru
        _
      // Predicated region
      $region69: #{forward.4} parent=47 // pred_check
        %p478 = pneg %p342
      $region70: #{forward.4} parent=47 // pred_check_branch
        %480 = sbr.rel (%p478) target = $region72
      $region71: #{forward.4} parent=47 // pred_region
        %p481 = scmp.lt.s32.totalorder %s24, 1
        %s482 = scalar_select %p481, %s24, 1
        %s483 = scalar_lea.vmem %s13, %s482
      $region72: #{forward.4} parent=47 // pred_fallthru
        _
    $region48: #{forward.4} parent=5 // pred_fallthru
      _
    %p484 = scmp.le.s32.totalorder 1, %s24
    %p485 = scmp.lt.s32.totalorder %s24, 3
    %p486 = pnand %p484, %p485
    %p487 = pneg %p486
    // Predicated region
    $region73: #{forward.4} parent=5 // pred_check
      _
    $region74: #{forward.4} parent=5 // pred_check_branch
      %489 = sbr.rel (%p486) target = $region76
    $region75: #{forward.4} parent=5 // pred_region
      %s490 = ssub.s32 %s24, 1
      %p491 = scmp.lt.s32.totalorder %s29, 1
      %s492 = scalar_select %p491, %s29, 1
      %s493 = smul.addr %s492, 2
      %s494 = smul.addr %s493, 8
      %s495 = scalar_lea.vmem %s0, %s494
      %p496 = pneg %p50
      %p497 = pneg %p47
      %p498 = scmp.lt.s32.totalorder %s29, 1
      %s499 = scalar_select %p498, %s29, 1
      %s500 = smul.addr %s499, 8
      %s501 = scalar_lea.vmem %s1, %s500
      %p502 = pneg %p76
      %p503 = pneg %p73
      %p504 = scmp.lt.s32.totalorder %s29, 1
      %s505 = scalar_select %p504, %s29, 1
      %s506 = smul.addr %s505, 2
      %s507 = smul.addr %s506, 8
      %s508 = scalar_lea.vmem %s2, %s507
      %p509 = pneg %p102
      %p510 = pneg %p99
      %p511 = scmp.lt.s32.totalorder %s29, 1
      %s512 = scalar_select %p511, %s29, 1
      %s513 = scalar_lea.vmem %s3, %s512
      %p514 = pneg %p128
      %p515 = pneg %p125
      %p516 = pneg %p149
      %p517 = pneg %p146
      %p518 = pneg %p170
      %p519 = pneg %p167
      %p520 = pneg %p191
      %p521 = pneg %p188
      %p522 = pneg %p212
      %p523 = pneg %p209
      %p524 = pneg %p233
      %p525 = pneg %p230
      %p526 = pneg %p254
      %p527 = pneg %p251
      %p528 = pneg %p275
      %p529 = pneg %p272
      %p530 = pneg %p296
      %p531 = pneg %p293
      %p532 = scmp.lt.s32.totalorder %s29, 1
      %s533 = scalar_select %p532, %s29, 1
      %s534 = scalar_lea.vmem %s12, %s533
      %p535 = pneg %p322
      %p536 = pneg %p319
      %p537 = scmp.lt.s32.totalorder %s29, 1
      %s538 = scalar_select %p537, %s29, 1
      %s539 = scalar_lea.vmem %s13, %s538
      %p540 = pneg %p348
      %p541 = pneg %p345
      %p542 = pneg %p374
      %p543 = pneg %p371
      %p544 = scmp.lt.s32.totalorder %s29, 1
      %s545 = scalar_select %p544, %s29, 1
      %s546 = smul.addr %s545, 2
      %s547 = smul.addr %s546, 8
      %s548 = scalar_lea.vmem %s14, %s547
      %p549 = pneg %p400
      %p550 = pneg %p397
      %p551 = scmp.lt.s32.totalorder %s29, 1
      %s552 = scalar_select %p551, %s29, 1
      %s553 = smul.addr %s552, 2
      %s554 = smul.addr %s553, 8
      %s555 = scalar_lea.vmem %s15, %s554
      %p556 = scmp.lt.s32.totalorder %s29, 1
      %s557 = scalar_select %p556, %s29, 1
      %s558 = smul.addr %s557, 2
      %s559 = smul.addr %s558, 8
      %s560 = scalar_lea.vmem %s0, %s559
      %p561 = scmp.lt.s32.totalorder %s29, 1
      %s562 = scalar_select %p561, %s29, 1
      %s563 = smul.addr %s562, 8
      %s564 = scalar_lea.vmem %s1, %s563
      %p565 = scmp.lt.s32.totalorder %s29, 1
      %s566 = scalar_select %p565, %s29, 1
      %s567 = smul.addr %s566, 2
      %s568 = smul.addr %s567, 8
      %s569 = scalar_lea.vmem %s2, %s568
      %p570 = scmp.lt.s32.totalorder %s29, 1
      %s571 = scalar_select %p570, %s29, 1
      %s572 = scalar_lea.vmem %s3, %s571
      %p573 = scmp.lt.s32.totalorder %s29, 1
      %s574 = scalar_select %p573, %s29, 1
      %s575 = scalar_lea.vmem %s12, %s574
      %p576 = scmp.lt.s32.totalorder %s29, 1
      %s577 = scalar_select %p576, %s29, 1
      %s578 = scalar_lea.vmem %s13, %s577
      %p579 = scmp.lt.s32.totalorder %s29, 1
      %s580 = scalar_select %p579, %s29, 1
      %s581 = smul.addr %s580, 2
      %s582 = smul.addr %s581, 8
      %s583 = scalar_lea.vmem %s14, %s582
      %p584 = scmp.lt.s32.totalorder %s29, 1
      %s585 = scalar_select %p584, %s29, 1
      %s586 = smul.addr %s585, 2
      %s587 = smul.addr %s586, 8
      %s588 = scalar_lea.vmem %s15, %s587
      %v590 = vld [vmem:[%s560] sm:$0xff]
      %v591 = vld [vmem:[%s560 + $0x8] sm:$0xff]
      %v592 = vld [vmem:[%s564] sm:$0xff]
      %vm593 = vcmask 64512
      %v595 = vsel %vm593, %v590, 0
      %v598 = vsel %vm593, %v591, 0
      %600 = vmatpush.msra.mxu0 0.0
      %601 = vmatpush.msra.mxu0 0.0
      %602 = vmatpush.msra.mxu0 0.0
      %603 = vmatpush.msra.mxu0 0.0
      %604 = vmatpush.msra.mxu0 0.0
      %605 = vmatpush.msra.mxu0 0.0
      %606 = vmatpush.msra.mxu0 0.0
      %607 = vmatpush.msra.mxu0 0.0
      %608 = vmatpush.msra.mxu0 0.0
      %609 = vmatpush.msra.mxu0 0.0
      %610 = vmatpush.msra.mxu0 0.0
      %611 = vmatpush.msra.mxu0 0.0
      %612 = vmatpush.msra.mxu0 0.0
      %613 = vmatpush.msra.mxu0 0.0
      %614 = vmatpush.msra.mxu0 0.0
      %615 = vmatpush.msra.mxu0 %v592
      %616 = vmatmul.f32.gmra.mxu0 %v595
      %v617 = vpop.f32.mrf.mxu0
      %v618 = vadd.f32 0.0, %v617
      %619 = vmatmul.f32.gmra.mxu0 %v598
      %v620 = vpop.f32.mrf.mxu0
      %v621 = vadd.f32 0.0, %v620
      %622 = vdwg.mxu0
      %v623 = vld [vmem:[%s4] sm:$0xf]
      %v624 = vld [vmem:[%s4 + $0x4] sm:$0xf]
      %v625 = vld [vmem:[%s4 + $0x8] sm:$0xf]
      %v626 = vld [vmem:[%s4 + $0xc] sm:$0xf]
      %v627 = vld [vmem:[%s4 + $0x10] sm:$0xf]
      %v628 = vld [vmem:[%s4 + $0x14] sm:$0xf]
      %v629 = vld [vmem:[%s4 + $0x18] sm:$0xf]
      %v630 = vld [vmem:[%s4 + $0x1c] sm:$0xf]
      %v631 = vld [vmem:[%s4 + $0x20] sm:$0xf]
      %v632 = vld [vmem:[%s4 + $0x24] sm:$0xf]
      %v633 = vld [vmem:[%s4 + $0x28] sm:$0xf]
      %v634 = vld [vmem:[%s4 + $0x2c] sm:$0xf]
      %vm637 = vcmask 1040384
      %v638 = vrot.slane %v618, 7
      %v639 = vrot.slane %v621, 7
      %v640 = vsel %vm637, %v638, %v639
      %v643 = vsel %vm637, 0.0, %v638
      %vm644 = vcmask 1046528
      %v645 = vrot.slane %v618, 1
      %v646 = vrot.slane %v621, 1
      %v647 = vsel %vm644, %v645, %v646
      %v649 = vsel %vm644, %v646, 0.0
      %650 = vrot.lane.b32.xlu0 %v618, 32
      %v651 = vpop.permute.xlu0 %650
      %652 = vrot.lane.b32.xlu0 %v621, 32
      %v653 = vpop.permute.xlu0 %652
      %657 = vrot.lane.b32.xlu0 %v647, 64
      %v658 = vpop.permute.xlu0 %657
      %659 = vrot.lane.b32.xlu0 %v649, 64
      %v660 = vpop.permute.xlu0 %659
      %vm663 = vcmask 261120
      %v664 = vsel %vm663, %v643, %v651
      %v665 = vsel %vm663, %v640, %v653
      %vm666 = vcmask 523264
      %v667 = vsel %vm666, %v664, %v658
      %v668 = vsel %vm666, %v665, %v660
      %v669 = vpack.c.bf16 %v668, %v667
      %v670 = vld [vmem:[%s5] sm:$0x1]
      %v672 = vperm.slane %v670, 0
      %v686 = vunpack.c.l.b16 %v623
      %v687 = vunpack.c.l.b16 %v624
      %v688 = vunpack.c.l.b16 %v625
      %v689 = vunpack.c.l.b16 %v626
      %v690 = vunpack.c.l.b16 %v627
      %v691 = vunpack.c.l.b16 %v628
      %v692 = vunpack.c.l.b16 %v629
      %v693 = vunpack.c.l.b16 %v630
      %v694 = vunpack.c.l.b16 %v631
      %v695 = vunpack.c.l.b16 %v632
      %v696 = vunpack.c.l.b16 %v633
      %v697 = vunpack.c.l.b16 %v634
      %v698 = vpack.c.b16 %v687, %v686
      %v699 = vpack.c.b16 %v689, %v688
      %v700 = vpack.c.b16 %v691, %v690
      %v701 = vpack.c.b16 %v693, %v692
      %v702 = vpack.c.b16 %v695, %v694
      %v703 = vpack.c.b16 %v697, %v696
      %vm710 = vcmask 785408
      %v712 = vsel %vm710, %v669, 0
      %714 = vmatpush.bf16.msra.mxu0 0
      %715 = vmatpush.bf16.msra.mxu0 0
      %716 = vmatpush.bf16.msra.mxu0 %v703
      %717 = vmatpush.bf16.msra.mxu0 %v702
      %718 = vmatpush.bf16.msra.mxu0 %v701
      %719 = vmatpush.bf16.msra.mxu0 %v700
      %720 = vmatpush.bf16.msra.mxu0 %v699
      %721 = vmatpush.bf16.msra.mxu0 %v698
      %722 = vmatmul.bf16.gmra.mxu0 %v712
      %v723 = vpop.f32.mrf.mxu0
      %v724 = vadd.f32 %v672, %v723
      %v725 = vpop.f32.mrf.mxu0
      %v726 = vadd.f32 %v672, %v725
      %727 = vdwg.mxu0
      %v728 = vmax.f32 %v724, 0.0
      %v729 = vmax.f32 %v726, 0.0
      %v730 = vld [vmem:[%s6] sm:$0xf]
      %v731 = vld [vmem:[%s6 + $0x4] sm:$0xf]
      %v732 = vld [vmem:[%s6 + $0x8] sm:$0xf]
      %v733 = vld [vmem:[%s6 + $0xc] sm:$0xf]
      %v734 = vpack.c.bf16 %v729, %v728
      %v735 = vld [vmem:[#allocation2] sm:$0x1]
      %v737 = vperm.slane %v735, 0
      %v743 = vunpack.c.l.b16 %v730
      %v744 = vunpack.c.l.b16 %v731
      %v745 = vunpack.c.l.b16 %v732
      %v746 = vunpack.c.l.b16 %v733
      %v747 = vpack.c.b16 %v744, %v743
      %v748 = vpack.c.b16 %v746, %v745
      %v752 = vsel %vm663, %v734, 0
      %754 = vmatpush.bf16.msra.mxu0 0
      %755 = vmatpush.bf16.msra.mxu0 0
      %756 = vmatpush.bf16.msra.mxu0 0
      %757 = vmatpush.bf16.msra.mxu0 0
      %758 = vmatpush.bf16.msra.mxu0 0
      %759 = vmatpush.bf16.msra.mxu0 0
      %760 = vmatpush.bf16.msra.mxu0 %v748
      %761 = vmatpush.bf16.msra.mxu0 %v747
      %762 = vmatmul.bf16.gmra.mxu0 %v752
      %v763 = vpop.f32.mrf.mxu0
      %v764 = vadd.f32 %v737, %v763
      %v765 = vpop.f32.mrf.mxu0
      %v766 = vadd.f32 %v737, %v765
      %767 = vdwg.mxu0
      %v768 = vmul.f32 %v618, 1.442695
      %v769 = vpow.pop %v768
      %v770 = vmul.f32 %v621, 1.442695
      %v771 = vpow.pop %v770
      %v772 = vld [vmem:[%s569] sm:$0xff]
      %v773 = vld [vmem:[%s569 + $0x8] sm:$0xff]
      %776 = vrot.lane.b32.xlu0 %v772, 64
      %v777 = vpop.permute.xlu0 %776
      %778 = vrot.lane.b32.xlu0 %v773, 64
      %v779 = vpop.permute.xlu0 %778
      %v782 = vmul.f32 %v769, %v777
      %v783 = vmul.f32 %v771, %v779
      %786 = vrot.lane.b32.xlu0 %v782, 96
      %v787 = vpop.permute.xlu0 %786
      %788 = vrot.lane.b32.xlu0 %v783, 96
      %v789 = vpop.permute.xlu0 %788
      %v792 = vadd.f32 %v618, %v787
      %v793 = vadd.f32 %v621, %v789
      %v794 = vld [vmem:[%s572] sm:$0x1]
      %v795 = vld [vmem:[%s8] sm:$0xf]
      %v796 = vld [vmem:[%s8 + $0x4] sm:$0xf]
      %v797 = vld [vmem:[%s8 + $0x8] sm:$0xf]
      %v798 = vld [vmem:[%s8 + $0xc] sm:$0xf]
      %v799 = vld [vmem:[%s9] sm:$0xf]
      %v800 = vld [vmem:[%s9 + $0x4] sm:$0xf]
      %v801 = vld [vmem:[%s9 + $0x8] sm:$0xf]
      %v802 = vld [vmem:[%s9 + $0xc] sm:$0xf]
      %v803 = vpack.c.bf16 %v793, %v792
      %v804 = vpack.c.bf16 %v794, %v794
      %v809 = vunpack.c.l.b16 %v799
      %v810 = vunpack.c.l.b16 %v800
      %v811 = vunpack.c.l.b16 %v801
      %v812 = vunpack.c.l.b16 %v802
      %v813 = vpack.c.b16 %v810, %v809
      %v814 = vpack.c.b16 %v812, %v811
      %v818 = vsel %vm663, %v804, 0
      %820 = vmatpush.bf16.msra.mxu0 0
      %821 = vmatpush.bf16.msra.mxu0 0
      %822 = vmatpush.bf16.msra.mxu0 0
      %823 = vmatpush.bf16.msra.mxu0 0
      %824 = vmatpush.bf16.msra.mxu0 0
      %825 = vmatpush.bf16.msra.mxu0 0
      %826 = vmatpush.bf16.msra.mxu0 %v814
      %827 = vmatpush.bf16.msra.mxu0 %v813
      %828 = vmatmul.bf16.gmra.mxu0 %v818
      %v829 = vpop.f32.mrf.mxu0
      %v830 = vadd.f32 0.0, %v829
      %v831 = vpop.f32.mrf.mxu0
      %832 = vdwg.mxu0
      %v833 = vperm.slane %v830, 0
      %835 = vrot.lane.b32.xlu0 %v803, 96
      %v836 = vpop.permute.xlu0 %835
      %v841 = vunpack.c.l.b16 %v795
      %v842 = vunpack.c.l.b16 %v796
      %v843 = vunpack.c.l.b16 %v797
      %v844 = vunpack.c.l.b16 %v798
      %v845 = vpack.c.b16 %v842, %v841
      %v846 = vpack.c.b16 %v844, %v843
      %v850 = vsel %vm663, %v836, 0
      %852 = vmatpush.bf16.msra.mxu0 0
      %853 = vmatpush.bf16.msra.mxu0 0
      %854 = vmatpush.bf16.msra.mxu0 0
      %855 = vmatpush.bf16.msra.mxu0 0
      %856 = vmatpush.bf16.msra.mxu0 0
      %857 = vmatpush.bf16.msra.mxu0 0
      %858 = vmatpush.bf16.msra.mxu0 %v846
      %859 = vmatpush.bf16.msra.mxu0 %v845
      %860 = vmatmul.bf16.gmra.mxu0 %v850
      %v861 = vpop.f32.mrf.mxu0
      %v862 = vadd.f32 %v833, %v861
      %v863 = vpop.f32.mrf.mxu0
      %v864 = vadd.f32 %v833, %v863
      %865 = vdwg.mxu0
      %v866 = vld [vmem:[%s10] sm:$0xf]
      %v867 = vld [vmem:[%s10 + $0x4] sm:$0xf]
      %v868 = vld [vmem:[%s10 + $0x8] sm:$0xf]
      %v869 = vld [vmem:[%s10 + $0xc] sm:$0xf]
      %v870 = vld [vmem:[%s11] sm:$0xf]
      %v871 = vld [vmem:[%s11 + $0x4] sm:$0xf]
      %v872 = vld [vmem:[%s11 + $0x8] sm:$0xf]
      %v873 = vld [vmem:[%s11 + $0xc] sm:$0xf]
      %v874 = vpack.c.bf16 %v864, %v862
      %v879 = vunpack.c.l.b16 %v870
      %v880 = vunpack.c.l.b16 %v871
      %v881 = vunpack.c.l.b16 %v872
      %v882 = vunpack.c.l.b16 %v873
      %v883 = vpack.c.b16 %v880, %v879
      %v884 = vpack.c.b16 %v882, %v881
      %887 = vmatpush.bf16.msra.mxu0 0
      %888 = vmatpush.bf16.msra.mxu0 0
      %889 = vmatpush.bf16.msra.mxu0 0
      %890 = vmatpush.bf16.msra.mxu0 0
      %891 = vmatpush.bf16.msra.mxu0 0
      %892 = vmatpush.bf16.msra.mxu0 0
      %893 = vmatpush.bf16.msra.mxu0 %v884
      %894 = vmatpush.bf16.msra.mxu0 %v883
      %895 = vmatmul.bf16.gmra.mxu0 %v818
      %v896 = vpop.f32.mrf.mxu0
      %v897 = vadd.f32 0.0, %v896
      %v898 = vpop.f32.mrf.mxu0
      %899 = vdwg.mxu0
      %v900 = vperm.slane %v897, 0
      %v905 = vunpack.c.l.b16 %v866
      %v906 = vunpack.c.l.b16 %v867
      %v907 = vunpack.c.l.b16 %v868
      %v908 = vunpack.c.l.b16 %v869
      %v909 = vpack.c.b16 %v906, %v905
      %v910 = vpack.c.b16 %v908, %v907
      %v914 = vsel %vm663, %v874, 0
      %916 = vmatpush.bf16.msra.mxu0 0
      %917 = vmatpush.bf16.msra.mxu0 0
      %918 = vmatpush.bf16.msra.mxu0 0
      %919 = vmatpush.bf16.msra.mxu0 0
      %920 = vmatpush.bf16.msra.mxu0 0
      %921 = vmatpush.bf16.msra.mxu0 0
      %922 = vmatpush.bf16.msra.mxu0 %v910
      %923 = vmatpush.bf16.msra.mxu0 %v909
      %924 = vmatmul.bf16.gmra.mxu0 %v914
      %v925 = vpop.f32.mrf.mxu0
      %v926 = vadd.f32 %v900, %v925
      %v927 = vpop.f32.mrf.mxu0
      %v928 = vadd.f32 %v900, %v927
      %929 = vdwg.mxu0
      %930 = vst.msk [vmem:[%s583] sm:$0xff] %vm663, %v926
      %931 = vst.msk [vmem:[%s583 + $0x8] sm:$0xff] %vm663, %v928
      %v932 = vld [vmem:[%s578] sm:$0x1]
      %v934 = vperm.slane %v932, 0
      %v936 = vmul.f32 %v764, %v934
      %v937 = vmul.f32 %v766, %v934
      %v938 = vld [vmem:[%s575] sm:$0x1]
      %v940 = vperm.slane %v938, 0
      %v942 = vadd.f32 %v936, %v940
      %v943 = vadd.f32 %v937, %v940
      %v944 = vand.u32 2147483647, %v764
      %v945 = vand.u32 2147483647, %v766
      %vm946 = vcmp.lt.f32.partialorder %v944, 0.001
      %vm947 = vcmp.lt.f32.partialorder %v945, 0.001
      %v948 = vsel %vm946, %v942, 0.0
      %v949 = vsel %vm947, %v943, 0.0
      %vm950 = vcmask 7168
      %951 = vst.msk [vmem:[%s588] sm:$0xff] %vm950, %v948
      %952 = vst.msk [vmem:[%s588 + $0x8] sm:$0xff] %vm950, %v949
      %p953 = scmp.lt.s32.totalorder %s29, 1
      %s954 = scalar_select %p953, %s29, 1
      %s955 = smul.addr %s954, 2
      %s956 = smul.addr %s955, 8
      %s957 = scalar_lea.vmem %s14, %s956
      %p958 = scmp.lt.s32.totalorder %s29, 1
      %s959 = scalar_select %p958, %s29, 1
      %s960 = smul.addr %s959, 2
      %s961 = smul.addr %s960, 8
      %s962 = scalar_lea.vmem %s15, %s961
      // Predicated region
      $region77: #{forward.4} parent=75 // pred_check
        %p963 = pneg %p371
      $region78: #{forward.4} parent=75 // pred_check_branch
        %965 = sbr.rel (%p963) target = $region80
      $region79: #{forward.4} parent=75 // pred_region
        _
      $region80: #{forward.4} parent=75 // pred_fallthru
        _
      // Predicated region
      $region81: #{forward.4} parent=75 // pred_check
        %p966 = pneg %p397
      $region82: #{forward.4} parent=75 // pred_check_branch
        %968 = sbr.rel (%p966) target = $region84
      $region83: #{forward.4} parent=75 // pred_region
        _
      $region84: #{forward.4} parent=75 // pred_fallthru
        _
    $region76: #{forward.4} parent=5 // pred_fallthru
      _
    %p969 = scmp.le.s32.totalorder 2, %s24
    // Predicated region
    $region85: #{forward.4} parent=5 // pred_check
      %p970 = pneg %p969
    $region86: #{forward.4} parent=5 // pred_check_branch
      %972 = sbr.rel (%p970) target = $region88
    $region87: #{forward.4} parent=5 // pred_region
      %s973 = ssub.s32 %s24, 2
      // Predicated region
      $region89: #{forward.4} parent=87 // pred_check
        %p974 = pneg %p377
      $region90: #{forward.4} parent=87 // pred_check_branch
        %976 = sbr.rel (%p974) target = $region92
      $region91: #{forward.4} parent=87 // pred_region
        %p977 = scmp.lt.s32.totalorder %s30, 1
        %s978 = scalar_select %p977, %s30, 1
        %s979 = smul.addr %s978, 2
        %s980 = smul.addr %s979, 8
        %s981 = scalar_lea.vmem %s14, %s980
      $region92: #{forward.4} parent=87 // pred_fallthru
        _
      // Predicated region
      $region93: #{forward.4} parent=87 // pred_check
        %p982 = pneg %p403
      $region94: #{forward.4} parent=87 // pred_check_branch
        %984 = sbr.rel (%p982) target = $region96
      $region95: #{forward.4} parent=87 // pred_region
        %p985 = scmp.lt.s32.totalorder %s30, 1
        %s986 = scalar_select %p985, %s30, 1
        %s987 = smul.addr %s986, 2
        %s988 = smul.addr %s987, 8
        %s989 = scalar_lea.vmem %s15, %s988
      $region96: #{forward.4} parent=87 // pred_fallthru
        _
    $region88: #{forward.4} parent=5 // pred_fallthru
      _
  $region6: #{forward.4} parent=0 // loop_footer
    %s28 = sadd.s32 1, %s24
  $region7: #{forward.4} parent=0 // loop_footer_branch
    %23 = sbr.rel target = $region3
  $region8: #{forward.4} parent=0 // loop_exit
    _

// kernel: forward.3
$region0: #{forward.3}
  #allocation0 [shape = 'u32[]', space=smem, size = 0x4, offset = 0x4, fixed_abs, tag = 'smem constant byte address 0x4 - core index']
  #allocation1 [shape = 'u32[72,128]{1,0:T(1,128)}', space=vmem, size = 0x9000, scoped, tag = 'internal scratch']
  #allocation2 [shape = 'f32[1,1]{1,0:T(1,128)S(1)}', space=vmem, size = 0x200, scoped, tag = 'scoped memory for forward.3']
  %s0 = inlined_call_operand.smem [shape: u32[34], index: -1, kind: input, shape index: {}]
  %s1 = sld [smem:[%s0]]
  %s2 = scalar_lea.smem %s0, 1
  %s3 = sld [smem:[%s2]]
  %s4 = scalar_lea.smem %s0, 2
  %s5 = sld [smem:[%s4]]
  %s6 = scalar_lea.smem %s0, 3
  %s7 = sld [smem:[%s6]]
  %s8 = scalar_lea.smem %s0, 4
  %s9 = sld [smem:[%s8]]
  %s10 = scalar_lea.smem %s0, 5
  %s11 = sld [smem:[%s10]]
  %s12 = scalar_lea.smem %s0, 6
  %s13 = sld [smem:[%s12]]
  %s14 = scalar_lea.smem %s0, 7
  %s15 = sld [smem:[%s14]]
  %s16 = scalar_lea.smem %s0, 8
  %s17 = sld [smem:[%s16]]
  %s18 = scalar_lea.smem %s0, 9
  %s19 = sld [smem:[%s18]]
  %s20 = scalar_lea.smem %s0, 10
  %s21 = sld [smem:[%s20]]
  %s22 = scalar_lea.smem %s0, 11
  %s23 = sld [smem:[%s22]]
  %s24 = scalar_lea.smem %s0, 12
  %s25 = sld [smem:[%s24]]
  %s26 = scalar_lea.smem %s0, 13
  %s27 = sld [smem:[%s26]]
  %s28 = scalar_lea.smem %s0, 14
  %s29 = sld [smem:[%s28]]
  %s30 = scalar_lea.smem %s0, 15
  %s31 = sld [smem:[%s30]]
  %s32 = scalar_lea.smem %s0, 16
  %s33 = sld [smem:[%s32]]
  %s34 = scalar_lea.smem %s0, 17
  %s35 = sld [smem:[%s34]]
  %s36 = scalar_lea.smem %s0, 18
  %s37 = sld [smem:[%s36]]
  %s38 = scalar_lea.smem %s0, 19
  %s39 = sld [smem:[%s38]]
  %s40 = scalar_lea.smem %s0, 20
  %s41 = sld [smem:[%s40]]
  %s42 = scalar_lea.smem %s0, 21
  %s43 = sld [smem:[%s42]]
  %s44 = scalar_lea.smem %s0, 22
  %s45 = sld [smem:[%s44]]
  %s46 = scalar_lea.smem %s0, 23
  %s47 = sld [smem:[%s46]]
  %s48 = scalar_lea.smem %s0, 24
  %s49 = sld [smem:[%s48]]
  %s50 = scalar_lea.smem %s0, 25
  %s51 = sld [smem:[%s50]]
  %s52 = scalar_lea.smem %s0, 26
  %s53 = sld [smem:[%s52]]
  %s54 = scalar_lea.smem %s0, 27
  %s55 = sld [smem:[%s54]]
  %s56 = scalar_lea.smem %s0, 28
  %s57 = sld [smem:[%s56]]
  %s58 = scalar_lea.smem %s0, 29
  %s59 = sld [smem:[%s58]]
  %s60 = scalar_lea.smem %s0, 30
  %s61 = sld [smem:[%s60]]
  %s62 = scalar_lea.smem %s0, 31
  %s63 = sld [smem:[%s62]]
  %s64 = scalar_lea.smem %s0, 32
  %s65 = sld [smem:[%s64]]
  %s66 = scalar_lea.smem %s0, 33
  %s67 = sld [smem:[%s66]]
  %68 = xla_tuple %s65, %s67
  %s69 = sld [smem:[#allocation0]]
  $region169: #{forward.3} parent=0
    _
  %s71 = ssub.s32 1, %s69
  %s72 = scalar_select 0, %s71, %s69
  %v73 = vstv %s63
  %74 = vst [vmem:[#allocation2] sm:$0x1] %v73
  loop: start=0, step=1, limit=4
  $region2: #{forward.3} parent=0 // loop_pre_header
    _
  $region3: #{forward.3} parent=0 // loop_header
    %s76 = sphi 0, %s80
    %p77 = scmp.ge.s32.totalorder %s76, 4
    %s86 = sphi 0, %s88
    %s89 = sphi 0, %s86
    %s90 = sphi 0, %s89
    %s106 = sphi 0, %s90
    %s112 = sphi 0, %s114
    %s115 = sphi 0, %s112
    %s116 = sphi 0, %s115
    %s132 = sphi 0, %s116
    %s136 = sphi 0, %s136
    %s138 = sphi 0, %s136
    %s139 = sphi 0, %s138
    %s153 = sphi 0, %s139
    %s157 = sphi 0, %s157
    %s159 = sphi 0, %s157
    %s160 = sphi 0, %s159
    %s174 = sphi 0, %s160
    %s178 = sphi 0, %s178
    %s180 = sphi 0, %s178
    %s181 = sphi 0, %s180
    %s195 = sphi 0, %s181
    %s199 = sphi 0, %s199
    %s201 = sphi 0, %s199
    %s202 = sphi 0, %s201
    %s216 = sphi 0, %s202
    %s220 = sphi 0, %s220
    %s222 = sphi 0, %s220
    %s223 = sphi 0, %s222
    %s237 = sphi 0, %s223
    %s241 = sphi 0, %s241
    %s243 = sphi 0, %s241
    %s244 = sphi 0, %s243
    %s258 = sphi 0, %s244
    %s262 = sphi 0, %s262
    %s264 = sphi 0, %s262
    %s265 = sphi 0, %s264
    %s279 = sphi 0, %s265
    %s283 = sphi 0, %s283
    %s285 = sphi 0, %s283
    %s286 = sphi 0, %s285
    %s300 = sphi 0, %s286
    %s304 = sphi 0, %s304
    %s306 = sphi 0, %s304
    %s307 = sphi 0, %s306
    %s321 = sphi 0, %s307
    %s325 = sphi 0, %s325
    %s327 = sphi 0, %s325
    %s328 = sphi 0, %s327
    %s342 = sphi 0, %s328
    %s346 = sphi 0, %s346
    %s348 = sphi 0, %s346
    %s349 = sphi 0, %s348
    %s363 = sphi 0, %s349
    %s367 = sphi 0, %s367
    %s369 = sphi 0, %s367
    %s370 = sphi 0, %s369
    %s384 = sphi 0, %s370
    %s388 = sphi 0, %s388
    %s390 = sphi 0, %s388
    %s391 = sphi 0, %s390
    %s405 = sphi 0, %s391
    %s409 = sphi 0, %s409
    %s411 = sphi 0, %s409
    %s412 = sphi 0, %s411
    %s426 = sphi 0, %s412
    %s430 = sphi 0, %s430
    %s432 = sphi 0, %s430
    %s433 = sphi 0, %s432
    %s447 = sphi 0, %s433
    %s451 = sphi 0, %s451
    %s453 = sphi 0, %s451
    %s454 = sphi 0, %s453
    %s468 = sphi 0, %s454
    %s472 = sphi 0, %s472
    %s474 = sphi 0, %s472
    %s475 = sphi 0, %s474
    %s489 = sphi 0, %s475
    %s493 = sphi 0, %s493
    %s495 = sphi 0, %s493
    %s496 = sphi 0, %s495
    %s510 = sphi 0, %s496
    %s514 = sphi 0, %s514
    %s516 = sphi 0, %s514
    %s517 = sphi 0, %s516
    %s531 = sphi 0, %s517
    %s535 = sphi 0, %s535
    %s537 = sphi 0, %s535
    %s538 = sphi 0, %s537
    %s552 = sphi 0, %s538
    %s556 = sphi 0, %s556
    %s558 = sphi 0, %s556
    %s559 = sphi 0, %s558
    %s573 = sphi 0, %s559
    %s577 = sphi 0, %s577
    %s579 = sphi 0, %s577
    %s580 = sphi 0, %s579
    %s594 = sphi 0, %s580
    %s598 = sphi 0, %s598
    %s600 = sphi 0, %s598
    %s601 = sphi 0, %s600
    %s615 = sphi 0, %s601
    %s619 = sphi 0, %s619
    %s621 = sphi 0, %s619
    %s622 = sphi 0, %s621
    %s636 = sphi 0, %s622
    %s640 = sphi 0, %s640
    %s642 = sphi 0, %s640
    %s643 = sphi 0, %s642
    %s657 = sphi 0, %s643
    %s661 = sphi 0, %s661
    %s663 = sphi 0, %s661
    %s664 = sphi 0, %s663
    %s678 = sphi 0, %s664
    %s682 = sphi 0, %s682
    %s684 = sphi 0, %s682
    %s685 = sphi 0, %s684
    %s699 = sphi 0, %s685
    %s703 = sphi 0, %s703
    %s705 = sphi 0, %s703
    %s706 = sphi 0, %s705
    %s720 = sphi 0, %s706
    %s724 = sphi 0, %s724
    %s726 = sphi 0, %s724
    %s727 = sphi 0, %s726
    %s741 = sphi 0, %s727
    %s745 = sphi 0, %s745
    %s747 = sphi 0, %s745
    %s748 = sphi 0, %s747
    %s762 = sphi 0, %s748
    %s768 = sphi 0, %s770
    %s771 = sphi 0, %s768
    %s772 = sphi 0, %s771
    %s788 = sphi 0, %s772
    %s794 = sphi 0, %s796
    %s797 = sphi 0, %s794
    %s798 = sphi 0, %s797
    %s814 = sphi 0, %s798
  $region4: #{forward.3} parent=0 // loop_header_branch
    %79 = sbr.rel (%p77) target = $region8
  $region5: #{forward.3} parent=0 // loop_body
    %s81 = ssub.s32 %s76, 1
    %s82 = ssub.s32 %s76, 2
    %s83 = sadd.s32 %s76, 1
    %s84 = ssub.s32 %s76, %s83
    %p85 = scmp.eq.s32.totalorder %s84, 0
    %s87 = sadd.s32 %s86, 1
    %s88 = scalar_select %p85, %s86, %s87
    %p91 = pneg %p85
    %p92 = scmp.eq.s32.totalorder %s76, 1
    %p93 = por %p91, %p92
    %p94 = scmp.ne.s32.totalorder %s86, %s89
    %p95 = scmp.eq.s32.totalorder %s76, 0
    %p96 = por %p94, %p95
    %p97 = scmp.ne.s32.totalorder %s86, %s89
    %p98 = scmp.eq.s32.totalorder %s81, 1
    %p99 = por %p97, %p98
    %p100 = scmp.ne.s32.totalorder %s89, %s90
    %p101 = scmp.eq.s32.totalorder %s81, 0
    %p102 = por %p100, %p101
    %p103 = scmp.ne.s32.totalorder %s89, %s90
    %p104 = scmp.eq.s32.totalorder %s82, 1
    %p105 = por %p103, %p104
    %p107 = scmp.ne.s32.totalorder %s90, %s106
    %p108 = scmp.eq.s32.totalorder %s82, 0
    %p109 = por %p107, %p108
    %s110 = ssub.s32 %s76, %s83
    %p111 = scmp.eq.s32.totalorder %s110, 0
    %s113 = sadd.s32 %s112, 1
    %s114 = scalar_select %p111, %s112, %s113
    %p117 = pneg %p111
    %p118 = scmp.eq.s32.totalorder %s76, 1
    %p119 = por %p117, %p118
    %p120 = scmp.ne.s32.totalorder %s112, %s115
    %p121 = scmp.eq.s32.totalorder %s76, 0
    %p122 = por %p120, %p121
    %p123 = scmp.ne.s32.totalorder %s112, %s115
    %p124 = scmp.eq.s32.totalorder %s81, 1
    %p125 = por %p123, %p124
    %p126 = scmp.ne.s32.totalorder %s115, %s116
    %p127 = scmp.eq.s32.totalorder %s81, 0
    %p128 = por %p126, %p127
    %p129 = scmp.ne.s32.totalorder %s115, %s116
    %p130 = scmp.eq.s32.totalorder %s82, 1
    %p131 = por %p129, %p130
    %p133 = scmp.ne.s32.totalorder %s116, %s132
    %p134 = scmp.eq.s32.totalorder %s82, 0
    %p135 = por %p133, %p134
    %s137 = sadd.s32 %s136, 1
    %p140 = scmp.eq.s32.totalorder %s76, 1
    %p141 = scmp.ne.s32.totalorder %s136, %s138
    %p142 = scmp.eq.s32.totalorder %s76, 0
    %p143 = por %p141, %p142
    %p144 = scmp.ne.s32.totalorder %s136, %s138
    %p145 = scmp.eq.s32.totalorder %s81, 1
    %p146 = por %p144, %p145
    %p147 = scmp.ne.s32.totalorder %s138, %s139
    %p148 = scmp.eq.s32.totalorder %s81, 0
    %p149 = por %p147, %p148
    %p150 = scmp.ne.s32.totalorder %s138, %s139
    %p151 = scmp.eq.s32.totalorder %s82, 1
    %p152 = por %p150, %p151
    %p154 = scmp.ne.s32.totalorder %s139, %s153
    %p155 = scmp.eq.s32.totalorder %s82, 0
    %p156 = por %p154, %p155
    %s158 = sadd.s32 %s157, 1
    %p161 = scmp.eq.s32.totalorder %s76, 1
    %p162 = scmp.ne.s32.totalorder %s157, %s159
    %p163 = scmp.eq.s32.totalorder %s76, 0
    %p164 = por %p162, %p163
    %p165 = scmp.ne.s32.totalorder %s157, %s159
    %p166 = scmp.eq.s32.totalorder %s81, 1
    %p167 = por %p165, %p166
    %p168 = scmp.ne.s32.totalorder %s159, %s160
    %p169 = scmp.eq.s32.totalorder %s81, 0
    %p170 = por %p168, %p169
    %p171 = scmp.ne.s32.totalorder %s159, %s160
    %p172 = scmp.eq.s32.totalorder %s82, 1
    %p173 = por %p171, %p172
    %p175 = scmp.ne.s32.totalorder %s160, %s174
    %p176 = scmp.eq.s32.totalorder %s82, 0
    %p177 = por %p175, %p176
    %s179 = sadd.s32 %s178, 1
    %p182 = scmp.eq.s32.totalorder %s76, 1
    %p183 = scmp.ne.s32.totalorder %s178, %s180
    %p184 = scmp.eq.s32.totalorder %s76, 0
    %p185 = por %p183, %p184
    %p186 = scmp.ne.s32.totalorder %s178, %s180
    %p187 = scmp.eq.s32.totalorder %s81, 1
    %p188 = por %p186, %p187
    %p189 = scmp.ne.s32.totalorder %s180, %s181
    %p190 = scmp.eq.s32.totalorder %s81, 0
    %p191 = por %p189, %p190
    %p192 = scmp.ne.s32.totalorder %s180, %s181
    %p193 = scmp.eq.s32.totalorder %s82, 1
    %p194 = por %p192, %p193
    %p196 = scmp.ne.s32.totalorder %s181, %s195
    %p197 = scmp.eq.s32.totalorder %s82, 0
    %p198 = por %p196, %p197
    %s200 = sadd.s32 %s199, 1
    %p203 = scmp.eq.s32.totalorder %s76, 1
    %p204 = scmp.ne.s32.totalorder %s199, %s201
    %p205 = scmp.eq.s32.totalorder %s76, 0
    %p206 = por %p204, %p205
    %p207 = scmp.ne.s32.totalorder %s199, %s201
    %p208 = scmp.eq.s32.totalorder %s81, 1
    %p209 = por %p207, %p208
    %p210 = scmp.ne.s32.totalorder %s201, %s202
    %p211 = scmp.eq.s32.totalorder %s81, 0
    %p212 = por %p210, %p211
    %p213 = scmp.ne.s32.totalorder %s201, %s202
    %p214 = scmp.eq.s32.totalorder %s82, 1
    %p215 = por %p213, %p214
    %p217 = scmp.ne.s32.totalorder %s202, %s216
    %p218 = scmp.eq.s32.totalorder %s82, 0
    %p219 = por %p217, %p218
    %s221 = sadd.s32 %s220, 1
    %p224 = scmp.eq.s32.totalorder %s76, 1
    %p225 = scmp.ne.s32.totalorder %s220, %s222
    %p226 = scmp.eq.s32.totalorder %s76, 0
    %p227 = por %p225, %p226
    %p228 = scmp.ne.s32.totalorder %s220, %s222
    %p229 = scmp.eq.s32.totalorder %s81, 1
    %p230 = por %p228, %p229
    %p231 = scmp.ne.s32.totalorder %s222, %s223
    %p232 = scmp.eq.s32.totalorder %s81, 0
    %p233 = por %p231, %p232
    %p234 = scmp.ne.s32.totalorder %s222, %s223
    %p235 = scmp.eq.s32.totalorder %s82, 1
    %p236 = por %p234, %p235
    %p238 = scmp.ne.s32.totalorder %s223, %s237
    %p239 = scmp.eq.s32.totalorder %s82, 0
    %p240 = por %p238, %p239
    %s242 = sadd.s32 %s241, 1
    %p245 = scmp.eq.s32.totalorder %s76, 1
    %p246 = scmp.ne.s32.totalorder %s241, %s243
    %p247 = scmp.eq.s32.totalorder %s76, 0
    %p248 = por %p246, %p247
    %p249 = scmp.ne.s32.totalorder %s241, %s243
    %p250 = scmp.eq.s32.totalorder %s81, 1
    %p251 = por %p249, %p250
    %p252 = scmp.ne.s32.totalorder %s243, %s244
    %p253 = scmp.eq.s32.totalorder %s81, 0
    %p254 = por %p252, %p253
    %p255 = scmp.ne.s32.totalorder %s243, %s244
    %p256 = scmp.eq.s32.totalorder %s82, 1
    %p257 = por %p255, %p256
    %p259 = scmp.ne.s32.totalorder %s244, %s258
    %p260 = scmp.eq.s32.totalorder %s82, 0
    %p261 = por %p259, %p260
    %s263 = sadd.s32 %s262, 1
    %p266 = scmp.eq.s32.totalorder %s76, 1
    %p267 = scmp.ne.s32.totalorder %s262, %s264
    %p268 = scmp.eq.s32.totalorder %s76, 0
    %p269 = por %p267, %p268
    %p270 = scmp.ne.s32.totalorder %s262, %s264
    %p271 = scmp.eq.s32.totalorder %s81, 1
    %p272 = por %p270, %p271
    %p273 = scmp.ne.s32.totalorder %s264, %s265
    %p274 = scmp.eq.s32.totalorder %s81, 0
    %p275 = por %p273, %p274
    %p276 = scmp.ne.s32.totalorder %s264, %s265
    %p277 = scmp.eq.s32.totalorder %s82, 1
    %p278 = por %p276, %p277
    %p280 = scmp.ne.s32.totalorder %s265, %s279
    %p281 = scmp.eq.s32.totalorder %s82, 0
    %p282 = por %p280, %p281
    %s284 = sadd.s32 %s283, 1
    %p287 = scmp.eq.s32.totalorder %s76, 1
    %p288 = scmp.ne.s32.totalorder %s283, %s285
    %p289 = scmp.eq.s32.totalorder %s76, 0
    %p290 = por %p288, %p289
    %p291 = scmp.ne.s32.totalorder %s283, %s285
    %p292 = scmp.eq.s32.totalorder %s81, 1
    %p293 = por %p291, %p292
    %p294 = scmp.ne.s32.totalorder %s285, %s286
    %p295 = scmp.eq.s32.totalorder %s81, 0
    %p296 = por %p294, %p295
    %p297 = scmp.ne.s32.totalorder %s285, %s286
    %p298 = scmp.eq.s32.totalorder %s82, 1
    %p299 = por %p297, %p298
    %p301 = scmp.ne.s32.totalorder %s286, %s300
    %p302 = scmp.eq.s32.totalorder %s82, 0
    %p303 = por %p301, %p302
    %s305 = sadd.s32 %s304, 1
    %p308 = scmp.eq.s32.totalorder %s76, 1
    %p309 = scmp.ne.s32.totalorder %s304, %s306
    %p310 = scmp.eq.s32.totalorder %s76, 0
    %p311 = por %p309, %p310
    %p312 = scmp.ne.s32.totalorder %s304, %s306
    %p313 = scmp.eq.s32.totalorder %s81, 1
    %p314 = por %p312, %p313
    %p315 = scmp.ne.s32.totalorder %s306, %s307
    %p316 = scmp.eq.s32.totalorder %s81, 0
    %p317 = por %p315, %p316
    %p318 = scmp.ne.s32.totalorder %s306, %s307
    %p319 = scmp.eq.s32.totalorder %s82, 1
    %p320 = por %p318, %p319
    %p322 = scmp.ne.s32.totalorder %s307, %s321
    %p323 = scmp.eq.s32.totalorder %s82, 0
    %p324 = por %p322, %p323
    %s326 = sadd.s32 %s325, 1
    %p329 = scmp.eq.s32.totalorder %s76, 1
    %p330 = scmp.ne.s32.totalorder %s325, %s327
    %p331 = scmp.eq.s32.totalorder %s76, 0
    %p332 = por %p330, %p331
    %p333 = scmp.ne.s32.totalorder %s325, %s327
    %p334 = scmp.eq.s32.totalorder %s81, 1
    %p335 = por %p333, %p334
    %p336 = scmp.ne.s32.totalorder %s327, %s328
    %p337 = scmp.eq.s32.totalorder %s81, 0
    %p338 = por %p336, %p337
    %p339 = scmp.ne.s32.totalorder %s327, %s328
    %p340 = scmp.eq.s32.totalorder %s82, 1
    %p341 = por %p339, %p340
    %p343 = scmp.ne.s32.totalorder %s328, %s342
    %p344 = scmp.eq.s32.totalorder %s82, 0
    %p345 = por %p343, %p344
    %s347 = sadd.s32 %s346, 1
    %p350 = scmp.eq.s32.totalorder %s76, 1
    %p351 = scmp.ne.s32.totalorder %s346, %s348
    %p352 = scmp.eq.s32.totalorder %s76, 0
    %p353 = por %p351, %p352
    %p354 = scmp.ne.s32.totalorder %s346, %s348
    %p355 = scmp.eq.s32.totalorder %s81, 1
    %p356 = por %p354, %p355
    %p357 = scmp.ne.s32.totalorder %s348, %s349
    %p358 = scmp.eq.s32.totalorder %s81, 0
    %p359 = por %p357, %p358
    %p360 = scmp.ne.s32.totalorder %s348, %s349
    %p361 = scmp.eq.s32.totalorder %s82, 1
    %p362 = por %p360, %p361
    %p364 = scmp.ne.s32.totalorder %s349, %s363
    %p365 = scmp.eq.s32.totalorder %s82, 0
    %p366 = por %p364, %p365
    %s368 = sadd.s32 %s367, 1
    %p371 = scmp.eq.s32.totalorder %s76, 1
    %p372 = scmp.ne.s32.totalorder %s367, %s369
    %p373 = scmp.eq.s32.totalorder %s76, 0
    %p374 = por %p372, %p373
    %p375 = scmp.ne.s32.totalorder %s367, %s369
    %p376 = scmp.eq.s32.totalorder %s81, 1
    %p377 = por %p375, %p376
    %p378 = scmp.ne.s32.totalorder %s369, %s370
    %p379 = scmp.eq.s32.totalorder %s81, 0
    %p380 = por %p378, %p379
    %p381 = scmp.ne.s32.totalorder %s369, %s370
    %p382 = scmp.eq.s32.totalorder %s82, 1
    %p383 = por %p381, %p382
    %p385 = scmp.ne.s32.totalorder %s370, %s384
    %p386 = scmp.eq.s32.totalorder %s82, 0
    %p387 = por %p385, %p386
    %s389 = sadd.s32 %s388, 1
    %p392 = scmp.eq.s32.totalorder %s76, 1
    %p393 = scmp.ne.s32.totalorder %s388, %s390
    %p394 = scmp.eq.s32.totalorder %s76, 0
    %p395 = por %p393, %p394
    %p396 = scmp.ne.s32.totalorder %s388, %s390
    %p397 = scmp.eq.s32.totalorder %s81, 1
    %p398 = por %p396, %p397
    %p399 = scmp.ne.s32.totalorder %s390, %s391
    %p400 = scmp.eq.s32.totalorder %s81, 0
    %p401 = por %p399, %p400
    %p402 = scmp.ne.s32.totalorder %s390, %s391
    %p403 = scmp.eq.s32.totalorder %s82, 1
    %p404 = por %p402, %p403
    %p406 = scmp.ne.s32.totalorder %s391, %s405
    %p407 = scmp.eq.s32.totalorder %s82, 0
    %p408 = por %p406, %p407
    %s410 = sadd.s32 %s409, 1
    %p413 = scmp.eq.s32.totalorder %s76, 1
    %p414 = scmp.ne.s32.totalorder %s409, %s411
    %p415 = scmp.eq.s32.totalorder %s76, 0
    %p416 = por %p414, %p415
    %p417 = scmp.ne.s32.totalorder %s409, %s411
    %p418 = scmp.eq.s32.totalorder %s81, 1
    %p419 = por %p417, %p418
    %p420 = scmp.ne.s32.totalorder %s411, %s412
    %p421 = scmp.eq.s32.totalorder %s81, 0
    %p422 = por %p420, %p421
    %p423 = scmp.ne.s32.totalorder %s411, %s412
    %p424 = scmp.eq.s32.totalorder %s82, 1
    %p425 = por %p423, %p424
    %p427 = scmp.ne.s32.totalorder %s412, %s426
    %p428 = scmp.eq.s32.totalorder %s82, 0
    %p429 = por %p427, %p428
    %s431 = sadd.s32 %s430, 1
    %p434 = scmp.eq.s32.totalorder %s76, 1
    %p435 = scmp.ne.s32.totalorder %s430, %s432
    %p436 = scmp.eq.s32.totalorder %s76, 0
    %p437 = por %p435, %p436
    %p438 = scmp.ne.s32.totalorder %s430, %s432
    %p439 = scmp.eq.s32.totalorder %s81, 1
    %p440 = por %p438, %p439
    %p441 = scmp.ne.s32.totalorder %s432, %s433
    %p442 = scmp.eq.s32.totalorder %s81, 0
    %p443 = por %p441, %p442
    %p444 = scmp.ne.s32.totalorder %s432, %s433
    %p445 = scmp.eq.s32.totalorder %s82, 1
    %p446 = por %p444, %p445
    %p448 = scmp.ne.s32.totalorder %s433, %s447
    %p449 = scmp.eq.s32.totalorder %s82, 0
    %p450 = por %p448, %p449
    %s452 = sadd.s32 %s451, 1
    %p455 = scmp.eq.s32.totalorder %s76, 1
    %p456 = scmp.ne.s32.totalorder %s451, %s453
    %p457 = scmp.eq.s32.totalorder %s76, 0
    %p458 = por %p456, %p457
    %p459 = scmp.ne.s32.totalorder %s451, %s453
    %p460 = scmp.eq.s32.totalorder %s81, 1
    %p461 = por %p459, %p460
    %p462 = scmp.ne.s32.totalorder %s453, %s454
    %p463 = scmp.eq.s32.totalorder %s81, 0
    %p464 = por %p462, %p463
    %p465 = scmp.ne.s32.totalorder %s453, %s454
    %p466 = scmp.eq.s32.totalorder %s82, 1
    %p467 = por %p465, %p466
    %p469 = scmp.ne.s32.totalorder %s454, %s468
    %p470 = scmp.eq.s32.totalorder %s82, 0
    %p471 = por %p469, %p470
    %s473 = sadd.s32 %s472, 1
    %p476 = scmp.eq.s32.totalorder %s76, 1
    %p477 = scmp.ne.s32.totalorder %s472, %s474
    %p478 = scmp.eq.s32.totalorder %s76, 0
    %p479 = por %p477, %p478
    %p480 = scmp.ne.s32.totalorder %s472, %s474
    %p481 = scmp.eq.s32.totalorder %s81, 1
    %p482 = por %p480, %p481
    %p483 = scmp.ne.s32.totalorder %s474, %s475
    %p484 = scmp.eq.s32.totalorder %s81, 0
    %p485 = por %p483, %p484
    %p486 = scmp.ne.s32.totalorder %s474, %s475
    %p487 = scmp.eq.s32.totalorder %s82, 1
    %p488 = por %p486, %p487
    %p490 = scmp.ne.s32.totalorder %s475, %s489
    %p491 = scmp.eq.s32.totalorder %s82, 0
    %p492 = por %p490, %p491
    %s494 = sadd.s32 %s493, 1
    %p497 = scmp.eq.s32.totalorder %s76, 1
    %p498 = scmp.ne.s32.totalorder %s493, %s495
    %p499 = scmp.eq.s32.totalorder %s76, 0
    %p500 = por %p498, %p499
    %p501 = scmp.ne.s32.totalorder %s493, %s495
    %p502 = scmp.eq.s32.totalorder %s81, 1
    %p503 = por %p501, %p502
    %p504 = scmp.ne.s32.totalorder %s495, %s496
    %p505 = scmp.eq.s32.totalorder %s81, 0
    %p506 = por %p504, %p505
    %p507 = scmp.ne.s32.totalorder %s495, %s496
    %p508 = scmp.eq.s32.totalorder %s82, 1
    %p509 = por %p507, %p508
    %p511 = scmp.ne.s32.totalorder %s496, %s510
    %p512 = scmp.eq.s32.totalorder %s82, 0
    %p513 = por %p511, %p512
    %s515 = sadd.s32 %s514, 1
    %p518 = scmp.eq.s32.totalorder %s76, 1
    %p519 = scmp.ne.s32.totalorder %s514, %s516
    %p520 = scmp.eq.s32.totalorder %s76, 0
    %p521 = por %p519, %p520
    %p522 = scmp.ne.s32.totalorder %s514, %s516
    %p523 = scmp.eq.s32.totalorder %s81, 1
    %p524 = por %p522, %p523
    %p525 = scmp.ne.s32.totalorder %s516, %s517
    %p526 = scmp.eq.s32.totalorder %s81, 0
    %p527 = por %p525, %p526
    %p528 = scmp.ne.s32.totalorder %s516, %s517
    %p529 = scmp.eq.s32.totalorder %s82, 1
    %p530 = por %p528, %p529
    %p532 = scmp.ne.s32.totalorder %s517, %s531
    %p533 = scmp.eq.s32.totalorder %s82, 0
    %p534 = por %p532, %p533
    %s536 = sadd.s32 %s535, 1
    %p539 = scmp.eq.s32.totalorder %s76, 1
    %p540 = scmp.ne.s32.totalorder %s535, %s537
    %p541 = scmp.eq.s32.totalorder %s76, 0
    %p542 = por %p540, %p541
    %p543 = scmp.ne.s32.totalorder %s535, %s537
    %p544 = scmp.eq.s32.totalorder %s81, 1
    %p545 = por %p543, %p544
    %p546 = scmp.ne.s32.totalorder %s537, %s538
    %p547 = scmp.eq.s32.totalorder %s81, 0
    %p548 = por %p546, %p547
    %p549 = scmp.ne.s32.totalorder %s537, %s538
    %p550 = scmp.eq.s32.totalorder %s82, 1
    %p551 = por %p549, %p550
    %p553 = scmp.ne.s32.totalorder %s538, %s552
    %p554 = scmp.eq.s32.totalorder %s82, 0
    %p555 = por %p553, %p554
    %s557 = sadd.s32 %s556, 1
    %p560 = scmp.eq.s32.totalorder %s76, 1
    %p561 = scmp.ne.s32.totalorder %s556, %s558
    %p562 = scmp.eq.s32.totalorder %s76, 0
    %p563 = por %p561, %p562
    %p564 = scmp.ne.s32.totalorder %s556, %s558
    %p565 = scmp.eq.s32.totalorder %s81, 1
    %p566 = por %p564, %p565
    %p567 = scmp.ne.s32.totalorder %s558, %s559
    %p568 = scmp.eq.s32.totalorder %s81, 0
    %p569 = por %p567, %p568
    %p570 = scmp.ne.s32.totalorder %s558, %s559
    %p571 = scmp.eq.s32.totalorder %s82, 1
    %p572 = por %p570, %p571
    %p574 = scmp.ne.s32.totalorder %s559, %s573
    %p575 = scmp.eq.s32.totalorder %s82, 0
    %p576 = por %p574, %p575
    %s578 = sadd.s32 %s577, 1
    %p581 = scmp.eq.s32.totalorder %s76, 1
    %p582 = scmp.ne.s32.totalorder %s577, %s579
    %p583 = scmp.eq.s32.totalorder %s76, 0
    %p584 = por %p582, %p583
    %p585 = scmp.ne.s32.totalorder %s577, %s579
    %p586 = scmp.eq.s32.totalorder %s81, 1
    %p587 = por %p585, %p586
    %p588 = scmp.ne.s32.totalorder %s579, %s580
    %p589 = scmp.eq.s32.totalorder %s81, 0
    %p590 = por %p588, %p589
    %p591 = scmp.ne.s32.totalorder %s579, %s580
    %p592 = scmp.eq.s32.totalorder %s82, 1
    %p593 = por %p591, %p592
    %p595 = scmp.ne.s32.totalorder %s580, %s594
    %p596 = scmp.eq.s32.totalorder %s82, 0
    %p597 = por %p595, %p596
    %s599 = sadd.s32 %s598, 1
    %p602 = scmp.eq.s32.totalorder %s76, 1
    %p603 = scmp.ne.s32.totalorder %s598, %s600
    %p604 = scmp.eq.s32.totalorder %s76, 0
    %p605 = por %p603, %p604
    %p606 = scmp.ne.s32.totalorder %s598, %s600
    %p607 = scmp.eq.s32.totalorder %s81, 1
    %p608 = por %p606, %p607
    %p609 = scmp.ne.s32.totalorder %s600, %s601
    %p610 = scmp.eq.s32.totalorder %s81, 0
    %p611 = por %p609, %p610
    %p612 = scmp.ne.s32.totalorder %s600, %s601
    %p613 = scmp.eq.s32.totalorder %s82, 1
    %p614 = por %p612, %p613
    %p616 = scmp.ne.s32.totalorder %s601, %s615
    %p617 = scmp.eq.s32.totalorder %s82, 0
    %p618 = por %p616, %p617
    %s620 = sadd.s32 %s619, 1
    %p623 = scmp.eq.s32.totalorder %s76, 1
    %p624 = scmp.ne.s32.totalorder %s619, %s621
    %p625 = scmp.eq.s32.totalorder %s76, 0
    %p626 = por %p624, %p625
    %p627 = scmp.ne.s32.totalorder %s619, %s621
    %p628 = scmp.eq.s32.totalorder %s81, 1
    %p629 = por %p627, %p628
    %p630 = scmp.ne.s32.totalorder %s621, %s622
    %p631 = scmp.eq.s32.totalorder %s81, 0
    %p632 = por %p630, %p631
    %p633 = scmp.ne.s32.totalorder %s621, %s622
    %p634 = scmp.eq.s32.totalorder %s82, 1
    %p635 = por %p633, %p634
    %p637 = scmp.ne.s32.totalorder %s622, %s636
    %p638 = scmp.eq.s32.totalorder %s82, 0
    %p639 = por %p637, %p638
    %s641 = sadd.s32 %s640, 1
    %p644 = scmp.eq.s32.totalorder %s76, 1
    %p645 = scmp.ne.s32.totalorder %s640, %s642
    %p646 = scmp.eq.s32.totalorder %s76, 0
    %p647 = por %p645, %p646
    %p648 = scmp.ne.s32.totalorder %s640, %s642
    %p649 = scmp.eq.s32.totalorder %s81, 1
    %p650 = por %p648, %p649
    %p651 = scmp.ne.s32.totalorder %s642, %s643
    %p652 = scmp.eq.s32.totalorder %s81, 0
    %p653 = por %p651, %p652
    %p654 = scmp.ne.s32.totalorder %s642, %s643
    %p655 = scmp.eq.s32.totalorder %s82, 1
    %p656 = por %p654, %p655
    %p658 = scmp.ne.s32.totalorder %s643, %s657
    %p659 = scmp.eq.s32.totalorder %s82, 0
    %p660 = por %p658, %p659
    %s662 = sadd.s32 %s661, 1
    %p665 = scmp.eq.s32.totalorder %s76, 1
    %p666 = scmp.ne.s32.totalorder %s661, %s663
    %p667 = scmp.eq.s32.totalorder %s76, 0
    %p668 = por %p666, %p667
    %p669 = scmp.ne.s32.totalorder %s661, %s663
    %p670 = scmp.eq.s32.totalorder %s81, 1
    %p671 = por %p669, %p670
    %p672 = scmp.ne.s32.totalorder %s663, %s664
    %p673 = scmp.eq.s32.totalorder %s81, 0
    %p674 = por %p672, %p673
    %p675 = scmp.ne.s32.totalorder %s663, %s664
    %p676 = scmp.eq.s32.totalorder %s82, 1
    %p677 = por %p675, %p676
    %p679 = scmp.ne.s32.totalorder %s664, %s678
    %p680 = scmp.eq.s32.totalorder %s82, 0
    %p681 = por %p679, %p680
    %s683 = sadd.s32 %s682, 1
    %p686 = scmp.eq.s32.totalorder %s76, 1
    %p687 = scmp.ne.s32.totalorder %s682, %s684
    %p688 = scmp.eq.s32.totalorder %s76, 0
    %p689 = por %p687, %p688
    %p690 = scmp.ne.s32.totalorder %s682, %s684
    %p691 = scmp.eq.s32.totalorder %s81, 1
    %p692 = por %p690, %p691
    %p693 = scmp.ne.s32.totalorder %s684, %s685
    %p694 = scmp.eq.s32.totalorder %s81, 0
    %p695 = por %p693, %p694
    %p696 = scmp.ne.s32.totalorder %s684, %s685
    %p697 = scmp.eq.s32.totalorder %s82, 1
    %p698 = por %p696, %p697
    %p700 = scmp.ne.s32.totalorder %s685, %s699
    %p701 = scmp.eq.s32.totalorder %s82, 0
    %p702 = por %p700, %p701
    %s704 = sadd.s32 %s703, 1
    %p707 = scmp.eq.s32.totalorder %s76, 1
    %p708 = scmp.ne.s32.totalorder %s703, %s705
    %p709 = scmp.eq.s32.totalorder %s76, 0
    %p710 = por %p708, %p709
    %p711 = scmp.ne.s32.totalorder %s703, %s705
    %p712 = scmp.eq.s32.totalorder %s81, 1
    %p713 = por %p711, %p712
    %p714 = scmp.ne.s32.totalorder %s705, %s706
    %p715 = scmp.eq.s32.totalorder %s81, 0
    %p716 = por %p714, %p715
    %p717 = scmp.ne.s32.totalorder %s705, %s706
    %p718 = scmp.eq.s32.totalorder %s82, 1
    %p719 = por %p717, %p718
    %p721 = scmp.ne.s32.totalorder %s706, %s720
    %p722 = scmp.eq.s32.totalorder %s82, 0
    %p723 = por %p721, %p722
    %s725 = sadd.s32 %s724, 1
    %p728 = scmp.eq.s32.totalorder %s76, 1
    %p729 = scmp.ne.s32.totalorder %s724, %s726
    %p730 = scmp.eq.s32.totalorder %s76, 0
    %p731 = por %p729, %p730
    %p732 = scmp.ne.s32.totalorder %s724, %s726
    %p733 = scmp.eq.s32.totalorder %s81, 1
    %p734 = por %p732, %p733
    %p735 = scmp.ne.s32.totalorder %s726, %s727
    %p736 = scmp.eq.s32.totalorder %s81, 0
    %p737 = por %p735, %p736
    %p738 = scmp.ne.s32.totalorder %s726, %s727
    %p739 = scmp.eq.s32.totalorder %s82, 1
    %p740 = por %p738, %p739
    %p742 = scmp.ne.s32.totalorder %s727, %s741
    %p743 = scmp.eq.s32.totalorder %s82, 0
    %p744 = por %p742, %p743
    %s746 = sadd.s32 %s745, 1
    %p749 = scmp.eq.s32.totalorder %s76, 1
    %p750 = scmp.ne.s32.totalorder %s745, %s747
    %p751 = scmp.eq.s32.totalorder %s76, 0
    %p752 = por %p750, %p751
    %p753 = scmp.ne.s32.totalorder %s745, %s747
    %p754 = scmp.eq.s32.totalorder %s81, 1
    %p755 = por %p753, %p754
    %p756 = scmp.ne.s32.totalorder %s747, %s748
    %p757 = scmp.eq.s32.totalorder %s81, 0
    %p758 = por %p756, %p757
    %p759 = scmp.ne.s32.totalorder %s747, %s748
    %p760 = scmp.eq.s32.totalorder %s82, 1
    %p761 = por %p759, %p760
    %p763 = scmp.ne.s32.totalorder %s748, %s762
    %p764 = scmp.eq.s32.totalorder %s82, 0
    %p765 = por %p763, %p764
    %s766 = ssub.s32 %s76, %s83
    %p767 = scmp.eq.s32.totalorder %s766, 0
    %s769 = sadd.s32 %s768, 1
    %s770 = scalar_select %p767, %s768, %s769
    %p773 = pneg %p767
    %p774 = scmp.eq.s32.totalorder %s76, 1
    %p775 = por %p773, %p774
    %p776 = scmp.ne.s32.totalorder %s768, %s771
    %p777 = scmp.eq.s32.totalorder %s76, 0
    %p778 = por %p776, %p777
    %p779 = scmp.ne.s32.totalorder %s768, %s771
    %p780 = scmp.eq.s32.totalorder %s81, 1
    %p781 = por %p779, %p780
    %p782 = scmp.ne.s32.totalorder %s771, %s772
    %p783 = scmp.eq.s32.totalorder %s81, 0
    %p784 = por %p782, %p783
    %p785 = scmp.ne.s32.totalorder %s771, %s772
    %p786 = scmp.eq.s32.totalorder %s82, 1
    %p787 = por %p785, %p786
    %p789 = scmp.ne.s32.totalorder %s772, %s788
    %p790 = scmp.eq.s32.totalorder %s82, 0
    %p791 = por %p789, %p790
    %s792 = ssub.s32 %s76, %s83
    %p793 = scmp.eq.s32.totalorder %s792, 0
    %s795 = sadd.s32 %s794, 1
    %s796 = scalar_select %p793, %s794, %s795
    %p799 = pneg %p793
    %p800 = scmp.eq.s32.totalorder %s76, 1
    %p801 = por %p799, %p800
    %p802 = scmp.ne.s32.totalorder %s794, %s797
    %p803 = scmp.eq.s32.totalorder %s76, 0
    %p804 = por %p802, %p803
    %p805 = scmp.ne.s32.totalorder %s794, %s797
    %p806 = scmp.eq.s32.totalorder %s81, 1
    %p807 = por %p805, %p806
    %p808 = scmp.ne.s32.totalorder %s797, %s798
    %p809 = scmp.eq.s32.totalorder %s81, 0
    %p810 = por %p808, %p809
    %p811 = scmp.ne.s32.totalorder %s797, %s798
    %p812 = scmp.eq.s32.totalorder %s82, 1
    %p813 = por %p811, %p812
    %p815 = scmp.ne.s32.totalorder %s798, %s814
    %p816 = scmp.eq.s32.totalorder %s82, 0
    %p817 = por %p815, %p816
    %p818 = scmp.le.s32.totalorder 1, %s76
    %p819 = scmp.lt.s32.totalorder %s76, 3
    %p820 = pnand %p818, %p819
    %p821 = pneg %p820
    // Predicated region
    $region9: #{forward.3} parent=5 // pred_check
      _
    $region10: #{forward.3} parent=5 // pred_check_branch
      %823 = sbr.rel (%p820) target = $region12
    $region11: #{forward.3} parent=5 // pred_region
      %s824 = ssub.s32 %s76, 1
      // Predicated region
      $region13: #{forward.3} parent=11 // pred_check
        %p825 = pneg %p149
      $region14: #{forward.3} parent=11 // pred_check_branch
        %827 = sbr.rel (%p825) target = $region16
      $region15: #{forward.3} parent=11 // pred_region
        _
      $region16: #{forward.3} parent=11 // pred_fallthru
        _
      // Predicated region
      $region17: #{forward.3} parent=11 // pred_check
        %p828 = pneg %p170
      $region18: #{forward.3} parent=11 // pred_check_branch
        %830 = sbr.rel (%p828) target = $region20
      $region19: #{forward.3} parent=11 // pred_region
        _
      $region20: #{forward.3} parent=11 // pred_fallthru
        _
      // Predicated region
      $region21: #{forward.3} parent=11 // pred_check
        %p831 = pneg %p191
      $region22: #{forward.3} parent=11 // pred_check_branch
        %833 = sbr.rel (%p831) target = $region24
      $region23: #{forward.3} parent=11 // pred_region
        _
      $region24: #{forward.3} parent=11 // pred_fallthru
        _
      // Predicated region
      $region25: #{forward.3} parent=11 // pred_check
        %p834 = pneg %p212
      $region26: #{forward.3} parent=11 // pred_check_branch
        %836 = sbr.rel (%p834) target = $region28
      $region27: #{forward.3} parent=11 // pred_region
        _
      $region28: #{forward.3} parent=11 // pred_fallthru
        _
      // Predicated region
      $region29: #{forward.3} parent=11 // pred_check
        %p837 = pneg %p233
      $region30: #{forward.3} parent=11 // pred_check_branch
        %839 = sbr.rel (%p837) target = $region32
      $region31: #{forward.3} parent=11 // pred_region
        _
      $region32: #{forward.3} parent=11 // pred_fallthru
        _
      // Predicated region
      $region33: #{forward.3} parent=11 // pred_check
        %p840 = pneg %p254
      $region34: #{forward.3} parent=11 // pred_check_branch
        %842 = sbr.rel (%p840) target = $region36
      $region35: #{forward.3} parent=11 // pred_region
        _
      $region36: #{forward.3} parent=11 // pred_fallthru
        _
      // Predicated region
      $region37: #{forward.3} parent=11 // pred_check
        %p843 = pneg %p275
      $region38: #{forward.3} parent=11 // pred_check_branch
        %845 = sbr.rel (%p843) target = $region40
      $region39: #{forward.3} parent=11 // pred_region
        _
      $region40: #{forward.3} parent=11 // pred_fallthru
        _
      // Predicated region
      $region41: #{forward.3} parent=11 // pred_check
        %p846 = pneg %p296
      $region42: #{forward.3} parent=11 // pred_check_branch
        %848 = sbr.rel (%p846) target = $region44
      $region43: #{forward.3} parent=11 // pred_region
        _
      $region44: #{forward.3} parent=11 // pred_fallthru
        _
      // Predicated region
      $region45: #{forward.3} parent=11 // pred_check
        %p849 = pneg %p317
      $region46: #{forward.3} parent=11 // pred_check_branch
        %851 = sbr.rel (%p849) target = $region48
      $region47: #{forward.3} parent=11 // pred_region
        _
      $region48: #{forward.3} parent=11 // pred_fallthru
        _
      // Predicated region
      $region49: #{forward.3} parent=11 // pred_check
        %p852 = pneg %p338
      $region50: #{forward.3} parent=11 // pred_check_branch
        %854 = sbr.rel (%p852) target = $region52
      $region51: #{forward.3} parent=11 // pred_region
        _
      $region52: #{forward.3} parent=11 // pred_fallthru
        _
      // Predicated region
      $region53: #{forward.3} parent=11 // pred_check
        %p855 = pneg %p359
      $region54: #{forward.3} parent=11 // pred_check_branch
        %857 = sbr.rel (%p855) target = $region56
      $region55: #{forward.3} parent=11 // pred_region
        _
      $region56: #{forward.3} parent=11 // pred_fallthru
        _
      // Predicated region
      $region57: #{forward.3} parent=11 // pred_check
        %p858 = pneg %p380
      $region58: #{forward.3} parent=11 // pred_check_branch
        %860 = sbr.rel (%p858) target = $region60
      $region59: #{forward.3} parent=11 // pred_region
        _
      $region60: #{forward.3} parent=11 // pred_fallthru
        _
      // Predicated region
      $region61: #{forward.3} parent=11 // pred_check
        %p861 = pneg %p401
      $region62: #{forward.3} parent=11 // pred_check_branch
        %863 = sbr.rel (%p861) target = $region64
      $region63: #{forward.3} parent=11 // pred_region
        _
      $region64: #{forward.3} parent=11 // pred_fallthru
        _
      // Predicated region
      $region65: #{forward.3} parent=11 // pred_check
        %p864 = pneg %p422
      $region66: #{forward.3} parent=11 // pred_check_branch
        %866 = sbr.rel (%p864) target = $region68
      $region67: #{forward.3} parent=11 // pred_region
        _
      $region68: #{forward.3} parent=11 // pred_fallthru
        _
      // Predicated region
      $region69: #{forward.3} parent=11 // pred_check
        %p867 = pneg %p443
      $region70: #{forward.3} parent=11 // pred_check_branch
        %869 = sbr.rel (%p867) target = $region72
      $region71: #{forward.3} parent=11 // pred_region
        _
      $region72: #{forward.3} parent=11 // pred_fallthru
        _
      // Predicated region
      $region73: #{forward.3} parent=11 // pred_check
        %p870 = pneg %p464
      $region74: #{forward.3} parent=11 // pred_check_branch
        %872 = sbr.rel (%p870) target = $region76
      $region75: #{forward.3} parent=11 // pred_region
        _
      $region76: #{forward.3} parent=11 // pred_fallthru
        _
      // Predicated region
      $region77: #{forward.3} parent=11 // pred_check
        %p873 = pneg %p485
      $region78: #{forward.3} parent=11 // pred_check_branch
        %875 = sbr.rel (%p873) target = $region80
      $region79: #{forward.3} parent=11 // pred_region
        _
      $region80: #{forward.3} parent=11 // pred_fallthru
        _
      // Predicated region
      $region81: #{forward.3} parent=11 // pred_check
        %p876 = pneg %p506
      $region82: #{forward.3} parent=11 // pred_check_branch
        %878 = sbr.rel (%p876) target = $region84
      $region83: #{forward.3} parent=11 // pred_region
        _
      $region84: #{forward.3} parent=11 // pred_fallthru
        _
      // Predicated region
      $region85: #{forward.3} parent=11 // pred_check
        %p879 = pneg %p527
      $region86: #{forward.3} parent=11 // pred_check_branch
        %881 = sbr.rel (%p879) target = $region88
      $region87: #{forward.3} parent=11 // pred_region
        _
      $region88: #{forward.3} parent=11 // pred_fallthru
        _
      // Predicated region
      $region89: #{forward.3} parent=11 // pred_check
        %p882 = pneg %p548
      $region90: #{forward.3} parent=11 // pred_check_branch
        %884 = sbr.rel (%p882) target = $region92
      $region91: #{forward.3} parent=11 // pred_region
        _
      $region92: #{forward.3} parent=11 // pred_fallthru
        _
      // Predicated region
      $region93: #{forward.3} parent=11 // pred_check
        %p885 = pneg %p569
      $region94: #{forward.3} parent=11 // pred_check_branch
        %887 = sbr.rel (%p885) target = $region96
      $region95: #{forward.3} parent=11 // pred_region
        _
      $region96: #{forward.3} parent=11 // pred_fallthru
        _
      // Predicated region
      $region97: #{forward.3} parent=11 // pred_check
        %p888 = pneg %p590
      $region98: #{forward.3} parent=11 // pred_check_branch
        %890 = sbr.rel (%p888) target = $region100
      $region99: #{forward.3} parent=11 // pred_region
        _
      $region100: #{forward.3} parent=11 // pred_fallthru
        _
      // Predicated region
      $region101: #{forward.3} parent=11 // pred_check
        %p891 = pneg %p611
      $region102: #{forward.3} parent=11 // pred_check_branch
        %893 = sbr.rel (%p891) target = $region104
      $region103: #{forward.3} parent=11 // pred_region
        _
      $region104: #{forward.3} parent=11 // pred_fallthru
        _
      // Predicated region
      $region105: #{forward.3} parent=11 // pred_check
        %p894 = pneg %p632
      $region106: #{forward.3} parent=11 // pred_check_branch
        %896 = sbr.rel (%p894) target = $region108
      $region107: #{forward.3} parent=11 // pred_region
        _
      $region108: #{forward.3} parent=11 // pred_fallthru
        _
      // Predicated region
      $region109: #{forward.3} parent=11 // pred_check
        %p897 = pneg %p653
      $region110: #{forward.3} parent=11 // pred_check_branch
        %899 = sbr.rel (%p897) target = $region112
      $region111: #{forward.3} parent=11 // pred_region
        _
      $region112: #{forward.3} parent=11 // pred_fallthru
        _
      // Predicated region
      $region113: #{forward.3} parent=11 // pred_check
        %p900 = pneg %p674
      $region114: #{forward.3} parent=11 // pred_check_branch
        %902 = sbr.rel (%p900) target = $region116
      $region115: #{forward.3} parent=11 // pred_region
        _
      $region116: #{forward.3} parent=11 // pred_fallthru
        _
      // Predicated region
      $region117: #{forward.3} parent=11 // pred_check
        %p903 = pneg %p695
      $region118: #{forward.3} parent=11 // pred_check_branch
        %905 = sbr.rel (%p903) target = $region120
      $region119: #{forward.3} parent=11 // pred_region
        _
      $region120: #{forward.3} parent=11 // pred_fallthru
        _
      // Predicated region
      $region121: #{forward.3} parent=11 // pred_check
        %p906 = pneg %p716
      $region122: #{forward.3} parent=11 // pred_check_branch
        %908 = sbr.rel (%p906) target = $region124
      $region123: #{forward.3} parent=11 // pred_region
        _
      $region124: #{forward.3} parent=11 // pred_fallthru
        _
      // Predicated region
      $region125: #{forward.3} parent=11 // pred_check
        %p909 = pneg %p737
      $region126: #{forward.3} parent=11 // pred_check_branch
        %911 = sbr.rel (%p909) target = $region128
      $region127: #{forward.3} parent=11 // pred_region
        _
      $region128: #{forward.3} parent=11 // pred_fallthru
        _
      // Predicated region
      $region129: #{forward.3} parent=11 // pred_check
        %p912 = pneg %p758
      $region130: #{forward.3} parent=11 // pred_check_branch
        %914 = sbr.rel (%p912) target = $region132
      $region131: #{forward.3} parent=11 // pred_region
        _
      $region132: #{forward.3} parent=11 // pred_fallthru
        _
    $region12: #{forward.3} parent=5 // pred_fallthru
      _
    %p915 = scmp.lt.s32.totalorder %s76, 2
    // Predicated region
    $region133: #{forward.3} parent=5 // pred_check
      %p916 = pneg %p915
    $region134: #{forward.3} parent=5 // pred_check_branch
      %918 = sbr.rel (%p916) target = $region136
    $region135: #{forward.3} parent=5 // pred_region
      // Predicated region
      $region137: #{forward.3} parent=135 // pred_check
        %p919 = pneg %p96
      $region138: #{forward.3} parent=135 // pred_check_branch
        %921 = sbr.rel (%p919) target = $region140
      $region139: #{forward.3} parent=135 // pred_region
        %p922 = scmp.lt.s32.totalorder %s76, 1
        %s923 = scalar_select %p922, %s76, 1
        %s924 = smul.addr %s923, 8
        %s925 = scalar_lea.vmem %s1, %s924
      $region140: #{forward.3} parent=135 // pred_fallthru
        _
      // Predicated region
      $region141: #{forward.3} parent=135 // pred_check
        %p926 = pneg %p122
      $region142: #{forward.3} parent=135 // pred_check_branch
        %928 = sbr.rel (%p926) target = $region144
      $region143: #{forward.3} parent=135 // pred_region
        %p929 = scmp.lt.s32.totalorder %s76, 1
        %s930 = scalar_select %p929, %s76, 1
        %s931 = scalar_lea.vmem %s3, %s930
      $region144: #{forward.3} parent=135 // pred_fallthru
        _
    $region136: #{forward.3} parent=5 // pred_fallthru
      _
    %p932 = scmp.le.s32.totalorder 1, %s76
    %p933 = scmp.lt.s32.totalorder %s76, 3
    %p934 = pnand %p932, %p933
    %p935 = pneg %p934
    // Predicated region
    $region145: #{forward.3} parent=5 // pred_check
      _
    $region146: #{forward.3} parent=5 // pred_check_branch
      %937 = sbr.rel (%p934) target = $region148
    $region147: #{forward.3} parent=5 // pred_region
      %s938 = ssub.s32 %s76, 1
      %p939 = scmp.lt.s32.totalorder %s81, 1
      %s940 = scalar_select %p939, %s81, 1
      %s941 = smul.addr %s940, 8
      %s942 = scalar_lea.vmem %s1, %s941
      %p943 = pneg %p102
      %p944 = pneg %p99
      %p945 = scmp.lt.s32.totalorder %s81, 1
      %s946 = scalar_select %p945, %s81, 1
      %s947 = scalar_lea.vmem %s3, %s946
      %p948 = pneg %p128
      %p949 = pneg %p125
      %p950 = pneg %p149
      %p951 = pneg %p146
      %p952 = pneg %p170
      %p953 = pneg %p167
      %p954 = pneg %p191
      %p955 = pneg %p188
      %p956 = pneg %p212
      %p957 = pneg %p209
      %p958 = pneg %p233
      %p959 = pneg %p230
      %p960 = pneg %p254
      %p961 = pneg %p251
      %p962 = pneg %p275
      %p963 = pneg %p272
      %p964 = pneg %p296
      %p965 = pneg %p293
      %p966 = pneg %p317
      %p967 = pneg %p314
      %p968 = pneg %p338
      %p969 = pneg %p335
      %p970 = pneg %p359
      %p971 = pneg %p356
      %p972 = pneg %p380
      %p973 = pneg %p377
      %p974 = pneg %p401
      %p975 = pneg %p398
      %p976 = pneg %p422
      %p977 = pneg %p419
      %p978 = pneg %p443
      %p979 = pneg %p440
      %p980 = pneg %p464
      %p981 = pneg %p461
      %p982 = pneg %p485
      %p983 = pneg %p482
      %p984 = pneg %p506
      %p985 = pneg %p503
      %p986 = pneg %p527
      %p987 = pneg %p524
      %p988 = pneg %p548
      %p989 = pneg %p545
      %p990 = pneg %p569
      %p991 = pneg %p566
      %p992 = pneg %p590
      %p993 = pneg %p587
      %p994 = pneg %p611
      %p995 = pneg %p608
      %p996 = pneg %p632
      %p997 = pneg %p629
      %p998 = pneg %p653
      %p999 = pneg %p650
      %p1000 = pneg %p674
      %p1001 = pneg %p671
      %p1002 = pneg %p695
      %p1003 = pneg %p692
      %p1004 = pneg %p716
      %p1005 = pneg %p713
      %p1006 = pneg %p737
      %p1007 = pneg %p734
      %p1008 = pneg %p758
      %p1009 = pneg %p755
      %p1010 = pneg %p784
      %p1011 = pneg %p781
      %p1012 = scmp.lt.s32.totalorder %s81, 1
      %s1013 = scalar_select %p1012, %s81, 1
      %s1014 = smul.addr %s1013, 8
      %s1015 = scalar_lea.vmem %s65, %s1014
      %p1016 = pneg %p810
      %p1017 = pneg %p807
      %p1018 = scmp.lt.s32.totalorder %s81, 1
      %s1019 = scalar_select %p1018, %s81, 1
      %s1020 = smul.addr %s1019, 8
      %s1021 = scalar_lea.vmem %s67, %s1020
      %p1022 = scmp.lt.s32.totalorder %s81, 1
      %s1023 = scalar_select %p1022, %s81, 1
      %s1024 = smul.addr %s1023, 8
      %s1025 = scalar_lea.vmem %s1, %s1024
      %p1026 = scmp.lt.s32.totalorder %s81, 1
      %s1027 = scalar_select %p1026, %s81, 1
      %s1028 = scalar_lea.vmem %s3, %s1027
      %p1029 = scmp.lt.s32.totalorder %s81, 1
      %s1030 = scalar_select %p1029, %s81, 1
      %s1031 = smul.addr %s1030, 8
      %s1032 = scalar_lea.vmem %s65, %s1031
      %p1033 = scmp.lt.s32.totalorder %s81, 1
      %s1034 = scalar_select %p1033, %s81, 1
      %s1035 = smul.addr %s1034, 8
      %s1036 = scalar_lea.vmem %s67, %s1035
      %v1038 = vld [vmem:[%s1025] sm:$0xff]
      %v1039 = vld [vmem:[%s5] sm:$0xf]
      %v1040 = vld [vmem:[%s5 + $0x4] sm:$0xf]
      %v1041 = vld [vmem:[%s5 + $0x8] sm:$0xf]
      %v1042 = vld [vmem:[%s5 + $0xc] sm:$0xf]
      %v1043 = vld [vmem:[%s7] sm:$0x1]
      %v1044 = vld [vmem:[%s9] sm:$0xf]
      %v1045 = vld [vmem:[%s9 + $0x4] sm:$0xf]
      %v1046 = vld [vmem:[%s9 + $0x8] sm:$0xf]
      %v1047 = vld [vmem:[%s9 + $0xc] sm:$0xf]
      %v1048 = vld [vmem:[%s11] sm:$0x1]
      %v1049 = vld [vmem:[%s13] sm:$0x1]
      %v1050 = vld [vmem:[%s15] sm:$0x1]
      %v1051 = vld [vmem:[%s17] sm:$0xf]
      %v1052 = vld [vmem:[%s17 + $0x4] sm:$0xf]
      %v1053 = vld [vmem:[%s17 + $0x8] sm:$0xf]
      %v1054 = vld [vmem:[%s17 + $0xc] sm:$0xf]
      %v1055 = vld [vmem:[%s19] sm:$0x1]
      %v1056 = vld [vmem:[%s21] sm:$0xf]
      %v1057 = vld [vmem:[%s21 + $0x4] sm:$0xf]
      %v1058 = vld [vmem:[%s21 + $0x8] sm:$0xf]
      %v1059 = vld [vmem:[%s21 + $0xc] sm:$0xf]
      %v1060 = vld [vmem:[%s21 + $0x10] sm:$0xf]
      %v1061 = vld [vmem:[%s21 + $0x14] sm:$0xf]
      %v1062 = vld [vmem:[%s21 + $0x18] sm:$0xf]
      %v1063 = vld [vmem:[%s21 + $0x1c] sm:$0xf]
      %v1064 = vld [vmem:[%s21 + $0x20] sm:$0xf]
      %v1065 = vld [vmem:[%s21 + $0x24] sm:$0xf]
      %v1066 = vld [vmem:[%s21 + $0x28] sm:$0xf]
      %v1067 = vld [vmem:[%s21 + $0x2c] sm:$0xf]
      %v1068 = vld [vmem:[%s21 + $0x30] sm:$0xf]
      %v1069 = vld [vmem:[%s21 + $0x34] sm:$0xf]
      %v1070 = vld [vmem:[%s21 + $0x38] sm:$0xf]
      %v1071 = vld [vmem:[%s21 + $0x3c] sm:$0xf]
      %v1072 = vld [vmem:[%s23] sm:$0x1]
      %v1073 = vld [vmem:[%s25] sm:$0x1]
      %v1074 = vld [vmem:[%s27] sm:$0x1]
      %v1075 = vpack.c.bf16 %v1038, %v1038
      %v1077 = vperm.slane %v1043, 0
      %v1083 = vunpack.c.l.b16 %v1039
      %v1084 = vunpack.c.l.b16 %v1040
      %v1085 = vunpack.c.l.b16 %v1041
      %v1086 = vunpack.c.l.b16 %v1042
      %v1087 = vpack.c.b16 %v1084, %v1083
      %v1088 = vpack.c.b16 %v1086, %v1085
      %vm1091 = vcmask 261120
      %v1093 = vsel %vm1091, %v1075, 0
      %1095 = vmatpush.bf16.msra.mxu0 0
      %1096 = vmatpush.bf16.msra.mxu0 0
      %1097 = vmatpush.bf16.msra.mxu0 0
      %1098 = vmatpush.bf16.msra.mxu0 0
      %1099 = vmatpush.bf16.msra.mxu0 0
      %1100 = vmatpush.bf16.msra.mxu0 0
      %1101 = vmatpush.bf16.msra.mxu0 %v1088
      %1102 = vmatpush.bf16.msra.mxu0 %v1087
      %1103 = vmatmul.bf16.gmra.mxu0 %v1093
      %v1104 = vpop.f32.mrf.mxu0
      %v1105 = vadd.f32 %v1077, %v1104
      %v1106 = vpop.f32.mrf.mxu0
      %1107 = vdwg.mxu0
      %1109 = vrot.lane.b32.xlu0 %v1105, 96
      %v1110 = vpop.permute.xlu0 %1109
      %vm1111 = vcmask 64512
      %v1112 = vsel %vm1111, %v1105, 0
      %v1114 = vsel %vm1111, %v1110, 0
      %1116 = vmatpush.xpose.msra.mxu0 0.0
      %1117 = vmatpush.xpose.msra.mxu0 0.0
      %1118 = vmatpush.xpose.msra.mxu0 0.0
      %1119 = vmatpush.xpose.msra.mxu0 0.0
      %1120 = vmatpush.xpose.msra.mxu0 0.0
      %1121 = vmatpush.xpose.msra.mxu0 0.0
      %1122 = vmatpush.xpose.msra.mxu0 0.0
      %1123 = vmatpush.xpose.msra.mxu0 0.0
      %1124 = vmatpush.xpose.msra.mxu0 0.0
      %1125 = vmatpush.xpose.msra.mxu0 0.0
      %1126 = vmatpush.xpose.msra.mxu0 0.0
      %1127 = vmatpush.xpose.msra.mxu0 0.0
      %1128 = vmatpush.xpose.msra.mxu0 0.0
      %1129 = vmatpush.xpose.msra.mxu0 0.0
      %1130 = vmatpush.xpose.msra.mxu0 0.0
      %1131 = vmatpush.xpose.msra.mxu0 %v1114
      %1132 = vmatmul.f32.gmra.mxu0 %v1112
      %v1133 = vpop.f32.mrf.mxu0
      %v1134 = vadd.f32 0.0, %v1133
      %1135 = vdwg.mxu0
      %v1136 = vmul.f32 %v1134, 0.35355338
      %v1137 = vsel %vm1111, %v1136, -inf
      %1138 = vmax.xlane.f32.xlu0 %v1137
      %v1139 = vpop.xlane.xlu0 %1138
      %v1140 = vsub.f32 %v1136, %v1139
      %v1141 = vmul.f32 %v1140, 1.442695
      %v1142 = vpow.pop %v1141
      %v1143 = vsel %vm1111, %v1142, 0.0
      %1144 = vadd.xlane.f32.xlu0 %v1143
      %v1145 = vpop.xlane.xlu0 %1144
      %v1146 = vrcp.pop %v1145
      %v1147 = vmul.f32 %v1145, %v1146
      %v1148 = vsub.f32 1.0, %v1147
      %v1149 = vmul.f32 %v1146, %v1148
      %v1150 = vadd.f32 %v1146, %v1149
      %vm1151 = vweird.f32 %v1145
      %vm1152 = vweird.f32 %v1146
      %vm1153 = vmor %vm1151, %vm1152
      %v1154 = vsel %vm1153, %v1146, %v1150
      %v1155 = vand.u32 2147483647, %v1145
      %vm1156 = vcmp.eq.f32.partialorder %v1155, 8.507059e+37
      %v1157 = vand.u32 %v1145, 2147483648
      %v1158 = vor.u32 1.1754944e-38, %v1157
      %v1159 = vsel %vm1156, %v1158, %v1154
      %v1160 = vmul.f32 %v1142, %v1159
      %1161 = vrot.lane.b32.xlu0 %v1105, 64
      %v1162 = vpop.permute.xlu0 %1161
      %v1165 = vsel %vm1111, %v1160, 0
      %1167 = vmatpush.msra.mxu0 0.0
      %1168 = vmatpush.msra.mxu0 0.0
      %1169 = vmatpush.msra.mxu0 0.0
      %1170 = vmatpush.msra.mxu0 0.0
      %1171 = vmatpush.msra.mxu0 0.0
      %1172 = vmatpush.msra.mxu0 0.0
      %1173 = vmatpush.msra.mxu0 0.0
      %1174 = vmatpush.msra.mxu0 0.0
      %1175 = vmatpush.msra.mxu0 0.0
      %1176 = vmatpush.msra.mxu0 0.0
      %1177 = vmatpush.msra.mxu0 0.0
      %1178 = vmatpush.msra.mxu0 0.0
      %1179 = vmatpush.msra.mxu0 0.0
      %1180 = vmatpush.msra.mxu0 0.0
      %1181 = vmatpush.msra.mxu0 0.0
      %1182 = vmatpush.msra.mxu0 %v1162
      %1183 = vmatmul.f32.gmra.mxu0 %v1165
      %v1184 = vpop.f32.mrf.mxu0
      %v1185 = vadd.f32 0.0, %v1184
      %1186 = vdwg.mxu0
      %1187 = vrot.lane.b32.xlu0 %v1105, 120
      %v1188 = vpop.permute.xlu0 %1187
      %1189 = vrot.lane.b32.xlu0 %v1105, 88
      %v1190 = vpop.permute.xlu0 %1189
      %v1191 = vsel %vm1111, %v1188, 0
      %v1193 = vsel %vm1111, %v1190, 0
      %1195 = vmatpush.xpose.msra.mxu0 0.0
      %1196 = vmatpush.xpose.msra.mxu0 0.0
      %1197 = vmatpush.xpose.msra.mxu0 0.0
      %1198 = vmatpush.xpose.msra.mxu0 0.0
      %1199 = vmatpush.xpose.msra.mxu0 0.0
      %1200 = vmatpush.xpose.msra.mxu0 0.0
      %1201 = vmatpush.xpose.msra.mxu0 0.0
      %1202 = vmatpush.xpose.msra.mxu0 0.0
      %1203 = vmatpush.xpose.msra.mxu0 0.0
      %1204 = vmatpush.xpose.msra.mxu0 0.0
      %1205 = vmatpush.xpose.msra.mxu0 0.0
      %1206 = vmatpush.xpose.msra.mxu0 0.0
      %1207 = vmatpush.xpose.msra.mxu0 0.0
      %1208 = vmatpush.xpose.msra.mxu0 0.0
      %1209 = vmatpush.xpose.msra.mxu0 0.0
      %1210 = vmatpush.xpose.msra.mxu0 %v1193
      %1211 = vmatmul.f32.gmra.mxu0 %v1191
      %v1212 = vpop.f32.mrf.mxu0
      %v1213 = vadd.f32 0.0, %v1212
      %1214 = vdwg.mxu0
      %v1215 = vmul.f32 %v1213, 0.35355338
      %v1216 = vsel %vm1111, %v1215, -inf
      %1217 = vmax.xlane.f32.xlu0 %v1216
      %v1218 = vpop.xlane.xlu0 %1217
      %v1219 = vsub.f32 %v1215, %v1218
      %v1220 = vmul.f32 %v1219, 1.442695
      %v1221 = vpow.pop %v1220
      %v1222 = vsel %vm1111, %v1221, 0.0
      %1223 = vadd.xlane.f32.xlu0 %v1222
      %v1224 = vpop.xlane.xlu0 %1223
      %v1225 = vrcp.pop %v1224
      %v1226 = vmul.f32 %v1224, %v1225
      %v1227 = vsub.f32 1.0, %v1226
      %v1228 = vmul.f32 %v1225, %v1227
      %v1229 = vadd.f32 %v1225, %v1228
      %vm1230 = vweird.f32 %v1224
      %vm1231 = vweird.f32 %v1225
      %vm1232 = vmor %vm1230, %vm1231
      %v1233 = vsel %vm1232, %v1225, %v1229
      %v1234 = vand.u32 2147483647, %v1224
      %vm1235 = vcmp.eq.f32.partialorder %v1234, 8.507059e+37
      %v1236 = vand.u32 %v1224, 2147483648
      %v1237 = vor.u32 1.1754944e-38, %v1236
      %v1238 = vsel %vm1235, %v1237, %v1233
      %v1239 = vmul.f32 %v1221, %v1238
      %1240 = vrot.lane.b32.xlu0 %v1105, 56
      %v1241 = vpop.permute.xlu0 %1240
      %v1244 = vsel %vm1111, %v1239, 0
      %1246 = vmatpush.msra.mxu0 0.0
      %1247 = vmatpush.msra.mxu0 0.0
      %1248 = vmatpush.msra.mxu0 0.0
      %1249 = vmatpush.msra.mxu0 0.0
      %1250 = vmatpush.msra.mxu0 0.0
      %1251 = vmatpush.msra.mxu0 0.0
      %1252 = vmatpush.msra.mxu0 0.0
      %1253 = vmatpush.msra.mxu0 0.0
      %1254 = vmatpush.msra.mxu0 0.0
      %1255 = vmatpush.msra.mxu0 0.0
      %1256 = vmatpush.msra.mxu0 0.0
      %1257 = vmatpush.msra.mxu0 0.0
      %1258 = vmatpush.msra.mxu0 0.0
      %1259 = vmatpush.msra.mxu0 0.0
      %1260 = vmatpush.msra.mxu0 0.0
      %1261 = vmatpush.msra.mxu0 %v1241
      %1262 = vmatmul.f32.gmra.mxu0 %v1244
      %v1263 = vpop.f32.mrf.mxu0
      %v1264 = vadd.f32 0.0, %v1263
      %1265 = vdwg.mxu0
      %1266 = vrot.lane.b32.xlu0 %v1105, 112
      %v1267 = vpop.permute.xlu0 %1266
      %1268 = vrot.lane.b32.xlu0 %v1105, 80
      %v1269 = vpop.permute.xlu0 %1268
      %v1270 = vsel %vm1111, %v1267, 0
      %v1272 = vsel %vm1111, %v1269, 0
      %1274 = vmatpush.xpose.msra.mxu0 0.0
      %1275 = vmatpush.xpose.msra.mxu0 0.0
      %1276 = vmatpush.xpose.msra.mxu0 0.0
      %1277 = vmatpush.xpose.msra.mxu0 0.0
      %1278 = vmatpush.xpose.msra.mxu0 0.0
      %1279 = vmatpush.xpose.msra.mxu0 0.0
      %1280 = vmatpush.xpose.msra.mxu0 0.0
      %1281 = vmatpush.xpose.msra.mxu0 0.0
      %1282 = vmatpush.xpose.msra.mxu0 0.0
      %1283 = vmatpush.xpose.msra.mxu0 0.0
      %1284 = vmatpush.xpose.msra.mxu0 0.0
      %1285 = vmatpush.xpose.msra.mxu0 0.0
      %1286 = vmatpush.xpose.msra.mxu0 0.0
      %1287 = vmatpush.xpose.msra.mxu0 0.0
      %1288 = vmatpush.xpose.msra.mxu0 0.0
      %1289 = vmatpush.xpose.msra.mxu0 %v1272
      %1290 = vmatmul.f32.gmra.mxu0 %v1270
      %v1291 = vpop.f32.mrf.mxu0
      %v1292 = vadd.f32 0.0, %v1291
      %1293 = vdwg.mxu0
      %v1294 = vmul.f32 %v1292, 0.35355338
      %v1295 = vsel %vm1111, %v1294, -inf
      %1296 = vmax.xlane.f32.xlu0 %v1295
      %v1297 = vpop.xlane.xlu0 %1296
      %v1298 = vsub.f32 %v1294, %v1297
      %v1299 = vmul.f32 %v1298, 1.442695
      %v1300 = vpow.pop %v1299
      %v1301 = vsel %vm1111, %v1300, 0.0
      %1302 = vadd.xlane.f32.xlu0 %v1301
      %v1303 = vpop.xlane.xlu0 %1302
      %v1304 = vrcp.pop %v1303
      %v1305 = vmul.f32 %v1303, %v1304
      %v1306 = vsub.f32 1.0, %v1305
      %v1307 = vmul.f32 %v1304, %v1306
      %v1308 = vadd.f32 %v1304, %v1307
      %vm1309 = vweird.f32 %v1303
      %vm1310 = vweird.f32 %v1304
      %vm1311 = vmor %vm1309, %vm1310
      %v1312 = vsel %vm1311, %v1304, %v1308
      %v1313 = vand.u32 2147483647, %v1303
      %vm1314 = vcmp.eq.f32.partialorder %v1313, 8.507059e+37
      %v1315 = vand.u32 %v1303, 2147483648
      %v1316 = vor.u32 1.1754944e-38, %v1315
      %v1317 = vsel %vm1314, %v1316, %v1312
      %v1318 = vmul.f32 %v1300, %v1317
      %1319 = vrot.lane.b32.xlu0 %v1105, 48
      %v1320 = vpop.permute.xlu0 %1319
      %v1323 = vsel %vm1111, %v1318, 0
      %1325 = vmatpush.msra.mxu0 0.0
      %1326 = vmatpush.msra.mxu0 0.0
      %1327 = vmatpush.msra.mxu0 0.0
      %1328 = vmatpush.msra.mxu0 0.0
      %1329 = vmatpush.msra.mxu0 0.0
      %1330 = vmatpush.msra.mxu0 0.0
      %1331 = vmatpush.msra.mxu0 0.0
      %1332 = vmatpush.msra.mxu0 0.0
      %1333 = vmatpush.msra.mxu0 0.0
      %1334 = vmatpush.msra.mxu0 0.0
      %1335 = vmatpush.msra.mxu0 0.0
      %1336 = vmatpush.msra.mxu0 0.0
      %1337 = vmatpush.msra.mxu0 0.0
      %1338 = vmatpush.msra.mxu0 0.0
      %1339 = vmatpush.msra.mxu0 0.0
      %1340 = vmatpush.msra.mxu0 %v1320
      %1341 = vmatmul.f32.gmra.mxu0 %v1323
      %v1342 = vpop.f32.mrf.mxu0
      %v1343 = vadd.f32 0.0, %v1342
      %1344 = vdwg.mxu0
      %1345 = vrot.lane.b32.xlu0 %v1105, 104
      %v1346 = vpop.permute.xlu0 %1345
      %1347 = vrot.lane.b32.xlu0 %v1105, 72
      %v1348 = vpop.permute.xlu0 %1347
      %v1349 = vsel %vm1111, %v1346, 0
      %v1351 = vsel %vm1111, %v1348, 0
      %1353 = vmatpush.xpose.msra.mxu0 0.0
      %1354 = vmatpush.xpose.msra.mxu0 0.0
      %1355 = vmatpush.xpose.msra.mxu0 0.0
      %1356 = vmatpush.xpose.msra.mxu0 0.0
      %1357 = vmatpush.xpose.msra.mxu0 0.0
      %1358 = vmatpush.xpose.msra.mxu0 0.0
      %1359 = vmatpush.xpose.msra.mxu0 0.0
      %1360 = vmatpush.xpose.msra.mxu0 0.0
      %1361 = vmatpush.xpose.msra.mxu0 0.0
      %1362 = vmatpush.xpose.msra.mxu0 0.0
      %1363 = vmatpush.xpose.msra.mxu0 0.0
      %1364 = vmatpush.xpose.msra.mxu0 0.0
      %1365 = vmatpush.xpose.msra.mxu0 0.0
      %1366 = vmatpush.xpose.msra.mxu0 0.0
      %1367 = vmatpush.xpose.msra.mxu0 0.0
      %1368 = vmatpush.xpose.msra.mxu0 %v1351
      %1369 = vmatmul.f32.gmra.mxu0 %v1349
      %v1370 = vpop.f32.mrf.mxu0
      %v1371 = vadd.f32 0.0, %v1370
      %1372 = vdwg.mxu0
      %v1373 = vmul.f32 %v1371, 0.35355338
      %v1374 = vsel %vm1111, %v1373, -inf
      %1375 = vmax.xlane.f32.xlu0 %v1374
      %v1376 = vpop.xlane.xlu0 %1375
      %v1377 = vsub.f32 %v1373, %v1376
      %v1378 = vmul.f32 %v1377, 1.442695
      %v1379 = vpow.pop %v1378
      %v1380 = vsel %vm1111, %v1379, 0.0
      %1381 = vadd.xlane.f32.xlu0 %v1380
      %v1382 = vpop.xlane.xlu0 %1381
      %v1383 = vrcp.pop %v1382
      %v1384 = vmul.f32 %v1382, %v1383
      %v1385 = vsub.f32 1.0, %v1384
      %v1386 = vmul.f32 %v1383, %v1385
      %v1387 = vadd.f32 %v1383, %v1386
      %vm1388 = vweird.f32 %v1382
      %vm1389 = vweird.f32 %v1383
      %vm1390 = vmor %vm1388, %vm1389
      %v1391 = vsel %vm1390, %v1383, %v1387
      %v1392 = vand.u32 2147483647, %v1382
      %vm1393 = vcmp.eq.f32.partialorder %v1392, 8.507059e+37
      %v1394 = vand.u32 %v1382, 2147483648
      %v1395 = vor.u32 1.1754944e-38, %v1394
      %v1396 = vsel %vm1393, %v1395, %v1391
      %v1397 = vmul.f32 %v1379, %v1396
      %1398 = vrot.lane.b32.xlu0 %v1105, 40
      %v1399 = vpop.permute.xlu0 %1398
      %v1402 = vsel %vm1111, %v1397, 0
      %1404 = vmatpush.msra.mxu0 0.0
      %1405 = vmatpush.msra.mxu0 0.0
      %1406 = vmatpush.msra.mxu0 0.0
      %1407 = vmatpush.msra.mxu0 0.0
      %1408 = vmatpush.msra.mxu0 0.0
      %1409 = vmatpush.msra.mxu0 0.0
      %1410 = vmatpush.msra.mxu0 0.0
      %1411 = vmatpush.msra.mxu0 0.0
      %1412 = vmatpush.msra.mxu0 0.0
      %1413 = vmatpush.msra.mxu0 0.0
      %1414 = vmatpush.msra.mxu0 0.0
      %1415 = vmatpush.msra.mxu0 0.0
      %1416 = vmatpush.msra.mxu0 0.0
      %1417 = vmatpush.msra.mxu0 0.0
      %1418 = vmatpush.msra.mxu0 0.0
      %1419 = vmatpush.msra.mxu0 %v1399
      %1420 = vmatmul.f32.gmra.mxu0 %v1402
      %v1421 = vpop.f32.mrf.mxu0
      %v1422 = vadd.f32 0.0, %v1421
      %1423 = vdwg.mxu0
      %1425 = vrot.lane.b32.xlu0 %v1264, 8
      %v1426 = vpop.permute.xlu0 %1425
      %1429 = vrot.lane.b32.xlu0 %v1343, 16
      %v1430 = vpop.permute.xlu0 %1429
      %1433 = vrot.lane.b32.xlu0 %v1422, 24
      %v1434 = vpop.permute.xlu0 %1433
      %v1436 = vsel %vm1111, %v1185, %v1426
      %vm1437 = vcmask 130048
      %v1438 = vsel %vm1437, %v1436, %v1430
      %vm1439 = vcmask 195584
      %v1440 = vsel %vm1439, %v1438, %v1434
      %v1441 = vpack.c.bf16 %v1440, %v1440
      %v1446 = vunpack.c.l.b16 %v1044
      %v1447 = vunpack.c.l.b16 %v1045
      %v1448 = vunpack.c.l.b16 %v1046
      %v1449 = vunpack.c.l.b16 %v1047
      %v1450 = vpack.c.b16 %v1447, %v1446
      %v1451 = vpack.c.b16 %v1449, %v1448
      %v1455 = vsel %vm1091, %v1441, 0
      %1457 = vmatpush.bf16.msra.mxu0 0
      %1458 = vmatpush.bf16.msra.mxu0 0
      %1459 = vmatpush.bf16.msra.mxu0 0
      %1460 = vmatpush.bf16.msra.mxu0 0
      %1461 = vmatpush.bf16.msra.mxu0 0
      %1462 = vmatpush.bf16.msra.mxu0 0
      %1463 = vmatpush.bf16.msra.mxu0 %v1451
      %1464 = vmatpush.bf16.msra.mxu0 %v1450
      %1465 = vmatmul.bf16.gmra.mxu0 %v1455
      %v1466 = vpop.f32.mrf.mxu0
      %v1467 = vadd.f32 0.0, %v1466
      %v1468 = vpop.f32.mrf.mxu0
      %1469 = vdwg.mxu0
      %v1470 = vadd.f32 %v1038, %v1467
      %v1472 = vperm.slane %v1048, 0
      %v1474 = vadd.f32 %v1470, %v1472
      %v1475 = vsel %vm1091, %v1474, 0.0
      %1476 = vadd.xlane.f32.xlu0 %v1475
      %v1477 = vpop.xlane.xlu0 %1476
      %v1478 = vrcp.pop 32.0
      %v1479 = vmul.f32 32.0, %v1478
      %v1480 = vsub.f32 1.0, %v1479
      %v1481 = vmul.f32 %v1478, %v1480
      %v1482 = vadd.f32 %v1478, %v1481
      %vm1483 = vweird.f32 %v1478
      %v1484 = vsel %vm1483, %v1478, %v1482
      %v1485 = vmul.f32 %v1477, %v1484
      %v1486 = vsub.f32 %v1474, %v1485
      %v1487 = vmul.f32 %v1486, %v1486
      %v1488 = vsel %vm1091, %v1487, 0.0
      %1489 = vadd.xlane.f32.xlu0 %v1488
      %v1490 = vpop.xlane.xlu0 %1489
      %v1491 = vmul.f32 %v1490, %v1484
      %v1492 = vadd.f32 %v1491, 1e-05
      %v1493 = vrsqrt.pop %v1492
      %v1494 = vmul.f32 %v1493, %v1492
      %v1495 = vmul.f32 %v1494, %v1493
      %v1496 = vmul.f32 0.5, %v1495
      %v1497 = vsub.f32 1.5, %v1496
      %v1498 = vmul.f32 %v1493, %v1497
      %vm1499 = vweird.f32 %v1492
      %vm1500 = vweird.f32 %v1493
      %vm1501 = vmor %vm1499, %vm1500
      %v1502 = vsel %vm1501, %v1493, %v1498
      %v1503 = vmul.f32 %v1486, %v1502
      %v1505 = vperm.slane %v1049, 0
      %v1507 = vmul.f32 %v1503, %v1505
      %v1509 = vperm.slane %v1050, 0
      %v1511 = vadd.f32 %v1507, %v1509
      %v1512 = vpack.c.bf16 %v1511, %v1511
      %v1514 = vperm.slane %v1055, 0
      %v1520 = vunpack.c.l.b16 %v1051
      %v1521 = vunpack.c.l.b16 %v1052
      %v1522 = vunpack.c.l.b16 %v1053
      %v1523 = vunpack.c.l.b16 %v1054
      %v1524 = vpack.c.b16 %v1521, %v1520
      %v1525 = vpack.c.b16 %v1523, %v1522
      %v1529 = vsel %vm1091, %v1512, 0
      %1531 = vmatpush.bf16.msra.mxu0 0
      %1532 = vmatpush.bf16.msra.mxu0 0
      %1533 = vmatpush.bf16.msra.mxu0 0
      %1534 = vmatpush.bf16.msra.mxu0 0
      %1535 = vmatpush.bf16.msra.mxu0 0
      %1536 = vmatpush.bf16.msra.mxu0 0
      %1537 = vmatpush.bf16.msra.mxu0 %v1525
      %1538 = vmatpush.bf16.msra.mxu0 %v1524
      %1539 = vmatmul.bf16.gmra.mxu0 %v1529
      %v1540 = vpop.f32.mrf.mxu0
      %v1541 = vadd.f32 %v1514, %v1540
      %v1542 = vpop.f32.mrf.mxu0
      %1543 = vdwg.mxu0
      %v1544 = vmax.f32 %v1541, 0.0
      %v1545 = vpack.c.bf16 %v1544, %v1544
      %v1562 = vunpack.c.l.b16 %v1056
      %v1563 = vunpack.c.l.b16 %v1057
      %v1564 = vunpack.c.l.b16 %v1058
      %v1565 = vunpack.c.l.b16 %v1059
      %v1566 = vunpack.c.l.b16 %v1060
      %v1567 = vunpack.c.l.b16 %v1061
      %v1568 = vunpack.c.l.b16 %v1062
      %v1569 = vunpack.c.l.b16 %v1063
      %v1570 = vunpack.c.l.b16 %v1064
      %v1571 = vunpack.c.l.b16 %v1065
      %v1572 = vunpack.c.l.b16 %v1066
      %v1573 = vunpack.c.l.b16 %v1067
      %v1574 = vunpack.c.l.b16 %v1068
      %v1575 = vunpack.c.l.b16 %v1069
      %v1576 = vunpack.c.l.b16 %v1070
      %v1577 = vunpack.c.l.b16 %v1071
      %v1578 = vpack.c.b16 %v1563, %v1562
      %v1579 = vpack.c.b16 %v1565, %v1564
      %v1580 = vpack.c.b16 %v1567, %v1566
      %v1581 = vpack.c.b16 %v1569, %v1568
      %v1582 = vpack.c.b16 %v1571, %v1570
      %v1583 = vpack.c.b16 %v1573, %v1572
      %v1584 = vpack.c.b16 %v1575, %v1574
      %v1585 = vpack.c.b16 %v1577, %v1576
      %1594 = vmatpush.bf16.msra.mxu0 %v1585
      %1595 = vmatpush.bf16.msra.mxu0 %v1584
      %1596 = vmatpush.bf16.msra.mxu0 %v1583
      %1597 = vmatpush.bf16.msra.mxu0 %v1582
      %1598 = vmatpush.bf16.msra.mxu0 %v1581
      %1599 = vmatpush.bf16.msra.mxu0 %v1580
      %1600 = vmatpush.bf16.msra.mxu0 %v1579
      %1601 = vmatpush.bf16.msra.mxu0 %v1578
      %1602 = vmatmul.bf16.gmra.mxu0 %v1545
      %v1603 = vpop.f32.mrf.mxu0
      %v1604 = vadd.f32 0.0, %v1603
      %v1605 = vpop.f32.mrf.mxu0
      %1606 = vdwg.mxu0
      %v1607 = vadd.f32 %v1511, %v1604
      %v1609 = vperm.slane %v1072, 0
      %v1611 = vadd.f32 %v1607, %v1609
      %v1612 = vsel %vm1091, %v1611, 0.0
      %1613 = vadd.xlane.f32.xlu0 %v1612
      %v1614 = vpop.xlane.xlu0 %1613
      %v1615 = vmul.f32 %v1614, %v1484
      %v1616 = vsub.f32 %v1611, %v1615
      %v1617 = vmul.f32 %v1616, %v1616
      %v1618 = vsel %vm1091, %v1617, 0.0
      %1619 = vadd.xlane.f32.xlu0 %v1618
      %v1620 = vpop.xlane.xlu0 %1619
      %v1621 = vmul.f32 %v1620, %v1484
      %v1622 = vadd.f32 %v1621, 1e-05
      %v1623 = vrsqrt.pop %v1622
      %v1624 = vmul.f32 %v1623, %v1622
      %v1625 = vmul.f32 %v1624, %v1623
      %v1626 = vmul.f32 0.5, %v1625
      %v1627 = vsub.f32 1.5, %v1626
      %v1628 = vmul.f32 %v1623, %v1627
      %vm1629 = vweird.f32 %v1622
      %vm1630 = vweird.f32 %v1623
      %vm1631 = vmor %vm1629, %vm1630
      %v1632 = vsel %vm1631, %v1623, %v1628
      %v1633 = vmul.f32 %v1616, %v1632
      %v1635 = vperm.slane %v1073, 0
      %v1637 = vmul.f32 %v1633, %v1635
      %v1639 = vperm.slane %v1074, 0
      %v1641 = vadd.f32 %v1637, %v1639
      %v1642 = vld [vmem:[%s29] sm:$0xf]
      %v1643 = vld [vmem:[%s29 + $0x4] sm:$0xf]
      %v1644 = vld [vmem:[%s29 + $0x8] sm:$0xf]
      %v1645 = vld [vmem:[%s29 + $0xc] sm:$0xf]
      %v1646 = vld [vmem:[%s31] sm:$0x1]
      %v1647 = vld [vmem:[%s33] sm:$0xf]
      %v1648 = vld [vmem:[%s33 + $0x4] sm:$0xf]
      %v1649 = vld [vmem:[%s33 + $0x8] sm:$0xf]
      %v1650 = vld [vmem:[%s33 + $0xc] sm:$0xf]
      %v1651 = vld [vmem:[%s35] sm:$0x1]
      %v1652 = vld [vmem:[%s37] sm:$0x1]
      %v1653 = vld [vmem:[%s39] sm:$0x1]
      %v1654 = vld [vmem:[%s41] sm:$0xf]
      %v1655 = vld [vmem:[%s41 + $0x4] sm:$0xf]
      %v1656 = vld [vmem:[%s41 + $0x8] sm:$0xf]
      %v1657 = vld [vmem:[%s41 + $0xc] sm:$0xf]
      %v1658 = vld [vmem:[%s43] sm:$0x1]
      %v1659 = vld [vmem:[%s45] sm:$0xf]
      %v1660 = vld [vmem:[%s45 + $0x4] sm:$0xf]
      %v1661 = vld [vmem:[%s45 + $0x8] sm:$0xf]
      %v1662 = vld [vmem:[%s45 + $0xc] sm:$0xf]
      %v1663 = vld [vmem:[%s45 + $0x10] sm:$0xf]
      %v1664 = vld [vmem:[%s45 + $0x14] sm:$0xf]
      %v1665 = vld [vmem:[%s45 + $0x18] sm:$0xf]
      %v1666 = vld [vmem:[%s45 + $0x1c] sm:$0xf]
      %v1667 = vld [vmem:[%s45 + $0x20] sm:$0xf]
      %v1668 = vld [vmem:[%s45 + $0x24] sm:$0xf]
      %v1669 = vld [vmem:[%s45 + $0x28] sm:$0xf]
      %v1670 = vld [vmem:[%s45 + $0x2c] sm:$0xf]
      %v1671 = vld [vmem:[%s45 + $0x30] sm:$0xf]
      %v1672 = vld [vmem:[%s45 + $0x34] sm:$0xf]
      %v1673 = vld [vmem:[%s45 + $0x38] sm:$0xf]
      %v1674 = vld [vmem:[%s45 + $0x3c] sm:$0xf]
      %v1675 = vld [vmem:[%s47] sm:$0x1]
      %v1676 = vld [vmem:[%s49] sm:$0x1]
      %v1677 = vld [vmem:[%s51] sm:$0x1]
      %v1678 = vpack.c.bf16 %v1641, %v1641
      %v1680 = vperm.slane %v1646, 0
      %v1686 = vunpack.c.l.b16 %v1642
      %v1687 = vunpack.c.l.b16 %v1643
      %v1688 = vunpack.c.l.b16 %v1644
      %v1689 = vunpack.c.l.b16 %v1645
      %v1690 = vpack.c.b16 %v1687, %v1686
      %v1691 = vpack.c.b16 %v1689, %v1688
      %v1695 = vsel %vm1091, %v1678, 0
      %1697 = vmatpush.bf16.msra.mxu0 0
      %1698 = vmatpush.bf16.msra.mxu0 0
      %1699 = vmatpush.bf16.msra.mxu0 0
      %1700 = vmatpush.bf16.msra.mxu0 0
      %1701 = vmatpush.bf16.msra.mxu0 0
      %1702 = vmatpush.bf16.msra.mxu0 0
      %1703 = vmatpush.bf16.msra.mxu0 %v1691
      %1704 = vmatpush.bf16.msra.mxu0 %v1690
      %1705 = vmatmul.bf16.gmra.mxu0 %v1695
      %v1706 = vpop.f32.mrf.mxu0
      %v1707 = vadd.f32 %v1680, %v1706
      %v1708 = vpop.f32.mrf.mxu0
      %1709 = vdwg.mxu0
      %1711 = vrot.lane.b32.xlu0 %v1707, 96
      %v1712 = vpop.permute.xlu0 %1711
      %v1713 = vsel %vm1111, %v1707, 0
      %v1715 = vsel %vm1111, %v1712, 0
      %1717 = vmatpush.xpose.msra.mxu0 0.0
      %1718 = vmatpush.xpose.msra.mxu0 0.0
      %1719 = vmatpush.xpose.msra.mxu0 0.0
      %1720 = vmatpush.xpose.msra.mxu0 0.0
      %1721 = vmatpush.xpose.msra.mxu0 0.0
      %1722 = vmatpush.xpose.msra.mxu0 0.0
      %1723 = vmatpush.xpose.msra.mxu0 0.0
      %1724 = vmatpush.xpose.msra.mxu0 0.0
      %1725 = vmatpush.xpose.msra.mxu0 0.0
      %1726 = vmatpush.xpose.msra.mxu0 0.0
      %1727 = vmatpush.xpose.msra.mxu0 0.0
      %1728 = vmatpush.xpose.msra.mxu0 0.0
      %1729 = vmatpush.xpose.msra.mxu0 0.0
      %1730 = vmatpush.xpose.msra.mxu0 0.0
      %1731 = vmatpush.xpose.msra.mxu0 0.0
      %1732 = vmatpush.xpose.msra.mxu0 %v1715
      %1733 = vmatmul.f32.gmra.mxu0 %v1713
      %v1734 = vpop.f32.mrf.mxu0
      %v1735 = vadd.f32 0.0, %v1734
      %1736 = vdwg.mxu0
      %v1737 = vmul.f32 %v1735, 0.35355338
      %v1738 = vsel %vm1111, %v1737, -inf
      %1739 = vmax.xlane.f32.xlu0 %v1738
      %v1740 = vpop.xlane.xlu0 %1739
      %v1741 = vsub.f32 %v1737, %v1740
      %v1742 = vmul.f32 %v1741, 1.442695
      %v1743 = vpow.pop %v1742
      %v1744 = vsel %vm1111, %v1743, 0.0
      %1745 = vadd.xlane.f32.xlu0 %v1744
      %v1746 = vpop.xlane.xlu0 %1745
      %v1747 = vrcp.pop %v1746
      %v1748 = vmul.f32 %v1746, %v1747
      %v1749 = vsub.f32 1.0, %v1748
      %v1750 = vmul.f32 %v1747, %v1749
      %v1751 = vadd.f32 %v1747, %v1750
      %vm1752 = vweird.f32 %v1746
      %vm1753 = vweird.f32 %v1747
      %vm1754 = vmor %vm1752, %vm1753
      %v1755 = vsel %vm1754, %v1747, %v1751
      %v1756 = vand.u32 2147483647, %v1746
      %vm1757 = vcmp.eq.f32.partialorder %v1756, 8.507059e+37
      %v1758 = vand.u32 %v1746, 2147483648
      %v1759 = vor.u32 1.1754944e-38, %v1758
      %v1760 = vsel %vm1757, %v1759, %v1755
      %v1761 = vmul.f32 %v1743, %v1760
      %1762 = vrot.lane.b32.xlu0 %v1707, 64
      %v1763 = vpop.permute.xlu0 %1762
      %v1766 = vsel %vm1111, %v1761, 0
      %1768 = vmatpush.msra.mxu0 0.0
      %1769 = vmatpush.msra.mxu0 0.0
      %1770 = vmatpush.msra.mxu0 0.0
      %1771 = vmatpush.msra.mxu0 0.0
      %1772 = vmatpush.msra.mxu0 0.0
      %1773 = vmatpush.msra.mxu0 0.0
      %1774 = vmatpush.msra.mxu0 0.0
      %1775 = vmatpush.msra.mxu0 0.0
      %1776 = vmatpush.msra.mxu0 0.0
      %1777 = vmatpush.msra.mxu0 0.0
      %1778 = vmatpush.msra.mxu0 0.0
      %1779 = vmatpush.msra.mxu0 0.0
      %1780 = vmatpush.msra.mxu0 0.0
      %1781 = vmatpush.msra.mxu0 0.0
      %1782 = vmatpush.msra.mxu0 0.0
      %1783 = vmatpush.msra.mxu0 %v1763
      %1784 = vmatmul.f32.gmra.mxu0 %v1766
      %v1785 = vpop.f32.mrf.mxu0
      %v1786 = vadd.f32 0.0, %v1785
      %1787 = vdwg.mxu0
      %1788 = vrot.lane.b32.xlu0 %v1707, 120
      %v1789 = vpop.permute.xlu0 %1788
      %1790 = vrot.lane.b32.xlu0 %v1707, 88
      %v1791 = vpop.permute.xlu0 %1790
      %v1792 = vsel %vm1111, %v1789, 0
      %v1794 = vsel %vm1111, %v1791, 0
      %1796 = vmatpush.xpose.msra.mxu0 0.0
      %1797 = vmatpush.xpose.msra.mxu0 0.0
      %1798 = vmatpush.xpose.msra.mxu0 0.0
      %1799 = vmatpush.xpose.msra.mxu0 0.0
      %1800 = vmatpush.xpose.msra.mxu0 0.0
      %1801 = vmatpush.xpose.msra.mxu0 0.0
      %1802 = vmatpush.xpose.msra.mxu0 0.0
      %1803 = vmatpush.xpose.msra.mxu0 0.0
      %1804 = vmatpush.xpose.msra.mxu0 0.0
      %1805 = vmatpush.xpose.msra.mxu0 0.0
      %1806 = vmatpush.xpose.msra.mxu0 0.0
      %1807 = vmatpush.xpose.msra.mxu0 0.0
      %1808 = vmatpush.xpose.msra.mxu0 0.0
      %1809 = vmatpush.xpose.msra.mxu0 0.0
      %1810 = vmatpush.xpose.msra.mxu0 0.0
      %1811 = vmatpush.xpose.msra.mxu0 %v1794
      %1812 = vmatmul.f32.gmra.mxu0 %v1792
      %v1813 = vpop.f32.mrf.mxu0
      %v1814 = vadd.f32 0.0, %v1813
      %1815 = vdwg.mxu0
      %v1816 = vmul.f32 %v1814, 0.35355338
      %v1817 = vsel %vm1111, %v1816, -inf
      %1818 = vmax.xlane.f32.xlu0 %v1817
      %v1819 = vpop.xlane.xlu0 %1818
      %v1820 = vsub.f32 %v1816, %v1819
      %v1821 = vmul.f32 %v1820, 1.442695
      %v1822 = vpow.pop %v1821
      %v1823 = vsel %vm1111, %v1822, 0.0
      %1824 = vadd.xlane.f32.xlu0 %v1823
      %v1825 = vpop.xlane.xlu0 %1824
      %v1826 = vrcp.pop %v1825
      %v1827 = vmul.f32 %v1825, %v1826
      %v1828 = vsub.f32 1.0, %v1827
      %v1829 = vmul.f32 %v1826, %v1828
      %v1830 = vadd.f32 %v1826, %v1829
      %vm1831 = vweird.f32 %v1825
      %vm1832 = vweird.f32 %v1826
      %vm1833 = vmor %vm1831, %vm1832
      %v1834 = vsel %vm1833, %v1826, %v1830
      %v1835 = vand.u32 2147483647, %v1825
      %vm1836 = vcmp.eq.f32.partialorder %v1835, 8.507059e+37
      %v1837 = vand.u32 %v1825, 2147483648
      %v1838 = vor.u32 1.1754944e-38, %v1837
      %v1839 = vsel %vm1836, %v1838, %v1834
      %v1840 = vmul.f32 %v1822, %v1839
      %1841 = vrot.lane.b32.xlu0 %v1707, 56
      %v1842 = vpop.permute.xlu0 %1841
      %v1845 = vsel %vm1111, %v1840, 0
      %1847 = vmatpush.msra.mxu0 0.0
      %1848 = vmatpush.msra.mxu0 0.0
      %1849 = vmatpush.msra.mxu0 0.0
      %1850 = vmatpush.msra.mxu0 0.0
      %1851 = vmatpush.msra.mxu0 0.0
      %1852 = vmatpush.msra.mxu0 0.0
      %1853 = vmatpush.msra.mxu0 0.0
      %1854 = vmatpush.msra.mxu0 0.0
      %1855 = vmatpush.msra.mxu0 0.0
      %1856 = vmatpush.msra.mxu0 0.0
      %1857 = vmatpush.msra.mxu0 0.0
      %1858 = vmatpush.msra.mxu0 0.0
      %1859 = vmatpush.msra.mxu0 0.0
      %1860 = vmatpush.msra.mxu0 0.0
      %1861 = vmatpush.msra.mxu0 0.0
      %1862 = vmatpush.msra.mxu0 %v1842
      %1863 = vmatmul.f32.gmra.mxu0 %v1845
      %v1864 = vpop.f32.mrf.mxu0
      %v1865 = vadd.f32 0.0, %v1864
      %1866 = vdwg.mxu0
      %1867 = vrot.lane.b32.xlu0 %v1707, 112
      %v1868 = vpop.permute.xlu0 %1867
      %1869 = vrot.lane.b32.xlu0 %v1707, 80
      %v1870 = vpop.permute.xlu0 %1869
      %v1871 = vsel %vm1111, %v1868, 0
      %v1873 = vsel %vm1111, %v1870, 0
      %1875 = vmatpush.xpose.msra.mxu0 0.0
      %1876 = vmatpush.xpose.msra.mxu0 0.0
      %1877 = vmatpush.xpose.msra.mxu0 0.0
      %1878 = vmatpush.xpose.msra.mxu0 0.0
      %1879 = vmatpush.xpose.msra.mxu0 0.0
      %1880 = vmatpush.xpose.msra.mxu0 0.0
      %1881 = vmatpush.xpose.msra.mxu0 0.0
      %1882 = vmatpush.xpose.msra.mxu0 0.0
      %1883 = vmatpush.xpose.msra.mxu0 0.0
      %1884 = vmatpush.xpose.msra.mxu0 0.0
      %1885 = vmatpush.xpose.msra.mxu0 0.0
      %1886 = vmatpush.xpose.msra.mxu0 0.0
      %1887 = vmatpush.xpose.msra.mxu0 0.0
      %1888 = vmatpush.xpose.msra.mxu0 0.0
      %1889 = vmatpush.xpose.msra.mxu0 0.0
      %1890 = vmatpush.xpose.msra.mxu0 %v1873
      %1891 = vmatmul.f32.gmra.mxu0 %v1871
      %v1892 = vpop.f32.mrf.mxu0
      %v1893 = vadd.f32 0.0, %v1892
      %1894 = vdwg.mxu0
      %v1895 = vmul.f32 %v1893, 0.35355338
      %v1896 = vsel %vm1111, %v1895, -inf
      %1897 = vmax.xlane.f32.xlu0 %v1896
      %v1898 = vpop.xlane.xlu0 %1897
      %v1899 = vsub.f32 %v1895, %v1898
      %v1900 = vmul.f32 %v1899, 1.442695
      %v1901 = vpow.pop %v1900
      %v1902 = vsel %vm1111, %v1901, 0.0
      %1903 = vadd.xlane.f32.xlu0 %v1902
      %v1904 = vpop.xlane.xlu0 %1903
      %v1905 = vrcp.pop %v1904
      %v1906 = vmul.f32 %v1904, %v1905
      %v1907 = vsub.f32 1.0, %v1906
      %v1908 = vmul.f32 %v1905, %v1907
      %v1909 = vadd.f32 %v1905, %v1908
      %vm1910 = vweird.f32 %v1904
      %vm1911 = vweird.f32 %v1905
      %vm1912 = vmor %vm1910, %vm1911
      %v1913 = vsel %vm1912, %v1905, %v1909
      %v1914 = vand.u32 2147483647, %v1904
      %vm1915 = vcmp.eq.f32.partialorder %v1914, 8.507059e+37
      %v1916 = vand.u32 %v1904, 2147483648
      %v1917 = vor.u32 1.1754944e-38, %v1916
      %v1918 = vsel %vm1915, %v1917, %v1913
      %v1919 = vmul.f32 %v1901, %v1918
      %1920 = vrot.lane.b32.xlu0 %v1707, 48
      %v1921 = vpop.permute.xlu0 %1920
      %v1924 = vsel %vm1111, %v1919, 0
      %1926 = vmatpush.msra.mxu0 0.0
      %1927 = vmatpush.msra.mxu0 0.0
      %1928 = vmatpush.msra.mxu0 0.0
      %1929 = vmatpush.msra.mxu0 0.0
      %1930 = vmatpush.msra.mxu0 0.0
      %1931 = vmatpush.msra.mxu0 0.0
      %1932 = vmatpush.msra.mxu0 0.0
      %1933 = vmatpush.msra.mxu0 0.0
      %1934 = vmatpush.msra.mxu0 0.0
      %1935 = vmatpush.msra.mxu0 0.0
      %1936 = vmatpush.msra.mxu0 0.0
      %1937 = vmatpush.msra.mxu0 0.0
      %1938 = vmatpush.msra.mxu0 0.0
      %1939 = vmatpush.msra.mxu0 0.0
      %1940 = vmatpush.msra.mxu0 0.0
      %1941 = vmatpush.msra.mxu0 %v1921
      %1942 = vmatmul.f32.gmra.mxu0 %v1924
      %v1943 = vpop.f32.mrf.mxu0
      %v1944 = vadd.f32 0.0, %v1943
      %1945 = vdwg.mxu0
      %1946 = vrot.lane.b32.xlu0 %v1707, 104
      %v1947 = vpop.permute.xlu0 %1946
      %1948 = vrot.lane.b32.xlu0 %v1707, 72
      %v1949 = vpop.permute.xlu0 %1948
      %v1950 = vsel %vm1111, %v1947, 0
      %v1952 = vsel %vm1111, %v1949, 0
      %1954 = vmatpush.xpose.msra.mxu0 0.0
      %1955 = vmatpush.xpose.msra.mxu0 0.0
      %1956 = vmatpush.xpose.msra.mxu0 0.0
      %1957 = vmatpush.xpose.msra.mxu0 0.0
      %1958 = vmatpush.xpose.msra.mxu0 0.0
      %1959 = vmatpush.xpose.msra.mxu0 0.0
      %1960 = vmatpush.xpose.msra.mxu0 0.0
      %1961 = vmatpush.xpose.msra.mxu0 0.0
      %1962 = vmatpush.xpose.msra.mxu0 0.0
      %1963 = vmatpush.xpose.msra.mxu0 0.0
      %1964 = vmatpush.xpose.msra.mxu0 0.0
      %1965 = vmatpush.xpose.msra.mxu0 0.0
      %1966 = vmatpush.xpose.msra.mxu0 0.0
      %1967 = vmatpush.xpose.msra.mxu0 0.0
      %1968 = vmatpush.xpose.msra.mxu0 0.0
      %1969 = vmatpush.xpose.msra.mxu0 %v1952
      %1970 = vmatmul.f32.gmra.mxu0 %v1950
      %v1971 = vpop.f32.mrf.mxu0
      %v1972 = vadd.f32 0.0, %v1971
      %1973 = vdwg.mxu0
      %v1974 = vmul.f32 %v1972, 0.35355338
      %v1975 = vsel %vm1111, %v1974, -inf
      %1976 = vmax.xlane.f32.xlu0 %v1975
      %v1977 = vpop.xlane.xlu0 %1976
      %v1978 = vsub.f32 %v1974, %v1977
      %v1979 = vmul.f32 %v1978, 1.442695
      %v1980 = vpow.pop %v1979
      %v1981 = vsel %vm1111, %v1980, 0.0
      %1982 = vadd.xlane.f32.xlu0 %v1981
      %v1983 = vpop.xlane.xlu0 %1982
      %v1984 = vrcp.pop %v1983
      %v1985 = vmul.f32 %v1983, %v1984
      %v1986 = vsub.f32 1.0, %v1985
      %v1987 = vmul.f32 %v1984, %v1986
      %v1988 = vadd.f32 %v1984, %v1987
      %vm1989 = vweird.f32 %v1983
      %vm1990 = vweird.f32 %v1984
      %vm1991 = vmor %vm1989, %vm1990
      %v1992 = vsel %vm1991, %v1984, %v1988
      %v1993 = vand.u32 2147483647, %v1983
      %vm1994 = vcmp.eq.f32.partialorder %v1993, 8.507059e+37
      %v1995 = vand.u32 %v1983, 2147483648
      %v1996 = vor.u32 1.1754944e-38, %v1995
      %v1997 = vsel %vm1994, %v1996, %v1992
      %v1998 = vmul.f32 %v1980, %v1997
      %1999 = vrot.lane.b32.xlu0 %v1707, 40
      %v2000 = vpop.permute.xlu0 %1999
      %v2003 = vsel %vm1111, %v1998, 0
      %2005 = vmatpush.msra.mxu0 0.0
      %2006 = vmatpush.msra.mxu0 0.0
      %2007 = vmatpush.msra.mxu0 0.0
      %2008 = vmatpush.msra.mxu0 0.0
      %2009 = vmatpush.msra.mxu0 0.0
      %2010 = vmatpush.msra.mxu0 0.0
      %2011 = vmatpush.msra.mxu0 0.0
      %2012 = vmatpush.msra.mxu0 0.0
      %2013 = vmatpush.msra.mxu0 0.0
      %2014 = vmatpush.msra.mxu0 0.0
      %2015 = vmatpush.msra.mxu0 0.0
      %2016 = vmatpush.msra.mxu0 0.0
      %2017 = vmatpush.msra.mxu0 0.0
      %2018 = vmatpush.msra.mxu0 0.0
      %2019 = vmatpush.msra.mxu0 0.0
      %2020 = vmatpush.msra.mxu0 %v2000
      %2021 = vmatmul.f32.gmra.mxu0 %v2003
      %v2022 = vpop.f32.mrf.mxu0
      %v2023 = vadd.f32 0.0, %v2022
      %2024 = vdwg.mxu0
      %2026 = vrot.lane.b32.xlu0 %v1865, 8
      %v2027 = vpop.permute.xlu0 %2026
      %2030 = vrot.lane.b32.xlu0 %v1944, 16
      %v2031 = vpop.permute.xlu0 %2030
      %2034 = vrot.lane.b32.xlu0 %v2023, 24
      %v2035 = vpop.permute.xlu0 %2034
      %v2037 = vsel %vm1111, %v1786, %v2027
      %v2038 = vsel %vm1437, %v2037, %v2031
      %v2039 = vsel %vm1439, %v2038, %v2035
      %v2040 = vpack.c.bf16 %v2039, %v2039
      %v2045 = vunpack.c.l.b16 %v1647
      %v2046 = vunpack.c.l.b16 %v1648
      %v2047 = vunpack.c.l.b16 %v1649
      %v2048 = vunpack.c.l.b16 %v1650
      %v2049 = vpack.c.b16 %v2046, %v2045
      %v2050 = vpack.c.b16 %v2048, %v2047
      %v2054 = vsel %vm1091, %v2040, 0
      %2056 = vmatpush.bf16.msra.mxu0 0
      %2057 = vmatpush.bf16.msra.mxu0 0
      %2058 = vmatpush.bf16.msra.mxu0 0
      %2059 = vmatpush.bf16.msra.mxu0 0
      %2060 = vmatpush.bf16.msra.mxu0 0
      %2061 = vmatpush.bf16.msra.mxu0 0
      %2062 = vmatpush.bf16.msra.mxu0 %v2050
      %2063 = vmatpush.bf16.msra.mxu0 %v2049
      %2064 = vmatmul.bf16.gmra.mxu0 %v2054
      %v2065 = vpop.f32.mrf.mxu0
      %v2066 = vadd.f32 0.0, %v2065
      %v2067 = vpop.f32.mrf.mxu0
      %2068 = vdwg.mxu0
      %v2069 = vadd.f32 %v1641, %v2066
      %v2071 = vperm.slane %v1651, 0
      %v2073 = vadd.f32 %v2069, %v2071
      %v2074 = vsel %vm1091, %v2073, 0.0
      %2075 = vadd.xlane.f32.xlu0 %v2074
      %v2076 = vpop.xlane.xlu0 %2075
      %v2077 = vmul.f32 %v2076, %v1484
      %v2078 = vsub.f32 %v2073, %v2077
      %v2079 = vmul.f32 %v2078, %v2078
      %v2080 = vsel %vm1091, %v2079, 0.0
      %2081 = vadd.xlane.f32.xlu0 %v2080
      %v2082 = vpop.xlane.xlu0 %2081
      %v2083 = vmul.f32 %v2082, %v1484
      %v2084 = vadd.f32 %v2083, 1e-05
      %v2085 = vrsqrt.pop %v2084
      %v2086 = vmul.f32 %v2085, %v2084
      %v2087 = vmul.f32 %v2086, %v2085
      %v2088 = vmul.f32 0.5, %v2087
      %v2089 = vsub.f32 1.5, %v2088
      %v2090 = vmul.f32 %v2085, %v2089
      %vm2091 = vweird.f32 %v2084
      %vm2092 = vweird.f32 %v2085
      %vm2093 = vmor %vm2091, %vm2092
      %v2094 = vsel %vm2093, %v2085, %v2090
      %v2095 = vmul.f32 %v2078, %v2094
      %v2097 = vperm.slane %v1652, 0
      %v2099 = vmul.f32 %v2095, %v2097
      %v2101 = vperm.slane %v1653, 0
      %v2103 = vadd.f32 %v2099, %v2101
      %v2104 = vpack.c.bf16 %v2103, %v2103
      %v2106 = vperm.slane %v1658, 0
      %v2112 = vunpack.c.l.b16 %v1654
      %v2113 = vunpack.c.l.b16 %v1655
      %v2114 = vunpack.c.l.b16 %v1656
      %v2115 = vunpack.c.l.b16 %v1657
      %v2116 = vpack.c.b16 %v2113, %v2112
      %v2117 = vpack.c.b16 %v2115, %v2114
      %v2121 = vsel %vm1091, %v2104, 0
      %2123 = vmatpush.bf16.msra.mxu0 0
      %2124 = vmatpush.bf16.msra.mxu0 0
      %2125 = vmatpush.bf16.msra.mxu0 0
      %2126 = vmatpush.bf16.msra.mxu0 0
      %2127 = vmatpush.bf16.msra.mxu0 0
      %2128 = vmatpush.bf16.msra.mxu0 0
      %2129 = vmatpush.bf16.msra.mxu0 %v2117
      %2130 = vmatpush.bf16.msra.mxu0 %v2116
      %2131 = vmatmul.bf16.gmra.mxu0 %v2121
      %v2132 = vpop.f32.mrf.mxu0
      %v2133 = vadd.f32 %v2106, %v2132
      %v2134 = vpop.f32.mrf.mxu0
      %2135 = vdwg.mxu0
      %v2136 = vmax.f32 %v2133, 0.0
      %v2137 = vpack.c.bf16 %v2136, %v2136
      %v2154 = vunpack.c.l.b16 %v1659
      %v2155 = vunpack.c.l.b16 %v1660
      %v2156 = vunpack.c.l.b16 %v1661
      %v2157 = vunpack.c.l.b16 %v1662
      %v2158 = vunpack.c.l.b16 %v1663
      %v2159 = vunpack.c.l.b16 %v1664
      %v2160 = vunpack.c.l.b16 %v1665
      %v2161 = vunpack.c.l.b16 %v1666
      %v2162 = vunpack.c.l.b16 %v1667
      %v2163 = vunpack.c.l.b16 %v1668
      %v2164 = vunpack.c.l.b16 %v1669
      %v2165 = vunpack.c.l.b16 %v1670
      %v2166 = vunpack.c.l.b16 %v1671
      %v2167 = vunpack.c.l.b16 %v1672
      %v2168 = vunpack.c.l.b16 %v1673
      %v2169 = vunpack.c.l.b16 %v1674
      %v2170 = vpack.c.b16 %v2155, %v2154
      %v2171 = vpack.c.b16 %v2157, %v2156
      %v2172 = vpack.c.b16 %v2159, %v2158
      %v2173 = vpack.c.b16 %v2161, %v2160
      %v2174 = vpack.c.b16 %v2163, %v2162
      %v2175 = vpack.c.b16 %v2165, %v2164
      %v2176 = vpack.c.b16 %v2167, %v2166
      %v2177 = vpack.c.b16 %v2169, %v2168
      %2186 = vmatpush.bf16.msra.mxu0 %v2177
      %2187 = vmatpush.bf16.msra.mxu0 %v2176
      %2188 = vmatpush.bf16.msra.mxu0 %v2175
      %2189 = vmatpush.bf16.msra.mxu0 %v2174
      %2190 = vmatpush.bf16.msra.mxu0 %v2173
      %2191 = vmatpush.bf16.msra.mxu0 %v2172
      %2192 = vmatpush.bf16.msra.mxu0 %v2171
      %2193 = vmatpush.bf16.msra.mxu0 %v2170
      %2194 = vmatmul.bf16.gmra.mxu0 %v2137
      %v2195 = vpop.f32.mrf.mxu0
      %v2196 = vadd.f32 0.0, %v2195
      %v2197 = vpop.f32.mrf.mxu0
      %2198 = vdwg.mxu0
      %v2199 = vadd.f32 %v2103, %v2196
      %v2201 = vperm.slane %v1675, 0
      %v2203 = vadd.f32 %v2199, %v2201
      %v2204 = vsel %vm1091, %v2203, 0.0
      %2205 = vadd.xlane.f32.xlu0 %v2204
      %v2206 = vpop.xlane.xlu0 %2205
      %v2207 = vmul.f32 %v2206, %v1484
      %v2208 = vsub.f32 %v2203, %v2207
      %v2209 = vmul.f32 %v2208, %v2208
      %v2210 = vsel %vm1091, %v2209, 0.0
      %2211 = vadd.xlane.f32.xlu0 %v2210
      %v2212 = vpop.xlane.xlu0 %2211
      %v2213 = vmul.f32 %v2212, %v1484
      %v2214 = vadd.f32 %v2213, 1e-05
      %v2215 = vrsqrt.pop %v2214
      %v2216 = vmul.f32 %v2215, %v2214
      %v2217 = vmul.f32 %v2216, %v2215
      %v2218 = vmul.f32 0.5, %v2217
      %v2219 = vsub.f32 1.5, %v2218
      %v2220 = vmul.f32 %v2215, %v2219
      %vm2221 = vweird.f32 %v2214
      %vm2222 = vweird.f32 %v2215
      %vm2223 = vmor %vm2221, %vm2222
      %v2224 = vsel %vm2223, %v2215, %v2220
      %v2225 = vmul.f32 %v2208, %v2224
      %v2227 = vperm.slane %v1676, 0
      %v2229 = vmul.f32 %v2225, %v2227
      %v2231 = vperm.slane %v1677, 0
      %v2233 = vadd.f32 %v2229, %v2231
      %v2234 = vld [vmem:[%s53] sm:$0xf]
      %v2235 = vld [vmem:[%s53 + $0x4] sm:$0xf]
      %v2236 = vld [vmem:[%s53 + $0x8] sm:$0xf]
      %v2237 = vld [vmem:[%s53 + $0xc] sm:$0xf]
      %v2238 = vpack.c.bf16 %v2233, %v2233
      %v2239 = vld [vmem:[%s55] sm:$0x1]
      %v2241 = vperm.slane %v2239, 0
      %v2247 = vunpack.c.l.b16 %v2234
      %v2248 = vunpack.c.l.b16 %v2235
      %v2249 = vunpack.c.l.b16 %v2236
      %v2250 = vunpack.c.l.b16 %v2237
      %v2251 = vpack.c.b16 %v2248, %v2247
      %v2252 = vpack.c.b16 %v2250, %v2249
      %v2256 = vsel %vm1091, %v2238, 0
      %2258 = vmatpush.bf16.msra.mxu0 0
      %2259 = vmatpush.bf16.msra.mxu0 0
      %2260 = vmatpush.bf16.msra.mxu0 0
      %2261 = vmatpush.bf16.msra.mxu0 0
      %2262 = vmatpush.bf16.msra.mxu0 0
      %2263 = vmatpush.bf16.msra.mxu0 0
      %2264 = vmatpush.bf16.msra.mxu0 %v2252
      %2265 = vmatpush.bf16.msra.mxu0 %v2251
      %2266 = vmatmul.bf16.gmra.mxu0 %v2256
      %v2267 = vpop.f32.mrf.mxu0
      %v2268 = vadd.f32 %v2241, %v2267
      %v2269 = vpop.f32.mrf.mxu0
      %2270 = vdwg.mxu0
      %v2271 = vand.u32 2147483647, %v2268
      %v2272 = vsub.f32 0.0, %v2271
      %v2273 = vmul.f32 %v2272, 1.442695
      %v2274 = vpow.pop %v2273
      %v2275 = vadd.f32 %v2274, 1.0
      %v2276 = vlog2.pop %v2275
      %v2277 = vmul.f32 %v2276, 0.6931472
      %v2278 = vmul.f32 -0.5, %v2274
      %v2279 = vadd.f32 %v2278, 1.0
      %v2280 = vmul.f32 %v2279, %v2274
      %v2281 = vand.u32 2147483647, %v2274
      %vm2282 = vcmp.lt.f32.partialorder %v2281, 0.0004427343
      %v2283 = vsel %vm2282, %v2280, %v2277
      %v2284 = vmax.f32 %v2268, 0.0
      %v2285 = vadd.f32 %v2283, %v2284
      %vm2286 = vcmp.lt.f32.partialorder %v2268, -20.0
      %v2287 = vadd.f32 %v2285, 1e-30
      %v2288 = vlog2.pop %v2287
      %v2289 = vmul.f32 %v2288, 0.6931472
      %v2290 = vsel %vm2286, %v2268, %v2289
      %v2291 = vld [vmem:[%s1028] sm:$0x1]
      %v2293 = vperm.slane %v2291, 0
      %v2295 = vadd.f32 %v2233, %v2293
      %v2296 = vld [vmem:[%s57] sm:$0xf]
      %v2297 = vld [vmem:[%s57 + $0x4] sm:$0xf]
      %v2298 = vld [vmem:[%s57 + $0x8] sm:$0xf]
      %v2299 = vld [vmem:[%s57 + $0xc] sm:$0xf]
      %v2300 = vld [vmem:[%s57 + $0x10] sm:$0xf]
      %v2301 = vld [vmem:[%s57 + $0x14] sm:$0xf]
      %v2302 = vld [vmem:[%s57 + $0x18] sm:$0xf]
      %v2303 = vld [vmem:[%s57 + $0x1c] sm:$0xf]
      %v2304 = vld [vmem:[%s57 + $0x20] sm:$0xf]
      %v2305 = vld [vmem:[%s57 + $0x24] sm:$0xf]
      %v2306 = vld [vmem:[%s57 + $0x28] sm:$0xf]
      %v2307 = vld [vmem:[%s57 + $0x2c] sm:$0xf]
      %v2309 = vrot.slane %v2295, 7
      %vm2311 = vcmask 1040384
      %v2312 = vsel %vm2311, 0.0, %v2309
      %v2313 = vrot.slane %v2295, 1
      %vm2315 = vcmask 1046528
      %v2316 = vsel %vm2315, %v2313, 0.0
      %2317 = vrot.lane.b32.xlu0 %v2295, 32
      %v2318 = vpop.permute.xlu0 %2317
      %2321 = vrot.lane.b32.xlu0 %v2316, 64
      %v2322 = vpop.permute.xlu0 %2321
      %v2324 = vsel %vm1091, %v2312, %v2318
      %vm2325 = vcmask 523264
      %v2326 = vsel %vm2325, %v2324, %v2322
      %v2327 = vpack.c.bf16 %v2326, %v2326
      %v2328 = vld [vmem:[%s59] sm:$0x1]
      %v2330 = vperm.slane %v2328, 0
      %v2344 = vunpack.c.l.b16 %v2296
      %v2345 = vunpack.c.l.b16 %v2297
      %v2346 = vunpack.c.l.b16 %v2298
      %v2347 = vunpack.c.l.b16 %v2299
      %v2348 = vunpack.c.l.b16 %v2300
      %v2349 = vunpack.c.l.b16 %v2301
      %v2350 = vunpack.c.l.b16 %v2302
      %v2351 = vunpack.c.l.b16 %v2303
      %v2352 = vunpack.c.l.b16 %v2304
      %v2353 = vunpack.c.l.b16 %v2305
      %v2354 = vunpack.c.l.b16 %v2306
      %v2355 = vunpack.c.l.b16 %v2307
      %v2356 = vpack.c.b16 %v2345, %v2344
      %v2357 = vpack.c.b16 %v2347, %v2346
      %v2358 = vpack.c.b16 %v2349, %v2348
      %v2359 = vpack.c.b16 %v2351, %v2350
      %v2360 = vpack.c.b16 %v2353, %v2352
      %v2361 = vpack.c.b16 %v2355, %v2354
      %vm2368 = vcmask 785408
      %v2370 = vsel %vm2368, %v2327, 0
      %2372 = vmatpush.bf16.msra.mxu0 0
      %2373 = vmatpush.bf16.msra.mxu0 0
      %2374 = vmatpush.bf16.msra.mxu0 %v2361
      %2375 = vmatpush.bf16.msra.mxu0 %v2360
      %2376 = vmatpush.bf16.msra.mxu0 %v2359
      %2377 = vmatpush.bf16.msra.mxu0 %v2358
      %2378 = vmatpush.bf16.msra.mxu0 %v2357
      %2379 = vmatpush.bf16.msra.mxu0 %v2356
      %2380 = vmatmul.bf16.gmra.mxu0 %v2370
      %v2381 = vpop.f32.mrf.mxu0
      %v2382 = vadd.f32 %v2330, %v2381
      %v2383 = vpop.f32.mrf.mxu0
      %2384 = vdwg.mxu0
      %v2385 = vmax.f32 %v2382, 0.0
      %v2386 = vld [vmem:[%s61] sm:$0xf]
      %v2387 = vld [vmem:[%s61 + $0x4] sm:$0xf]
      %v2388 = vld [vmem:[%s61 + $0x8] sm:$0xf]
      %v2389 = vld [vmem:[%s61 + $0xc] sm:$0xf]
      %v2390 = vpack.c.bf16 %v2385, %v2385
      %v2391 = vld [vmem:[#allocation2] sm:$0x1]
      %v2393 = vperm.slane %v2391, 0
      %v2399 = vunpack.c.l.b16 %v2386
      %v2400 = vunpack.c.l.b16 %v2387
      %v2401 = vunpack.c.l.b16 %v2388
      %v2402 = vunpack.c.l.b16 %v2389
      %v2403 = vpack.c.b16 %v2400, %v2399
      %v2404 = vpack.c.b16 %v2402, %v2401
      %v2408 = vsel %vm1091, %v2390, 0
      %2410 = vmatpush.bf16.msra.mxu0 0
      %2411 = vmatpush.bf16.msra.mxu0 0
      %2412 = vmatpush.bf16.msra.mxu0 0
      %2413 = vmatpush.bf16.msra.mxu0 0
      %2414 = vmatpush.bf16.msra.mxu0 0
      %2415 = vmatpush.bf16.msra.mxu0 0
      %2416 = vmatpush.bf16.msra.mxu0 %v2404
      %2417 = vmatpush.bf16.msra.mxu0 %v2403
      %2418 = vmatmul.bf16.gmra.mxu0 %v2408
      %v2419 = vpop.f32.mrf.mxu0
      %v2420 = vadd.f32 %v2393, %v2419
      %v2421 = vpop.f32.mrf.mxu0
      %2422 = vdwg.mxu0
      %v2423 = vand.u32 2147483647, %v2420
      %v2424 = vsub.f32 0.0, %v2423
      %v2425 = vmul.f32 %v2424, 1.442695
      %v2426 = vpow.pop %v2425
      %v2427 = vadd.f32 %v2426, 1.0
      %v2428 = vlog2.pop %v2427
      %v2429 = vmul.f32 %v2428, 0.6931472
      %v2430 = vmul.f32 -0.5, %v2426
      %v2431 = vadd.f32 %v2430, 1.0
      %v2432 = vmul.f32 %v2431, %v2426
      %v2433 = vand.u32 2147483647, %v2426
      %vm2434 = vcmp.lt.f32.partialorder %v2433, 0.0004427343
      %v2435 = vsel %vm2434, %v2432, %v2429
      %v2436 = vmax.f32 %v2420, 0.0
      %v2437 = vadd.f32 %v2435, %v2436
      %2439 = vrot.lane.b32.xlu0 %v2268, 32
      %v2440 = vpop.permute.xlu0 %2439
      %2443 = vrot.lane.b32.xlu0 %v2290, 32
      %v2444 = vpop.permute.xlu0 %2443
      %v2446 = vsel %vm1091, %v2295, %v2440
      %v2447 = vsel %vm2325, %v2446, %v2444
      %2448 = vst.msk [vmem:[%s1032] sm:$0xff] %vm2368, %v2447
      %vm2449 = vcmask 7168
      %2450 = vst.msk [vmem:[%s1036] sm:$0xff] %vm2449, %v2437
      %p2451 = scmp.lt.s32.totalorder %s81, 1
      %s2452 = scalar_select %p2451, %s81, 1
      %s2453 = smul.addr %s2452, 8
      %s2454 = scalar_lea.vmem %s65, %s2453
      %p2455 = scmp.lt.s32.totalorder %s81, 1
      %s2456 = scalar_select %p2455, %s81, 1
      %s2457 = smul.addr %s2456, 8
      %s2458 = scalar_lea.vmem %s67, %s2457
      // Predicated region
      $region149: #{forward.3} parent=147 // pred_check
        %p2459 = pneg %p781
      $region150: #{forward.3} parent=147 // pred_check_branch
        %2461 = sbr.rel (%p2459) target = $region152
      $region151: #{forward.3} parent=147 // pred_region
        _
      $region152: #{forward.3} parent=147 // pred_fallthru
        _
      // Predicated region
      $region153: #{forward.3} parent=147 // pred_check
        %p2462 = pneg %p807
      $region154: #{forward.3} parent=147 // pred_check_branch
        %2464 = sbr.rel (%p2462) target = $region156
      $region155: #{forward.3} parent=147 // pred_region
        _
      $region156: #{forward.3} parent=147 // pred_fallthru
        _
    $region148: #{forward.3} parent=5 // pred_fallthru
      _
    %p2465 = scmp.le.s32.totalorder 2, %s76
    // Predicated region
    $region157: #{forward.3} parent=5 // pred_check
      %p2466 = pneg %p2465
    $region158: #{forward.3} parent=5 // pred_check_branch
      %2468 = sbr.rel (%p2466) target = $region160
    $region159: #{forward.3} parent=5 // pred_region
      %s2469 = ssub.s32 %s76, 2
      // Predicated region
      $region161: #{forward.3} parent=159 // pred_check
        %p2470 = pneg %p787
      $region162: #{forward.3} parent=159 // pred_check_branch
        %2472 = sbr.rel (%p2470) target = $region164
      $region163: #{forward.3} parent=159 // pred_region
        %p2473 = scmp.lt.s32.totalorder %s82, 1
        %s2474 = scalar_select %p2473, %s82, 1
        %s2475 = smul.addr %s2474, 8
        %s2476 = scalar_lea.vmem %s65, %s2475
      $region164: #{forward.3} parent=159 // pred_fallthru
        _
      // Predicated region
      $region165: #{forward.3} parent=159 // pred_check
        %p2477 = pneg %p813
      $region166: #{forward.3} parent=159 // pred_check_branch
        %2479 = sbr.rel (%p2477) target = $region168
      $region167: #{forward.3} parent=159 // pred_region
        %p2480 = scmp.lt.s32.totalorder %s82, 1
        %s2481 = scalar_select %p2480, %s82, 1
        %s2482 = smul.addr %s2481, 8
        %s2483 = scalar_lea.vmem %s67, %s2482
      $region168: #{forward.3} parent=159 // pred_fallthru
        _
    $region160: #{forward.3} parent=5 // pred_fallthru
      _
  $region6: #{forward.3} parent=0 // loop_footer
    %s80 = sadd.s32 1, %s76
  $region7: #{forward.3} parent=0 // loop_footer_branch
    %75 = sbr.rel target = $region3
  $region8: #{forward.3} parent=0 // loop_exit
    _

// kernel: forward.5
$region0: #{forward.5}
  #allocation0 [shape = 'u32[]', space=smem, size = 0x4, offset = 0x4, fixed_abs, tag = 'smem constant byte address 0x4 - core index']
  #allocation1 [shape = 'u32[72,128]{1,0:T(1,128)}', space=vmem, size = 0x9000, scoped, tag = 'internal scratch']
  #allocation2 [shape = 'f32[1,1]{1,0:T(1,128)S(1)}', space=vmem, size = 0x200, scoped, tag = 'scoped memory for forward.5']
  %s0 = inlined_call_operand.vmem [shape: f32[2,16,32], index: 0, kind: input, shape index: {}]
  %s1 = inlined_call_operand.vmem [shape: f32[2,32,4], index: 1, kind: input, shape index: {}]
  %s2 = inlined_call_operand.vmem [shape: f32[2,64,1], index: 2, kind: input, shape index: {}]
  %s3 = inlined_call_operand.vmem [shape: bf16[224,32], index: 3, kind: input, shape index: {}]
  %s4 = inlined_call_operand.vmem [shape: f32[1,32], index: 4, kind: input, shape index: {}]
  %s5 = inlined_call_operand.vmem [shape: bf16[96,16], index: 5, kind: input, shape index: {}]
  %s6 = inlined_call_operand.vmem [shape: f32[1,16], index: 6, kind: input, shape index: {}]
  %s7 = inlined_call_operand.vmem [shape: bf16[4,16], index: 7, kind: input, shape index: {}]
  %s8 = inlined_call_operand.vmem [shape: f32[1,16], index: 8, kind: input, shape index: {}]
  %s9 = inlined_call_operand.vmem [shape: bf16[48,16], index: 9, kind: input, shape index: {}]
  %s10 = inlined_call_operand.vmem [shape: f32[1,16], index: 10, kind: input, shape index: {}]
  %s11 = inlined_call_operand.vmem [shape: bf16[80,16], index: 11, kind: input, shape index: {}]
  %s12 = inlined_call_operand.vmem [shape: f32[1,16], index: 12, kind: input, shape index: {}]
  %s13 = inlined_call_operand.vmem [shape: bf16[48,8], index: 13, kind: input, shape index: {}]
  %s14 = inlined_call_operand.vmem [shape: f32[1,8], index: 14, kind: input, shape index: {}]
  %s15 = inlined_call_operand.vmem [shape: bf16[1,8], index: 15, kind: input, shape index: {}]
  %s16 = inlined_call_operand.vmem [shape: f32[1,8], index: 16, kind: input, shape index: {}]
  %s17 = inlined_call_operand.vmem [shape: bf16[24,8], index: 17, kind: input, shape index: {}]
  %s18 = inlined_call_operand.vmem [shape: f32[1,8], index: 18, kind: input, shape index: {}]
  %s19 = inlined_call_operand.vmem [shape: bf16[40,8], index: 19, kind: input, shape index: {}]
  %s20 = inlined_call_operand.vmem [shape: f32[1,8], index: 20, kind: input, shape index: {}]
  %s21 = inlined_call_operand.vmem [shape: bf16[56,1], index: 21, kind: input, shape index: {}]
  %s22 = inlined_call_operand.<no memory space> [shape: f32[1,1], index: 22, kind: input, shape index: {}]
  %s23 = inlined_call_operand.vmem [shape: f32[2,64,1], index: 23, kind: output, shape index: {}]
  %s24 = sld [smem:[#allocation0]]
  $region125: #{forward.5} parent=0
    _
  %s26 = ssub.s32 1, %s24
  %s27 = scalar_select 0, %s26, %s24
  %v28 = vstv %s22
  %29 = vst [vmem:[#allocation2] sm:$0x1] %v28
  loop: start=0, step=1, limit=4
  $region2: #{forward.5} parent=0 // loop_pre_header
    _
  $region3: #{forward.5} parent=0 // loop_header
    %s31 = sphi 0, %s35
    %p32 = scmp.ge.s32.totalorder %s31, 4
    %s41 = sphi 0, %s43
    %s44 = sphi 0, %s41
    %s45 = sphi 0, %s44
    %s61 = sphi 0, %s45
    %s67 = sphi 0, %s69
    %s70 = sphi 0, %s67
    %s71 = sphi 0, %s70
    %s87 = sphi 0, %s71
    %s93 = sphi 0, %s95
    %s96 = sphi 0, %s93
    %s97 = sphi 0, %s96
    %s113 = sphi 0, %s97
    %s117 = sphi 0, %s117
    %s119 = sphi 0, %s117
    %s120 = sphi 0, %s119
    %s134 = sphi 0, %s120
    %s138 = sphi 0, %s138
    %s140 = sphi 0, %s138
    %s141 = sphi 0, %s140
    %s155 = sphi 0, %s141
    %s159 = sphi 0, %s159
    %s161 = sphi 0, %s159
    %s162 = sphi 0, %s161
    %s176 = sphi 0, %s162
    %s180 = sphi 0, %s180
    %s182 = sphi 0, %s180
    %s183 = sphi 0, %s182
    %s197 = sphi 0, %s183
    %s201 = sphi 0, %s201
    %s203 = sphi 0, %s201
    %s204 = sphi 0, %s203
    %s218 = sphi 0, %s204
    %s222 = sphi 0, %s222
    %s224 = sphi 0, %s222
    %s225 = sphi 0, %s224
    %s239 = sphi 0, %s225
    %s243 = sphi 0, %s243
    %s245 = sphi 0, %s243
    %s246 = sphi 0, %s245
    %s260 = sphi 0, %s246
    %s264 = sphi 0, %s264
    %s266 = sphi 0, %s264
    %s267 = sphi 0, %s266
    %s281 = sphi 0, %s267
    %s285 = sphi 0, %s285
    %s287 = sphi 0, %s285
    %s288 = sphi 0, %s287
    %s302 = sphi 0, %s288
    %s306 = sphi 0, %s306
    %s308 = sphi 0, %s306
    %s309 = sphi 0, %s308
    %s323 = sphi 0, %s309
    %s327 = sphi 0, %s327
    %s329 = sphi 0, %s327
    %s330 = sphi 0, %s329
    %s344 = sphi 0, %s330
    %s348 = sphi 0, %s348
    %s350 = sphi 0, %s348
    %s351 = sphi 0, %s350
    %s365 = sphi 0, %s351
    %s369 = sphi 0, %s369
    %s371 = sphi 0, %s369
    %s372 = sphi 0, %s371
    %s386 = sphi 0, %s372
    %s390 = sphi 0, %s390
    %s392 = sphi 0, %s390
    %s393 = sphi 0, %s392
    %s407 = sphi 0, %s393
    %s411 = sphi 0, %s411
    %s413 = sphi 0, %s411
    %s414 = sphi 0, %s413
    %s428 = sphi 0, %s414
    %s432 = sphi 0, %s432
    %s434 = sphi 0, %s432
    %s435 = sphi 0, %s434
    %s449 = sphi 0, %s435
    %s453 = sphi 0, %s453
    %s455 = sphi 0, %s453
    %s456 = sphi 0, %s455
    %s470 = sphi 0, %s456
    %s474 = sphi 0, %s474
    %s476 = sphi 0, %s474
    %s477 = sphi 0, %s476
    %s491 = sphi 0, %s477
    %s495 = sphi 0, %s495
    %s497 = sphi 0, %s495
    %s498 = sphi 0, %s497
    %s512 = sphi 0, %s498
    %s516 = sphi 0, %s516
    %s518 = sphi 0, %s516
    %s519 = sphi 0, %s518
    %s533 = sphi 0, %s519
    %s539 = sphi 0, %s541
    %s542 = sphi 0, %s539
    %s543 = sphi 0, %s542
    %s559 = sphi 0, %s543
  $region4: #{forward.5} parent=0 // loop_header_branch
    %34 = sbr.rel (%p32) target = $region8
  $region5: #{forward.5} parent=0 // loop_body
    %s36 = ssub.s32 %s31, 1
    %s37 = ssub.s32 %s31, 2
    %s38 = sadd.s32 %s31, 1
    %s39 = ssub.s32 %s31, %s38
    %p40 = scmp.eq.s32.totalorder %s39, 0
    %s42 = sadd.s32 %s41, 1
    %s43 = scalar_select %p40, %s41, %s42
    %p46 = pneg %p40
    %p47 = scmp.eq.s32.totalorder %s31, 1
    %p48 = por %p46, %p47
    %p49 = scmp.ne.s32.totalorder %s41, %s44
    %p50 = scmp.eq.s32.totalorder %s31, 0
    %p51 = por %p49, %p50
    %p52 = scmp.ne.s32.totalorder %s41, %s44
    %p53 = scmp.eq.s32.totalorder %s36, 1
    %p54 = por %p52, %p53
    %p55 = scmp.ne.s32.totalorder %s44, %s45
    %p56 = scmp.eq.s32.totalorder %s36, 0
    %p57 = por %p55, %p56
    %p58 = scmp.ne.s32.totalorder %s44, %s45
    %p59 = scmp.eq.s32.totalorder %s37, 1
    %p60 = por %p58, %p59
    %p62 = scmp.ne.s32.totalorder %s45, %s61
    %p63 = scmp.eq.s32.totalorder %s37, 0
    %p64 = por %p62, %p63
    %s65 = ssub.s32 %s31, %s38
    %p66 = scmp.eq.s32.totalorder %s65, 0
    %s68 = sadd.s32 %s67, 1
    %s69 = scalar_select %p66, %s67, %s68
    %p72 = pneg %p66
    %p73 = scmp.eq.s32.totalorder %s31, 1
    %p74 = por %p72, %p73
    %p75 = scmp.ne.s32.totalorder %s67, %s70
    %p76 = scmp.eq.s32.totalorder %s31, 0
    %p77 = por %p75, %p76
    %p78 = scmp.ne.s32.totalorder %s67, %s70
    %p79 = scmp.eq.s32.totalorder %s36, 1
    %p80 = por %p78, %p79
    %p81 = scmp.ne.s32.totalorder %s70, %s71
    %p82 = scmp.eq.s32.totalorder %s36, 0
    %p83 = por %p81, %p82
    %p84 = scmp.ne.s32.totalorder %s70, %s71
    %p85 = scmp.eq.s32.totalorder %s37, 1
    %p86 = por %p84, %p85
    %p88 = scmp.ne.s32.totalorder %s71, %s87
    %p89 = scmp.eq.s32.totalorder %s37, 0
    %p90 = por %p88, %p89
    %s91 = ssub.s32 %s31, %s38
    %p92 = scmp.eq.s32.totalorder %s91, 0
    %s94 = sadd.s32 %s93, 1
    %s95 = scalar_select %p92, %s93, %s94
    %p98 = pneg %p92
    %p99 = scmp.eq.s32.totalorder %s31, 1
    %p100 = por %p98, %p99
    %p101 = scmp.ne.s32.totalorder %s93, %s96
    %p102 = scmp.eq.s32.totalorder %s31, 0
    %p103 = por %p101, %p102
    %p104 = scmp.ne.s32.totalorder %s93, %s96
    %p105 = scmp.eq.s32.totalorder %s36, 1
    %p106 = por %p104, %p105
    %p107 = scmp.ne.s32.totalorder %s96, %s97
    %p108 = scmp.eq.s32.totalorder %s36, 0
    %p109 = por %p107, %p108
    %p110 = scmp.ne.s32.totalorder %s96, %s97
    %p111 = scmp.eq.s32.totalorder %s37, 1
    %p112 = por %p110, %p111
    %p114 = scmp.ne.s32.totalorder %s97, %s113
    %p115 = scmp.eq.s32.totalorder %s37, 0
    %p116 = por %p114, %p115
    %s118 = sadd.s32 %s117, 1
    %p121 = scmp.eq.s32.totalorder %s31, 1
    %p122 = scmp.ne.s32.totalorder %s117, %s119
    %p123 = scmp.eq.s32.totalorder %s31, 0
    %p124 = por %p122, %p123
    %p125 = scmp.ne.s32.totalorder %s117, %s119
    %p126 = scmp.eq.s32.totalorder %s36, 1
    %p127 = por %p125, %p126
    %p128 = scmp.ne.s32.totalorder %s119, %s120
    %p129 = scmp.eq.s32.totalorder %s36, 0
    %p130 = por %p128, %p129
    %p131 = scmp.ne.s32.totalorder %s119, %s120
    %p132 = scmp.eq.s32.totalorder %s37, 1
    %p133 = por %p131, %p132
    %p135 = scmp.ne.s32.totalorder %s120, %s134
    %p136 = scmp.eq.s32.totalorder %s37, 0
    %p137 = por %p135, %p136
    %s139 = sadd.s32 %s138, 1
    %p142 = scmp.eq.s32.totalorder %s31, 1
    %p143 = scmp.ne.s32.totalorder %s138, %s140
    %p144 = scmp.eq.s32.totalorder %s31, 0
    %p145 = por %p143, %p144
    %p146 = scmp.ne.s32.totalorder %s138, %s140
    %p147 = scmp.eq.s32.totalorder %s36, 1
    %p148 = por %p146, %p147
    %p149 = scmp.ne.s32.totalorder %s140, %s141
    %p150 = scmp.eq.s32.totalorder %s36, 0
    %p151 = por %p149, %p150
    %p152 = scmp.ne.s32.totalorder %s140, %s141
    %p153 = scmp.eq.s32.totalorder %s37, 1
    %p154 = por %p152, %p153
    %p156 = scmp.ne.s32.totalorder %s141, %s155
    %p157 = scmp.eq.s32.totalorder %s37, 0
    %p158 = por %p156, %p157
    %s160 = sadd.s32 %s159, 1
    %p163 = scmp.eq.s32.totalorder %s31, 1
    %p164 = scmp.ne.s32.totalorder %s159, %s161
    %p165 = scmp.eq.s32.totalorder %s31, 0
    %p166 = por %p164, %p165
    %p167 = scmp.ne.s32.totalorder %s159, %s161
    %p168 = scmp.eq.s32.totalorder %s36, 1
    %p169 = por %p167, %p168
    %p170 = scmp.ne.s32.totalorder %s161, %s162
    %p171 = scmp.eq.s32.totalorder %s36, 0
    %p172 = por %p170, %p171
    %p173 = scmp.ne.s32.totalorder %s161, %s162
    %p174 = scmp.eq.s32.totalorder %s37, 1
    %p175 = por %p173, %p174
    %p177 = scmp.ne.s32.totalorder %s162, %s176
    %p178 = scmp.eq.s32.totalorder %s37, 0
    %p179 = por %p177, %p178
    %s181 = sadd.s32 %s180, 1
    %p184 = scmp.eq.s32.totalorder %s31, 1
    %p185 = scmp.ne.s32.totalorder %s180, %s182
    %p186 = scmp.eq.s32.totalorder %s31, 0
    %p187 = por %p185, %p186
    %p188 = scmp.ne.s32.totalorder %s180, %s182
    %p189 = scmp.eq.s32.totalorder %s36, 1
    %p190 = por %p188, %p189
    %p191 = scmp.ne.s32.totalorder %s182, %s183
    %p192 = scmp.eq.s32.totalorder %s36, 0
    %p193 = por %p191, %p192
    %p194 = scmp.ne.s32.totalorder %s182, %s183
    %p195 = scmp.eq.s32.totalorder %s37, 1
    %p196 = por %p194, %p195
    %p198 = scmp.ne.s32.totalorder %s183, %s197
    %p199 = scmp.eq.s32.totalorder %s37, 0
    %p200 = por %p198, %p199
    %s202 = sadd.s32 %s201, 1
    %p205 = scmp.eq.s32.totalorder %s31, 1
    %p206 = scmp.ne.s32.totalorder %s201, %s203
    %p207 = scmp.eq.s32.totalorder %s31, 0
    %p208 = por %p206, %p207
    %p209 = scmp.ne.s32.totalorder %s201, %s203
    %p210 = scmp.eq.s32.totalorder %s36, 1
    %p211 = por %p209, %p210
    %p212 = scmp.ne.s32.totalorder %s203, %s204
    %p213 = scmp.eq.s32.totalorder %s36, 0
    %p214 = por %p212, %p213
    %p215 = scmp.ne.s32.totalorder %s203, %s204
    %p216 = scmp.eq.s32.totalorder %s37, 1
    %p217 = por %p215, %p216
    %p219 = scmp.ne.s32.totalorder %s204, %s218
    %p220 = scmp.eq.s32.totalorder %s37, 0
    %p221 = por %p219, %p220
    %s223 = sadd.s32 %s222, 1
    %p226 = scmp.eq.s32.totalorder %s31, 1
    %p227 = scmp.ne.s32.totalorder %s222, %s224
    %p228 = scmp.eq.s32.totalorder %s31, 0
    %p229 = por %p227, %p228
    %p230 = scmp.ne.s32.totalorder %s222, %s224
    %p231 = scmp.eq.s32.totalorder %s36, 1
    %p232 = por %p230, %p231
    %p233 = scmp.ne.s32.totalorder %s224, %s225
    %p234 = scmp.eq.s32.totalorder %s36, 0
    %p235 = por %p233, %p234
    %p236 = scmp.ne.s32.totalorder %s224, %s225
    %p237 = scmp.eq.s32.totalorder %s37, 1
    %p238 = por %p236, %p237
    %p240 = scmp.ne.s32.totalorder %s225, %s239
    %p241 = scmp.eq.s32.totalorder %s37, 0
    %p242 = por %p240, %p241
    %s244 = sadd.s32 %s243, 1
    %p247 = scmp.eq.s32.totalorder %s31, 1
    %p248 = scmp.ne.s32.totalorder %s243, %s245
    %p249 = scmp.eq.s32.totalorder %s31, 0
    %p250 = por %p248, %p249
    %p251 = scmp.ne.s32.totalorder %s243, %s245
    %p252 = scmp.eq.s32.totalorder %s36, 1
    %p253 = por %p251, %p252
    %p254 = scmp.ne.s32.totalorder %s245, %s246
    %p255 = scmp.eq.s32.totalorder %s36, 0
    %p256 = por %p254, %p255
    %p257 = scmp.ne.s32.totalorder %s245, %s246
    %p258 = scmp.eq.s32.totalorder %s37, 1
    %p259 = por %p257, %p258
    %p261 = scmp.ne.s32.totalorder %s246, %s260
    %p262 = scmp.eq.s32.totalorder %s37, 0
    %p263 = por %p261, %p262
    %s265 = sadd.s32 %s264, 1
    %p268 = scmp.eq.s32.totalorder %s31, 1
    %p269 = scmp.ne.s32.totalorder %s264, %s266
    %p270 = scmp.eq.s32.totalorder %s31, 0
    %p271 = por %p269, %p270
    %p272 = scmp.ne.s32.totalorder %s264, %s266
    %p273 = scmp.eq.s32.totalorder %s36, 1
    %p274 = por %p272, %p273
    %p275 = scmp.ne.s32.totalorder %s266, %s267
    %p276 = scmp.eq.s32.totalorder %s36, 0
    %p277 = por %p275, %p276
    %p278 = scmp.ne.s32.totalorder %s266, %s267
    %p279 = scmp.eq.s32.totalorder %s37, 1
    %p280 = por %p278, %p279
    %p282 = scmp.ne.s32.totalorder %s267, %s281
    %p283 = scmp.eq.s32.totalorder %s37, 0
    %p284 = por %p282, %p283
    %s286 = sadd.s32 %s285, 1
    %p289 = scmp.eq.s32.totalorder %s31, 1
    %p290 = scmp.ne.s32.totalorder %s285, %s287
    %p291 = scmp.eq.s32.totalorder %s31, 0
    %p292 = por %p290, %p291
    %p293 = scmp.ne.s32.totalorder %s285, %s287
    %p294 = scmp.eq.s32.totalorder %s36, 1
    %p295 = por %p293, %p294
    %p296 = scmp.ne.s32.totalorder %s287, %s288
    %p297 = scmp.eq.s32.totalorder %s36, 0
    %p298 = por %p296, %p297
    %p299 = scmp.ne.s32.totalorder %s287, %s288
    %p300 = scmp.eq.s32.totalorder %s37, 1
    %p301 = por %p299, %p300
    %p303 = scmp.ne.s32.totalorder %s288, %s302
    %p304 = scmp.eq.s32.totalorder %s37, 0
    %p305 = por %p303, %p304
    %s307 = sadd.s32 %s306, 1
    %p310 = scmp.eq.s32.totalorder %s31, 1
    %p311 = scmp.ne.s32.totalorder %s306, %s308
    %p312 = scmp.eq.s32.totalorder %s31, 0
    %p313 = por %p311, %p312
    %p314 = scmp.ne.s32.totalorder %s306, %s308
    %p315 = scmp.eq.s32.totalorder %s36, 1
    %p316 = por %p314, %p315
    %p317 = scmp.ne.s32.totalorder %s308, %s309
    %p318 = scmp.eq.s32.totalorder %s36, 0
    %p319 = por %p317, %p318
    %p320 = scmp.ne.s32.totalorder %s308, %s309
    %p321 = scmp.eq.s32.totalorder %s37, 1
    %p322 = por %p320, %p321
    %p324 = scmp.ne.s32.totalorder %s309, %s323
    %p325 = scmp.eq.s32.totalorder %s37, 0
    %p326 = por %p324, %p325
    %s328 = sadd.s32 %s327, 1
    %p331 = scmp.eq.s32.totalorder %s31, 1
    %p332 = scmp.ne.s32.totalorder %s327, %s329
    %p333 = scmp.eq.s32.totalorder %s31, 0
    %p334 = por %p332, %p333
    %p335 = scmp.ne.s32.totalorder %s327, %s329
    %p336 = scmp.eq.s32.totalorder %s36, 1
    %p337 = por %p335, %p336
    %p338 = scmp.ne.s32.totalorder %s329, %s330
    %p339 = scmp.eq.s32.totalorder %s36, 0
    %p340 = por %p338, %p339
    %p341 = scmp.ne.s32.totalorder %s329, %s330
    %p342 = scmp.eq.s32.totalorder %s37, 1
    %p343 = por %p341, %p342
    %p345 = scmp.ne.s32.totalorder %s330, %s344
    %p346 = scmp.eq.s32.totalorder %s37, 0
    %p347 = por %p345, %p346
    %s349 = sadd.s32 %s348, 1
    %p352 = scmp.eq.s32.totalorder %s31, 1
    %p353 = scmp.ne.s32.totalorder %s348, %s350
    %p354 = scmp.eq.s32.totalorder %s31, 0
    %p355 = por %p353, %p354
    %p356 = scmp.ne.s32.totalorder %s348, %s350
    %p357 = scmp.eq.s32.totalorder %s36, 1
    %p358 = por %p356, %p357
    %p359 = scmp.ne.s32.totalorder %s350, %s351
    %p360 = scmp.eq.s32.totalorder %s36, 0
    %p361 = por %p359, %p360
    %p362 = scmp.ne.s32.totalorder %s350, %s351
    %p363 = scmp.eq.s32.totalorder %s37, 1
    %p364 = por %p362, %p363
    %p366 = scmp.ne.s32.totalorder %s351, %s365
    %p367 = scmp.eq.s32.totalorder %s37, 0
    %p368 = por %p366, %p367
    %s370 = sadd.s32 %s369, 1
    %p373 = scmp.eq.s32.totalorder %s31, 1
    %p374 = scmp.ne.s32.totalorder %s369, %s371
    %p375 = scmp.eq.s32.totalorder %s31, 0
    %p376 = por %p374, %p375
    %p377 = scmp.ne.s32.totalorder %s369, %s371
    %p378 = scmp.eq.s32.totalorder %s36, 1
    %p379 = por %p377, %p378
    %p380 = scmp.ne.s32.totalorder %s371, %s372
    %p381 = scmp.eq.s32.totalorder %s36, 0
    %p382 = por %p380, %p381
    %p383 = scmp.ne.s32.totalorder %s371, %s372
    %p384 = scmp.eq.s32.totalorder %s37, 1
    %p385 = por %p383, %p384
    %p387 = scmp.ne.s32.totalorder %s372, %s386
    %p388 = scmp.eq.s32.totalorder %s37, 0
    %p389 = por %p387, %p388
    %s391 = sadd.s32 %s390, 1
    %p394 = scmp.eq.s32.totalorder %s31, 1
    %p395 = scmp.ne.s32.totalorder %s390, %s392
    %p396 = scmp.eq.s32.totalorder %s31, 0
    %p397 = por %p395, %p396
    %p398 = scmp.ne.s32.totalorder %s390, %s392
    %p399 = scmp.eq.s32.totalorder %s36, 1
    %p400 = por %p398, %p399
    %p401 = scmp.ne.s32.totalorder %s392, %s393
    %p402 = scmp.eq.s32.totalorder %s36, 0
    %p403 = por %p401, %p402
    %p404 = scmp.ne.s32.totalorder %s392, %s393
    %p405 = scmp.eq.s32.totalorder %s37, 1
    %p406 = por %p404, %p405
    %p408 = scmp.ne.s32.totalorder %s393, %s407
    %p409 = scmp.eq.s32.totalorder %s37, 0
    %p410 = por %p408, %p409
    %s412 = sadd.s32 %s411, 1
    %p415 = scmp.eq.s32.totalorder %s31, 1
    %p416 = scmp.ne.s32.totalorder %s411, %s413
    %p417 = scmp.eq.s32.totalorder %s31, 0
    %p418 = por %p416, %p417
    %p419 = scmp.ne.s32.totalorder %s411, %s413
    %p420 = scmp.eq.s32.totalorder %s36, 1
    %p421 = por %p419, %p420
    %p422 = scmp.ne.s32.totalorder %s413, %s414
    %p423 = scmp.eq.s32.totalorder %s36, 0
    %p424 = por %p422, %p423
    %p425 = scmp.ne.s32.totalorder %s413, %s414
    %p426 = scmp.eq.s32.totalorder %s37, 1
    %p427 = por %p425, %p426
    %p429 = scmp.ne.s32.totalorder %s414, %s428
    %p430 = scmp.eq.s32.totalorder %s37, 0
    %p431 = por %p429, %p430
    %s433 = sadd.s32 %s432, 1
    %p436 = scmp.eq.s32.totalorder %s31, 1
    %p437 = scmp.ne.s32.totalorder %s432, %s434
    %p438 = scmp.eq.s32.totalorder %s31, 0
    %p439 = por %p437, %p438
    %p440 = scmp.ne.s32.totalorder %s432, %s434
    %p441 = scmp.eq.s32.totalorder %s36, 1
    %p442 = por %p440, %p441
    %p443 = scmp.ne.s32.totalorder %s434, %s435
    %p444 = scmp.eq.s32.totalorder %s36, 0
    %p445 = por %p443, %p444
    %p446 = scmp.ne.s32.totalorder %s434, %s435
    %p447 = scmp.eq.s32.totalorder %s37, 1
    %p448 = por %p446, %p447
    %p450 = scmp.ne.s32.totalorder %s435, %s449
    %p451 = scmp.eq.s32.totalorder %s37, 0
    %p452 = por %p450, %p451
    %s454 = sadd.s32 %s453, 1
    %p457 = scmp.eq.s32.totalorder %s31, 1
    %p458 = scmp.ne.s32.totalorder %s453, %s455
    %p459 = scmp.eq.s32.totalorder %s31, 0
    %p460 = por %p458, %p459
    %p461 = scmp.ne.s32.totalorder %s453, %s455
    %p462 = scmp.eq.s32.totalorder %s36, 1
    %p463 = por %p461, %p462
    %p464 = scmp.ne.s32.totalorder %s455, %s456
    %p465 = scmp.eq.s32.totalorder %s36, 0
    %p466 = por %p464, %p465
    %p467 = scmp.ne.s32.totalorder %s455, %s456
    %p468 = scmp.eq.s32.totalorder %s37, 1
    %p469 = por %p467, %p468
    %p471 = scmp.ne.s32.totalorder %s456, %s470
    %p472 = scmp.eq.s32.totalorder %s37, 0
    %p473 = por %p471, %p472
    %s475 = sadd.s32 %s474, 1
    %p478 = scmp.eq.s32.totalorder %s31, 1
    %p479 = scmp.ne.s32.totalorder %s474, %s476
    %p480 = scmp.eq.s32.totalorder %s31, 0
    %p481 = por %p479, %p480
    %p482 = scmp.ne.s32.totalorder %s474, %s476
    %p483 = scmp.eq.s32.totalorder %s36, 1
    %p484 = por %p482, %p483
    %p485 = scmp.ne.s32.totalorder %s476, %s477
    %p486 = scmp.eq.s32.totalorder %s36, 0
    %p487 = por %p485, %p486
    %p488 = scmp.ne.s32.totalorder %s476, %s477
    %p489 = scmp.eq.s32.totalorder %s37, 1
    %p490 = por %p488, %p489
    %p492 = scmp.ne.s32.totalorder %s477, %s491
    %p493 = scmp.eq.s32.totalorder %s37, 0
    %p494 = por %p492, %p493
    %s496 = sadd.s32 %s495, 1
    %p499 = scmp.eq.s32.totalorder %s31, 1
    %p500 = scmp.ne.s32.totalorder %s495, %s497
    %p501 = scmp.eq.s32.totalorder %s31, 0
    %p502 = por %p500, %p501
    %p503 = scmp.ne.s32.totalorder %s495, %s497
    %p504 = scmp.eq.s32.totalorder %s36, 1
    %p505 = por %p503, %p504
    %p506 = scmp.ne.s32.totalorder %s497, %s498
    %p507 = scmp.eq.s32.totalorder %s36, 0
    %p508 = por %p506, %p507
    %p509 = scmp.ne.s32.totalorder %s497, %s498
    %p510 = scmp.eq.s32.totalorder %s37, 1
    %p511 = por %p509, %p510
    %p513 = scmp.ne.s32.totalorder %s498, %s512
    %p514 = scmp.eq.s32.totalorder %s37, 0
    %p515 = por %p513, %p514
    %s517 = sadd.s32 %s516, 1
    %p520 = scmp.eq.s32.totalorder %s31, 1
    %p521 = scmp.ne.s32.totalorder %s516, %s518
    %p522 = scmp.eq.s32.totalorder %s31, 0
    %p523 = por %p521, %p522
    %p524 = scmp.ne.s32.totalorder %s516, %s518
    %p525 = scmp.eq.s32.totalorder %s36, 1
    %p526 = por %p524, %p525
    %p527 = scmp.ne.s32.totalorder %s518, %s519
    %p528 = scmp.eq.s32.totalorder %s36, 0
    %p529 = por %p527, %p528
    %p530 = scmp.ne.s32.totalorder %s518, %s519
    %p531 = scmp.eq.s32.totalorder %s37, 1
    %p532 = por %p530, %p531
    %p534 = scmp.ne.s32.totalorder %s519, %s533
    %p535 = scmp.eq.s32.totalorder %s37, 0
    %p536 = por %p534, %p535
    %s537 = ssub.s32 %s31, %s38
    %p538 = scmp.eq.s32.totalorder %s537, 0
    %s540 = sadd.s32 %s539, 1
    %s541 = scalar_select %p538, %s539, %s540
    %p544 = pneg %p538
    %p545 = scmp.eq.s32.totalorder %s31, 1
    %p546 = por %p544, %p545
    %p547 = scmp.ne.s32.totalorder %s539, %s542
    %p548 = scmp.eq.s32.totalorder %s31, 0
    %p549 = por %p547, %p548
    %p550 = scmp.ne.s32.totalorder %s539, %s542
    %p551 = scmp.eq.s32.totalorder %s36, 1
    %p552 = por %p550, %p551
    %p553 = scmp.ne.s32.totalorder %s542, %s543
    %p554 = scmp.eq.s32.totalorder %s36, 0
    %p555 = por %p553, %p554
    %p556 = scmp.ne.s32.totalorder %s542, %s543
    %p557 = scmp.eq.s32.totalorder %s37, 1
    %p558 = por %p556, %p557
    %p560 = scmp.ne.s32.totalorder %s543, %s559
    %p561 = scmp.eq.s32.totalorder %s37, 0
    %p562 = por %p560, %p561
    %p563 = scmp.le.s32.totalorder 1, %s31
    %p564 = scmp.lt.s32.totalorder %s31, 3
    %p565 = pnand %p563, %p564
    %p566 = pneg %p565
    // Predicated region
    $region9: #{forward.5} parent=5 // pred_check
      _
    $region10: #{forward.5} parent=5 // pred_check_branch
      %568 = sbr.rel (%p565) target = $region12
    $region11: #{forward.5} parent=5 // pred_region
      %s569 = ssub.s32 %s31, 1
      // Predicated region
      $region13: #{forward.5} parent=11 // pred_check
        %p570 = pneg %p130
      $region14: #{forward.5} parent=11 // pred_check_branch
        %572 = sbr.rel (%p570) target = $region16
      $region15: #{forward.5} parent=11 // pred_region
        _
      $region16: #{forward.5} parent=11 // pred_fallthru
        _
      // Predicated region
      $region17: #{forward.5} parent=11 // pred_check
        %p573 = pneg %p151
      $region18: #{forward.5} parent=11 // pred_check_branch
        %575 = sbr.rel (%p573) target = $region20
      $region19: #{forward.5} parent=11 // pred_region
        _
      $region20: #{forward.5} parent=11 // pred_fallthru
        _
      // Predicated region
      $region21: #{forward.5} parent=11 // pred_check
        %p576 = pneg %p172
      $region22: #{forward.5} parent=11 // pred_check_branch
        %578 = sbr.rel (%p576) target = $region24
      $region23: #{forward.5} parent=11 // pred_region
        _
      $region24: #{forward.5} parent=11 // pred_fallthru
        _
      // Predicated region
      $region25: #{forward.5} parent=11 // pred_check
        %p579 = pneg %p193
      $region26: #{forward.5} parent=11 // pred_check_branch
        %581 = sbr.rel (%p579) target = $region28
      $region27: #{forward.5} parent=11 // pred_region
        _
      $region28: #{forward.5} parent=11 // pred_fallthru
        _
      // Predicated region
      $region29: #{forward.5} parent=11 // pred_check
        %p582 = pneg %p214
      $region30: #{forward.5} parent=11 // pred_check_branch
        %584 = sbr.rel (%p582) target = $region32
      $region31: #{forward.5} parent=11 // pred_region
        _
      $region32: #{forward.5} parent=11 // pred_fallthru
        _
      // Predicated region
      $region33: #{forward.5} parent=11 // pred_check
        %p585 = pneg %p235
      $region34: #{forward.5} parent=11 // pred_check_branch
        %587 = sbr.rel (%p585) target = $region36
      $region35: #{forward.5} parent=11 // pred_region
        _
      $region36: #{forward.5} parent=11 // pred_fallthru
        _
      // Predicated region
      $region37: #{forward.5} parent=11 // pred_check
        %p588 = pneg %p256
      $region38: #{forward.5} parent=11 // pred_check_branch
        %590 = sbr.rel (%p588) target = $region40
      $region39: #{forward.5} parent=11 // pred_region
        _
      $region40: #{forward.5} parent=11 // pred_fallthru
        _
      // Predicated region
      $region41: #{forward.5} parent=11 // pred_check
        %p591 = pneg %p277
      $region42: #{forward.5} parent=11 // pred_check_branch
        %593 = sbr.rel (%p591) target = $region44
      $region43: #{forward.5} parent=11 // pred_region
        _
      $region44: #{forward.5} parent=11 // pred_fallthru
        _
      // Predicated region
      $region45: #{forward.5} parent=11 // pred_check
        %p594 = pneg %p298
      $region46: #{forward.5} parent=11 // pred_check_branch
        %596 = sbr.rel (%p594) target = $region48
      $region47: #{forward.5} parent=11 // pred_region
        _
      $region48: #{forward.5} parent=11 // pred_fallthru
        _
      // Predicated region
      $region49: #{forward.5} parent=11 // pred_check
        %p597 = pneg %p319
      $region50: #{forward.5} parent=11 // pred_check_branch
        %599 = sbr.rel (%p597) target = $region52
      $region51: #{forward.5} parent=11 // pred_region
        _
      $region52: #{forward.5} parent=11 // pred_fallthru
        _
      // Predicated region
      $region53: #{forward.5} parent=11 // pred_check
        %p600 = pneg %p340
      $region54: #{forward.5} parent=11 // pred_check_branch
        %602 = sbr.rel (%p600) target = $region56
      $region55: #{forward.5} parent=11 // pred_region
        _
      $region56: #{forward.5} parent=11 // pred_fallthru
        _
      // Predicated region
      $region57: #{forward.5} parent=11 // pred_check
        %p603 = pneg %p361
      $region58: #{forward.5} parent=11 // pred_check_branch
        %605 = sbr.rel (%p603) target = $region60
      $region59: #{forward.5} parent=11 // pred_region
        _
      $region60: #{forward.5} parent=11 // pred_fallthru
        _
      // Predicated region
      $region61: #{forward.5} parent=11 // pred_check
        %p606 = pneg %p382
      $region62: #{forward.5} parent=11 // pred_check_branch
        %608 = sbr.rel (%p606) target = $region64
      $region63: #{forward.5} parent=11 // pred_region
        _
      $region64: #{forward.5} parent=11 // pred_fallthru
        _
      // Predicated region
      $region65: #{forward.5} parent=11 // pred_check
        %p609 = pneg %p403
      $region66: #{forward.5} parent=11 // pred_check_branch
        %611 = sbr.rel (%p609) target = $region68
      $region67: #{forward.5} parent=11 // pred_region
        _
      $region68: #{forward.5} parent=11 // pred_fallthru
        _
      // Predicated region
      $region69: #{forward.5} parent=11 // pred_check
        %p612 = pneg %p424
      $region70: #{forward.5} parent=11 // pred_check_branch
        %614 = sbr.rel (%p612) target = $region72
      $region71: #{forward.5} parent=11 // pred_region
        _
      $region72: #{forward.5} parent=11 // pred_fallthru
        _
      // Predicated region
      $region73: #{forward.5} parent=11 // pred_check
        %p615 = pneg %p445
      $region74: #{forward.5} parent=11 // pred_check_branch
        %617 = sbr.rel (%p615) target = $region76
      $region75: #{forward.5} parent=11 // pred_region
        _
      $region76: #{forward.5} parent=11 // pred_fallthru
        _
      // Predicated region
      $region77: #{forward.5} parent=11 // pred_check
        %p618 = pneg %p466
      $region78: #{forward.5} parent=11 // pred_check_branch
        %620 = sbr.rel (%p618) target = $region80
      $region79: #{forward.5} parent=11 // pred_region
        _
      $region80: #{forward.5} parent=11 // pred_fallthru
        _
      // Predicated region
      $region81: #{forward.5} parent=11 // pred_check
        %p621 = pneg %p487
      $region82: #{forward.5} parent=11 // pred_check_branch
        %623 = sbr.rel (%p621) target = $region84
      $region83: #{forward.5} parent=11 // pred_region
        _
      $region84: #{forward.5} parent=11 // pred_fallthru
        _
      // Predicated region
      $region85: #{forward.5} parent=11 // pred_check
        %p624 = pneg %p508
      $region86: #{forward.5} parent=11 // pred_check_branch
        %626 = sbr.rel (%p624) target = $region88
      $region87: #{forward.5} parent=11 // pred_region
        _
      $region88: #{forward.5} parent=11 // pred_fallthru
        _
      // Predicated region
      $region89: #{forward.5} parent=11 // pred_check
        %p627 = pneg %p529
      $region90: #{forward.5} parent=11 // pred_check_branch
        %629 = sbr.rel (%p627) target = $region92
      $region91: #{forward.5} parent=11 // pred_region
        _
      $region92: #{forward.5} parent=11 // pred_fallthru
        _
    $region12: #{forward.5} parent=5 // pred_fallthru
      _
    %p630 = scmp.lt.s32.totalorder %s31, 2
    // Predicated region
    $region93: #{forward.5} parent=5 // pred_check
      %p631 = pneg %p630
    $region94: #{forward.5} parent=5 // pred_check_branch
      %633 = sbr.rel (%p631) target = $region96
    $region95: #{forward.5} parent=5 // pred_region
      // Predicated region
      $region97: #{forward.5} parent=95 // pred_check
        %p634 = pneg %p51
      $region98: #{forward.5} parent=95 // pred_check_branch
        %636 = sbr.rel (%p634) target = $region100
      $region99: #{forward.5} parent=95 // pred_region
        %p637 = scmp.lt.s32.totalorder %s31, 1
        %s638 = scalar_select %p637, %s31, 1
        %s639 = smul.addr %s638, 2
        %s640 = smul.addr %s639, 8
        %s641 = scalar_lea.vmem %s0, %s640
      $region100: #{forward.5} parent=95 // pred_fallthru
        _
      // Predicated region
      $region101: #{forward.5} parent=95 // pred_check
        %p642 = pneg %p77
      $region102: #{forward.5} parent=95 // pred_check_branch
        %644 = sbr.rel (%p642) target = $region104
      $region103: #{forward.5} parent=95 // pred_region
        %p645 = scmp.lt.s32.totalorder %s31, 1
        %s646 = scalar_select %p645, %s31, 1
        %s647 = smul.addr %s646, 4
        %s648 = smul.addr %s647, 8
        %s649 = scalar_lea.vmem %s1, %s648
      $region104: #{forward.5} parent=95 // pred_fallthru
        _
      // Predicated region
      $region105: #{forward.5} parent=95 // pred_check
        %p650 = pneg %p103
      $region106: #{forward.5} parent=95 // pred_check_branch
        %652 = sbr.rel (%p650) target = $region108
      $region107: #{forward.5} parent=95 // pred_region
        %p653 = scmp.lt.s32.totalorder %s31, 1
        %s654 = scalar_select %p653, %s31, 1
        %s655 = smul.addr %s654, 8
        %s656 = smul.addr %s655, 8
        %s657 = scalar_lea.vmem %s2, %s656
      $region108: #{forward.5} parent=95 // pred_fallthru
        _
    $region96: #{forward.5} parent=5 // pred_fallthru
      _
    %p658 = scmp.le.s32.totalorder 1, %s31
    %p659 = scmp.lt.s32.totalorder %s31, 3
    %p660 = pnand %p658, %p659
    %p661 = pneg %p660
    // Predicated region
    $region109: #{forward.5} parent=5 // pred_check
      _
    $region110: #{forward.5} parent=5 // pred_check_branch
      %663 = sbr.rel (%p660) target = $region112
    $region111: #{forward.5} parent=5 // pred_region
      %s664 = ssub.s32 %s31, 1
      %p665 = scmp.lt.s32.totalorder %s36, 1
      %s666 = scalar_select %p665, %s36, 1
      %s667 = smul.addr %s666, 2
      %s668 = smul.addr %s667, 8
      %s669 = scalar_lea.vmem %s0, %s668
      %p670 = pneg %p57
      %p671 = pneg %p54
      %p672 = scmp.lt.s32.totalorder %s36, 1
      %s673 = scalar_select %p672, %s36, 1
      %s674 = smul.addr %s673, 4
      %s675 = smul.addr %s674, 8
      %s676 = scalar_lea.vmem %s1, %s675
      %p677 = pneg %p83
      %p678 = pneg %p80
      %p679 = scmp.lt.s32.totalorder %s36, 1
      %s680 = scalar_select %p679, %s36, 1
      %s681 = smul.addr %s680, 8
      %s682 = smul.addr %s681, 8
      %s683 = scalar_lea.vmem %s2, %s682
      %p684 = pneg %p109
      %p685 = pneg %p106
      %p686 = pneg %p130
      %p687 = pneg %p127
      %p688 = pneg %p151
      %p689 = pneg %p148
      %p690 = pneg %p172
      %p691 = pneg %p169
      %p692 = pneg %p193
      %p693 = pneg %p190
      %p694 = pneg %p214
      %p695 = pneg %p211
      %p696 = pneg %p235
      %p697 = pneg %p232
      %p698 = pneg %p256
      %p699 = pneg %p253
      %p700 = pneg %p277
      %p701 = pneg %p274
      %p702 = pneg %p298
      %p703 = pneg %p295
      %p704 = pneg %p319
      %p705 = pneg %p316
      %p706 = pneg %p340
      %p707 = pneg %p337
      %p708 = pneg %p361
      %p709 = pneg %p358
      %p710 = pneg %p382
      %p711 = pneg %p379
      %p712 = pneg %p403
      %p713 = pneg %p400
      %p714 = pneg %p424
      %p715 = pneg %p421
      %p716 = pneg %p445
      %p717 = pneg %p442
      %p718 = pneg %p466
      %p719 = pneg %p463
      %p720 = pneg %p487
      %p721 = pneg %p484
      %p722 = pneg %p508
      %p723 = pneg %p505
      %p724 = pneg %p529
      %p725 = pneg %p526
      %p726 = pneg %p555
      %p727 = pneg %p552
      %p728 = scmp.lt.s32.totalorder %s36, 1
      %s729 = scalar_select %p728, %s36, 1
      %s730 = smul.addr %s729, 8
      %s731 = smul.addr %s730, 8
      %s732 = scalar_lea.vmem %s23, %s731
      %p733 = scmp.lt.s32.totalorder %s36, 1
      %s734 = scalar_select %p733, %s36, 1
      %s735 = smul.addr %s734, 2
      %s736 = smul.addr %s735, 8
      %s737 = scalar_lea.vmem %s0, %s736
      %p738 = scmp.lt.s32.totalorder %s36, 1
      %s739 = scalar_select %p738, %s36, 1
      %s740 = smul.addr %s739, 4
      %s741 = smul.addr %s740, 8
      %s742 = scalar_lea.vmem %s1, %s741
      %p743 = scmp.lt.s32.totalorder %s36, 1
      %s744 = scalar_select %p743, %s36, 1
      %s745 = smul.addr %s744, 8
      %s746 = smul.addr %s745, 8
      %s747 = scalar_lea.vmem %s2, %s746
      %p748 = scmp.lt.s32.totalorder %s36, 1
      %s749 = scalar_select %p748, %s36, 1
      %s750 = smul.addr %s749, 8
      %s751 = smul.addr %s750, 8
      %s752 = scalar_lea.vmem %s23, %s751
      %v754 = vld [vmem:[%s737] sm:$0xff]
      %v755 = vld [vmem:[%s737 + $0x8] sm:$0xff]
      %v756 = vld [vmem:[%s3] sm:$0xf]
      %v757 = vld [vmem:[%s3 + $0x4] sm:$0xf]
      %v758 = vld [vmem:[%s3 + $0x8] sm:$0xf]
      %v759 = vld [vmem:[%s3 + $0xc] sm:$0xf]
      %v760 = vld [vmem:[%s3 + $0x10] sm:$0xf]
      %v761 = vld [vmem:[%s3 + $0x14] sm:$0xf]
      %v762 = vld [vmem:[%s3 + $0x18] sm:$0xf]
      %v763 = vld [vmem:[%s3 + $0x1c] sm:$0xf]
      %v764 = vld [vmem:[%s3 + $0x20] sm:$0xf]
      %v765 = vld [vmem:[%s3 + $0x24] sm:$0xf]
      %v766 = vld [vmem:[%s3 + $0x28] sm:$0xf]
      %v767 = vld [vmem:[%s3 + $0x2c] sm:$0xf]
      %v768 = vld [vmem:[%s3 + $0x30] sm:$0xf]
      %v769 = vld [vmem:[%s3 + $0x34] sm:$0xf]
      %v770 = vld [vmem:[%s3 + $0x38] sm:$0xf]
      %v771 = vld [vmem:[%s3 + $0x3c] sm:$0xf]
      %v772 = vld [vmem:[%s3 + $0x40] sm:$0xf]
      %v773 = vld [vmem:[%s3 + $0x44] sm:$0xf]
      %v774 = vld [vmem:[%s3 + $0x48] sm:$0xf]
      %v775 = vld [vmem:[%s3 + $0x4c] sm:$0xf]
      %v776 = vld [vmem:[%s3 + $0x50] sm:$0xf]
      %v777 = vld [vmem:[%s3 + $0x54] sm:$0xf]
      %v778 = vld [vmem:[%s3 + $0x58] sm:$0xf]
      %v779 = vld [vmem:[%s3 + $0x5c] sm:$0xf]
      %v780 = vld [vmem:[%s3 + $0x60] sm:$0xf]
      %v781 = vld [vmem:[%s3 + $0x64] sm:$0xf]
      %v782 = vld [vmem:[%s3 + $0x68] sm:$0xf]
      %v783 = vld [vmem:[%s3 + $0x6c] sm:$0xf]
      %vm786 = vcmask 1042432
      %v787 = vrot.slane %v754, 5
      %v788 = vrot.slane %v755, 5
      %v789 = vsel %vm786, %v787, %v788
      %v792 = vsel %vm786, 0.0, %v787
      %vm793 = vcmask 1041408
      %v794 = vrot.slane %v754, 6
      %v795 = vrot.slane %v755, 6
      %v796 = vsel %vm793, %v794, %v795
      %v798 = vsel %vm793, 0.0, %v794
      %vm799 = vcmask 1040384
      %v800 = vrot.slane %v754, 7
      %v801 = vrot.slane %v755, 7
      %v802 = vsel %vm799, %v800, %v801
      %v804 = vsel %vm799, 0.0, %v800
      %vm805 = vcmask 1046528
      %v806 = vrot.slane %v754, 1
      %v807 = vrot.slane %v755, 1
      %v808 = vsel %vm805, %v806, %v807
      %v811 = vsel %vm805, %v807, 0.0
      %vm812 = vcmask 1045504
      %v813 = vrot.slane %v754, 2
      %v814 = vrot.slane %v755, 2
      %v815 = vsel %vm812, %v813, %v814
      %v817 = vsel %vm812, %v814, 0.0
      %vm818 = vcmask 1044480
      %v819 = vrot.slane %v754, 3
      %v820 = vrot.slane %v755, 3
      %v821 = vsel %vm818, %v819, %v820
      %v823 = vsel %vm818, %v820, 0.0
      %825 = vrot.lane.b32.xlu0 %v798, 32
      %v826 = vpop.permute.xlu0 %825
      %827 = vrot.lane.b32.xlu0 %v796, 32
      %v828 = vpop.permute.xlu0 %827
      %832 = vrot.lane.b32.xlu0 %v804, 64
      %v833 = vpop.permute.xlu0 %832
      %834 = vrot.lane.b32.xlu0 %v802, 64
      %v835 = vpop.permute.xlu0 %834
      %838 = vrot.lane.b32.xlu0 %v754, 96
      %v839 = vpop.permute.xlu0 %838
      %840 = vrot.lane.b32.xlu0 %v755, 96
      %v841 = vpop.permute.xlu0 %840
      %845 = vrot.lane.b32.xlu0 %v815, 32
      %v846 = vpop.permute.xlu0 %845
      %847 = vrot.lane.b32.xlu0 %v817, 32
      %v848 = vpop.permute.xlu0 %847
      %852 = vrot.lane.b32.xlu0 %v821, 64
      %v853 = vpop.permute.xlu0 %852
      %854 = vrot.lane.b32.xlu0 %v823, 64
      %v855 = vpop.permute.xlu0 %854
      %vm858 = vcmask 261120
      %v859 = vsel %vm858, %v792, %v826
      %v860 = vsel %vm858, %v789, %v828
      %vm861 = vcmask 523264
      %v862 = vsel %vm861, %v859, %v833
      %v863 = vsel %vm861, %v860, %v835
      %vm864 = vcmask 785408
      %v865 = vsel %vm864, %v862, %v839
      %v866 = vsel %vm864, %v863, %v841
      %v867 = vsel %vm858, %v808, %v846
      %v868 = vsel %vm858, %v811, %v848
      %v869 = vsel %vm861, %v867, %v853
      %v870 = vsel %vm861, %v868, %v855
      %v871 = vpack.c.bf16 %v866, %v865
      %v872 = vpack.c.bf16 %v870, %v869
      %v873 = vld [vmem:[%s4] sm:$0x1]
      %v875 = vperm.slane %v873, 0
      %v905 = vunpack.c.l.b16 %v756
      %v906 = vunpack.c.l.b16 %v757
      %v907 = vunpack.c.l.b16 %v758
      %v908 = vunpack.c.l.b16 %v759
      %v909 = vunpack.c.l.b16 %v760
      %v910 = vunpack.c.l.b16 %v761
      %v911 = vunpack.c.l.b16 %v762
      %v912 = vunpack.c.l.b16 %v763
      %v913 = vunpack.c.l.b16 %v764
      %v914 = vunpack.c.l.b16 %v765
      %v915 = vunpack.c.l.b16 %v766
      %v916 = vunpack.c.l.b16 %v767
      %v917 = vunpack.c.l.b16 %v768
      %v918 = vunpack.c.l.b16 %v769
      %v919 = vunpack.c.l.b16 %v770
      %v920 = vunpack.c.l.b16 %v771
      %v921 = vunpack.c.l.b16 %v772
      %v922 = vunpack.c.l.b16 %v773
      %v923 = vunpack.c.l.b16 %v774
      %v924 = vunpack.c.l.b16 %v775
      %v925 = vunpack.c.l.b16 %v776
      %v926 = vunpack.c.l.b16 %v777
      %v927 = vunpack.c.l.b16 %v778
      %v928 = vunpack.c.l.b16 %v779
      %v929 = vunpack.c.l.b16 %v780
      %v930 = vunpack.c.l.b16 %v781
      %v931 = vunpack.c.l.b16 %v782
      %v932 = vunpack.c.l.b16 %v783
      %v933 = vpack.c.b16 %v906, %v905
      %v934 = vpack.c.b16 %v908, %v907
      %v935 = vpack.c.b16 %v910, %v909
      %v936 = vpack.c.b16 %v912, %v911
      %v937 = vpack.c.b16 %v914, %v913
      %v938 = vpack.c.b16 %v916, %v915
      %v939 = vpack.c.b16 %v918, %v917
      %v940 = vpack.c.b16 %v920, %v919
      %v941 = vpack.c.b16 %v922, %v921
      %v942 = vpack.c.b16 %v924, %v923
      %v943 = vpack.c.b16 %v926, %v925
      %v944 = vpack.c.b16 %v928, %v927
      %v945 = vpack.c.b16 %v930, %v929
      %v946 = vpack.c.b16 %v932, %v931
      %v962 = vsel %vm864, %v872, 0
      %964 = vmatpush.bf16.msra.mxu0 %v940
      %965 = vmatpush.bf16.msra.mxu0 %v939
      %966 = vmatpush.bf16.msra.mxu0 %v938
      %967 = vmatpush.bf16.msra.mxu0 %v937
      %968 = vmatpush.bf16.msra.mxu0 %v936
      %969 = vmatpush.bf16.msra.mxu0 %v935
      %970 = vmatpush.bf16.msra.mxu0 %v934
      %971 = vmatpush.bf16.msra.mxu0 %v933
      %972 = vmatmul.bf16.gmra.mxu0 %v871
      %v973 = vpop.f32.mrf.mxu0
      %v974 = vadd.f32 %v875, %v973
      %v975 = vpop.f32.mrf.mxu0
      %v976 = vadd.f32 %v875, %v975
      %977 = vdwg.mxu0
      %978 = vmatpush.bf16.msra.mxu0 0
      %979 = vmatpush.bf16.msra.mxu0 0
      %980 = vmatpush.bf16.msra.mxu0 %v946
      %981 = vmatpush.bf16.msra.mxu0 %v945
      %982 = vmatpush.bf16.msra.mxu0 %v944
      %983 = vmatpush.bf16.msra.mxu0 %v943
      %984 = vmatpush.bf16.msra.mxu0 %v942
      %985 = vmatpush.bf16.msra.mxu0 %v941
      %986 = vmatmul.bf16.gmra.mxu0 %v962
      %v987 = vpop.f32.mrf.mxu0
      %v988 = vadd.f32 %v974, %v987
      %v989 = vpop.f32.mrf.mxu0
      %v990 = vadd.f32 %v976, %v989
      %991 = vdwg.mxu0
      %v992 = vld [vmem:[%s5] sm:$0xf]
      %v993 = vld [vmem:[%s5 + $0x4] sm:$0xf]
      %v994 = vld [vmem:[%s5 + $0x8] sm:$0xf]
      %v995 = vld [vmem:[%s5 + $0xc] sm:$0xf]
      %v996 = vld [vmem:[%s5 + $0x10] sm:$0xf]
      %v997 = vld [vmem:[%s5 + $0x14] sm:$0xf]
      %v998 = vld [vmem:[%s5 + $0x18] sm:$0xf]
      %v999 = vld [vmem:[%s5 + $0x1c] sm:$0xf]
      %v1000 = vld [vmem:[%s5 + $0x20] sm:$0xf]
      %v1001 = vld [vmem:[%s5 + $0x24] sm:$0xf]
      %v1002 = vld [vmem:[%s5 + $0x28] sm:$0xf]
      %v1003 = vld [vmem:[%s5 + $0x2c] sm:$0xf]
      %v1004 = vld [vmem:[%s6] sm:$0x1]
      %v1005 = vld [vmem:[%s7] sm:$0x3]
      %v1006 = vld [vmem:[%s8] sm:$0x1]
      %v1007 = vld [vmem:[%s9] sm:$0xf]
      %v1008 = vld [vmem:[%s9 + $0x4] sm:$0xf]
      %v1009 = vld [vmem:[%s9 + $0x8] sm:$0xf]
      %v1010 = vld [vmem:[%s9 + $0xc] sm:$0xf]
      %v1011 = vld [vmem:[%s9 + $0x10] sm:$0xf]
      %v1012 = vld [vmem:[%s9 + $0x14] sm:$0xf]
      %v1013 = vld [vmem:[%s10] sm:$0x1]
      %v1014 = vld [vmem:[%s11] sm:$0xf]
      %v1015 = vld [vmem:[%s11 + $0x4] sm:$0xf]
      %v1016 = vld [vmem:[%s11 + $0x8] sm:$0xf]
      %v1017 = vld [vmem:[%s11 + $0xc] sm:$0xf]
      %v1018 = vld [vmem:[%s11 + $0x10] sm:$0xf]
      %v1019 = vld [vmem:[%s11 + $0x14] sm:$0xf]
      %v1020 = vld [vmem:[%s11 + $0x18] sm:$0xf]
      %v1021 = vld [vmem:[%s11 + $0x1c] sm:$0xf]
      %v1022 = vld [vmem:[%s11 + $0x20] sm:$0xf]
      %v1023 = vld [vmem:[%s11 + $0x24] sm:$0xf]
      %v1024 = vld [vmem:[%s12] sm:$0x1]
      %v1027 = vrot.slane %v988, 1
      %v1028 = vrot.slane %v988, 2
      %v1029 = vrot.slane %v988, 3
      %v1030 = vrot.slane %v988, 4
      %v1031 = vrot.slane %v988, 5
      %v1032 = vrot.slane %v988, 6
      %v1033 = vrot.slane %v988, 7
      %v1034 = vrot.slane %v990, 1
      %v1035 = vrot.slane %v990, 2
      %v1036 = vrot.slane %v990, 3
      %v1037 = vrot.slane %v990, 4
      %v1038 = vrot.slane %v990, 5
      %v1039 = vrot.slane %v990, 6
      %v1040 = vrot.slane %v990, 7
      %v1041 = vperm.slane %v988, 0
      %v1042 = vperm.slane %v1027, 0
      %v1043 = vperm.slane %v1028, 0
      %v1044 = vperm.slane %v1029, 0
      %v1045 = vperm.slane %v1030, 0
      %v1046 = vperm.slane %v1031, 0
      %v1047 = vperm.slane %v1032, 0
      %v1048 = vperm.slane %v1033, 0
      %v1049 = vperm.slane %v990, 0
      %v1050 = vperm.slane %v1034, 0
      %v1051 = vperm.slane %v1035, 0
      %v1052 = vperm.slane %v1036, 0
      %v1053 = vperm.slane %v1037, 0
      %v1054 = vperm.slane %v1038, 0
      %v1055 = vperm.slane %v1039, 0
      %v1056 = vperm.slane %v1040, 0
      %1057 = vst [vmem:[#allocation1] ss:$4 sm:$0xff] %v1041
      %s1058 = scalar_lea.vmem [#allocation1], 1
      %1059 = vst [vmem:[%s1058] ss:$4 sm:$0xff] %v1042
      %s1060 = scalar_lea.vmem [#allocation1], 2
      %1061 = vst [vmem:[%s1060] ss:$4 sm:$0xff] %v1043
      %s1062 = scalar_lea.vmem [#allocation1], 3
      %1063 = vst [vmem:[%s1062] ss:$4 sm:$0xff] %v1044
      %s1064 = scalar_lea.vmem [#allocation1], 32
      %1065 = vst [vmem:[%s1064] ss:$4 sm:$0xff] %v1045
      %s1066 = scalar_lea.vmem [#allocation1], 33
      %1067 = vst [vmem:[%s1066] ss:$4 sm:$0xff] %v1046
      %s1068 = scalar_lea.vmem [#allocation1], 34
      %1069 = vst [vmem:[%s1068] ss:$4 sm:$0xff] %v1047
      %s1070 = scalar_lea.vmem [#allocation1], 35
      %1071 = vst [vmem:[%s1070] ss:$4 sm:$0xff] %v1048
      %v1072 = vld.sshfl [vmem:[#allocation1] sm:$0xff pattern:$0x73625140]
      %v1073 = vld.sshfl [vmem:[#allocation1 + $0x20] sm:$0xff pattern:$0x73625140]
      %1074 = vst [vmem:[#allocation1] ss:$4 sm:$0xff] %v1049
      %1075 = vst [vmem:[%s1058] ss:$4 sm:$0xff] %v1050
      %1076 = vst [vmem:[%s1060] ss:$4 sm:$0xff] %v1051
      %1077 = vst [vmem:[%s1062] ss:$4 sm:$0xff] %v1052
      %1078 = vst [vmem:[%s1064] ss:$4 sm:$0xff] %v1053
      %1079 = vst [vmem:[%s1066] ss:$4 sm:$0xff] %v1054
      %1080 = vst [vmem:[%s1068] ss:$4 sm:$0xff] %v1055
      %1081 = vst [vmem:[%s1070] ss:$4 sm:$0xff] %v1056
      %v1082 = vld.sshfl [vmem:[#allocation1] sm:$0xff pattern:$0x73625140]
      %v1083 = vld.sshfl [vmem:[#allocation1 + $0x20] sm:$0xff pattern:$0x73625140]
      %v1084 = vrot.slane %v1072, 7
      %v1085 = vrot.slane %v1073, 7
      %v1086 = vsel %vm799, %v1084, %v1085
      %v1087 = vrot.slane %v1082, 7
      %v1088 = vsel %vm799, %v1085, %v1087
      %v1089 = vrot.slane %v1083, 7
      %v1090 = vsel %vm799, %v1087, %v1089
      %v1095 = vsel %vm799, 0.0, %v1084
      %1096 = vst [vmem:[#allocation1] ss:$4 sm:$0xff] %v1041
      %s1097 = scalar_lea.vmem [#allocation1], 1
      %1098 = vst [vmem:[%s1097] ss:$4 sm:$0xff] %v1042
      %s1099 = scalar_lea.vmem [#allocation1], 2
      %1100 = vst [vmem:[%s1099] ss:$4 sm:$0xff] %v1043
      %s1101 = scalar_lea.vmem [#allocation1], 3
      %1102 = vst [vmem:[%s1101] ss:$4 sm:$0xff] %v1044
      %s1103 = scalar_lea.vmem [#allocation1], 32
      %1104 = vst [vmem:[%s1103] ss:$4 sm:$0xff] %v1045
      %s1105 = scalar_lea.vmem [#allocation1], 33
      %1106 = vst [vmem:[%s1105] ss:$4 sm:$0xff] %v1046
      %s1107 = scalar_lea.vmem [#allocation1], 34
      %1108 = vst [vmem:[%s1107] ss:$4 sm:$0xff] %v1047
      %s1109 = scalar_lea.vmem [#allocation1], 35
      %1110 = vst [vmem:[%s1109] ss:$4 sm:$0xff] %v1048
      %v1111 = vld.sshfl [vmem:[#allocation1] sm:$0xff pattern:$0x73625140]
      %v1112 = vld.sshfl [vmem:[#allocation1 + $0x20] sm:$0xff pattern:$0x73625140]
      %1113 = vst [vmem:[#allocation1] ss:$4 sm:$0xff] %v1049
      %1114 = vst [vmem:[%s1097] ss:$4 sm:$0xff] %v1050
      %1115 = vst [vmem:[%s1099] ss:$4 sm:$0xff] %v1051
      %1116 = vst [vmem:[%s1101] ss:$4 sm:$0xff] %v1052
      %1117 = vst [vmem:[%s1103] ss:$4 sm:$0xff] %v1053
      %1118 = vst [vmem:[%s1105] ss:$4 sm:$0xff] %v1054
      %1119 = vst [vmem:[%s1107] ss:$4 sm:$0xff] %v1055
      %1120 = vst [vmem:[%s1109] ss:$4 sm:$0xff] %v1056
      %v1121 = vld.sshfl [vmem:[#allocation1] sm:$0xff pattern:$0x73625140]
      %v1122 = vld.sshfl [vmem:[#allocation1 + $0x20] sm:$0xff pattern:$0x73625140]
      %v1123 = vrot.slane %v1111, 1
      %v1124 = vrot.slane %v1112, 1
      %v1125 = vsel %vm805, %v1123, %v1124
      %v1126 = vrot.slane %v1121, 1
      %v1127 = vsel %vm805, %v1124, %v1126
      %v1128 = vrot.slane %v1122, 1
      %v1129 = vsel %vm805, %v1126, %v1128
      %v1131 = vsel %vm805, %v1128, 0.0
      %1132 = vst [vmem:[#allocation1] ss:$4 sm:$0xff] %v1041
      %s1133 = scalar_lea.vmem [#allocation1], 1
      %1134 = vst [vmem:[%s1133] ss:$4 sm:$0xff] %v1042
      %s1135 = scalar_lea.vmem [#allocation1], 2
      %1136 = vst [vmem:[%s1135] ss:$4 sm:$0xff] %v1043
      %s1137 = scalar_lea.vmem [#allocation1], 3
      %1138 = vst [vmem:[%s1137] ss:$4 sm:$0xff] %v1044
      %s1139 = scalar_lea.vmem [#allocation1], 32
      %1140 = vst [vmem:[%s1139] ss:$4 sm:$0xff] %v1045
      %s1141 = scalar_lea.vmem [#allocation1], 33
      %1142 = vst [vmem:[%s1141] ss:$4 sm:$0xff] %v1046
      %s1143 = scalar_lea.vmem [#allocation1], 34
      %1144 = vst [vmem:[%s1143] ss:$4 sm:$0xff] %v1047
      %s1145 = scalar_lea.vmem [#allocation1], 35
      %1146 = vst [vmem:[%s1145] ss:$4 sm:$0xff] %v1048
      %v1147 = vld.sshfl [vmem:[#allocation1] sm:$0xff pattern:$0x73625140]
      %v1148 = vld.sshfl [vmem:[#allocation1 + $0x20] sm:$0xff pattern:$0x73625140]
      %1149 = vst [vmem:[#allocation1] ss:$4 sm:$0xff] %v1049
      %1150 = vst [vmem:[%s1133] ss:$4 sm:$0xff] %v1050
      %1151 = vst [vmem:[%s1135] ss:$4 sm:$0xff] %v1051
      %1152 = vst [vmem:[%s1137] ss:$4 sm:$0xff] %v1052
      %1153 = vst [vmem:[%s1139] ss:$4 sm:$0xff] %v1053
      %1154 = vst [vmem:[%s1141] ss:$4 sm:$0xff] %v1054
      %1155 = vst [vmem:[%s1143] ss:$4 sm:$0xff] %v1055
      %1156 = vst [vmem:[%s1145] ss:$4 sm:$0xff] %v1056
      %v1157 = vld.sshfl [vmem:[#allocation1] sm:$0xff pattern:$0x73625140]
      %v1158 = vld.sshfl [vmem:[#allocation1 + $0x20] sm:$0xff pattern:$0x73625140]
      %1159 = vrot.lane.b32.xlu0 %v1147, 32
      %v1160 = vpop.permute.xlu0 %1159
      %1161 = vrot.lane.b32.xlu0 %v1148, 32
      %v1162 = vpop.permute.xlu0 %1161
      %1163 = vrot.lane.b32.xlu0 %v1157, 32
      %v1164 = vpop.permute.xlu0 %1163
      %1165 = vrot.lane.b32.xlu0 %v1158, 32
      %v1166 = vpop.permute.xlu0 %1165
      %1172 = vrot.lane.b32.xlu0 %v1125, 64
      %v1173 = vpop.permute.xlu0 %1172
      %1174 = vrot.lane.b32.xlu0 %v1127, 64
      %v1175 = vpop.permute.xlu0 %1174
      %1176 = vrot.lane.b32.xlu0 %v1129, 64
      %v1177 = vpop.permute.xlu0 %1176
      %1178 = vrot.lane.b32.xlu0 %v1131, 64
      %v1179 = vpop.permute.xlu0 %1178
      %v1184 = vsel %vm858, %v1095, %v1160
      %v1185 = vsel %vm858, %v1086, %v1162
      %v1186 = vsel %vm858, %v1088, %v1164
      %v1187 = vsel %vm858, %v1090, %v1166
      %v1188 = vsel %vm861, %v1184, %v1173
      %v1189 = vsel %vm861, %v1185, %v1175
      %v1190 = vsel %vm861, %v1186, %v1177
      %v1191 = vsel %vm861, %v1187, %v1179
      %v1192 = vpack.c.bf16 %v1189, %v1188
      %v1193 = vpack.c.bf16 %v1191, %v1190
      %v1195 = vperm.slane %v1004, 0
      %v1209 = vunpack.c.l.b16 %v992
      %v1210 = vunpack.c.l.b16 %v993
      %v1211 = vunpack.c.l.b16 %v994
      %v1212 = vunpack.c.l.b16 %v995
      %v1213 = vunpack.c.l.b16 %v996
      %v1214 = vunpack.c.l.b16 %v997
      %v1215 = vunpack.c.l.b16 %v998
      %v1216 = vunpack.c.l.b16 %v999
      %v1217 = vunpack.c.l.b16 %v1000
      %v1218 = vunpack.c.l.b16 %v1001
      %v1219 = vunpack.c.l.b16 %v1002
      %v1220 = vunpack.c.l.b16 %v1003
      %v1221 = vpack.c.b16 %v1210, %v1209
      %v1222 = vpack.c.b16 %v1212, %v1211
      %v1223 = vpack.c.b16 %v1214, %v1213
      %v1224 = vpack.c.b16 %v1216, %v1215
      %v1225 = vpack.c.b16 %v1218, %v1217
      %v1226 = vpack.c.b16 %v1220, %v1219
      %v1234 = vsel %vm864, %v1192, 0
      %v1237 = vsel %vm864, %v1193, 0
      %1239 = vmatpush.bf16.msra.mxu0 0
      %1240 = vmatpush.bf16.msra.mxu0 0
      %1241 = vmatpush.bf16.msra.mxu0 %v1226
      %1242 = vmatpush.bf16.msra.mxu0 %v1225
      %1243 = vmatpush.bf16.msra.mxu0 %v1224
      %1244 = vmatpush.bf16.msra.mxu0 %v1223
      %1245 = vmatpush.bf16.msra.mxu0 %v1222
      %1246 = vmatpush.bf16.msra.mxu0 %v1221
      %1247 = vmatmul.bf16.gmra.mxu0 %v1234
      %v1248 = vpop.f32.mrf.mxu0
      %v1249 = vadd.f32 %v1195, %v1248
      %v1250 = vpop.f32.mrf.mxu0
      %v1251 = vadd.f32 %v1195, %v1250
      %1252 = vmatmul.bf16.gmra.mxu0 %v1237
      %v1253 = vpop.f32.mrf.mxu0
      %v1254 = vadd.f32 %v1195, %v1253
      %v1255 = vpop.f32.mrf.mxu0
      %v1256 = vadd.f32 %v1195, %v1255
      %1257 = vdwg.mxu0
      %vm1258 = vcmp.gt.f32.partialorder %v1249, 0.0
      %vm1259 = vcmp.gt.f32.partialorder %v1251, 0.0
      %vm1260 = vcmp.gt.f32.partialorder %v1254, 0.0
      %vm1261 = vcmp.gt.f32.partialorder %v1256, 0.0
      %v1262 = vmul.f32 %v1249, 0.1
      %v1263 = vmul.f32 %v1251, 0.1
      %v1264 = vmul.f32 %v1254, 0.1
      %v1265 = vmul.f32 %v1256, 0.1
      %v1266 = vsel %vm1258, %v1249, %v1262
      %v1267 = vsel %vm1259, %v1251, %v1263
      %v1268 = vsel %vm1260, %v1254, %v1264
      %v1269 = vsel %vm1261, %v1256, %v1265
      %v1270 = vld [vmem:[%s742] sm:$0xff]
      %v1271 = vld [vmem:[%s742 + $0x8] sm:$0xff]
      %v1272 = vld [vmem:[%s742 + $0x10] sm:$0xff]
      %v1273 = vld [vmem:[%s742 + $0x18] sm:$0xff]
      %v1274 = vpack.c.bf16 %v1271, %v1270
      %v1275 = vpack.c.bf16 %v1273, %v1272
      %vm1276 = vcmask 31744
      %v1278 = vsel %vm1276, %v1274, 0
      %v1281 = vsel %vm1276, %v1275, 0
      %v1284 = vsel %vm793, %v1005, 0
      %1286 = vmatpush.bf16.msra.mxu0 0
      %1287 = vmatpush.bf16.msra.mxu0 0
      %1288 = vmatpush.bf16.msra.mxu0 0
      %1289 = vmatpush.bf16.msra.mxu0 0
      %1290 = vmatpush.bf16.msra.mxu0 0
      %1291 = vmatpush.bf16.msra.mxu0 0
      %1292 = vmatpush.bf16.msra.mxu0 0
      %1293 = vmatpush.bf16.msra.mxu0 %v1284
      %1294 = vmatmul.bf16.gmra.mxu0 %v1278
      %v1295 = vpop.f32.mrf.mxu0
      %v1296 = vadd.f32 0.0, %v1295
      %v1297 = vpop.f32.mrf.mxu0
      %v1298 = vadd.f32 0.0, %v1297
      %1299 = vmatmul.bf16.gmra.mxu0 %v1281
      %v1300 = vpop.f32.mrf.mxu0
      %v1301 = vadd.f32 0.0, %v1300
      %v1302 = vpop.f32.mrf.mxu0
      %v1303 = vadd.f32 0.0, %v1302
      %1304 = vdwg.mxu0
      %v1305 = vadd.f32 %v1266, %v1296
      %v1306 = vadd.f32 %v1267, %v1298
      %v1307 = vadd.f32 %v1268, %v1301
      %v1308 = vadd.f32 %v1269, %v1303
      %v1310 = vperm.slane %v1006, 0
      %v1312 = vadd.f32 %v1305, %v1310
      %v1313 = vadd.f32 %v1306, %v1310
      %v1314 = vadd.f32 %v1307, %v1310
      %v1315 = vadd.f32 %v1308, %v1310
      %vm1316 = vcmp.gt.f32.partialorder %v1312, 0.0
      %vm1317 = vcmp.gt.f32.partialorder %v1313, 0.0
      %vm1318 = vcmp.gt.f32.partialorder %v1314, 0.0
      %vm1319 = vcmp.gt.f32.partialorder %v1315, 0.0
      %v1320 = vmul.f32 %v1312, 0.1
      %v1321 = vmul.f32 %v1313, 0.1
      %v1322 = vmul.f32 %v1314, 0.1
      %v1323 = vmul.f32 %v1315, 0.1
      %v1324 = vsel %vm1316, %v1312, %v1320
      %v1325 = vsel %vm1317, %v1313, %v1321
      %v1326 = vsel %vm1318, %v1314, %v1322
      %v1327 = vsel %vm1319, %v1315, %v1323
      %v1332 = vrot.slane %v1324, 7
      %v1333 = vrot.slane %v1325, 7
      %v1334 = vsel %vm799, %v1332, %v1333
      %v1335 = vrot.slane %v1326, 7
      %v1336 = vsel %vm799, %v1333, %v1335
      %v1337 = vrot.slane %v1327, 7
      %v1338 = vsel %vm799, %v1335, %v1337
      %v1343 = vsel %vm799, 0.0, %v1332
      %v1344 = vrot.slane %v1324, 1
      %v1345 = vrot.slane %v1325, 1
      %v1346 = vsel %vm805, %v1344, %v1345
      %v1347 = vrot.slane %v1326, 1
      %v1348 = vsel %vm805, %v1345, %v1347
      %v1349 = vrot.slane %v1327, 1
      %v1350 = vsel %vm805, %v1347, %v1349
      %v1352 = vsel %vm805, %v1349, 0.0
      %1353 = vrot.lane.b32.xlu0 %v1324, 16
      %v1354 = vpop.permute.xlu0 %1353
      %1355 = vrot.lane.b32.xlu0 %v1325, 16
      %v1356 = vpop.permute.xlu0 %1355
      %1357 = vrot.lane.b32.xlu0 %v1326, 16
      %v1358 = vpop.permute.xlu0 %1357
      %1359 = vrot.lane.b32.xlu0 %v1327, 16
      %v1360 = vpop.permute.xlu0 %1359
      %1366 = vrot.lane.b32.xlu0 %v1346, 32
      %v1367 = vpop.permute.xlu0 %1366
      %1368 = vrot.lane.b32.xlu0 %v1348, 32
      %v1369 = vpop.permute.xlu0 %1368
      %1370 = vrot.lane.b32.xlu0 %v1350, 32
      %v1371 = vpop.permute.xlu0 %1370
      %1372 = vrot.lane.b32.xlu0 %v1352, 32
      %v1373 = vpop.permute.xlu0 %1372
      %vm1378 = vcmask 130048
      %v1379 = vsel %vm1378, %v1343, %v1354
      %v1380 = vsel %vm1378, %v1334, %v1356
      %v1381 = vsel %vm1378, %v1336, %v1358
      %v1382 = vsel %vm1378, %v1338, %v1360
      %v1383 = vsel %vm858, %v1379, %v1367
      %v1384 = vsel %vm858, %v1380, %v1369
      %v1385 = vsel %vm858, %v1381, %v1371
      %v1386 = vsel %vm858, %v1382, %v1373
      %v1387 = vpack.c.bf16 %v1384, %v1383
      %v1388 = vpack.c.bf16 %v1386, %v1385
      %v1390 = vperm.slane %v1013, 0
      %v1398 = vunpack.c.l.b16 %v1007
      %v1399 = vunpack.c.l.b16 %v1008
      %v1400 = vunpack.c.l.b16 %v1009
      %v1401 = vunpack.c.l.b16 %v1010
      %v1402 = vunpack.c.l.b16 %v1011
      %v1403 = vunpack.c.l.b16 %v1012
      %v1404 = vpack.c.b16 %v1399, %v1398
      %v1405 = vpack.c.b16 %v1401, %v1400
      %v1406 = vpack.c.b16 %v1403, %v1402
      %vm1410 = vcmask 392192
      %v1412 = vsel %vm1410, %v1387, 0
      %v1415 = vsel %vm1410, %v1388, 0
      %1417 = vmatpush.bf16.msra.mxu0 0
      %1418 = vmatpush.bf16.msra.mxu0 0
      %1419 = vmatpush.bf16.msra.mxu0 0
      %1420 = vmatpush.bf16.msra.mxu0 0
      %1421 = vmatpush.bf16.msra.mxu0 0
      %1422 = vmatpush.bf16.msra.mxu0 %v1406
      %1423 = vmatpush.bf16.msra.mxu0 %v1405
      %1424 = vmatpush.bf16.msra.mxu0 %v1404
      %1425 = vmatmul.bf16.gmra.mxu0 %v1412
      %v1426 = vpop.f32.mrf.mxu0
      %v1427 = vadd.f32 %v1390, %v1426
      %v1428 = vpop.f32.mrf.mxu0
      %v1429 = vadd.f32 %v1390, %v1428
      %1430 = vmatmul.bf16.gmra.mxu0 %v1415
      %v1431 = vpop.f32.mrf.mxu0
      %v1432 = vadd.f32 %v1390, %v1431
      %v1433 = vpop.f32.mrf.mxu0
      %v1434 = vadd.f32 %v1390, %v1433
      %1435 = vdwg.mxu0
      %v1436 = vrot.slane %v1324, 6
      %v1437 = vrot.slane %v1325, 6
      %v1438 = vsel %vm793, %v1436, %v1437
      %v1439 = vrot.slane %v1326, 6
      %v1440 = vsel %vm793, %v1437, %v1439
      %v1441 = vrot.slane %v1327, 6
      %v1442 = vsel %vm793, %v1439, %v1441
      %v1447 = vsel %vm793, 0.0, %v1436
      %v1448 = vrot.slane %v1324, 2
      %v1449 = vrot.slane %v1325, 2
      %v1450 = vsel %vm812, %v1448, %v1449
      %v1451 = vrot.slane %v1326, 2
      %v1452 = vsel %vm812, %v1449, %v1451
      %v1453 = vrot.slane %v1327, 2
      %v1454 = vsel %vm812, %v1451, %v1453
      %v1456 = vsel %vm812, %v1453, 0.0
      %1458 = vrot.lane.b32.xlu0 %v1343, 16
      %v1459 = vpop.permute.xlu0 %1458
      %1460 = vrot.lane.b32.xlu0 %v1334, 16
      %v1461 = vpop.permute.xlu0 %1460
      %1462 = vrot.lane.b32.xlu0 %v1336, 16
      %v1463 = vpop.permute.xlu0 %1462
      %1464 = vrot.lane.b32.xlu0 %v1338, 16
      %v1465 = vpop.permute.xlu0 %1464
      %1470 = vrot.lane.b32.xlu0 %v1324, 32
      %v1471 = vpop.permute.xlu0 %1470
      %1472 = vrot.lane.b32.xlu0 %v1325, 32
      %v1473 = vpop.permute.xlu0 %1472
      %1474 = vrot.lane.b32.xlu0 %v1326, 32
      %v1475 = vpop.permute.xlu0 %1474
      %1476 = vrot.lane.b32.xlu0 %v1327, 32
      %v1477 = vpop.permute.xlu0 %1476
      %1482 = vrot.lane.b32.xlu0 %v1346, 48
      %v1483 = vpop.permute.xlu0 %1482
      %1484 = vrot.lane.b32.xlu0 %v1348, 48
      %v1485 = vpop.permute.xlu0 %1484
      %1486 = vrot.lane.b32.xlu0 %v1350, 48
      %v1487 = vpop.permute.xlu0 %1486
      %1488 = vrot.lane.b32.xlu0 %v1352, 48
      %v1489 = vpop.permute.xlu0 %1488
      %1495 = vrot.lane.b32.xlu0 %v1450, 64
      %v1496 = vpop.permute.xlu0 %1495
      %1497 = vrot.lane.b32.xlu0 %v1452, 64
      %v1498 = vpop.permute.xlu0 %1497
      %1499 = vrot.lane.b32.xlu0 %v1454, 64
      %v1500 = vpop.permute.xlu0 %1499
      %1501 = vrot.lane.b32.xlu0 %v1456, 64
      %v1502 = vpop.permute.xlu0 %1501
      %v1507 = vsel %vm1378, %v1447, %v1459
      %v1508 = vsel %vm1378, %v1438, %v1461
      %v1509 = vsel %vm1378, %v1440, %v1463
      %v1510 = vsel %vm1378, %v1442, %v1465
      %v1511 = vsel %vm858, %v1507, %v1471
      %v1512 = vsel %vm858, %v1508, %v1473
      %v1513 = vsel %vm858, %v1509, %v1475
      %v1514 = vsel %vm858, %v1510, %v1477
      %v1515 = vsel %vm1410, %v1511, %v1483
      %v1516 = vsel %vm1410, %v1512, %v1485
      %v1517 = vsel %vm1410, %v1513, %v1487
      %v1518 = vsel %vm1410, %v1514, %v1489
      %v1519 = vsel %vm861, %v1515, %v1496
      %v1520 = vsel %vm861, %v1516, %v1498
      %v1521 = vsel %vm861, %v1517, %v1500
      %v1522 = vsel %vm861, %v1518, %v1502
      %v1523 = vpack.c.bf16 %v1520, %v1519
      %v1524 = vpack.c.bf16 %v1522, %v1521
      %v1526 = vperm.slane %v1024, 0
      %v1538 = vunpack.c.l.b16 %v1014
      %v1539 = vunpack.c.l.b16 %v1015
      %v1540 = vunpack.c.l.b16 %v1016
      %v1541 = vunpack.c.l.b16 %v1017
      %v1542 = vunpack.c.l.b16 %v1018
      %v1543 = vunpack.c.l.b16 %v1019
      %v1544 = vunpack.c.l.b16 %v1020
      %v1545 = vunpack.c.l.b16 %v1021
      %v1546 = vunpack.c.l.b16 %v1022
      %v1547 = vunpack.c.l.b16 %v1023
      %v1548 = vpack.c.b16 %v1539, %v1538
      %v1549 = vpack.c.b16 %v1541, %v1540
      %v1550 = vpack.c.b16 %v1543, %v1542
      %v1551 = vpack.c.b16 %v1545, %v1544
      %v1552 = vpack.c.b16 %v1547, %v1546
      %vm1558 = vcmask 654336
      %v1560 = vsel %vm1558, %v1523, 0
      %v1563 = vsel %vm1558, %v1524, 0
      %1565 = vmatpush.bf16.msra.mxu0 0
      %1566 = vmatpush.bf16.msra.mxu0 0
      %1567 = vmatpush.bf16.msra.mxu0 0
      %1568 = vmatpush.bf16.msra.mxu0 %v1552
      %1569 = vmatpush.bf16.msra.mxu0 %v1551
      %1570 = vmatpush.bf16.msra.mxu0 %v1550
      %1571 = vmatpush.bf16.msra.mxu0 %v1549
      %1572 = vmatpush.bf16.msra.mxu0 %v1548
      %1573 = vmatmul.bf16.gmra.mxu0 %v1560
      %v1574 = vpop.f32.mrf.mxu0
      %v1575 = vadd.f32 %v1526, %v1574
      %v1576 = vpop.f32.mrf.mxu0
      %v1577 = vadd.f32 %v1526, %v1576
      %1578 = vmatmul.bf16.gmra.mxu0 %v1563
      %v1579 = vpop.f32.mrf.mxu0
      %v1580 = vadd.f32 %v1526, %v1579
      %v1581 = vpop.f32.mrf.mxu0
      %v1582 = vadd.f32 %v1526, %v1581
      %1583 = vdwg.mxu0
      %v1584 = vadd.f32 %v1427, %v1575
      %v1585 = vadd.f32 %v1429, %v1577
      %v1586 = vadd.f32 %v1432, %v1580
      %v1587 = vadd.f32 %v1434, %v1582
      %v1588 = vmul.f32 %v1584, 0.5
      %v1589 = vmul.f32 %v1585, 0.5
      %v1590 = vmul.f32 %v1586, 0.5
      %v1591 = vmul.f32 %v1587, 0.5
      %v1592 = vadd.f32 %v1312, %v1588
      %v1593 = vadd.f32 %v1313, %v1589
      %v1594 = vadd.f32 %v1314, %v1590
      %v1595 = vadd.f32 %v1315, %v1591
      %v1596 = vld [vmem:[%s13] sm:$0xf]
      %v1597 = vld [vmem:[%s13 + $0x4] sm:$0xf]
      %v1598 = vld [vmem:[%s13 + $0x8] sm:$0xf]
      %v1599 = vld [vmem:[%s13 + $0xc] sm:$0xf]
      %v1600 = vld [vmem:[%s13 + $0x10] sm:$0xf]
      %v1601 = vld [vmem:[%s13 + $0x14] sm:$0xf]
      %v1602 = vld [vmem:[%s14] sm:$0x1]
      %v1603 = vld [vmem:[%s15] sm:$0x1]
      %v1604 = vld [vmem:[%s16] sm:$0x1]
      %v1605 = vld [vmem:[%s17] sm:$0xf]
      %v1606 = vld [vmem:[%s17 + $0x4] sm:$0xf]
      %v1607 = vld [vmem:[%s17 + $0x8] sm:$0xf]
      %v1608 = vld [vmem:[%s18] sm:$0x1]
      %v1609 = vld [vmem:[%s19] sm:$0xf]
      %v1610 = vld [vmem:[%s19 + $0x4] sm:$0xf]
      %v1611 = vld [vmem:[%s19 + $0x8] sm:$0xf]
      %v1612 = vld [vmem:[%s19 + $0xc] sm:$0xf]
      %v1613 = vld [vmem:[%s19 + $0x10] sm:$0xf]
      %v1614 = vld [vmem:[%s20] sm:$0x1]
      %v1619 = vrot.slane %v1592, 1
      %v1620 = vrot.slane %v1592, 2
      %v1621 = vrot.slane %v1592, 3
      %v1622 = vrot.slane %v1592, 4
      %v1623 = vrot.slane %v1592, 5
      %v1624 = vrot.slane %v1592, 6
      %v1625 = vrot.slane %v1592, 7
      %v1626 = vrot.slane %v1593, 1
      %v1627 = vrot.slane %v1593, 2
      %v1628 = vrot.slane %v1593, 3
      %v1629 = vrot.slane %v1593, 4
      %v1630 = vrot.slane %v1593, 5
      %v1631 = vrot.slane %v1593, 6
      %v1632 = vrot.slane %v1593, 7
      %v1633 = vrot.slane %v1594, 1
      %v1634 = vrot.slane %v1594, 2
      %v1635 = vrot.slane %v1594, 3
      %v1636 = vrot.slane %v1594, 4
      %v1637 = vrot.slane %v1594, 5
      %v1638 = vrot.slane %v1594, 6
      %v1639 = vrot.slane %v1594, 7
      %v1640 = vrot.slane %v1595, 1
      %v1641 = vrot.slane %v1595, 2
      %v1642 = vrot.slane %v1595, 3
      %v1643 = vrot.slane %v1595, 4
      %v1644 = vrot.slane %v1595, 5
      %v1645 = vrot.slane %v1595, 6
      %v1646 = vrot.slane %v1595, 7
      %v1647 = vperm.slane %v1592, 0
      %v1648 = vperm.slane %v1619, 0
      %v1649 = vperm.slane %v1620, 0
      %v1650 = vperm.slane %v1621, 0
      %v1651 = vperm.slane %v1622, 0
      %v1652 = vperm.slane %v1623, 0
      %v1653 = vperm.slane %v1624, 0
      %v1654 = vperm.slane %v1625, 0
      %v1655 = vperm.slane %v1593, 0
      %v1656 = vperm.slane %v1626, 0
      %v1657 = vperm.slane %v1627, 0
      %v1658 = vperm.slane %v1628, 0
      %v1659 = vperm.slane %v1629, 0
      %v1660 = vperm.slane %v1630, 0
      %v1661 = vperm.slane %v1631, 0
      %v1662 = vperm.slane %v1632, 0
      %v1663 = vperm.slane %v1594, 0
      %v1664 = vperm.slane %v1633, 0
      %v1665 = vperm.slane %v1634, 0
      %v1666 = vperm.slane %v1635, 0
      %v1667 = vperm.slane %v1636, 0
      %v1668 = vperm.slane %v1637, 0
      %v1669 = vperm.slane %v1638, 0
      %v1670 = vperm.slane %v1639, 0
      %v1671 = vperm.slane %v1595, 0
      %v1672 = vperm.slane %v1640, 0
      %v1673 = vperm.slane %v1641, 0
      %v1674 = vperm.slane %v1642, 0
      %v1675 = vperm.slane %v1643, 0
      %v1676 = vperm.slane %v1644, 0
      %v1677 = vperm.slane %v1645, 0
      %v1678 = vperm.slane %v1646, 0
      %1679 = vst [vmem:[#allocation1] ss:$4 sm:$0xff] %v1647
      %s1680 = scalar_lea.vmem [#allocation1], 1
      %1681 = vst [vmem:[%s1680] ss:$4 sm:$0xff] %v1648
      %s1682 = scalar_lea.vmem [#allocation1], 2
      %1683 = vst [vmem:[%s1682] ss:$4 sm:$0xff] %v1649
      %s1684 = scalar_lea.vmem [#allocation1], 3
      %1685 = vst [vmem:[%s1684] ss:$4 sm:$0xff] %v1650
      %s1686 = scalar_lea.vmem [#allocation1], 32
      %1687 = vst [vmem:[%s1686] ss:$4 sm:$0xff] %v1651
      %s1688 = scalar_lea.vmem [#allocation1], 33
      %1689 = vst [vmem:[%s1688] ss:$4 sm:$0xff] %v1652
      %s1690 = scalar_lea.vmem [#allocation1], 34
      %1691 = vst [vmem:[%s1690] ss:$4 sm:$0xff] %v1653
      %s1692 = scalar_lea.vmem [#allocation1], 35
      %1693 = vst [vmem:[%s1692] ss:$4 sm:$0xff] %v1654
      %v1694 = vld.sshfl [vmem:[#allocation1] sm:$0xff pattern:$0x73625140]
      %v1695 = vld.sshfl [vmem:[#allocation1 + $0x20] sm:$0xff pattern:$0x73625140]
      %1696 = vst [vmem:[#allocation1] ss:$4 sm:$0xff] %v1655
      %1697 = vst [vmem:[%s1680] ss:$4 sm:$0xff] %v1656
      %1698 = vst [vmem:[%s1682] ss:$4 sm:$0xff] %v1657
      %1699 = vst [vmem:[%s1684] ss:$4 sm:$0xff] %v1658
      %1700 = vst [vmem:[%s1686] ss:$4 sm:$0xff] %v1659
      %1701 = vst [vmem:[%s1688] ss:$4 sm:$0xff] %v1660
      %1702 = vst [vmem:[%s1690] ss:$4 sm:$0xff] %v1661
      %1703 = vst [vmem:[%s1692] ss:$4 sm:$0xff] %v1662
      %v1704 = vld.sshfl [vmem:[#allocation1] sm:$0xff pattern:$0x73625140]
      %v1705 = vld.sshfl [vmem:[#allocation1 + $0x20] sm:$0xff pattern:$0x73625140]
      %1706 = vst [vmem:[#allocation1] ss:$4 sm:$0xff] %v1663
      %1707 = vst [vmem:[%s1680] ss:$4 sm:$0xff] %v1664
      %1708 = vst [vmem:[%s1682] ss:$4 sm:$0xff] %v1665
      %1709 = vst [vmem:[%s1684] ss:$4 sm:$0xff] %v1666
      %1710 = vst [vmem:[%s1686] ss:$4 sm:$0xff] %v1667
      %1711 = vst [vmem:[%s1688] ss:$4 sm:$0xff] %v1668
      %1712 = vst [vmem:[%s1690] ss:$4 sm:$0xff] %v1669
      %1713 = vst [vmem:[%s1692] ss:$4 sm:$0xff] %v1670
      %v1714 = vld.sshfl [vmem:[#allocation1] sm:$0xff pattern:$0x73625140]
      %v1715 = vld.sshfl [vmem:[#allocation1 + $0x20] sm:$0xff pattern:$0x73625140]
      %1716 = vst [vmem:[#allocation1] ss:$4 sm:$0xff] %v1671
      %1717 = vst [vmem:[%s1680] ss:$4 sm:$0xff] %v1672
      %1718 = vst [vmem:[%s1682] ss:$4 sm:$0xff] %v1673
      %1719 = vst [vmem:[%s1684] ss:$4 sm:$0xff] %v1674
      %1720 = vst [vmem:[%s1686] ss:$4 sm:$0xff] %v1675
      %1721 = vst [vmem:[%s1688] ss:$4 sm:$0xff] %v1676
      %1722 = vst [vmem:[%s1690] ss:$4 sm:$0xff] %v1677
      %1723 = vst [vmem:[%s1692] ss:$4 sm:$0xff] %v1678
      %v1724 = vld.sshfl [vmem:[#allocation1] sm:$0xff pattern:$0x73625140]
      %v1725 = vld.sshfl [vmem:[#allocation1 + $0x20] sm:$0xff pattern:$0x73625140]
      %v1726 = vrot.slane %v1694, 7
      %v1727 = vrot.slane %v1695, 7
      %v1728 = vsel %vm799, %v1726, %v1727
      %v1729 = vrot.slane %v1704, 7
      %v1730 = vsel %vm799, %v1727, %v1729
      %v1731 = vrot.slane %v1705, 7
      %v1732 = vsel %vm799, %v1729, %v1731
      %v1733 = vrot.slane %v1714, 7
      %v1734 = vsel %vm799, %v1731, %v1733
      %v1735 = vrot.slane %v1715, 7
      %v1736 = vsel %vm799, %v1733, %v1735
      %v1737 = vrot.slane %v1724, 7
      %v1738 = vsel %vm799, %v1735, %v1737
      %v1739 = vrot.slane %v1725, 7
      %v1740 = vsel %vm799, %v1737, %v1739
      %v1749 = vsel %vm799, 0.0, %v1726
      %1750 = vst [vmem:[#allocation1] ss:$4 sm:$0xff] %v1647
      %s1751 = scalar_lea.vmem [#allocation1], 1
      %1752 = vst [vmem:[%s1751] ss:$4 sm:$0xff] %v1648
      %s1753 = scalar_lea.vmem [#allocation1], 2
      %1754 = vst [vmem:[%s1753] ss:$4 sm:$0xff] %v1649
      %s1755 = scalar_lea.vmem [#allocation1], 3
      %1756 = vst [vmem:[%s1755] ss:$4 sm:$0xff] %v1650
      %s1757 = scalar_lea.vmem [#allocation1], 32
      %1758 = vst [vmem:[%s1757] ss:$4 sm:$0xff] %v1651
      %s1759 = scalar_lea.vmem [#allocation1], 33
      %1760 = vst [vmem:[%s1759] ss:$4 sm:$0xff] %v1652
      %s1761 = scalar_lea.vmem [#allocation1], 34
      %1762 = vst [vmem:[%s1761] ss:$4 sm:$0xff] %v1653
      %s1763 = scalar_lea.vmem [#allocation1], 35
      %1764 = vst [vmem:[%s1763] ss:$4 sm:$0xff] %v1654
      %v1765 = vld.sshfl [vmem:[#allocation1] sm:$0xff pattern:$0x73625140]
      %v1766 = vld.sshfl [vmem:[#allocation1 + $0x20] sm:$0xff pattern:$0x73625140]
      %1767 = vst [vmem:[#allocation1] ss:$4 sm:$0xff] %v1655
      %1768 = vst [vmem:[%s1751] ss:$4 sm:$0xff] %v1656
      %1769 = vst [vmem:[%s1753] ss:$4 sm:$0xff] %v1657
      %1770 = vst [vmem:[%s1755] ss:$4 sm:$0xff] %v1658
      %1771 = vst [vmem:[%s1757] ss:$4 sm:$0xff] %v1659
      %1772 = vst [vmem:[%s1759] ss:$4 sm:$0xff] %v1660
      %1773 = vst [vmem:[%s1761] ss:$4 sm:$0xff] %v1661
      %1774 = vst [vmem:[%s1763] ss:$4 sm:$0xff] %v1662
      %v1775 = vld.sshfl [vmem:[#allocation1] sm:$0xff pattern:$0x73625140]
      %v1776 = vld.sshfl [vmem:[#allocation1 + $0x20] sm:$0xff pattern:$0x73625140]
      %1777 = vst [vmem:[#allocation1] ss:$4 sm:$0xff] %v1663
      %1778 = vst [vmem:[%s1751] ss:$4 sm:$0xff] %v1664
      %1779 = vst [vmem:[%s1753] ss:$4 sm:$0xff] %v1665
      %1780 = vst [vmem:[%s1755] ss:$4 sm:$0xff] %v1666
      %1781 = vst [vmem:[%s1757] ss:$4 sm:$0xff] %v1667
      %1782 = vst [vmem:[%s1759] ss:$4 sm:$0xff] %v1668
      %1783 = vst [vmem:[%s1761] ss:$4 sm:$0xff] %v1669
      %1784 = vst [vmem:[%s1763] ss:$4 sm:$0xff] %v1670
      %v1785 = vld.sshfl [vmem:[#allocation1] sm:$0xff pattern:$0x73625140]
      %v1786 = vld.sshfl [vmem:[#allocation1 + $0x20] sm:$0xff pattern:$0x73625140]
      %1787 = vst [vmem:[#allocation1] ss:$4 sm:$0xff] %v1671
      %1788 = vst [vmem:[%s1751] ss:$4 sm:$0xff] %v1672
      %1789 = vst [vmem:[%s1753] ss:$4 sm:$0xff] %v1673
      %1790 = vst [vmem:[%s1755] ss:$4 sm:$0xff] %v1674
      %1791 = vst [vmem:[%s1757] ss:$4 sm:$0xff] %v1675
      %1792 = vst [vmem:[%s1759] ss:$4 sm:$0xff] %v1676
      %1793 = vst [vmem:[%s1761] ss:$4 sm:$0xff] %v1677
      %1794 = vst [vmem:[%s1763] ss:$4 sm:$0xff] %v1678
      %v1795 = vld.sshfl [vmem:[#allocation1] sm:$0xff pattern:$0x73625140]
      %v1796 = vld.sshfl [vmem:[#allocation1 + $0x20] sm:$0xff pattern:$0x73625140]
      %v1797 = vrot.slane %v1765, 1
      %v1798 = vrot.slane %v1766, 1
      %v1799 = vsel %vm805, %v1797, %v1798
      %v1800 = vrot.slane %v1775, 1
      %v1801 = vsel %vm805, %v1798, %v1800
      %v1802 = vrot.slane %v1776, 1
      %v1803 = vsel %vm805, %v1800, %v1802
      %v1804 = vrot.slane %v1785, 1
      %v1805 = vsel %vm805, %v1802, %v1804
      %v1806 = vrot.slane %v1786, 1
      %v1807 = vsel %vm805, %v1804, %v1806
      %v1808 = vrot.slane %v1795, 1
      %v1809 = vsel %vm805, %v1806, %v1808
      %v1810 = vrot.slane %v1796, 1
      %v1811 = vsel %vm805, %v1808, %v1810
      %v1813 = vsel %vm805, %v1810, 0.0
      %1814 = vst [vmem:[#allocation1] ss:$4 sm:$0xff] %v1647
      %s1815 = scalar_lea.vmem [#allocation1], 1
      %1816 = vst [vmem:[%s1815] ss:$4 sm:$0xff] %v1648
      %s1817 = scalar_lea.vmem [#allocation1], 2
      %1818 = vst [vmem:[%s1817] ss:$4 sm:$0xff] %v1649
      %s1819 = scalar_lea.vmem [#allocation1], 3
      %1820 = vst [vmem:[%s1819] ss:$4 sm:$0xff] %v1650
      %s1821 = scalar_lea.vmem [#allocation1], 32
      %1822 = vst [vmem:[%s1821] ss:$4 sm:$0xff] %v1651
      %s1823 = scalar_lea.vmem [#allocation1], 33
      %1824 = vst [vmem:[%s1823] ss:$4 sm:$0xff] %v1652
      %s1825 = scalar_lea.vmem [#allocation1], 34
      %1826 = vst [vmem:[%s1825] ss:$4 sm:$0xff] %v1653
      %s1827 = scalar_lea.vmem [#allocation1], 35
      %1828 = vst [vmem:[%s1827] ss:$4 sm:$0xff] %v1654
      %v1829 = vld.sshfl [vmem:[#allocation1] sm:$0xff pattern:$0x73625140]
      %v1830 = vld.sshfl [vmem:[#allocation1 + $0x20] sm:$0xff pattern:$0x73625140]
      %1831 = vst [vmem:[#allocation1] ss:$4 sm:$0xff] %v1655
      %1832 = vst [vmem:[%s1815] ss:$4 sm:$0xff] %v1656
      %1833 = vst [vmem:[%s1817] ss:$4 sm:$0xff] %v1657
      %1834 = vst [vmem:[%s1819] ss:$4 sm:$0xff] %v1658
      %1835 = vst [vmem:[%s1821] ss:$4 sm:$0xff] %v1659
      %1836 = vst [vmem:[%s1823] ss:$4 sm:$0xff] %v1660
      %1837 = vst [vmem:[%s1825] ss:$4 sm:$0xff] %v1661
      %1838 = vst [vmem:[%s1827] ss:$4 sm:$0xff] %v1662
      %v1839 = vld.sshfl [vmem:[#allocation1] sm:$0xff pattern:$0x73625140]
      %v1840 = vld.sshfl [vmem:[#allocation1 + $0x20] sm:$0xff pattern:$0x73625140]
      %1841 = vst [vmem:[#allocation1] ss:$4 sm:$0xff] %v1663
      %1842 = vst [vmem:[%s1815] ss:$4 sm:$0xff] %v1664
      %1843 = vst [vmem:[%s1817] ss:$4 sm:$0xff] %v1665
      %1844 = vst [vmem:[%s1819] ss:$4 sm:$0xff] %v1666
      %1845 = vst [vmem:[%s1821] ss:$4 sm:$0xff] %v1667
      %1846 = vst [vmem:[%s1823] ss:$4 sm:$0xff] %v1668
      %1847 = vst [vmem:[%s1825] ss:$4 sm:$0xff] %v1669
      %1848 = vst [vmem:[%s1827] ss:$4 sm:$0xff] %v1670
      %v1849 = vld.sshfl [vmem:[#allocation1] sm:$0xff pattern:$0x73625140]
      %v1850 = vld.sshfl [vmem:[#allocation1 + $0x20] sm:$0xff pattern:$0x73625140]
      %1851 = vst [vmem:[#allocation1] ss:$4 sm:$0xff] %v1671
      %1852 = vst [vmem:[%s1815] ss:$4 sm:$0xff] %v1672
      %1853 = vst [vmem:[%s1817] ss:$4 sm:$0xff] %v1673
      %1854 = vst [vmem:[%s1819] ss:$4 sm:$0xff] %v1674
      %1855 = vst [vmem:[%s1821] ss:$4 sm:$0xff] %v1675
      %1856 = vst [vmem:[%s1823] ss:$4 sm:$0xff] %v1676
      %1857 = vst [vmem:[%s1825] ss:$4 sm:$0xff] %v1677
      %1858 = vst [vmem:[%s1827] ss:$4 sm:$0xff] %v1678
      %v1859 = vld.sshfl [vmem:[#allocation1] sm:$0xff pattern:$0x73625140]
      %v1860 = vld.sshfl [vmem:[#allocation1 + $0x20] sm:$0xff pattern:$0x73625140]
      %1861 = vrot.lane.b32.xlu0 %v1829, 16
      %v1862 = vpop.permute.xlu0 %1861
      %1863 = vrot.lane.b32.xlu0 %v1830, 16
      %v1864 = vpop.permute.xlu0 %1863
      %1865 = vrot.lane.b32.xlu0 %v1839, 16
      %v1866 = vpop.permute.xlu0 %1865
      %1867 = vrot.lane.b32.xlu0 %v1840, 16
      %v1868 = vpop.permute.xlu0 %1867
      %1869 = vrot.lane.b32.xlu0 %v1849, 16
      %v1870 = vpop.permute.xlu0 %1869
      %1871 = vrot.lane.b32.xlu0 %v1850, 16
      %v1872 = vpop.permute.xlu0 %1871
      %1873 = vrot.lane.b32.xlu0 %v1859, 16
      %v1874 = vpop.permute.xlu0 %1873
      %1875 = vrot.lane.b32.xlu0 %v1860, 16
      %v1876 = vpop.permute.xlu0 %1875
      %1886 = vrot.lane.b32.xlu0 %v1799, 32
      %v1887 = vpop.permute.xlu0 %1886
      %1888 = vrot.lane.b32.xlu0 %v1801, 32
      %v1889 = vpop.permute.xlu0 %1888
      %1890 = vrot.lane.b32.xlu0 %v1803, 32
      %v1891 = vpop.permute.xlu0 %1890
      %1892 = vrot.lane.b32.xlu0 %v1805, 32
      %v1893 = vpop.permute.xlu0 %1892
      %1894 = vrot.lane.b32.xlu0 %v1807, 32
      %v1895 = vpop.permute.xlu0 %1894
      %1896 = vrot.lane.b32.xlu0 %v1809, 32
      %v1897 = vpop.permute.xlu0 %1896
      %1898 = vrot.lane.b32.xlu0 %v1811, 32
      %v1899 = vpop.permute.xlu0 %1898
      %1900 = vrot.lane.b32.xlu0 %v1813, 32
      %v1901 = vpop.permute.xlu0 %1900
      %v1910 = vsel %vm1378, %v1749, %v1862
      %v1911 = vsel %vm1378, %v1728, %v1864
      %v1912 = vsel %vm1378, %v1730, %v1866
      %v1913 = vsel %vm1378, %v1732, %v1868
      %v1914 = vsel %vm1378, %v1734, %v1870
      %v1915 = vsel %vm1378, %v1736, %v1872
      %v1916 = vsel %vm1378, %v1738, %v1874
      %v1917 = vsel %vm1378, %v1740, %v1876
      %v1918 = vsel %vm858, %v1910, %v1887
      %v1919 = vsel %vm858, %v1911, %v1889
      %v1920 = vsel %vm858, %v1912, %v1891
      %v1921 = vsel %vm858, %v1913, %v1893
      %v1922 = vsel %vm858, %v1914, %v1895
      %v1923 = vsel %vm858, %v1915, %v1897
      %v1924 = vsel %vm858, %v1916, %v1899
      %v1925 = vsel %vm858, %v1917, %v1901
      %v1926 = vpack.c.bf16 %v1919, %v1918
      %v1927 = vpack.c.bf16 %v1921, %v1920
      %v1928 = vpack.c.bf16 %v1923, %v1922
      %v1929 = vpack.c.bf16 %v1925, %v1924
      %v1931 = vperm.slane %v1602, 0
      %v1939 = vunpack.c.l.b16 %v1596
      %v1940 = vunpack.c.l.b16 %v1597
      %v1941 = vunpack.c.l.b16 %v1598
      %v1942 = vunpack.c.l.b16 %v1599
      %v1943 = vunpack.c.l.b16 %v1600
      %v1944 = vunpack.c.l.b16 %v1601
      %v1945 = vpack.c.b16 %v1940, %v1939
      %v1946 = vpack.c.b16 %v1942, %v1941
      %v1947 = vpack.c.b16 %v1944, %v1943
      %v1952 = vsel %vm1410, %v1926, 0
      %v1955 = vsel %vm1410, %v1927, 0
      %v1958 = vsel %vm1410, %v1928, 0
      %v1961 = vsel %vm1410, %v1929, 0
      %1963 = vmatpush.bf16.msra.mxu0 0
      %1964 = vmatpush.bf16.msra.mxu0 0
      %1965 = vmatpush.bf16.msra.mxu0 0
      %1966 = vmatpush.bf16.msra.mxu0 0
      %1967 = vmatpush.bf16.msra.mxu0 0
      %1968 = vmatpush.bf16.msra.mxu0 %v1947
      %1969 = vmatpush.bf16.msra.mxu0 %v1946
      %1970 = vmatpush.bf16.msra.mxu0 %v1945
      %1971 = vmatmul.bf16.gmra.mxu0 %v1952
      %v1972 = vpop.f32.mrf.mxu0
      %v1973 = vadd.f32 %v1931, %v1972
      %v1974 = vpop.f32.mrf.mxu0
      %v1975 = vadd.f32 %v1931, %v1974
      %1976 = vmatmul.bf16.gmra.mxu0 %v1955
      %v1977 = vpop.f32.mrf.mxu0
      %v1978 = vadd.f32 %v1931, %v1977
      %v1979 = vpop.f32.mrf.mxu0
      %v1980 = vadd.f32 %v1931, %v1979
      %1981 = vmatmul.bf16.gmra.mxu0 %v1958
      %v1982 = vpop.f32.mrf.mxu0
      %v1983 = vadd.f32 %v1931, %v1982
      %v1984 = vpop.f32.mrf.mxu0
      %v1985 = vadd.f32 %v1931, %v1984
      %1986 = vmatmul.bf16.gmra.mxu0 %v1961
      %v1987 = vpop.f32.mrf.mxu0
      %v1988 = vadd.f32 %v1931, %v1987
      %v1989 = vpop.f32.mrf.mxu0
      %v1990 = vadd.f32 %v1931, %v1989
      %1991 = vdwg.mxu0
      %vm1992 = vcmp.gt.f32.partialorder %v1973, 0.0
      %vm1993 = vcmp.gt.f32.partialorder %v1975, 0.0
      %vm1994 = vcmp.gt.f32.partialorder %v1978, 0.0
      %vm1995 = vcmp.gt.f32.partialorder %v1980, 0.0
      %vm1996 = vcmp.gt.f32.partialorder %v1983, 0.0
      %vm1997 = vcmp.gt.f32.partialorder %v1985, 0.0
      %vm1998 = vcmp.gt.f32.partialorder %v1988, 0.0
      %vm1999 = vcmp.gt.f32.partialorder %v1990, 0.0
      %v2000 = vmul.f32 %v1973, 0.1
      %v2001 = vmul.f32 %v1975, 0.1
      %v2002 = vmul.f32 %v1978, 0.1
      %v2003 = vmul.f32 %v1980, 0.1
      %v2004 = vmul.f32 %v1983, 0.1
      %v2005 = vmul.f32 %v1985, 0.1
      %v2006 = vmul.f32 %v1988, 0.1
      %v2007 = vmul.f32 %v1990, 0.1
      %v2008 = vsel %vm1992, %v1973, %v2000
      %v2009 = vsel %vm1993, %v1975, %v2001
      %v2010 = vsel %vm1994, %v1978, %v2002
      %v2011 = vsel %vm1995, %v1980, %v2003
      %v2012 = vsel %vm1996, %v1983, %v2004
      %v2013 = vsel %vm1997, %v1985, %v2005
      %v2014 = vsel %vm1998, %v1988, %v2006
      %v2015 = vsel %vm1999, %v1990, %v2007
      %v2016 = vld [vmem:[%s747] sm:$0xff]
      %v2017 = vld [vmem:[%s747 + $0x8] sm:$0xff]
      %v2018 = vld [vmem:[%s747 + $0x10] sm:$0xff]
      %v2019 = vld [vmem:[%s747 + $0x18] sm:$0xff]
      %v2020 = vld [vmem:[%s747 + $0x20] sm:$0xff]
      %v2021 = vld [vmem:[%s747 + $0x28] sm:$0xff]
      %v2022 = vld [vmem:[%s747 + $0x30] sm:$0xff]
      %v2023 = vld [vmem:[%s747 + $0x38] sm:$0xff]
      %v2024 = vpack.c.bf16 %v2017, %v2016
      %v2025 = vpack.c.bf16 %v2019, %v2018
      %v2026 = vpack.c.bf16 %v2021, %v2020
      %v2027 = vpack.c.bf16 %v2023, %v2022
      %vm2028 = vcmask 7168
      %v2030 = vsel %vm2028, %v2024, 0
      %v2033 = vsel %vm2028, %v2025, 0
      %v2036 = vsel %vm2028, %v2026, 0
      %v2039 = vsel %vm2028, %v2027, 0
      %v2041 = vsel 0, 4294967295, 65535
      %v2042 = vsel %vm799, %v2041, 0
      %v2044 = vand.u32 %v1603, %v2042
      %2046 = vmatpush.bf16.msra.mxu0 0
      %2047 = vmatpush.bf16.msra.mxu0 0
      %2048 = vmatpush.bf16.msra.mxu0 0
      %2049 = vmatpush.bf16.msra.mxu0 0
      %2050 = vmatpush.bf16.msra.mxu0 0
      %2051 = vmatpush.bf16.msra.mxu0 0
      %2052 = vmatpush.bf16.msra.mxu0 0
      %2053 = vmatpush.bf16.msra.mxu0 %v2044
      %2054 = vmatmul.bf16.gmra.mxu0 %v2030
      %v2055 = vpop.f32.mrf.mxu0
      %v2056 = vadd.f32 0.0, %v2055
      %v2057 = vpop.f32.mrf.mxu0
      %v2058 = vadd.f32 0.0, %v2057
      %2059 = vmatmul.bf16.gmra.mxu0 %v2033
      %v2060 = vpop.f32.mrf.mxu0
      %v2061 = vadd.f32 0.0, %v2060
      %v2062 = vpop.f32.mrf.mxu0
      %v2063 = vadd.f32 0.0, %v2062
      %2064 = vmatmul.bf16.gmra.mxu0 %v2036
      %v2065 = vpop.f32.mrf.mxu0
      %v2066 = vadd.f32 0.0, %v2065
      %v2067 = vpop.f32.mrf.mxu0
      %v2068 = vadd.f32 0.0, %v2067
      %2069 = vmatmul.bf16.gmra.mxu0 %v2039
      %v2070 = vpop.f32.mrf.mxu0
      %v2071 = vadd.f32 0.0, %v2070
      %v2072 = vpop.f32.mrf.mxu0
      %v2073 = vadd.f32 0.0, %v2072
      %2074 = vdwg.mxu0
      %v2075 = vadd.f32 %v2008, %v2056
      %v2076 = vadd.f32 %v2009, %v2058
      %v2077 = vadd.f32 %v2010, %v2061
      %v2078 = vadd.f32 %v2011, %v2063
      %v2079 = vadd.f32 %v2012, %v2066
      %v2080 = vadd.f32 %v2013, %v2068
      %v2081 = vadd.f32 %v2014, %v2071
      %v2082 = vadd.f32 %v2015, %v2073
      %v2084 = vperm.slane %v1604, 0
      %v2086 = vadd.f32 %v2075, %v2084
      %v2087 = vadd.f32 %v2076, %v2084
      %v2088 = vadd.f32 %v2077, %v2084
      %v2089 = vadd.f32 %v2078, %v2084
      %v2090 = vadd.f32 %v2079, %v2084
      %v2091 = vadd.f32 %v2080, %v2084
      %v2092 = vadd.f32 %v2081, %v2084
      %v2093 = vadd.f32 %v2082, %v2084
      %vm2094 = vcmp.gt.f32.partialorder %v2086, 0.0
      %vm2095 = vcmp.gt.f32.partialorder %v2087, 0.0
      %vm2096 = vcmp.gt.f32.partialorder %v2088, 0.0
      %vm2097 = vcmp.gt.f32.partialorder %v2089, 0.0
      %vm2098 = vcmp.gt.f32.partialorder %v2090, 0.0
      %vm2099 = vcmp.gt.f32.partialorder %v2091, 0.0
      %vm2100 = vcmp.gt.f32.partialorder %v2092, 0.0
      %vm2101 = vcmp.gt.f32.partialorder %v2093, 0.0
      %v2102 = vmul.f32 %v2086, 0.1
      %v2103 = vmul.f32 %v2087, 0.1
      %v2104 = vmul.f32 %v2088, 0.1
      %v2105 = vmul.f32 %v2089, 0.1
      %v2106 = vmul.f32 %v2090, 0.1
      %v2107 = vmul.f32 %v2091, 0.1
      %v2108 = vmul.f32 %v2092, 0.1
      %v2109 = vmul.f32 %v2093, 0.1
      %v2110 = vsel %vm2094, %v2086, %v2102
      %v2111 = vsel %vm2095, %v2087, %v2103
      %v2112 = vsel %vm2096, %v2088, %v2104
      %v2113 = vsel %vm2097, %v2089, %v2105
      %v2114 = vsel %vm2098, %v2090, %v2106
      %v2115 = vsel %vm2099, %v2091, %v2107
      %v2116 = vsel %vm2100, %v2092, %v2108
      %v2117 = vsel %vm2101, %v2093, %v2109
      %v2126 = vrot.slane %v2110, 7
      %v2127 = vrot.slane %v2111, 7
      %v2128 = vsel %vm799, %v2126, %v2127
      %v2129 = vrot.slane %v2112, 7
      %v2130 = vsel %vm799, %v2127, %v2129
      %v2131 = vrot.slane %v2113, 7
      %v2132 = vsel %vm799, %v2129, %v2131
      %v2133 = vrot.slane %v2114, 7
      %v2134 = vsel %vm799, %v2131, %v2133
      %v2135 = vrot.slane %v2115, 7
      %v2136 = vsel %vm799, %v2133, %v2135
      %v2137 = vrot.slane %v2116, 7
      %v2138 = vsel %vm799, %v2135, %v2137
      %v2139 = vrot.slane %v2117, 7
      %v2140 = vsel %vm799, %v2137, %v2139
      %v2149 = vsel %vm799, 0.0, %v2126
      %v2150 = vrot.slane %v2110, 1
      %v2151 = vrot.slane %v2111, 1
      %v2152 = vsel %vm805, %v2150, %v2151
      %v2153 = vrot.slane %v2112, 1
      %v2154 = vsel %vm805, %v2151, %v2153
      %v2155 = vrot.slane %v2113, 1
      %v2156 = vsel %vm805, %v2153, %v2155
      %v2157 = vrot.slane %v2114, 1
      %v2158 = vsel %vm805, %v2155, %v2157
      %v2159 = vrot.slane %v2115, 1
      %v2160 = vsel %vm805, %v2157, %v2159
      %v2161 = vrot.slane %v2116, 1
      %v2162 = vsel %vm805, %v2159, %v2161
      %v2163 = vrot.slane %v2117, 1
      %v2164 = vsel %vm805, %v2161, %v2163
      %v2166 = vsel %vm805, %v2163, 0.0
      %2167 = vrot.lane.b32.xlu0 %v2110, 8
      %v2168 = vpop.permute.xlu0 %2167
      %2169 = vrot.lane.b32.xlu0 %v2111, 8
      %v2170 = vpop.permute.xlu0 %2169
      %2171 = vrot.lane.b32.xlu0 %v2112, 8
      %v2172 = vpop.permute.xlu0 %2171
      %2173 = vrot.lane.b32.xlu0 %v2113, 8
      %v2174 = vpop.permute.xlu0 %2173
      %2175 = vrot.lane.b32.xlu0 %v2114, 8
      %v2176 = vpop.permute.xlu0 %2175
      %2177 = vrot.lane.b32.xlu0 %v2115, 8
      %v2178 = vpop.permute.xlu0 %2177
      %2179 = vrot.lane.b32.xlu0 %v2116, 8
      %v2180 = vpop.permute.xlu0 %2179
      %2181 = vrot.lane.b32.xlu0 %v2117, 8
      %v2182 = vpop.permute.xlu0 %2181
      %2192 = vrot.lane.b32.xlu0 %v2152, 16
      %v2193 = vpop.permute.xlu0 %2192
      %2194 = vrot.lane.b32.xlu0 %v2154, 16
      %v2195 = vpop.permute.xlu0 %2194
      %2196 = vrot.lane.b32.xlu0 %v2156, 16
      %v2197 = vpop.permute.xlu0 %2196
      %2198 = vrot.lane.b32.xlu0 %v2158, 16
      %v2199 = vpop.permute.xlu0 %2198
      %2200 = vrot.lane.b32.xlu0 %v2160, 16
      %v2201 = vpop.permute.xlu0 %2200
      %2202 = vrot.lane.b32.xlu0 %v2162, 16
      %v2203 = vpop.permute.xlu0 %2202
      %2204 = vrot.lane.b32.xlu0 %v2164, 16
      %v2205 = vpop.permute.xlu0 %2204
      %2206 = vrot.lane.b32.xlu0 %v2166, 16
      %v2207 = vpop.permute.xlu0 %2206
      %vm2216 = vcmask 64512
      %v2217 = vsel %vm2216, %v2149, %v2168
      %v2218 = vsel %vm2216, %v2128, %v2170
      %v2219 = vsel %vm2216, %v2130, %v2172
      %v2220 = vsel %vm2216, %v2132, %v2174
      %v2221 = vsel %vm2216, %v2134, %v2176
      %v2222 = vsel %vm2216, %v2136, %v2178
      %v2223 = vsel %vm2216, %v2138, %v2180
      %v2224 = vsel %vm2216, %v2140, %v2182
      %v2225 = vsel %vm1378, %v2217, %v2193
      %v2226 = vsel %vm1378, %v2218, %v2195
      %v2227 = vsel %vm1378, %v2219, %v2197
      %v2228 = vsel %vm1378, %v2220, %v2199
      %v2229 = vsel %vm1378, %v2221, %v2201
      %v2230 = vsel %vm1378, %v2222, %v2203
      %v2231 = vsel %vm1378, %v2223, %v2205
      %v2232 = vsel %vm1378, %v2224, %v2207
      %v2233 = vpack.c.bf16 %v2226, %v2225
      %v2234 = vpack.c.bf16 %v2228, %v2227
      %v2235 = vpack.c.bf16 %v2230, %v2229
      %v2236 = vpack.c.bf16 %v2232, %v2231
      %v2238 = vperm.slane %v1608, 0
      %v2243 = vunpack.c.l.b16 %v1605
      %v2244 = vunpack.c.l.b16 %v1606
      %v2245 = vunpack.c.l.b16 %v1607
      %v2246 = vpack.c.b16 %v2244, %v2243
      %v2247 = vpack.c.b16 %v2245, %v2245
      %vm2249 = vcmask 195584
      %v2251 = vsel %vm2249, %v2233, 0
      %v2254 = vsel %vm2249, %v2234, 0
      %v2257 = vsel %vm2249, %v2235, 0
      %v2260 = vsel %vm2249, %v2236, 0
      %vm2262 = vcmask 1043456
      %v2264 = vsel %vm2262, %v2247, 0
      %2266 = vmatpush.bf16.msra.mxu0 0
      %2267 = vmatpush.bf16.msra.mxu0 0
      %2268 = vmatpush.bf16.msra.mxu0 0
      %2269 = vmatpush.bf16.msra.mxu0 0
      %2270 = vmatpush.bf16.msra.mxu0 0
      %2271 = vmatpush.bf16.msra.mxu0 0
      %2272 = vmatpush.bf16.msra.mxu0 %v2264
      %2273 = vmatpush.bf16.msra.mxu0 %v2246
      %2274 = vmatmul.bf16.gmra.mxu0 %v2251
      %v2275 = vpop.f32.mrf.mxu0
      %v2276 = vadd.f32 %v2238, %v2275
      %v2277 = vpop.f32.mrf.mxu0
      %v2278 = vadd.f32 %v2238, %v2277
      %2279 = vmatmul.bf16.gmra.mxu0 %v2254
      %v2280 = vpop.f32.mrf.mxu0
      %v2281 = vadd.f32 %v2238, %v2280
      %v2282 = vpop.f32.mrf.mxu0
      %v2283 = vadd.f32 %v2238, %v2282
      %2284 = vmatmul.bf16.gmra.mxu0 %v2257
      %v2285 = vpop.f32.mrf.mxu0
      %v2286 = vadd.f32 %v2238, %v2285
      %v2287 = vpop.f32.mrf.mxu0
      %v2288 = vadd.f32 %v2238, %v2287
      %2289 = vmatmul.bf16.gmra.mxu0 %v2260
      %v2290 = vpop.f32.mrf.mxu0
      %v2291 = vadd.f32 %v2238, %v2290
      %v2292 = vpop.f32.mrf.mxu0
      %v2293 = vadd.f32 %v2238, %v2292
      %2294 = vdwg.mxu0
      %v2295 = vrot.slane %v2110, 6
      %v2296 = vrot.slane %v2111, 6
      %v2297 = vsel %vm793, %v2295, %v2296
      %v2298 = vrot.slane %v2112, 6
      %v2299 = vsel %vm793, %v2296, %v2298
      %v2300 = vrot.slane %v2113, 6
      %v2301 = vsel %vm793, %v2298, %v2300
      %v2302 = vrot.slane %v2114, 6
      %v2303 = vsel %vm793, %v2300, %v2302
      %v2304 = vrot.slane %v2115, 6
      %v2305 = vsel %vm793, %v2302, %v2304
      %v2306 = vrot.slane %v2116, 6
      %v2307 = vsel %vm793, %v2304, %v2306
      %v2308 = vrot.slane %v2117, 6
      %v2309 = vsel %vm793, %v2306, %v2308
      %v2318 = vsel %vm793, 0.0, %v2295
      %v2319 = vrot.slane %v2110, 2
      %v2320 = vrot.slane %v2111, 2
      %v2321 = vsel %vm812, %v2319, %v2320
      %v2322 = vrot.slane %v2112, 2
      %v2323 = vsel %vm812, %v2320, %v2322
      %v2324 = vrot.slane %v2113, 2
      %v2325 = vsel %vm812, %v2322, %v2324
      %v2326 = vrot.slane %v2114, 2
      %v2327 = vsel %vm812, %v2324, %v2326
      %v2328 = vrot.slane %v2115, 2
      %v2329 = vsel %vm812, %v2326, %v2328
      %v2330 = vrot.slane %v2116, 2
      %v2331 = vsel %vm812, %v2328, %v2330
      %v2332 = vrot.slane %v2117, 2
      %v2333 = vsel %vm812, %v2330, %v2332
      %v2335 = vsel %vm812, %v2332, 0.0
      %2337 = vrot.lane.b32.xlu0 %v2149, 8
      %v2338 = vpop.permute.xlu0 %2337
      %2339 = vrot.lane.b32.xlu0 %v2128, 8
      %v2340 = vpop.permute.xlu0 %2339
      %2341 = vrot.lane.b32.xlu0 %v2130, 8
      %v2342 = vpop.permute.xlu0 %2341
      %2343 = vrot.lane.b32.xlu0 %v2132, 8
      %v2344 = vpop.permute.xlu0 %2343
      %2345 = vrot.lane.b32.xlu0 %v2134, 8
      %v2346 = vpop.permute.xlu0 %2345
      %2347 = vrot.lane.b32.xlu0 %v2136, 8
      %v2348 = vpop.permute.xlu0 %2347
      %2349 = vrot.lane.b32.xlu0 %v2138, 8
      %v2350 = vpop.permute.xlu0 %2349
      %2351 = vrot.lane.b32.xlu0 %v2140, 8
      %v2352 = vpop.permute.xlu0 %2351
      %2361 = vrot.lane.b32.xlu0 %v2110, 16
      %v2362 = vpop.permute.xlu0 %2361
      %2363 = vrot.lane.b32.xlu0 %v2111, 16
      %v2364 = vpop.permute.xlu0 %2363
      %2365 = vrot.lane.b32.xlu0 %v2112, 16
      %v2366 = vpop.permute.xlu0 %2365
      %2367 = vrot.lane.b32.xlu0 %v2113, 16
      %v2368 = vpop.permute.xlu0 %2367
      %2369 = vrot.lane.b32.xlu0 %v2114, 16
      %v2370 = vpop.permute.xlu0 %2369
      %2371 = vrot.lane.b32.xlu0 %v2115, 16
      %v2372 = vpop.permute.xlu0 %2371
      %2373 = vrot.lane.b32.xlu0 %v2116, 16
      %v2374 = vpop.permute.xlu0 %2373
      %2375 = vrot.lane.b32.xlu0 %v2117, 16
      %v2376 = vpop.permute.xlu0 %2375
      %2385 = vrot.lane.b32.xlu0 %v2152, 24
      %v2386 = vpop.permute.xlu0 %2385
      %2387 = vrot.lane.b32.xlu0 %v2154, 24
      %v2388 = vpop.permute.xlu0 %2387
      %2389 = vrot.lane.b32.xlu0 %v2156, 24
      %v2390 = vpop.permute.xlu0 %2389
      %2391 = vrot.lane.b32.xlu0 %v2158, 24
      %v2392 = vpop.permute.xlu0 %2391
      %2393 = vrot.lane.b32.xlu0 %v2160, 24
      %v2394 = vpop.permute.xlu0 %2393
      %2395 = vrot.lane.b32.xlu0 %v2162, 24
      %v2396 = vpop.permute.xlu0 %2395
      %2397 = vrot.lane.b32.xlu0 %v2164, 24
      %v2398 = vpop.permute.xlu0 %2397
      %2399 = vrot.lane.b32.xlu0 %v2166, 24
      %v2400 = vpop.permute.xlu0 %2399
      %2410 = vrot.lane.b32.xlu0 %v2321, 32
      %v2411 = vpop.permute.xlu0 %2410
      %2412 = vrot.lane.b32.xlu0 %v2323, 32
      %v2413 = vpop.permute.xlu0 %2412
      %2414 = vrot.lane.b32.xlu0 %v2325, 32
      %v2415 = vpop.permute.xlu0 %2414
      %2416 = vrot.lane.b32.xlu0 %v2327, 32
      %v2417 = vpop.permute.xlu0 %2416
      %2418 = vrot.lane.b32.xlu0 %v2329, 32
      %v2419 = vpop.permute.xlu0 %2418
      %2420 = vrot.lane.b32.xlu0 %v2331, 32
      %v2421 = vpop.permute.xlu0 %2420
      %2422 = vrot.lane.b32.xlu0 %v2333, 32
      %v2423 = vpop.permute.xlu0 %2422
      %2424 = vrot.lane.b32.xlu0 %v2335, 32
      %v2425 = vpop.permute.xlu0 %2424
      %v2434 = vsel %vm2216, %v2318, %v2338
      %v2435 = vsel %vm2216, %v2297, %v2340
      %v2436 = vsel %vm2216, %v2299, %v2342
      %v2437 = vsel %vm2216, %v2301, %v2344
      %v2438 = vsel %vm2216, %v2303, %v2346
      %v2439 = vsel %vm2216, %v2305, %v2348
      %v2440 = vsel %vm2216, %v2307, %v2350
      %v2441 = vsel %vm2216, %v2309, %v2352
      %v2442 = vsel %vm1378, %v2434, %v2362
      %v2443 = vsel %vm1378, %v2435, %v2364
      %v2444 = vsel %vm1378, %v2436, %v2366
      %v2445 = vsel %vm1378, %v2437, %v2368
      %v2446 = vsel %vm1378, %v2438, %v2370
      %v2447 = vsel %vm1378, %v2439, %v2372
      %v2448 = vsel %vm1378, %v2440, %v2374
      %v2449 = vsel %vm1378, %v2441, %v2376
      %v2450 = vsel %vm2249, %v2442, %v2386
      %v2451 = vsel %vm2249, %v2443, %v2388
      %v2452 = vsel %vm2249, %v2444, %v2390
      %v2453 = vsel %vm2249, %v2445, %v2392
      %v2454 = vsel %vm2249, %v2446, %v2394
      %v2455 = vsel %vm2249, %v2447, %v2396
      %v2456 = vsel %vm2249, %v2448, %v2398
      %v2457 = vsel %vm2249, %v2449, %v2400
      %v2458 = vsel %vm858, %v2450, %v2411
      %v2459 = vsel %vm858, %v2451, %v2413
      %v2460 = vsel %vm858, %v2452, %v2415
      %v2461 = vsel %vm858, %v2453, %v2417
      %v2462 = vsel %vm858, %v2454, %v2419
      %v2463 = vsel %vm858, %v2455, %v2421
      %v2464 = vsel %vm858, %v2456, %v2423
      %v2465 = vsel %vm858, %v2457, %v2425
      %v2466 = vpack.c.bf16 %v2459, %v2458
      %v2467 = vpack.c.bf16 %v2461, %v2460
      %v2468 = vpack.c.bf16 %v2463, %v2462
      %v2469 = vpack.c.bf16 %v2465, %v2464
      %v2471 = vperm.slane %v1614, 0
      %v2478 = vunpack.c.l.b16 %v1609
      %v2479 = vunpack.c.l.b16 %v1610
      %v2480 = vunpack.c.l.b16 %v1611
      %v2481 = vunpack.c.l.b16 %v1612
      %v2482 = vunpack.c.l.b16 %v1613
      %v2483 = vpack.c.b16 %v2479, %v2478
      %v2484 = vpack.c.b16 %v2481, %v2480
      %v2485 = vpack.c.b16 %v2482, %v2482
      %vm2488 = vcmask 326656
      %v2490 = vsel %vm2488, %v2466, 0
      %v2493 = vsel %vm2488, %v2467, 0
      %v2496 = vsel %vm2488, %v2468, 0
      %v2499 = vsel %vm2488, %v2469, 0
      %v2502 = vsel %vm2262, %v2485, 0
      %2504 = vmatpush.bf16.msra.mxu0 0
      %2505 = vmatpush.bf16.msra.mxu0 0
      %2506 = vmatpush.bf16.msra.mxu0 0
      %2507 = vmatpush.bf16.msra.mxu0 0
      %2508 = vmatpush.bf16.msra.mxu0 0
      %2509 = vmatpush.bf16.msra.mxu0 %v2502
      %2510 = vmatpush.bf16.msra.mxu0 %v2484
      %2511 = vmatpush.bf16.msra.mxu0 %v2483
      %2512 = vmatmul.bf16.gmra.mxu0 %v2490
      %v2513 = vpop.f32.mrf.mxu0
      %v2514 = vadd.f32 %v2471, %v2513
      %v2515 = vpop.f32.mrf.mxu0
      %v2516 = vadd.f32 %v2471, %v2515
      %2517 = vmatmul.bf16.gmra.mxu0 %v2493
      %v2518 = vpop.f32.mrf.mxu0
      %v2519 = vadd.f32 %v2471, %v2518
      %v2520 = vpop.f32.mrf.mxu0
      %v2521 = vadd.f32 %v2471, %v2520
      %2522 = vmatmul.bf16.gmra.mxu0 %v2496
      %v2523 = vpop.f32.mrf.mxu0
      %v2524 = vadd.f32 %v2471, %v2523
      %v2525 = vpop.f32.mrf.mxu0
      %v2526 = vadd.f32 %v2471, %v2525
      %2527 = vmatmul.bf16.gmra.mxu0 %v2499
      %v2528 = vpop.f32.mrf.mxu0
      %v2529 = vadd.f32 %v2471, %v2528
      %v2530 = vpop.f32.mrf.mxu0
      %v2531 = vadd.f32 %v2471, %v2530
      %2532 = vdwg.mxu0
      %v2533 = vadd.f32 %v2276, %v2514
      %v2534 = vadd.f32 %v2278, %v2516
      %v2535 = vadd.f32 %v2281, %v2519
      %v2536 = vadd.f32 %v2283, %v2521
      %v2537 = vadd.f32 %v2286, %v2524
      %v2538 = vadd.f32 %v2288, %v2526
      %v2539 = vadd.f32 %v2291, %v2529
      %v2540 = vadd.f32 %v2293, %v2531
      %v2541 = vmul.f32 %v2533, 0.5
      %v2542 = vmul.f32 %v2534, 0.5
      %v2543 = vmul.f32 %v2535, 0.5
      %v2544 = vmul.f32 %v2536, 0.5
      %v2545 = vmul.f32 %v2537, 0.5
      %v2546 = vmul.f32 %v2538, 0.5
      %v2547 = vmul.f32 %v2539, 0.5
      %v2548 = vmul.f32 %v2540, 0.5
      %v2549 = vadd.f32 %v2086, %v2541
      %v2550 = vadd.f32 %v2087, %v2542
      %v2551 = vadd.f32 %v2088, %v2543
      %v2552 = vadd.f32 %v2089, %v2544
      %v2553 = vadd.f32 %v2090, %v2545
      %v2554 = vadd.f32 %v2091, %v2546
      %v2555 = vadd.f32 %v2092, %v2547
      %v2556 = vadd.f32 %v2093, %v2548
      %vm2557 = vcmp.gt.f32.partialorder %v2549, 0.0
      %vm2558 = vcmp.gt.f32.partialorder %v2550, 0.0
      %vm2559 = vcmp.gt.f32.partialorder %v2551, 0.0
      %vm2560 = vcmp.gt.f32.partialorder %v2552, 0.0
      %vm2561 = vcmp.gt.f32.partialorder %v2553, 0.0
      %vm2562 = vcmp.gt.f32.partialorder %v2554, 0.0
      %vm2563 = vcmp.gt.f32.partialorder %v2555, 0.0
      %vm2564 = vcmp.gt.f32.partialorder %v2556, 0.0
      %v2565 = vmul.f32 %v2549, 0.1
      %v2566 = vmul.f32 %v2550, 0.1
      %v2567 = vmul.f32 %v2551, 0.1
      %v2568 = vmul.f32 %v2552, 0.1
      %v2569 = vmul.f32 %v2553, 0.1
      %v2570 = vmul.f32 %v2554, 0.1
      %v2571 = vmul.f32 %v2555, 0.1
      %v2572 = vmul.f32 %v2556, 0.1
      %v2573 = vsel %vm2557, %v2549, %v2565
      %v2574 = vsel %vm2558, %v2550, %v2566
      %v2575 = vsel %vm2559, %v2551, %v2567
      %v2576 = vsel %vm2560, %v2552, %v2568
      %v2577 = vsel %vm2561, %v2553, %v2569
      %v2578 = vsel %vm2562, %v2554, %v2570
      %v2579 = vsel %vm2563, %v2555, %v2571
      %v2580 = vsel %vm2564, %v2556, %v2572
      %v2581 = vld [vmem:[%s21] sm:$0xf]
      %v2582 = vld [vmem:[%s21 + $0x4] sm:$0xf]
      %v2583 = vld [vmem:[%s21 + $0x8] sm:$0xf]
      %v2584 = vld [vmem:[%s21 + $0xc] sm:$0xf]
      %v2585 = vld [vmem:[%s21 + $0x10] sm:$0xf]
      %v2586 = vld [vmem:[%s21 + $0x14] sm:$0xf]
      %v2587 = vld [vmem:[%s21 + $0x18] sm:$0xf]
      %v2596 = vrot.slane %v2573, 5
      %v2597 = vrot.slane %v2574, 5
      %v2598 = vsel %vm786, %v2596, %v2597
      %v2599 = vrot.slane %v2575, 5
      %v2600 = vsel %vm786, %v2597, %v2599
      %v2601 = vrot.slane %v2576, 5
      %v2602 = vsel %vm786, %v2599, %v2601
      %v2603 = vrot.slane %v2577, 5
      %v2604 = vsel %vm786, %v2601, %v2603
      %v2605 = vrot.slane %v2578, 5
      %v2606 = vsel %vm786, %v2603, %v2605
      %v2607 = vrot.slane %v2579, 5
      %v2608 = vsel %vm786, %v2605, %v2607
      %v2609 = vrot.slane %v2580, 5
      %v2610 = vsel %vm786, %v2607, %v2609
      %v2619 = vsel %vm786, 0.0, %v2596
      %v2620 = vrot.slane %v2573, 6
      %v2621 = vrot.slane %v2574, 6
      %v2622 = vsel %vm793, %v2620, %v2621
      %v2623 = vrot.slane %v2575, 6
      %v2624 = vsel %vm793, %v2621, %v2623
      %v2625 = vrot.slane %v2576, 6
      %v2626 = vsel %vm793, %v2623, %v2625
      %v2627 = vrot.slane %v2577, 6
      %v2628 = vsel %vm793, %v2625, %v2627
      %v2629 = vrot.slane %v2578, 6
      %v2630 = vsel %vm793, %v2627, %v2629
      %v2631 = vrot.slane %v2579, 6
      %v2632 = vsel %vm793, %v2629, %v2631
      %v2633 = vrot.slane %v2580, 6
      %v2634 = vsel %vm793, %v2631, %v2633
      %v2636 = vsel %vm793, 0.0, %v2620
      %v2637 = vrot.slane %v2573, 7
      %v2638 = vrot.slane %v2574, 7
      %v2639 = vsel %vm799, %v2637, %v2638
      %v2640 = vrot.slane %v2575, 7
      %v2641 = vsel %vm799, %v2638, %v2640
      %v2642 = vrot.slane %v2576, 7
      %v2643 = vsel %vm799, %v2640, %v2642
      %v2644 = vrot.slane %v2577, 7
      %v2645 = vsel %vm799, %v2642, %v2644
      %v2646 = vrot.slane %v2578, 7
      %v2647 = vsel %vm799, %v2644, %v2646
      %v2648 = vrot.slane %v2579, 7
      %v2649 = vsel %vm799, %v2646, %v2648
      %v2650 = vrot.slane %v2580, 7
      %v2651 = vsel %vm799, %v2648, %v2650
      %v2653 = vsel %vm799, 0.0, %v2637
      %v2654 = vrot.slane %v2573, 1
      %v2655 = vrot.slane %v2574, 1
      %v2656 = vsel %vm805, %v2654, %v2655
      %v2657 = vrot.slane %v2575, 1
      %v2658 = vsel %vm805, %v2655, %v2657
      %v2659 = vrot.slane %v2576, 1
      %v2660 = vsel %vm805, %v2657, %v2659
      %v2661 = vrot.slane %v2577, 1
      %v2662 = vsel %vm805, %v2659, %v2661
      %v2663 = vrot.slane %v2578, 1
      %v2664 = vsel %vm805, %v2661, %v2663
      %v2665 = vrot.slane %v2579, 1
      %v2666 = vsel %vm805, %v2663, %v2665
      %v2667 = vrot.slane %v2580, 1
      %v2668 = vsel %vm805, %v2665, %v2667
      %v2670 = vsel %vm805, %v2667, 0.0
      %v2671 = vrot.slane %v2573, 2
      %v2672 = vrot.slane %v2574, 2
      %v2673 = vsel %vm812, %v2671, %v2672
      %v2674 = vrot.slane %v2575, 2
      %v2675 = vsel %vm812, %v2672, %v2674
      %v2676 = vrot.slane %v2576, 2
      %v2677 = vsel %vm812, %v2674, %v2676
      %v2678 = vrot.slane %v2577, 2
      %v2679 = vsel %vm812, %v2676, %v2678
      %v2680 = vrot.slane %v2578, 2
      %v2681 = vsel %vm812, %v2678, %v2680
      %v2682 = vrot.slane %v2579, 2
      %v2683 = vsel %vm812, %v2680, %v2682
      %v2684 = vrot.slane %v2580, 2
      %v2685 = vsel %vm812, %v2682, %v2684
      %v2687 = vsel %vm812, %v2684, 0.0
      %v2688 = vrot.slane %v2573, 3
      %v2689 = vrot.slane %v2574, 3
      %v2690 = vsel %vm818, %v2688, %v2689
      %v2691 = vrot.slane %v2575, 3
      %v2692 = vsel %vm818, %v2689, %v2691
      %v2693 = vrot.slane %v2576, 3
      %v2694 = vsel %vm818, %v2691, %v2693
      %v2695 = vrot.slane %v2577, 3
      %v2696 = vsel %vm818, %v2693, %v2695
      %v2697 = vrot.slane %v2578, 3
      %v2698 = vsel %vm818, %v2695, %v2697
      %v2699 = vrot.slane %v2579, 3
      %v2700 = vsel %vm818, %v2697, %v2699
      %v2701 = vrot.slane %v2580, 3
      %v2702 = vsel %vm818, %v2699, %v2701
      %v2704 = vsel %vm818, %v2701, 0.0
      %2706 = vrot.lane.b32.xlu0 %v2636, 8
      %v2707 = vpop.permute.xlu0 %2706
      %2708 = vrot.lane.b32.xlu0 %v2622, 8
      %v2709 = vpop.permute.xlu0 %2708
      %2710 = vrot.lane.b32.xlu0 %v2624, 8
      %v2711 = vpop.permute.xlu0 %2710
      %2712 = vrot.lane.b32.xlu0 %v2626, 8
      %v2713 = vpop.permute.xlu0 %2712
      %2714 = vrot.lane.b32.xlu0 %v2628, 8
      %v2715 = vpop.permute.xlu0 %2714
      %2716 = vrot.lane.b32.xlu0 %v2630, 8
      %v2717 = vpop.permute.xlu0 %2716
      %2718 = vrot.lane.b32.xlu0 %v2632, 8
      %v2719 = vpop.permute.xlu0 %2718
      %2720 = vrot.lane.b32.xlu0 %v2634, 8
      %v2721 = vpop.permute.xlu0 %2720
      %2731 = vrot.lane.b32.xlu0 %v2653, 16
      %v2732 = vpop.permute.xlu0 %2731
      %2733 = vrot.lane.b32.xlu0 %v2639, 16
      %v2734 = vpop.permute.xlu0 %2733
      %2735 = vrot.lane.b32.xlu0 %v2641, 16
      %v2736 = vpop.permute.xlu0 %2735
      %2737 = vrot.lane.b32.xlu0 %v2643, 16
      %v2738 = vpop.permute.xlu0 %2737
      %2739 = vrot.lane.b32.xlu0 %v2645, 16
      %v2740 = vpop.permute.xlu0 %2739
      %2741 = vrot.lane.b32.xlu0 %v2647, 16
      %v2742 = vpop.permute.xlu0 %2741
      %2743 = vrot.lane.b32.xlu0 %v2649, 16
      %v2744 = vpop.permute.xlu0 %2743
      %2745 = vrot.lane.b32.xlu0 %v2651, 16
      %v2746 = vpop.permute.xlu0 %2745
      %2755 = vrot.lane.b32.xlu0 %v2573, 24
      %v2756 = vpop.permute.xlu0 %2755
      %2757 = vrot.lane.b32.xlu0 %v2574, 24
      %v2758 = vpop.permute.xlu0 %2757
      %2759 = vrot.lane.b32.xlu0 %v2575, 24
      %v2760 = vpop.permute.xlu0 %2759
      %2761 = vrot.lane.b32.xlu0 %v2576, 24
      %v2762 = vpop.permute.xlu0 %2761
      %2763 = vrot.lane.b32.xlu0 %v2577, 24
      %v2764 = vpop.permute.xlu0 %2763
      %2765 = vrot.lane.b32.xlu0 %v2578, 24
      %v2766 = vpop.permute.xlu0 %2765
      %2767 = vrot.lane.b32.xlu0 %v2579, 24
      %v2768 = vpop.permute.xlu0 %2767
      %2769 = vrot.lane.b32.xlu0 %v2580, 24
      %v2770 = vpop.permute.xlu0 %2769
      %2780 = vrot.lane.b32.xlu0 %v2656, 32
      %v2781 = vpop.permute.xlu0 %2780
      %2782 = vrot.lane.b32.xlu0 %v2658, 32
      %v2783 = vpop.permute.xlu0 %2782
      %2784 = vrot.lane.b32.xlu0 %v2660, 32
      %v2785 = vpop.permute.xlu0 %2784
      %2786 = vrot.lane.b32.xlu0 %v2662, 32
      %v2787 = vpop.permute.xlu0 %2786
      %2788 = vrot.lane.b32.xlu0 %v2664, 32
      %v2789 = vpop.permute.xlu0 %2788
      %2790 = vrot.lane.b32.xlu0 %v2666, 32
      %v2791 = vpop.permute.xlu0 %2790
      %2792 = vrot.lane.b32.xlu0 %v2668, 32
      %v2793 = vpop.permute.xlu0 %2792
      %2794 = vrot.lane.b32.xlu0 %v2670, 32
      %v2795 = vpop.permute.xlu0 %2794
      %2805 = vrot.lane.b32.xlu0 %v2673, 40
      %v2806 = vpop.permute.xlu0 %2805
      %2807 = vrot.lane.b32.xlu0 %v2675, 40
      %v2808 = vpop.permute.xlu0 %2807
      %2809 = vrot.lane.b32.xlu0 %v2677, 40
      %v2810 = vpop.permute.xlu0 %2809
      %2811 = vrot.lane.b32.xlu0 %v2679, 40
      %v2812 = vpop.permute.xlu0 %2811
      %2813 = vrot.lane.b32.xlu0 %v2681, 40
      %v2814 = vpop.permute.xlu0 %2813
      %2815 = vrot.lane.b32.xlu0 %v2683, 40
      %v2816 = vpop.permute.xlu0 %2815
      %2817 = vrot.lane.b32.xlu0 %v2685, 40
      %v2818 = vpop.permute.xlu0 %2817
      %2819 = vrot.lane.b32.xlu0 %v2687, 40
      %v2820 = vpop.permute.xlu0 %2819
      %2830 = vrot.lane.b32.xlu0 %v2690, 48
      %v2831 = vpop.permute.xlu0 %2830
      %2832 = vrot.lane.b32.xlu0 %v2692, 48
      %v2833 = vpop.permute.xlu0 %2832
      %2834 = vrot.lane.b32.xlu0 %v2694, 48
      %v2835 = vpop.permute.xlu0 %2834
      %2836 = vrot.lane.b32.xlu0 %v2696, 48
      %v2837 = vpop.permute.xlu0 %2836
      %2838 = vrot.lane.b32.xlu0 %v2698, 48
      %v2839 = vpop.permute.xlu0 %2838
      %2840 = vrot.lane.b32.xlu0 %v2700, 48
      %v2841 = vpop.permute.xlu0 %2840
      %2842 = vrot.lane.b32.xlu0 %v2702, 48
      %v2843 = vpop.permute.xlu0 %2842
      %2844 = vrot.lane.b32.xlu0 %v2704, 48
      %v2845 = vpop.permute.xlu0 %2844
      %v2854 = vsel %vm2216, %v2619, %v2707
      %v2855 = vsel %vm2216, %v2598, %v2709
      %v2856 = vsel %vm2216, %v2600, %v2711
      %v2857 = vsel %vm2216, %v2602, %v2713
      %v2858 = vsel %vm2216, %v2604, %v2715
      %v2859 = vsel %vm2216, %v2606, %v2717
      %v2860 = vsel %vm2216, %v2608, %v2719
      %v2861 = vsel %vm2216, %v2610, %v2721
      %v2862 = vsel %vm1378, %v2854, %v2732
      %v2863 = vsel %vm1378, %v2855, %v2734
      %v2864 = vsel %vm1378, %v2856, %v2736
      %v2865 = vsel %vm1378, %v2857, %v2738
      %v2866 = vsel %vm1378, %v2858, %v2740
      %v2867 = vsel %vm1378, %v2859, %v2742
      %v2868 = vsel %vm1378, %v2860, %v2744
      %v2869 = vsel %vm1378, %v2861, %v2746
      %v2870 = vsel %vm2249, %v2862, %v2756
      %v2871 = vsel %vm2249, %v2863, %v2758
      %v2872 = vsel %vm2249, %v2864, %v2760
      %v2873 = vsel %vm2249, %v2865, %v2762
      %v2874 = vsel %vm2249, %v2866, %v2764
      %v2875 = vsel %vm2249, %v2867, %v2766
      %v2876 = vsel %vm2249, %v2868, %v2768
      %v2877 = vsel %vm2249, %v2869, %v2770
      %v2878 = vsel %vm858, %v2870, %v2781
      %v2879 = vsel %vm858, %v2871, %v2783
      %v2880 = vsel %vm858, %v2872, %v2785
      %v2881 = vsel %vm858, %v2873, %v2787
      %v2882 = vsel %vm858, %v2874, %v2789
      %v2883 = vsel %vm858, %v2875, %v2791
      %v2884 = vsel %vm858, %v2876, %v2793
      %v2885 = vsel %vm858, %v2877, %v2795
      %v2886 = vsel %vm2488, %v2878, %v2806
      %v2887 = vsel %vm2488, %v2879, %v2808
      %v2888 = vsel %vm2488, %v2880, %v2810
      %v2889 = vsel %vm2488, %v2881, %v2812
      %v2890 = vsel %vm2488, %v2882, %v2814
      %v2891 = vsel %vm2488, %v2883, %v2816
      %v2892 = vsel %vm2488, %v2884, %v2818
      %v2893 = vsel %vm2488, %v2885, %v2820
      %v2894 = vsel %vm1410, %v2886, %v2831
      %v2895 = vsel %vm1410, %v2887, %v2833
      %v2896 = vsel %vm1410, %v2888, %v2835
      %v2897 = vsel %vm1410, %v2889, %v2837
      %v2898 = vsel %vm1410, %v2890, %v2839
      %v2899 = vsel %vm1410, %v2891, %v2841
      %v2900 = vsel %vm1410, %v2892, %v2843
      %v2901 = vsel %vm1410, %v2893, %v2845
      %v2902 = vpack.c.bf16 %v2895, %v2894
      %v2903 = vpack.c.bf16 %v2897, %v2896
      %v2904 = vpack.c.bf16 %v2899, %v2898
      %v2905 = vpack.c.bf16 %v2901, %v2900
      %v2906 = vld [vmem:[#allocation2] sm:$0x1]
      %v2908 = vperm.slane %v2906, 0
      %v2917 = vunpack.c.l.b16 %v2581
      %v2918 = vunpack.c.l.b16 %v2582
      %v2919 = vunpack.c.l.b16 %v2583
      %v2920 = vunpack.c.l.b16 %v2584
      %v2921 = vunpack.c.l.b16 %v2585
      %v2922 = vunpack.c.l.b16 %v2586
      %v2923 = vunpack.c.l.b16 %v2587
      %v2924 = vpack.c.b16 %v2918, %v2917
      %v2925 = vpack.c.b16 %v2920, %v2919
      %v2926 = vpack.c.b16 %v2922, %v2921
      %v2927 = vpack.c.b16 %v2923, %v2923
      %vm2931 = vcmask 457728
      %v2933 = vsel %vm2931, %v2902, 0
      %v2936 = vsel %vm2931, %v2903, 0
      %v2939 = vsel %vm2931, %v2904, 0
      %v2942 = vsel %vm2931, %v2905, 0
      %v2945 = vsel %vm2262, %v2927, 0
      %2947 = vmatpush.bf16.msra.mxu0 0
      %2948 = vmatpush.bf16.msra.mxu0 0
      %2949 = vmatpush.bf16.msra.mxu0 0
      %2950 = vmatpush.bf16.msra.mxu0 0
      %2951 = vmatpush.bf16.msra.mxu0 %v2945
      %2952 = vmatpush.bf16.msra.mxu0 %v2926
      %2953 = vmatpush.bf16.msra.mxu0 %v2925
      %2954 = vmatpush.bf16.msra.mxu0 %v2924
      %2955 = vmatmul.bf16.gmra.mxu0 %v2933
      %v2956 = vpop.f32.mrf.mxu0
      %v2957 = vadd.f32 %v2908, %v2956
      %v2958 = vpop.f32.mrf.mxu0
      %v2959 = vadd.f32 %v2908, %v2958
      %2960 = vmatmul.bf16.gmra.mxu0 %v2936
      %v2961 = vpop.f32.mrf.mxu0
      %v2962 = vadd.f32 %v2908, %v2961
      %v2963 = vpop.f32.mrf.mxu0
      %v2964 = vadd.f32 %v2908, %v2963
      %2965 = vmatmul.bf16.gmra.mxu0 %v2939
      %v2966 = vpop.f32.mrf.mxu0
      %v2967 = vadd.f32 %v2908, %v2966
      %v2968 = vpop.f32.mrf.mxu0
      %v2969 = vadd.f32 %v2908, %v2968
      %2970 = vmatmul.bf16.gmra.mxu0 %v2942
      %v2971 = vpop.f32.mrf.mxu0
      %v2972 = vadd.f32 %v2908, %v2971
      %v2973 = vpop.f32.mrf.mxu0
      %v2974 = vadd.f32 %v2908, %v2973
      %2975 = vdwg.mxu0
      %v2976 = vtanh.pop %v2957
      %v2977 = vtanh.pop %v2959
      %v2978 = vtanh.pop %v2962
      %v2979 = vtanh.pop %v2964
      %v2980 = vtanh.pop %v2967
      %v2981 = vtanh.pop %v2969
      %v2982 = vtanh.pop %v2972
      %v2983 = vtanh.pop %v2974
      %2984 = vst.msk [vmem:[%s752] sm:$0xff] %vm2028, %v2976
      %2985 = vst.msk [vmem:[%s752 + $0x8] sm:$0xff] %vm2028, %v2977
      %2986 = vst.msk [vmem:[%s752 + $0x10] sm:$0xff] %vm2028, %v2978
      %2987 = vst.msk [vmem:[%s752 + $0x18] sm:$0xff] %vm2028, %v2979
      %2988 = vst.msk [vmem:[%s752 + $0x20] sm:$0xff] %vm2028, %v2980
      %2989 = vst.msk [vmem:[%s752 + $0x28] sm:$0xff] %vm2028, %v2981
      %2990 = vst.msk [vmem:[%s752 + $0x30] sm:$0xff] %vm2028, %v2982
      %2991 = vst.msk [vmem:[%s752 + $0x38] sm:$0xff] %vm2028, %v2983
      %p2992 = scmp.lt.s32.totalorder %s36, 1
      %s2993 = scalar_select %p2992, %s36, 1
      %s2994 = smul.addr %s2993, 8
      %s2995 = smul.addr %s2994, 8
      %s2996 = scalar_lea.vmem %s23, %s2995
      // Predicated region
      $region113: #{forward.5} parent=111 // pred_check
        %p2997 = pneg %p552
      $region114: #{forward.5} parent=111 // pred_check_branch
        %2999 = sbr.rel (%p2997) target = $region116
      $region115: #{forward.5} parent=111 // pred_region
        _
      $region116: #{forward.5} parent=111 // pred_fallthru
        _
    $region112: #{forward.5} parent=5 // pred_fallthru
      _
    %p3000 = scmp.le.s32.totalorder 2, %s31
    // Predicated region
    $region117: #{forward.5} parent=5 // pred_check
      %p3001 = pneg %p3000
    $region118: #{forward.5} parent=5 // pred_check_branch
      %3003 = sbr.rel (%p3001) target = $region120
    $region119: #{forward.5} parent=5 // pred_region
      %s3004 = ssub.s32 %s31, 2
      // Predicated region
      $region121: #{forward.5} parent=119 // pred_check
        %p3005 = pneg %p558
      $region122: #{forward.5} parent=119 // pred_check_branch
        %3007 = sbr.rel (%p3005) target = $region124
      $region123: #{forward.5} parent=119 // pred_region
        %p3008 = scmp.lt.s32.totalorder %s37, 1
        %s3009 = scalar_select %p3008, %s37, 1
        %s3010 = smul.addr %s3009, 8
        %s3011 = smul.addr %s3010, 8
        %s3012 = scalar_lea.vmem %s23, %s3011
      $region124: #{forward.5} parent=119 // pred_fallthru
        _
    $region120: #{forward.5} parent=5 // pred_fallthru
      _
  $region6: #{forward.5} parent=0 // loop_footer
    %s35 = sadd.s32 1, %s31
  $region7: #{forward.5} parent=0 // loop_footer_branch
    %30 = sbr.rel target = $region3
  $region8: #{forward.5} parent=0 // loop_exit
    _

</llo_original>
